<compile_context>
chip_gen: v7x
topology: tpu7x:2x2x1
jax: 0.10.0
libtpu: 0.0.40
codegen_flags: <defaults>
</compile_context>

<pallas_src>
import jax
import jax.numpy as jnp
import numpy as np
from jax.experimental import pallas as pl
from jax.experimental.pallas import tpu as pltpu

C = 64               # hidden channels
HIDDEN = 128         # final_conv output channels
NUM_CLASSES = 6
LANES = 128          # lane-dense padded logits / parameter width
KERNELS = (3, 5, 7)  # MultiKernelBlock branch kernel sizes
MAX_K = 7
N_BLOCKS = 3
BN_EPS = 1e-5
TB = 8               # batch elements per grid step (full sublane tile)

STEM_PAGE = 0
SHIFT_COL = 8        # per-channel BN-folded shift lives in this column


def _mkb_page(blk, br):
    return 1 + blk * len(KERNELS) + br


def _wb_layout():
    """Static page map for the per-grid-step VMEM weight-broadcast slab."""
    pages, p = {}, 0
    pages["stem_shift"] = p; p += 1
    for blk in range(N_BLOCKS):
        for br, k in enumerate(KERNELS):
            pages[("shift", blk, br)] = p; p += 1
            for j in range(MAX_K):
                if abs(j - MAX_K // 2) <= k // 2:
                    pages[("tap", blk, br, j)] = p; p += 1
    return pages, p


WB_PAGES, N_WB_PAGES = _wb_layout()


# ============================================================================
# Fused kernel: one grid step == TB batch elements; activations stay on-chip.
# ============================================================================
def gavel_kernel(x_ref, pslab_ref, hw_ref, fw_ref, fb_ref, o_ref, wb_ref):
    tb, _, Lh = x_ref.shape
    Cc = hw_ref.shape[0]
    f32 = jnp.float32

    def elu(v):
        return jnp.where(v > 0, v, jnp.exp(jnp.minimum(v, 0.0)) - 1.0)

    # ---------- once per grid step: pre-broadcast BN-folded weights -----------
    # Edge masks depend only on the tap offset d (not on batch element / block),
    # so fold them straight into the broadcast weight pages: the inner loop then
    # needs no select at all, only roll + FMA on already-broadcast tiles.
    laneC = jax.lax.broadcasted_iota(jnp.int32, (Cc, Lh), 1)
    maskf = {d: ((laneC + d >= 0) & (laneC + d < Lh)).astype(f32)
             for d in range(-(MAX_K // 2), MAX_K // 2 + 1) if d != 0}

    wb_ref[WB_PAGES["stem_shift"]] = jnp.broadcast_to(
        pslab_ref[STEM_PAGE, :, SHIFT_COL:SHIFT_COL + 1], (Cc, Lh))
    for blk in range(N_BLOCKS):
        for br, k in enumerate(KERNELS):
            pg = _mkb_page(blk, br)
            wb_ref[WB_PAGES[("shift", blk, br)]] = jnp.broadcast_to(
                pslab_ref[pg, :, SHIFT_COL:SHIFT_COL + 1], (Cc, Lh))
            for j in range(MAX_K):
                d = j - MAX_K // 2
                if abs(d) <= k // 2:
                    wcol = jnp.broadcast_to(pslab_ref[pg, :, j:j + 1], (Cc, Lh))
                    wb_ref[WB_PAGES[("tap", blk, br, j)]] = (
                        wcol if d == 0 else wcol * maskf[d])

    lane2 = jax.lax.broadcasted_iota(jnp.int32, (2, Lh), 1)
    mask2 = {d: (lane2 + d >= 0) & (lane2 + d < Lh) for d in (-2, -1, 1)}
    sub_iota = jax.lax.broadcasted_iota(jnp.int32, (tb, HIDDEN), 0)

    # ---------------- per-element loop (rolled: flat vreg pressure) -----------
    def element(i, g_all):
        x2 = x_ref[i]                              # (2, Lh): even / odd samples

        def xshift(d):
            if d == 0:
                return x2
            return jnp.where(mask2[d], pltpu.roll(x2, (-d) % Lh, 1), 0.0)

        # Stem Conv1d(1->64, k=7, s=2, p=3) + BN + ELU: tap j reads x[2t+j-3];
        # stack the 8 (row, offset) combinations and contract K=8 on the MXU.
        stack8 = jnp.concatenate([xshift(-2), xshift(-1), x2, xshift(1)], axis=0)
        conv = jnp.dot(pslab_ref[STEM_PAGE, :, 0:8], stack8,
                       preferred_element_type=f32)                  # (C, Lh)
        h = elu(conv + wb_ref[WB_PAGES["stem_shift"]])

        # 3x MultiKernelBlock: depthwise k=3/5/7 + BN + ELU, branches summed.
        for blk in range(N_BLOCKS):
            convs = [wb_ref[WB_PAGES[("shift", blk, br)]]
                     for br in range(len(KERNELS))]
            for j in range(MAX_K):                 # one roll per offset, reused
                d = j - MAX_K // 2
                hs = h if d == 0 else pltpu.roll(h, (-d) % Lh, 1)
                for br, k in enumerate(KERNELS):
                    if abs(d) <= k // 2:           # masks pre-folded into weights
                        convs[br] = convs[br] + wb_ref[WB_PAGES[("tap", blk, br, j)]] * hs
            hn = elu(convs[0])
            for br in range(1, len(KERNELS)):
                hn = hn + elu(convs[br])
            h = hn

        # GAP commutes with the purely-linear final 1x1 conv: pool first.
        xm = jnp.mean(h, axis=1, keepdims=True)                     # (C, 1)
        g = jnp.sum(xm * hw_ref[...], axis=0, keepdims=True)        # (1, HIDDEN)
        return g_all + jnp.where(sub_iota == i, g, 0.0)             # place row i

    g_all = jax.lax.fori_loop(0, tb, element,
                              jnp.zeros((tb, HIDDEN), f32))

    # Batched head: one (TB,128)@(128,128) MXU matmul and one lane/sublane-dense
    # (TB, 128) store per grid step.  final_conv bias is folded into fb_ref.
    o_ref[...] = jnp.dot(g_all, fw_ref[...],
                         preferred_element_type=f32) + fb_ref[...]


def gavel_forward(x, kp, tb=TB):
    """x: (B, 1, L) float32 (PyTorch NCL). Returns (B, NUM_CLASSES) logits."""
    B, cin, L = x.shape
    assert cin == 1 and L % 2 == 0
    Lh = L // 2
    # De-interleave even/odd samples so the stride-2 stem conv becomes unit-stride
    # shifts in-kernel (no 7x im2col duplication through HBM).
    xd = x[:, 0, :].reshape(B, Lh, 2).transpose(0, 2, 1)             # (B, 2, Lh)
    Bp = tb * pl.cdiv(B, tb)
    if Bp != B:
        xd = jnp.pad(xd, ((0, Bp - B), (0, 0), (0, 0)))

    n_pages = 1 + N_BLOCKS * len(KERNELS)
    out = pl.pallas_call(
        gavel_kernel,
        out_shape=jax.ShapeDtypeStruct((Bp, LANES), jnp.float32),
        grid=(Bp // tb,),
        in_specs=[
            pl.BlockSpec((tb, 2, Lh), lambda b: (b, 0, 0)),          # input tile
            pl.BlockSpec((n_pages, C, LANES), lambda b: (0, 0, 0)),  # conv params
            pl.BlockSpec((C, HIDDEN), lambda b: (0, 0)),             # final_conv W^T
            pl.BlockSpec((HIDDEN, LANES), lambda b: (0, 0)),         # fc W^T (padded)
            pl.BlockSpec((1, LANES), lambda b: (0, 0)),              # fused bias
        ],
        out_specs=pl.BlockSpec((tb, LANES), lambda b: (b, 0)),
        scratch_shapes=[
            pltpu.VMEM((N_WB_PAGES, C, Lh), jnp.float32),            # weight slab
        ],
        compiler_params=pltpu.CompilerParams(
            dimension_semantics=("parallel",)),   # batch shards over v7x's 2 TCs
    )(xd, kp["pslab"], kp["head_w"], kp["fc_w"], kp["fc_b"])
    return out[:B, :NUM_CLASSES]


# ============================================================================
# Parameters: PyTorch-style uniform(+-1/sqrt(fan_in)) init; BatchNorm in eval
# mode with fresh running stats (mean=0, var=1, gamma=1, beta=0).
# ============================================================================
def init_params(key):
    keys = jax.random.split(key, 24)
    ki = iter(keys)

    def uni(shape, fan_in):
        b = 1.0 / float(np.sqrt(fan_in))
        return jax.random.uniform(next(ki), shape, jnp.float32, -b, b)

    def bn_default(n):
        return (jnp.ones((n,), jnp.float32), jnp.zeros((n,), jnp.float32),
                jnp.zeros((n,), jnp.float32), jnp.ones((n,), jnp.float32))

    raw = {"stem_w": uni((C, 1, 7), 7), "stem_b": uni((C,), 7),
           "stem_bn": bn_default(C), "mkb": []}
    for _ in range(N_BLOCKS):
        blk = []
        for k in KERNELS:
            blk.append({"w": uni((C, 1, k), k), "b": uni((C,), k),
                        "bn": bn_default(C), "k": k})
        raw["mkb"].append(blk)
    raw["final_w"] = uni((HIDDEN, C, 1), C)
    raw["final_b"] = uni((HIDDEN,), C)
    raw["fc_w"] = uni((NUM_CLASSES, HIDDEN), HIDDEN)
    raw["fc_b"] = uni((NUM_CLASSES,), HIDDEN)
    return raw


def pack_params(raw):
    """Fold eval-mode BN into conv weights (scale) / per-channel shifts and pack
    all per-channel conv parameters into one lane-padded (pages, C, 128) slab."""
    def fold(w2d, b, bn):
        g, beta, m, var = bn
        s = g / jnp.sqrt(var + BN_EPS)
        return w2d * s[:, None], beta + s * (b - m)

    kp = {}
    n_pages = 1 + N_BLOCKS * len(KERNELS)
    pslab = jnp.zeros((n_pages, C, LANES), jnp.float32)

    # Stem page: col 0 pairs with the unused x[2t-4] row of the stacked input
    # (zero weight), cols 1..7 = taps 0..6, col 8 = BN-folded shift.
    sw, ssh = fold(raw["stem_w"][:, 0, :], raw["stem_b"], raw["stem_bn"])
    pslab = pslab.at[STEM_PAGE, :, 1:1 + MAX_K].set(sw)
    pslab = pslab.at[STEM_PAGE, :, SHIFT_COL].set(ssh)

    # MKB pages: cols 0..6 = taps padded to 7, col 8 = shift.
    for blk in range(N_BLOCKS):
        for br, k in enumerate(KERNELS):
            brp = raw["mkb"][blk][br]
            wf, shf = fold(brp["w"][:, 0, :], brp["b"], brp["bn"])
            pad = (MAX_K - k) // 2
            w7 = jnp.pad(wf, ((0, 0), (pad, pad)))
            pg = _mkb_page(blk, br)
            pslab = pslab.at[pg, :, 0:MAX_K].set(w7)
            pslab = pslab.at[pg, :, SHIFT_COL].set(shf)
    kp["pslab"] = pslab

    kp["head_w"] = raw["final_w"][:, :, 0].T                      # (C, HIDDEN)
    fcw = jnp.zeros((HIDDEN, LANES), jnp.float32).at[:, :NUM_CLASSES].set(
        raw["fc_w"].T)                                            # (128, 128)
    fcb = jnp.zeros((1, LANES), jnp.float32).at[0, :NUM_CLASSES].set(raw["fc_b"])
    kp["fc_w"] = fcw
    # Fold final_conv bias through the fc: (g + hb) @ W + b = g @ W + (hb @ W + b)
    kp["fc_b"] = raw["final_b"].reshape(1, HIDDEN) @ fcw + fcb
    return kp


# ============================================================================
# Pure-JAX reference (mirrors the PyTorch module, eval-mode BN) for validation.
# ============================================================================
def reference_forward(x, raw):
    dn = ("NCH", "OIH", "NCH")
    hi = jax.lax.Precision.HIGHEST

    def bn(v, p):
        g, beta, m, var = p
        inv = (g / jnp.sqrt(var + BN_EPS))[None, :, None]
        return (v - m[None, :, None]) * inv + beta[None, :, None]

    def elu(v):
        return jnp.where(v > 0, v, jnp.expm1(v))

    y = jax.lax.conv_general_dilated(x, raw["stem_w"], (2,), [(3, 3)],
                                     dimension_numbers=dn, precision=hi)
    y = elu(bn(y + raw["stem_b"][None, :, None], raw["stem_bn"]))
    for blk in raw["mkb"]:
        acc = 0.0
        for br in blk:
            k = br["k"]
            z = jax.lax.conv_general_dilated(y, br["w"], (1,), [(k // 2, k // 2)],
                                             dimension_numbers=dn,
                                             feature_group_count=C, precision=hi)
            acc = acc + elu(bn(z + br["b"][None, :, None], br["bn"]))
        y = acc
    z = jax.lax.conv_general_dilated(y, raw["final_w"], (1,), [(0, 0)],
                                     dimension_numbers=dn, precision=hi)
    z = z + raw["final_b"][None, :, None]
    g = jnp.mean(z, axis=2)                                      # GAP -> (B, 128)
    return jnp.dot(g, raw["fc_w"].T, precision=hi) + raw["fc_b"][None, :]


if __name__ == "__main__":
    key = jax.random.PRNGKey(0)
    kparam, kx = jax.random.split(key)

    raw = init_params(kparam)
    kp = pack_params(raw)

    B, L = 16, 256        # Lh = 128 lane-aligned; grid = 2 steps of TB=8 elements
    x = jax.random.normal(kx, (B, 1, L), dtype=jnp.float32)

    logits = jax.jit(gavel_forward)(x, kp)
    jax.block_until_ready(logits)
    assert logits.shape == (B, NUM_CLASSES)

    ref = reference_forward(x, raw)
    np.testing.assert_allclose(np.asarray(logits), np.asarray(ref),
                               rtol=2e-3, atol=2e-3)
    print("KERNEL_OK")
</pallas_src>

<mosaic_0001>
module attributes {stable_mosaic.version = 11 : i64} {
  func.func @gavel_kernel(%arg0: i32, %arg1: memref<8x2x128xf32, #tpu.memory_space<vmem>>, %arg2: memref<10x64x128xf32, #tpu.memory_space<vmem>>, %arg3: memref<64x128xf32, #tpu.memory_space<vmem>>, %arg4: memref<128x128xf32, #tpu.memory_space<vmem>>, %arg5: memref<1x128xf32, #tpu.memory_space<vmem>>, %arg6: memref<8x128xf32, #tpu.memory_space<vmem>>, %arg7: memref<55x64x128xf32, #tpu.memory_space<vmem>>) attributes {dimension_semantics = [#tpu.dimension_semantics<parallel>], iteration_bounds = array<i64: 2>, scalar_prefetch = 0 : i64, scratch_operands = 1 : i64, tpu.core_type = #tpu.core_type<tc>, window_params = [{transform_indices = @transform_0, window_bounds = array<i64: 8, 2, 128>}, {pipeline_mode = #tpu.pipeline_mode<synchronous>, transform_indices = @transform_1, window_bounds = array<i64: 10, 64, 128>}, {pipeline_mode = #tpu.pipeline_mode<synchronous>, transform_indices = @transform_2, window_bounds = array<i64: 64, 128>}, {pipeline_mode = #tpu.pipeline_mode<synchronous>, transform_indices = @transform_3, window_bounds = array<i64: 128, 128>}, {pipeline_mode = #tpu.pipeline_mode<synchronous>, transform_indices = @transform_4, window_bounds = array<i64: 1, 128>}, {transform_indices = @transform_5, window_bounds = array<i64: 8, 128>}]} {
    %0 = tpu.iota {dimensions = array<i32: 1>} : vector<64x128xi32>
    %c-3_i32 = arith.constant -3 : i32
    %1 = vector.broadcast %c-3_i32 : i32 to vector<64x128xi32>
    %2 = arith.addi %0, %1 : vector<64x128xi32>
    %c0_i32 = arith.constant 0 : i32
    %3 = vector.broadcast %c0_i32 : i32 to vector<64x128xi32>
    %4 = arith.cmpi sge, %2, %3 : vector<64x128xi32>
    %c-3_i32_0 = arith.constant -3 : i32
    %5 = vector.broadcast %c-3_i32_0 : i32 to vector<64x128xi32>
    %6 = arith.addi %0, %5 : vector<64x128xi32>
    %c128_i32 = arith.constant 128 : i32
    %7 = vector.broadcast %c128_i32 : i32 to vector<64x128xi32>
    %8 = arith.cmpi slt, %6, %7 : vector<64x128xi32>
    %9 = arith.andi %4, %8 : vector<64x128xi1>
    %10 = arith.extui %9 : vector<64x128xi1> to vector<64x128xi32>
    %11 = arith.sitofp %10 : vector<64x128xi32> to vector<64x128xf32>
    %c-2_i32 = arith.constant -2 : i32
    %12 = vector.broadcast %c-2_i32 : i32 to vector<64x128xi32>
    %13 = arith.addi %0, %12 : vector<64x128xi32>
    %c0_i32_1 = arith.constant 0 : i32
    %14 = vector.broadcast %c0_i32_1 : i32 to vector<64x128xi32>
    %15 = arith.cmpi sge, %13, %14 : vector<64x128xi32>
    %c-2_i32_2 = arith.constant -2 : i32
    %16 = vector.broadcast %c-2_i32_2 : i32 to vector<64x128xi32>
    %17 = arith.addi %0, %16 : vector<64x128xi32>
    %c128_i32_3 = arith.constant 128 : i32
    %18 = vector.broadcast %c128_i32_3 : i32 to vector<64x128xi32>
    %19 = arith.cmpi slt, %17, %18 : vector<64x128xi32>
    %20 = arith.andi %15, %19 : vector<64x128xi1>
    %21 = arith.extui %20 : vector<64x128xi1> to vector<64x128xi32>
    %22 = arith.sitofp %21 : vector<64x128xi32> to vector<64x128xf32>
    %c-1_i32 = arith.constant -1 : i32
    %23 = vector.broadcast %c-1_i32 : i32 to vector<64x128xi32>
    %24 = arith.addi %0, %23 : vector<64x128xi32>
    %c0_i32_4 = arith.constant 0 : i32
    %25 = vector.broadcast %c0_i32_4 : i32 to vector<64x128xi32>
    %26 = arith.cmpi sge, %24, %25 : vector<64x128xi32>
    %c-1_i32_5 = arith.constant -1 : i32
    %27 = vector.broadcast %c-1_i32_5 : i32 to vector<64x128xi32>
    %28 = arith.addi %0, %27 : vector<64x128xi32>
    %c128_i32_6 = arith.constant 128 : i32
    %29 = vector.broadcast %c128_i32_6 : i32 to vector<64x128xi32>
    %30 = arith.cmpi slt, %28, %29 : vector<64x128xi32>
    %31 = arith.andi %26, %30 : vector<64x128xi1>
    %32 = arith.extui %31 : vector<64x128xi1> to vector<64x128xi32>
    %33 = arith.sitofp %32 : vector<64x128xi32> to vector<64x128xf32>
    %c1_i32 = arith.constant 1 : i32
    %34 = vector.broadcast %c1_i32 : i32 to vector<64x128xi32>
    %35 = arith.addi %0, %34 : vector<64x128xi32>
    %c0_i32_7 = arith.constant 0 : i32
    %36 = vector.broadcast %c0_i32_7 : i32 to vector<64x128xi32>
    %37 = arith.cmpi sge, %35, %36 : vector<64x128xi32>
    %c1_i32_8 = arith.constant 1 : i32
    %38 = vector.broadcast %c1_i32_8 : i32 to vector<64x128xi32>
    %39 = arith.addi %0, %38 : vector<64x128xi32>
    %c128_i32_9 = arith.constant 128 : i32
    %40 = vector.broadcast %c128_i32_9 : i32 to vector<64x128xi32>
    %41 = arith.cmpi slt, %39, %40 : vector<64x128xi32>
    %42 = arith.andi %37, %41 : vector<64x128xi1>
    %43 = arith.extui %42 : vector<64x128xi1> to vector<64x128xi32>
    %44 = arith.sitofp %43 : vector<64x128xi32> to vector<64x128xf32>
    %c2_i32 = arith.constant 2 : i32
    %45 = vector.broadcast %c2_i32 : i32 to vector<64x128xi32>
    %46 = arith.addi %0, %45 : vector<64x128xi32>
    %c0_i32_10 = arith.constant 0 : i32
    %47 = vector.broadcast %c0_i32_10 : i32 to vector<64x128xi32>
    %48 = arith.cmpi sge, %46, %47 : vector<64x128xi32>
    %c2_i32_11 = arith.constant 2 : i32
    %49 = vector.broadcast %c2_i32_11 : i32 to vector<64x128xi32>
    %50 = arith.addi %0, %49 : vector<64x128xi32>
    %c128_i32_12 = arith.constant 128 : i32
    %51 = vector.broadcast %c128_i32_12 : i32 to vector<64x128xi32>
    %52 = arith.cmpi slt, %50, %51 : vector<64x128xi32>
    %53 = arith.andi %48, %52 : vector<64x128xi1>
    %54 = arith.extui %53 : vector<64x128xi1> to vector<64x128xi32>
    %55 = arith.sitofp %54 : vector<64x128xi32> to vector<64x128xf32>
    %c3_i32 = arith.constant 3 : i32
    %56 = vector.broadcast %c3_i32 : i32 to vector<64x128xi32>
    %57 = arith.addi %0, %56 : vector<64x128xi32>
    %c0_i32_13 = arith.constant 0 : i32
    %58 = vector.broadcast %c0_i32_13 : i32 to vector<64x128xi32>
    %59 = arith.cmpi sge, %57, %58 : vector<64x128xi32>
    %c3_i32_14 = arith.constant 3 : i32
    %60 = vector.broadcast %c3_i32_14 : i32 to vector<64x128xi32>
    %61 = arith.addi %0, %60 : vector<64x128xi32>
    %c128_i32_15 = arith.constant 128 : i32
    %62 = vector.broadcast %c128_i32_15 : i32 to vector<64x128xi32>
    %63 = arith.cmpi slt, %61, %62 : vector<64x128xi32>
    %64 = arith.andi %59, %63 : vector<64x128xi1>
    %65 = arith.extui %64 : vector<64x128xi1> to vector<64x128xi32>
    %66 = arith.sitofp %65 : vector<64x128xi32> to vector<64x128xf32>
    %c0 = arith.constant 0 : index
    %c0_16 = arith.constant 0 : index
    %c8 = arith.constant 8 : index
    %67 = vector.load %arg2[%c0, %c0_16, %c8] : memref<10x64x128xf32, #tpu.memory_space<vmem>>, vector<1x64x1xf32>
    %68 = vector.shape_cast %67 : vector<1x64x1xf32> to vector<64x1xf32>
    %69 = vector.shape_cast %68 : vector<64x1xf32> to vector<64x1xf32>
    %70 = vector.broadcast %69 : vector<64x1xf32> to vector<64x128xf32>
    %c0_17 = arith.constant 0 : index
    %c0_18 = arith.constant 0 : index
    %c0_19 = arith.constant 0 : index
    %71 = vector.load %arg7[%c0_17, %c0_18, %c0_19] : memref<55x64x128xf32, #tpu.memory_space<vmem>>, vector<1x64x128xf32>
    %72 = vector.shape_cast %71 : vector<1x64x128xf32> to vector<64x128xf32>
    %73 = vector.shape_cast %70 : vector<64x128xf32> to vector<1x64x128xf32>
    tpu.vector_store %arg7[%c0_17, %c0_18, %c0_19], %73 {strides = array<i32>} : memref<55x64x128xf32, #tpu.memory_space<vmem>>, vector<1x64x128xf32>,
    %c1 = arith.constant 1 : index
    %c0_20 = arith.constant 0 : index
    %c8_21 = arith.constant 8 : index
    %74 = vector.load %arg2[%c1, %c0_20, %c8_21] : memref<10x64x128xf32, #tpu.memory_space<vmem>>, vector<1x64x1xf32>
    %75 = vector.shape_cast %74 : vector<1x64x1xf32> to vector<64x1xf32>
    %76 = vector.shape_cast %75 : vector<64x1xf32> to vector<64x1xf32>
    %77 = vector.broadcast %76 : vector<64x1xf32> to vector<64x128xf32>
    %c1_22 = arith.constant 1 : index
    %c0_23 = arith.constant 0 : index
    %c0_24 = arith.constant 0 : index
    %78 = vector.load %arg7[%c1_22, %c0_23, %c0_24] : memref<55x64x128xf32, #tpu.memory_space<vmem>>, vector<1x64x128xf32>
    %79 = vector.shape_cast %78 : vector<1x64x128xf32> to vector<64x128xf32>
    %80 = vector.shape_cast %77 : vector<64x128xf32> to vector<1x64x128xf32>
    tpu.vector_store %arg7[%c1_22, %c0_23, %c0_24], %80 {strides = array<i32>} : memref<55x64x128xf32, #tpu.memory_space<vmem>>, vector<1x64x128xf32>,
    %c1_25 = arith.constant 1 : index
    %c0_26 = arith.constant 0 : index
    %c2 = arith.constant 2 : index
    %81 = vector.load %arg2[%c1_25, %c0_26, %c2] : memref<10x64x128xf32, #tpu.memory_space<vmem>>, vector<1x64x1xf32>
    %82 = vector.shape_cast %81 : vector<1x64x1xf32> to vector<64x1xf32>
    %83 = vector.shape_cast %82 : vector<64x1xf32> to vector<64x1xf32>
    %84 = vector.broadcast %83 : vector<64x1xf32> to vector<64x128xf32>
    %85 = arith.mulf %84, %33 : vector<64x128xf32>
    %c2_27 = arith.constant 2 : index
    %c0_28 = arith.constant 0 : index
    %c0_29 = arith.constant 0 : index
    %86 = vector.load %arg7[%c2_27, %c0_28, %c0_29] : memref<55x64x128xf32, #tpu.memory_space<vmem>>, vector<1x64x128xf32>
    %87 = vector.shape_cast %86 : vector<1x64x128xf32> to vector<64x128xf32>
    %88 = vector.shape_cast %85 : vector<64x128xf32> to vector<1x64x128xf32>
    tpu.vector_store %arg7[%c2_27, %c0_28, %c0_29], %88 {strides = array<i32>} : memref<55x64x128xf32, #tpu.memory_space<vmem>>, vector<1x64x128xf32>,
    %c1_30 = arith.constant 1 : index
    %c0_31 = arith.constant 0 : index
    %c3 = arith.constant 3 : index
    %89 = vector.load %arg2[%c1_30, %c0_31, %c3] : memref<10x64x128xf32, #tpu.memory_space<vmem>>, vector<1x64x1xf32>
    %90 = vector.shape_cast %89 : vector<1x64x1xf32> to vector<64x1xf32>
    %91 = vector.shape_cast %90 : vector<64x1xf32> to vector<64x1xf32>
    %92 = vector.broadcast %91 : vector<64x1xf32> to vector<64x128xf32>
    %c3_32 = arith.constant 3 : index
    %c0_33 = arith.constant 0 : index
    %c0_34 = arith.constant 0 : index
    %93 = vector.load %arg7[%c3_32, %c0_33, %c0_34] : memref<55x64x128xf32, #tpu.memory_space<vmem>>, vector<1x64x128xf32>
    %94 = vector.shape_cast %93 : vector<1x64x128xf32> to vector<64x128xf32>
    %95 = vector.shape_cast %92 : vector<64x128xf32> to vector<1x64x128xf32>
    tpu.vector_store %arg7[%c3_32, %c0_33, %c0_34], %95 {strides = array<i32>} : memref<55x64x128xf32, #tpu.memory_space<vmem>>, vector<1x64x128xf32>,
    %c1_35 = arith.constant 1 : index
    %c0_36 = arith.constant 0 : index
    %c4 = arith.constant 4 : index
    %96 = vector.load %arg2[%c1_35, %c0_36, %c4] : memref<10x64x128xf32, #tpu.memory_space<vmem>>, vector<1x64x1xf32>
    %97 = vector.shape_cast %96 : vector<1x64x1xf32> to vector<64x1xf32>
    %98 = vector.shape_cast %97 : vector<64x1xf32> to vector<64x1xf32>
    %99 = vector.broadcast %98 : vector<64x1xf32> to vector<64x128xf32>
    %100 = arith.mulf %99, %44 : vector<64x128xf32>
    %c4_37 = arith.constant 4 : index
    %c0_38 = arith.constant 0 : index
    %c0_39 = arith.constant 0 : index
    %101 = vector.load %arg7[%c4_37, %c0_38, %c0_39] : memref<55x64x128xf32, #tpu.memory_space<vmem>>, vector<1x64x128xf32>
    %102 = vector.shape_cast %101 : vector<1x64x128xf32> to vector<64x128xf32>
    %103 = vector.shape_cast %100 : vector<64x128xf32> to vector<1x64x128xf32>
    tpu.vector_store %arg7[%c4_37, %c0_38, %c0_39], %103 {strides = array<i32>} : memref<55x64x128xf32, #tpu.memory_space<vmem>>, vector<1x64x128xf32>,
    %c2_40 = arith.constant 2 : index
    %c0_41 = arith.constant 0 : index
    %c8_42 = arith.constant 8 : index
    %104 = vector.load %arg2[%c2_40, %c0_41, %c8_42] : memref<10x64x128xf32, #tpu.memory_space<vmem>>, vector<1x64x1xf32>
    %105 = vector.shape_cast %104 : vector<1x64x1xf32> to vector<64x1xf32>
    %106 = vector.shape_cast %105 : vector<64x1xf32> to vector<64x1xf32>
    %107 = vector.broadcast %106 : vector<64x1xf32> to vector<64x128xf32>
    %c5 = arith.constant 5 : index
    %c0_43 = arith.constant 0 : index
    %c0_44 = arith.constant 0 : index
    %108 = vector.load %arg7[%c5, %c0_43, %c0_44] : memref<55x64x128xf32, #tpu.memory_space<vmem>>, vector<1x64x128xf32>
    %109 = vector.shape_cast %108 : vector<1x64x128xf32> to vector<64x128xf32>
    %110 = vector.shape_cast %107 : vector<64x128xf32> to vector<1x64x128xf32>
    tpu.vector_store %arg7[%c5, %c0_43, %c0_44], %110 {strides = array<i32>} : memref<55x64x128xf32, #tpu.memory_space<vmem>>, vector<1x64x128xf32>,
    %c2_45 = arith.constant 2 : index
    %c0_46 = arith.constant 0 : index
    %c1_47 = arith.constant 1 : index
    %111 = vector.load %arg2[%c2_45, %c0_46, %c1_47] : memref<10x64x128xf32, #tpu.memory_space<vmem>>, vector<1x64x1xf32>
    %112 = vector.shape_cast %111 : vector<1x64x1xf32> to vector<64x1xf32>
    %113 = vector.shape_cast %112 : vector<64x1xf32> to vector<64x1xf32>
    %114 = vector.broadcast %113 : vector<64x1xf32> to vector<64x128xf32>
    %115 = arith.mulf %114, %22 : vector<64x128xf32>
    %c6 = arith.constant 6 : index
    %c0_48 = arith.constant 0 : index
    %c0_49 = arith.constant 0 : index
    %116 = vector.load %arg7[%c6, %c0_48, %c0_49] : memref<55x64x128xf32, #tpu.memory_space<vmem>>, vector<1x64x128xf32>
    %117 = vector.shape_cast %116 : vector<1x64x128xf32> to vector<64x128xf32>
    %118 = vector.shape_cast %115 : vector<64x128xf32> to vector<1x64x128xf32>
    tpu.vector_store %arg7[%c6, %c0_48, %c0_49], %118 {strides = array<i32>} : memref<55x64x128xf32, #tpu.memory_space<vmem>>, vector<1x64x128xf32>,
    %c2_50 = arith.constant 2 : index
    %c0_51 = arith.constant 0 : index
    %c2_52 = arith.constant 2 : index
    %119 = vector.load %arg2[%c2_50, %c0_51, %c2_52] : memref<10x64x128xf32, #tpu.memory_space<vmem>>, vector<1x64x1xf32>
    %120 = vector.shape_cast %119 : vector<1x64x1xf32> to vector<64x1xf32>
    %121 = vector.shape_cast %120 : vector<64x1xf32> to vector<64x1xf32>
    %122 = vector.broadcast %121 : vector<64x1xf32> to vector<64x128xf32>
    %123 = arith.mulf %122, %33 : vector<64x128xf32>
    %c7 = arith.constant 7 : index
    %c0_53 = arith.constant 0 : index
    %c0_54 = arith.constant 0 : index
    %124 = vector.load %arg7[%c7, %c0_53, %c0_54] : memref<55x64x128xf32, #tpu.memory_space<vmem>>, vector<1x64x128xf32>
    %125 = vector.shape_cast %124 : vector<1x64x128xf32> to vector<64x128xf32>
    %126 = vector.shape_cast %123 : vector<64x128xf32> to vector<1x64x128xf32>
    tpu.vector_store %arg7[%c7, %c0_53, %c0_54], %126 {strides = array<i32>} : memref<55x64x128xf32, #tpu.memory_space<vmem>>, vector<1x64x128xf32>,
    %c2_55 = arith.constant 2 : index
    %c0_56 = arith.constant 0 : index
    %c3_57 = arith.constant 3 : index
    %127 = vector.load %arg2[%c2_55, %c0_56, %c3_57] : memref<10x64x128xf32, #tpu.memory_space<vmem>>, vector<1x64x1xf32>
    %128 = vector.shape_cast %127 : vector<1x64x1xf32> to vector<64x1xf32>
    %129 = vector.shape_cast %128 : vector<64x1xf32> to vector<64x1xf32>
    %130 = vector.broadcast %129 : vector<64x1xf32> to vector<64x128xf32>
    %c8_58 = arith.constant 8 : index
    %c0_59 = arith.constant 0 : index
    %c0_60 = arith.constant 0 : index
    %131 = vector.load %arg7[%c8_58, %c0_59, %c0_60] : memref<55x64x128xf32, #tpu.memory_space<vmem>>, vector<1x64x128xf32>
    %132 = vector.shape_cast %131 : vector<1x64x128xf32> to vector<64x128xf32>
    %133 = vector.shape_cast %130 : vector<64x128xf32> to vector<1x64x128xf32>
    tpu.vector_store %arg7[%c8_58, %c0_59, %c0_60], %133 {strides = array<i32>} : memref<55x64x128xf32, #tpu.memory_space<vmem>>, vector<1x64x128xf32>,
    %c2_61 = arith.constant 2 : index
    %c0_62 = arith.constant 0 : index
    %c4_63 = arith.constant 4 : index
    %134 = vector.load %arg2[%c2_61, %c0_62, %c4_63] : memref<10x64x128xf32, #tpu.memory_space<vmem>>, vector<1x64x1xf32>
    %135 = vector.shape_cast %134 : vector<1x64x1xf32> to vector<64x1xf32>
    %136 = vector.shape_cast %135 : vector<64x1xf32> to vector<64x1xf32>
    %137 = vector.broadcast %136 : vector<64x1xf32> to vector<64x128xf32>
    %138 = arith.mulf %137, %44 : vector<64x128xf32>
    %c9 = arith.constant 9 : index
    %c0_64 = arith.constant 0 : index
    %c0_65 = arith.constant 0 : index
    %139 = vector.load %arg7[%c9, %c0_64, %c0_65] : memref<55x64x128xf32, #tpu.memory_space<vmem>>, vector<1x64x128xf32>
    %140 = vector.shape_cast %139 : vector<1x64x128xf32> to vector<64x128xf32>
    %141 = vector.shape_cast %138 : vector<64x128xf32> to vector<1x64x128xf32>
    tpu.vector_store %arg7[%c9, %c0_64, %c0_65], %141 {strides = array<i32>} : memref<55x64x128xf32, #tpu.memory_space<vmem>>, vector<1x64x128xf32>,
    %c2_66 = arith.constant 2 : index
    %c0_67 = arith.constant 0 : index
    %c5_68 = arith.constant 5 : index
    %142 = vector.load %arg2[%c2_66, %c0_67, %c5_68] : memref<10x64x128xf32, #tpu.memory_space<vmem>>, vector<1x64x1xf32>
    %143 = vector.shape_cast %142 : vector<1x64x1xf32> to vector<64x1xf32>
    %144 = vector.shape_cast %143 : vector<64x1xf32> to vector<64x1xf32>
    %145 = vector.broadcast %144 : vector<64x1xf32> to vector<64x128xf32>
    %146 = arith.mulf %145, %55 : vector<64x128xf32>
    %c10 = arith.constant 10 : index
    %c0_69 = arith.constant 0 : index
    %c0_70 = arith.constant 0 : index
    %147 = vector.load %arg7[%c10, %c0_69, %c0_70] : memref<55x64x128xf32, #tpu.memory_space<vmem>>, vector<1x64x128xf32>
    %148 = vector.shape_cast %147 : vector<1x64x128xf32> to vector<64x128xf32>
    %149 = vector.shape_cast %146 : vector<64x128xf32> to vector<1x64x128xf32>
    tpu.vector_store %arg7[%c10, %c0_69, %c0_70], %149 {strides = array<i32>} : memref<55x64x128xf32, #tpu.memory_space<vmem>>, vector<1x64x128xf32>,
    %c3_71 = arith.constant 3 : index
    %c0_72 = arith.constant 0 : index
    %c8_73 = arith.constant 8 : index
    %150 = vector.load %arg2[%c3_71, %c0_72, %c8_73] : memref<10x64x128xf32, #tpu.memory_space<vmem>>, vector<1x64x1xf32>
    %151 = vector.shape_cast %150 : vector<1x64x1xf32> to vector<64x1xf32>
    %152 = vector.shape_cast %151 : vector<64x1xf32> to vector<64x1xf32>
    %153 = vector.broadcast %152 : vector<64x1xf32> to vector<64x128xf32>
    %c11 = arith.constant 11 : index
    %c0_74 = arith.constant 0 : index
    %c0_75 = arith.constant 0 : index
    %154 = vector.load %arg7[%c11, %c0_74, %c0_75] : memref<55x64x128xf32, #tpu.memory_space<vmem>>, vector<1x64x128xf32>
    %155 = vector.shape_cast %154 : vector<1x64x128xf32> to vector<64x128xf32>
    %156 = vector.shape_cast %153 : vector<64x128xf32> to vector<1x64x128xf32>
    tpu.vector_store %arg7[%c11, %c0_74, %c0_75], %156 {strides = array<i32>} : memref<55x64x128xf32, #tpu.memory_space<vmem>>, vector<1x64x128xf32>,
    %c3_76 = arith.constant 3 : index
    %c0_77 = arith.constant 0 : index
    %c0_78 = arith.constant 0 : index
    %157 = vector.load %arg2[%c3_76, %c0_77, %c0_78] : memref<10x64x128xf32, #tpu.memory_space<vmem>>, vector<1x64x1xf32>
    %158 = vector.shape_cast %157 : vector<1x64x1xf32> to vector<64x1xf32>
    %159 = vector.shape_cast %158 : vector<64x1xf32> to vector<64x1xf32>
    %160 = vector.broadcast %159 : vector<64x1xf32> to vector<64x128xf32>
    %161 = arith.mulf %160, %11 : vector<64x128xf32>
    %c12 = arith.constant 12 : index
    %c0_79 = arith.constant 0 : index
    %c0_80 = arith.constant 0 : index
    %162 = vector.load %arg7[%c12, %c0_79, %c0_80] : memref<55x64x128xf32, #tpu.memory_space<vmem>>, vector<1x64x128xf32>
    %163 = vector.shape_cast %162 : vector<1x64x128xf32> to vector<64x128xf32>
    %164 = vector.shape_cast %161 : vector<64x128xf32> to vector<1x64x128xf32>
    tpu.vector_store %arg7[%c12, %c0_79, %c0_80], %164 {strides = array<i32>} : memref<55x64x128xf32, #tpu.memory_space<vmem>>, vector<1x64x128xf32>,
    %c3_81 = arith.constant 3 : index
    %c0_82 = arith.constant 0 : index
    %c1_83 = arith.constant 1 : index
    %165 = vector.load %arg2[%c3_81, %c0_82, %c1_83] : memref<10x64x128xf32, #tpu.memory_space<vmem>>, vector<1x64x1xf32>
    %166 = vector.shape_cast %165 : vector<1x64x1xf32> to vector<64x1xf32>
    %167 = vector.shape_cast %166 : vector<64x1xf32> to vector<64x1xf32>
    %168 = vector.broadcast %167 : vector<64x1xf32> to vector<64x128xf32>
    %169 = arith.mulf %168, %22 : vector<64x128xf32>
    %c13 = arith.constant 13 : index
    %c0_84 = arith.constant 0 : index
    %c0_85 = arith.constant 0 : index
    %170 = vector.load %arg7[%c13, %c0_84, %c0_85] : memref<55x64x128xf32, #tpu.memory_space<vmem>>, vector<1x64x128xf32>
    %171 = vector.shape_cast %170 : vector<1x64x128xf32> to vector<64x128xf32>
    %172 = vector.shape_cast %169 : vector<64x128xf32> to vector<1x64x128xf32>
    tpu.vector_store %arg7[%c13, %c0_84, %c0_85], %172 {strides = array<i32>} : memref<55x64x128xf32, #tpu.memory_space<vmem>>, vector<1x64x128xf32>,
    %c3_86 = arith.constant 3 : index
    %c0_87 = arith.constant 0 : index
    %c2_88 = arith.constant 2 : index
    %173 = vector.load %arg2[%c3_86, %c0_87, %c2_88] : memref<10x64x128xf32, #tpu.memory_space<vmem>>, vector<1x64x1xf32>
    %174 = vector.shape_cast %173 : vector<1x64x1xf32> to vector<64x1xf32>
    %175 = vector.shape_cast %174 : vector<64x1xf32> to vector<64x1xf32>
    %176 = vector.broadcast %175 : vector<64x1xf32> to vector<64x128xf32>
    %177 = arith.mulf %176, %33 : vector<64x128xf32>
    %c14 = arith.constant 14 : index
    %c0_89 = arith.constant 0 : index
    %c0_90 = arith.constant 0 : index
    %178 = vector.load %arg7[%c14, %c0_89, %c0_90] : memref<55x64x128xf32, #tpu.memory_space<vmem>>, vector<1x64x128xf32>
    %179 = vector.shape_cast %178 : vector<1x64x128xf32> to vector<64x128xf32>
    %180 = vector.shape_cast %177 : vector<64x128xf32> to vector<1x64x128xf32>
    tpu.vector_store %arg7[%c14, %c0_89, %c0_90], %180 {strides = array<i32>} : memref<55x64x128xf32, #tpu.memory_space<vmem>>, vector<1x64x128xf32>,
    %c3_91 = arith.constant 3 : index
    %c0_92 = arith.constant 0 : index
    %c3_93 = arith.constant 3 : index
    %181 = vector.load %arg2[%c3_91, %c0_92, %c3_93] : memref<10x64x128xf32, #tpu.memory_space<vmem>>, vector<1x64x1xf32>
    %182 = vector.shape_cast %181 : vector<1x64x1xf32> to vector<64x1xf32>
    %183 = vector.shape_cast %182 : vector<64x1xf32> to vector<64x1xf32>
    %184 = vector.broadcast %183 : vector<64x1xf32> to vector<64x128xf32>
    %c15 = arith.constant 15 : index
    %c0_94 = arith.constant 0 : index
    %c0_95 = arith.constant 0 : index
    %185 = vector.load %arg7[%c15, %c0_94, %c0_95] : memref<55x64x128xf32, #tpu.memory_space<vmem>>, vector<1x64x128xf32>
    %186 = vector.shape_cast %185 : vector<1x64x128xf32> to vector<64x128xf32>
    %187 = vector.shape_cast %184 : vector<64x128xf32> to vector<1x64x128xf32>
    tpu.vector_store %arg7[%c15, %c0_94, %c0_95], %187 {strides = array<i32>} : memref<55x64x128xf32, #tpu.memory_space<vmem>>, vector<1x64x128xf32>,
    %c3_96 = arith.constant 3 : index
    %c0_97 = arith.constant 0 : index
    %c4_98 = arith.constant 4 : index
    %188 = vector.load %arg2[%c3_96, %c0_97, %c4_98] : memref<10x64x128xf32, #tpu.memory_space<vmem>>, vector<1x64x1xf32>
    %189 = vector.shape_cast %188 : vector<1x64x1xf32> to vector<64x1xf32>
    %190 = vector.shape_cast %189 : vector<64x1xf32> to vector<64x1xf32>
    %191 = vector.broadcast %190 : vector<64x1xf32> to vector<64x128xf32>
    %192 = arith.mulf %191, %44 : vector<64x128xf32>
    %c16 = arith.constant 16 : index
    %c0_99 = arith.constant 0 : index
    %c0_100 = arith.constant 0 : index
    %193 = vector.load %arg7[%c16, %c0_99, %c0_100] : memref<55x64x128xf32, #tpu.memory_space<vmem>>, vector<1x64x128xf32>
    %194 = vector.shape_cast %193 : vector<1x64x128xf32> to vector<64x128xf32>
    %195 = vector.shape_cast %192 : vector<64x128xf32> to vector<1x64x128xf32>
    tpu.vector_store %arg7[%c16, %c0_99, %c0_100], %195 {strides = array<i32>} : memref<55x64x128xf32, #tpu.memory_space<vmem>>, vector<1x64x128xf32>,
    %c3_101 = arith.constant 3 : index
    %c0_102 = arith.constant 0 : index
    %c5_103 = arith.constant 5 : index
    %196 = vector.load %arg2[%c3_101, %c0_102, %c5_103] : memref<10x64x128xf32, #tpu.memory_space<vmem>>, vector<1x64x1xf32>
    %197 = vector.shape_cast %196 : vector<1x64x1xf32> to vector<64x1xf32>
    %198 = vector.shape_cast %197 : vector<64x1xf32> to vector<64x1xf32>
    %199 = vector.broadcast %198 : vector<64x1xf32> to vector<64x128xf32>
    %200 = arith.mulf %199, %55 : vector<64x128xf32>
    %c17 = arith.constant 17 : index
    %c0_104 = arith.constant 0 : index
    %c0_105 = arith.constant 0 : index
    %201 = vector.load %arg7[%c17, %c0_104, %c0_105] : memref<55x64x128xf32, #tpu.memory_space<vmem>>, vector<1x64x128xf32>
    %202 = vector.shape_cast %201 : vector<1x64x128xf32> to vector<64x128xf32>
    %203 = vector.shape_cast %200 : vector<64x128xf32> to vector<1x64x128xf32>
    tpu.vector_store %arg7[%c17, %c0_104, %c0_105], %203 {strides = array<i32>} : memref<55x64x128xf32, #tpu.memory_space<vmem>>, vector<1x64x128xf32>,
    %c3_106 = arith.constant 3 : index
    %c0_107 = arith.constant 0 : index
    %c6_108 = arith.constant 6 : index
    %204 = vector.load %arg2[%c3_106, %c0_107, %c6_108] : memref<10x64x128xf32, #tpu.memory_space<vmem>>, vector<1x64x1xf32>
    %205 = vector.shape_cast %204 : vector<1x64x1xf32> to vector<64x1xf32>
    %206 = vector.shape_cast %205 : vector<64x1xf32> to vector<64x1xf32>
    %207 = vector.broadcast %206 : vector<64x1xf32> to vector<64x128xf32>
    %208 = arith.mulf %207, %66 : vector<64x128xf32>
    %c18 = arith.constant 18 : index
    %c0_109 = arith.constant 0 : index
    %c0_110 = arith.constant 0 : index
    %209 = vector.load %arg7[%c18, %c0_109, %c0_110] : memref<55x64x128xf32, #tpu.memory_space<vmem>>, vector<1x64x128xf32>
    %210 = vector.shape_cast %209 : vector<1x64x128xf32> to vector<64x128xf32>
    %211 = vector.shape_cast %208 : vector<64x128xf32> to vector<1x64x128xf32>
    tpu.vector_store %arg7[%c18, %c0_109, %c0_110], %211 {strides = array<i32>} : memref<55x64x128xf32, #tpu.memory_space<vmem>>, vector<1x64x128xf32>,
    %c4_111 = arith.constant 4 : index
    %c0_112 = arith.constant 0 : index
    %c8_113 = arith.constant 8 : index
    %212 = vector.load %arg2[%c4_111, %c0_112, %c8_113] : memref<10x64x128xf32, #tpu.memory_space<vmem>>, vector<1x64x1xf32>
    %213 = vector.shape_cast %212 : vector<1x64x1xf32> to vector<64x1xf32>
    %214 = vector.shape_cast %213 : vector<64x1xf32> to vector<64x1xf32>
    %215 = vector.broadcast %214 : vector<64x1xf32> to vector<64x128xf32>
    %c19 = arith.constant 19 : index
    %c0_114 = arith.constant 0 : index
    %c0_115 = arith.constant 0 : index
    %216 = vector.load %arg7[%c19, %c0_114, %c0_115] : memref<55x64x128xf32, #tpu.memory_space<vmem>>, vector<1x64x128xf32>
    %217 = vector.shape_cast %216 : vector<1x64x128xf32> to vector<64x128xf32>
    %218 = vector.shape_cast %215 : vector<64x128xf32> to vector<1x64x128xf32>
    tpu.vector_store %arg7[%c19, %c0_114, %c0_115], %218 {strides = array<i32>} : memref<55x64x128xf32, #tpu.memory_space<vmem>>, vector<1x64x128xf32>,
    %c4_116 = arith.constant 4 : index
    %c0_117 = arith.constant 0 : index
    %c2_118 = arith.constant 2 : index
    %219 = vector.load %arg2[%c4_116, %c0_117, %c2_118] : memref<10x64x128xf32, #tpu.memory_space<vmem>>, vector<1x64x1xf32>
    %220 = vector.shape_cast %219 : vector<1x64x1xf32> to vector<64x1xf32>
    %221 = vector.shape_cast %220 : vector<64x1xf32> to vector<64x1xf32>
    %222 = vector.broadcast %221 : vector<64x1xf32> to vector<64x128xf32>
    %223 = arith.mulf %222, %33 : vector<64x128xf32>
    %c20 = arith.constant 20 : index
    %c0_119 = arith.constant 0 : index
    %c0_120 = arith.constant 0 : index
    %224 = vector.load %arg7[%c20, %c0_119, %c0_120] : memref<55x64x128xf32, #tpu.memory_space<vmem>>, vector<1x64x128xf32>
    %225 = vector.shape_cast %224 : vector<1x64x128xf32> to vector<64x128xf32>
    %226 = vector.shape_cast %223 : vector<64x128xf32> to vector<1x64x128xf32>
    tpu.vector_store %arg7[%c20, %c0_119, %c0_120], %226 {strides = array<i32>} : memref<55x64x128xf32, #tpu.memory_space<vmem>>, vector<1x64x128xf32>,
    %c4_121 = arith.constant 4 : index
    %c0_122 = arith.constant 0 : index
    %c3_123 = arith.constant 3 : index
    %227 = vector.load %arg2[%c4_121, %c0_122, %c3_123] : memref<10x64x128xf32, #tpu.memory_space<vmem>>, vector<1x64x1xf32>
    %228 = vector.shape_cast %227 : vector<1x64x1xf32> to vector<64x1xf32>
    %229 = vector.shape_cast %228 : vector<64x1xf32> to vector<64x1xf32>
    %230 = vector.broadcast %229 : vector<64x1xf32> to vector<64x128xf32>
    %c21 = arith.constant 21 : index
    %c0_124 = arith.constant 0 : index
    %c0_125 = arith.constant 0 : index
    %231 = vector.load %arg7[%c21, %c0_124, %c0_125] : memref<55x64x128xf32, #tpu.memory_space<vmem>>, vector<1x64x128xf32>
    %232 = vector.shape_cast %231 : vector<1x64x128xf32> to vector<64x128xf32>
    %233 = vector.shape_cast %230 : vector<64x128xf32> to vector<1x64x128xf32>
    tpu.vector_store %arg7[%c21, %c0_124, %c0_125], %233 {strides = array<i32>} : memref<55x64x128xf32, #tpu.memory_space<vmem>>, vector<1x64x128xf32>,
    %c4_126 = arith.constant 4 : index
    %c0_127 = arith.constant 0 : index
    %c4_128 = arith.constant 4 : index
    %234 = vector.load %arg2[%c4_126, %c0_127, %c4_128] : memref<10x64x128xf32, #tpu.memory_space<vmem>>, vector<1x64x1xf32>
    %235 = vector.shape_cast %234 : vector<1x64x1xf32> to vector<64x1xf32>
    %236 = vector.shape_cast %235 : vector<64x1xf32> to vector<64x1xf32>
    %237 = vector.broadcast %236 : vector<64x1xf32> to vector<64x128xf32>
    %238 = arith.mulf %237, %44 : vector<64x128xf32>
    %c22 = arith.constant 22 : index
    %c0_129 = arith.constant 0 : index
    %c0_130 = arith.constant 0 : index
    %239 = vector.load %arg7[%c22, %c0_129, %c0_130] : memref<55x64x128xf32, #tpu.memory_space<vmem>>, vector<1x64x128xf32>
    %240 = vector.shape_cast %239 : vector<1x64x128xf32> to vector<64x128xf32>
    %241 = vector.shape_cast %238 : vector<64x128xf32> to vector<1x64x128xf32>
    tpu.vector_store %arg7[%c22, %c0_129, %c0_130], %241 {strides = array<i32>} : memref<55x64x128xf32, #tpu.memory_space<vmem>>, vector<1x64x128xf32>,
    %c5_131 = arith.constant 5 : index
    %c0_132 = arith.constant 0 : index
    %c8_133 = arith.constant 8 : index
    %242 = vector.load %arg2[%c5_131, %c0_132, %c8_133] : memref<10x64x128xf32, #tpu.memory_space<vmem>>, vector<1x64x1xf32>
    %243 = vector.shape_cast %242 : vector<1x64x1xf32> to vector<64x1xf32>
    %244 = vector.shape_cast %243 : vector<64x1xf32> to vector<64x1xf32>
    %245 = vector.broadcast %244 : vector<64x1xf32> to vector<64x128xf32>
    %c23 = arith.constant 23 : index
    %c0_134 = arith.constant 0 : index
    %c0_135 = arith.constant 0 : index
    %246 = vector.load %arg7[%c23, %c0_134, %c0_135] : memref<55x64x128xf32, #tpu.memory_space<vmem>>, vector<1x64x128xf32>
    %247 = vector.shape_cast %246 : vector<1x64x128xf32> to vector<64x128xf32>
    %248 = vector.shape_cast %245 : vector<64x128xf32> to vector<1x64x128xf32>
    tpu.vector_store %arg7[%c23, %c0_134, %c0_135], %248 {strides = array<i32>} : memref<55x64x128xf32, #tpu.memory_space<vmem>>, vector<1x64x128xf32>,
    %c5_136 = arith.constant 5 : index
    %c0_137 = arith.constant 0 : index
    %c1_138 = arith.constant 1 : index
    %249 = vector.load %arg2[%c5_136, %c0_137, %c1_138] : memref<10x64x128xf32, #tpu.memory_space<vmem>>, vector<1x64x1xf32>
    %250 = vector.shape_cast %249 : vector<1x64x1xf32> to vector<64x1xf32>
    %251 = vector.shape_cast %250 : vector<64x1xf32> to vector<64x1xf32>
    %252 = vector.broadcast %251 : vector<64x1xf32> to vector<64x128xf32>
    %253 = arith.mulf %252, %22 : vector<64x128xf32>
    %c24 = arith.constant 24 : index
    %c0_139 = arith.constant 0 : index
    %c0_140 = arith.constant 0 : index
    %254 = vector.load %arg7[%c24, %c0_139, %c0_140] : memref<55x64x128xf32, #tpu.memory_space<vmem>>, vector<1x64x128xf32>
    %255 = vector.shape_cast %254 : vector<1x64x128xf32> to vector<64x128xf32>
    %256 = vector.shape_cast %253 : vector<64x128xf32> to vector<1x64x128xf32>
    tpu.vector_store %arg7[%c24, %c0_139, %c0_140], %256 {strides = array<i32>} : memref<55x64x128xf32, #tpu.memory_space<vmem>>, vector<1x64x128xf32>,
    %c5_141 = arith.constant 5 : index
    %c0_142 = arith.constant 0 : index
    %c2_143 = arith.constant 2 : index
    %257 = vector.load %arg2[%c5_141, %c0_142, %c2_143] : memref<10x64x128xf32, #tpu.memory_space<vmem>>, vector<1x64x1xf32>
    %258 = vector.shape_cast %257 : vector<1x64x1xf32> to vector<64x1xf32>
    %259 = vector.shape_cast %258 : vector<64x1xf32> to vector<64x1xf32>
    %260 = vector.broadcast %259 : vector<64x1xf32> to vector<64x128xf32>
    %261 = arith.mulf %260, %33 : vector<64x128xf32>
    %c25 = arith.constant 25 : index
    %c0_144 = arith.constant 0 : index
    %c0_145 = arith.constant 0 : index
    %262 = vector.load %arg7[%c25, %c0_144, %c0_145] : memref<55x64x128xf32, #tpu.memory_space<vmem>>, vector<1x64x128xf32>
    %263 = vector.shape_cast %262 : vector<1x64x128xf32> to vector<64x128xf32>
    %264 = vector.shape_cast %261 : vector<64x128xf32> to vector<1x64x128xf32>
    tpu.vector_store %arg7[%c25, %c0_144, %c0_145], %264 {strides = array<i32>} : memref<55x64x128xf32, #tpu.memory_space<vmem>>, vector<1x64x128xf32>,
    %c5_146 = arith.constant 5 : index
    %c0_147 = arith.constant 0 : index
    %c3_148 = arith.constant 3 : index
    %265 = vector.load %arg2[%c5_146, %c0_147, %c3_148] : memref<10x64x128xf32, #tpu.memory_space<vmem>>, vector<1x64x1xf32>
    %266 = vector.shape_cast %265 : vector<1x64x1xf32> to vector<64x1xf32>
    %267 = vector.shape_cast %266 : vector<64x1xf32> to vector<64x1xf32>
    %268 = vector.broadcast %267 : vector<64x1xf32> to vector<64x128xf32>
    %c26 = arith.constant 26 : index
    %c0_149 = arith.constant 0 : index
    %c0_150 = arith.constant 0 : index
    %269 = vector.load %arg7[%c26, %c0_149, %c0_150] : memref<55x64x128xf32, #tpu.memory_space<vmem>>, vector<1x64x128xf32>
    %270 = vector.shape_cast %269 : vector<1x64x128xf32> to vector<64x128xf32>
    %271 = vector.shape_cast %268 : vector<64x128xf32> to vector<1x64x128xf32>
    tpu.vector_store %arg7[%c26, %c0_149, %c0_150], %271 {strides = array<i32>} : memref<55x64x128xf32, #tpu.memory_space<vmem>>, vector<1x64x128xf32>,
    %c5_151 = arith.constant 5 : index
    %c0_152 = arith.constant 0 : index
    %c4_153 = arith.constant 4 : index
    %272 = vector.load %arg2[%c5_151, %c0_152, %c4_153] : memref<10x64x128xf32, #tpu.memory_space<vmem>>, vector<1x64x1xf32>
    %273 = vector.shape_cast %272 : vector<1x64x1xf32> to vector<64x1xf32>
    %274 = vector.shape_cast %273 : vector<64x1xf32> to vector<64x1xf32>
    %275 = vector.broadcast %274 : vector<64x1xf32> to vector<64x128xf32>
    %276 = arith.mulf %275, %44 : vector<64x128xf32>
    %c27 = arith.constant 27 : index
    %c0_154 = arith.constant 0 : index
    %c0_155 = arith.constant 0 : index
    %277 = vector.load %arg7[%c27, %c0_154, %c0_155] : memref<55x64x128xf32, #tpu.memory_space<vmem>>, vector<1x64x128xf32>
    %278 = vector.shape_cast %277 : vector<1x64x128xf32> to vector<64x128xf32>
    %279 = vector.shape_cast %276 : vector<64x128xf32> to vector<1x64x128xf32>
    tpu.vector_store %arg7[%c27, %c0_154, %c0_155], %279 {strides = array<i32>} : memref<55x64x128xf32, #tpu.memory_space<vmem>>, vector<1x64x128xf32>,
    %c5_156 = arith.constant 5 : index
    %c0_157 = arith.constant 0 : index
    %c5_158 = arith.constant 5 : index
    %280 = vector.load %arg2[%c5_156, %c0_157, %c5_158] : memref<10x64x128xf32, #tpu.memory_space<vmem>>, vector<1x64x1xf32>
    %281 = vector.shape_cast %280 : vector<1x64x1xf32> to vector<64x1xf32>
    %282 = vector.shape_cast %281 : vector<64x1xf32> to vector<64x1xf32>
    %283 = vector.broadcast %282 : vector<64x1xf32> to vector<64x128xf32>
    %284 = arith.mulf %283, %55 : vector<64x128xf32>
    %c28 = arith.constant 28 : index
    %c0_159 = arith.constant 0 : index
    %c0_160 = arith.constant 0 : index
    %285 = vector.load %arg7[%c28, %c0_159, %c0_160] : memref<55x64x128xf32, #tpu.memory_space<vmem>>, vector<1x64x128xf32>
    %286 = vector.shape_cast %285 : vector<1x64x128xf32> to vector<64x128xf32>
    %287 = vector.shape_cast %284 : vector<64x128xf32> to vector<1x64x128xf32>
    tpu.vector_store %arg7[%c28, %c0_159, %c0_160], %287 {strides = array<i32>} : memref<55x64x128xf32, #tpu.memory_space<vmem>>, vector<1x64x128xf32>,
    %c6_161 = arith.constant 6 : index
    %c0_162 = arith.constant 0 : index
    %c8_163 = arith.constant 8 : index
    %288 = vector.load %arg2[%c6_161, %c0_162, %c8_163] : memref<10x64x128xf32, #tpu.memory_space<vmem>>, vector<1x64x1xf32>
    %289 = vector.shape_cast %288 : vector<1x64x1xf32> to vector<64x1xf32>
    %290 = vector.shape_cast %289 : vector<64x1xf32> to vector<64x1xf32>
    %291 = vector.broadcast %290 : vector<64x1xf32> to vector<64x128xf32>
    %c29 = arith.constant 29 : index
    %c0_164 = arith.constant 0 : index
    %c0_165 = arith.constant 0 : index
    %292 = vector.load %arg7[%c29, %c0_164, %c0_165] : memref<55x64x128xf32, #tpu.memory_space<vmem>>, vector<1x64x128xf32>
    %293 = vector.shape_cast %292 : vector<1x64x128xf32> to vector<64x128xf32>
    %294 = vector.shape_cast %291 : vector<64x128xf32> to vector<1x64x128xf32>
    tpu.vector_store %arg7[%c29, %c0_164, %c0_165], %294 {strides = array<i32>} : memref<55x64x128xf32, #tpu.memory_space<vmem>>, vector<1x64x128xf32>,
    %c6_166 = arith.constant 6 : index
    %c0_167 = arith.constant 0 : index
    %c0_168 = arith.constant 0 : index
    %295 = vector.load %arg2[%c6_166, %c0_167, %c0_168] : memref<10x64x128xf32, #tpu.memory_space<vmem>>, vector<1x64x1xf32>
    %296 = vector.shape_cast %295 : vector<1x64x1xf32> to vector<64x1xf32>
    %297 = vector.shape_cast %296 : vector<64x1xf32> to vector<64x1xf32>
    %298 = vector.broadcast %297 : vector<64x1xf32> to vector<64x128xf32>
    %299 = arith.mulf %298, %11 : vector<64x128xf32>
    %c30 = arith.constant 30 : index
    %c0_169 = arith.constant 0 : index
    %c0_170 = arith.constant 0 : index
    %300 = vector.load %arg7[%c30, %c0_169, %c0_170] : memref<55x64x128xf32, #tpu.memory_space<vmem>>, vector<1x64x128xf32>
    %301 = vector.shape_cast %300 : vector<1x64x128xf32> to vector<64x128xf32>
    %302 = vector.shape_cast %299 : vector<64x128xf32> to vector<1x64x128xf32>
    tpu.vector_store %arg7[%c30, %c0_169, %c0_170], %302 {strides = array<i32>} : memref<55x64x128xf32, #tpu.memory_space<vmem>>, vector<1x64x128xf32>,
    %c6_171 = arith.constant 6 : index
    %c0_172 = arith.constant 0 : index
    %c1_173 = arith.constant 1 : index
    %303 = vector.load %arg2[%c6_171, %c0_172, %c1_173] : memref<10x64x128xf32, #tpu.memory_space<vmem>>, vector<1x64x1xf32>
    %304 = vector.shape_cast %303 : vector<1x64x1xf32> to vector<64x1xf32>
    %305 = vector.shape_cast %304 : vector<64x1xf32> to vector<64x1xf32>
    %306 = vector.broadcast %305 : vector<64x1xf32> to vector<64x128xf32>
    %307 = arith.mulf %306, %22 : vector<64x128xf32>
    %c31 = arith.constant 31 : index
    %c0_174 = arith.constant 0 : index
    %c0_175 = arith.constant 0 : index
    %308 = vector.load %arg7[%c31, %c0_174, %c0_175] : memref<55x64x128xf32, #tpu.memory_space<vmem>>, vector<1x64x128xf32>
    %309 = vector.shape_cast %308 : vector<1x64x128xf32> to vector<64x128xf32>
    %310 = vector.shape_cast %307 : vector<64x128xf32> to vector<1x64x128xf32>
    tpu.vector_store %arg7[%c31, %c0_174, %c0_175], %310 {strides = array<i32>} : memref<55x64x128xf32, #tpu.memory_space<vmem>>, vector<1x64x128xf32>,
    %c6_176 = arith.constant 6 : index
    %c0_177 = arith.constant 0 : index
    %c2_178 = arith.constant 2 : index
    %311 = vector.load %arg2[%c6_176, %c0_177, %c2_178] : memref<10x64x128xf32, #tpu.memory_space<vmem>>, vector<1x64x1xf32>
    %312 = vector.shape_cast %311 : vector<1x64x1xf32> to vector<64x1xf32>
    %313 = vector.shape_cast %312 : vector<64x1xf32> to vector<64x1xf32>
    %314 = vector.broadcast %313 : vector<64x1xf32> to vector<64x128xf32>
    %315 = arith.mulf %314, %33 : vector<64x128xf32>
    %c32 = arith.constant 32 : index
    %c0_179 = arith.constant 0 : index
    %c0_180 = arith.constant 0 : index
    %316 = vector.load %arg7[%c32, %c0_179, %c0_180] : memref<55x64x128xf32, #tpu.memory_space<vmem>>, vector<1x64x128xf32>
    %317 = vector.shape_cast %316 : vector<1x64x128xf32> to vector<64x128xf32>
    %318 = vector.shape_cast %315 : vector<64x128xf32> to vector<1x64x128xf32>
    tpu.vector_store %arg7[%c32, %c0_179, %c0_180], %318 {strides = array<i32>} : memref<55x64x128xf32, #tpu.memory_space<vmem>>, vector<1x64x128xf32>,
    %c6_181 = arith.constant 6 : index
    %c0_182 = arith.constant 0 : index
    %c3_183 = arith.constant 3 : index
    %319 = vector.load %arg2[%c6_181, %c0_182, %c3_183] : memref<10x64x128xf32, #tpu.memory_space<vmem>>, vector<1x64x1xf32>
    %320 = vector.shape_cast %319 : vector<1x64x1xf32> to vector<64x1xf32>
    %321 = vector.shape_cast %320 : vector<64x1xf32> to vector<64x1xf32>
    %322 = vector.broadcast %321 : vector<64x1xf32> to vector<64x128xf32>
    %c33 = arith.constant 33 : index
    %c0_184 = arith.constant 0 : index
    %c0_185 = arith.constant 0 : index
    %323 = vector.load %arg7[%c33, %c0_184, %c0_185] : memref<55x64x128xf32, #tpu.memory_space<vmem>>, vector<1x64x128xf32>
    %324 = vector.shape_cast %323 : vector<1x64x128xf32> to vector<64x128xf32>
    %325 = vector.shape_cast %322 : vector<64x128xf32> to vector<1x64x128xf32>
    tpu.vector_store %arg7[%c33, %c0_184, %c0_185], %325 {strides = array<i32>} : memref<55x64x128xf32, #tpu.memory_space<vmem>>, vector<1x64x128xf32>,
    %c6_186 = arith.constant 6 : index
    %c0_187 = arith.constant 0 : index
    %c4_188 = arith.constant 4 : index
    %326 = vector.load %arg2[%c6_186, %c0_187, %c4_188] : memref<10x64x128xf32, #tpu.memory_space<vmem>>, vector<1x64x1xf32>
    %327 = vector.shape_cast %326 : vector<1x64x1xf32> to vector<64x1xf32>
    %328 = vector.shape_cast %327 : vector<64x1xf32> to vector<64x1xf32>
    %329 = vector.broadcast %328 : vector<64x1xf32> to vector<64x128xf32>
    %330 = arith.mulf %329, %44 : vector<64x128xf32>
    %c34 = arith.constant 34 : index
    %c0_189 = arith.constant 0 : index
    %c0_190 = arith.constant 0 : index
    %331 = vector.load %arg7[%c34, %c0_189, %c0_190] : memref<55x64x128xf32, #tpu.memory_space<vmem>>, vector<1x64x128xf32>
    %332 = vector.shape_cast %331 : vector<1x64x128xf32> to vector<64x128xf32>
    %333 = vector.shape_cast %330 : vector<64x128xf32> to vector<1x64x128xf32>
    tpu.vector_store %arg7[%c34, %c0_189, %c0_190], %333 {strides = array<i32>} : memref<55x64x128xf32, #tpu.memory_space<vmem>>, vector<1x64x128xf32>,
    %c6_191 = arith.constant 6 : index
    %c0_192 = arith.constant 0 : index
    %c5_193 = arith.constant 5 : index
    %334 = vector.load %arg2[%c6_191, %c0_192, %c5_193] : memref<10x64x128xf32, #tpu.memory_space<vmem>>, vector<1x64x1xf32>
    %335 = vector.shape_cast %334 : vector<1x64x1xf32> to vector<64x1xf32>
    %336 = vector.shape_cast %335 : vector<64x1xf32> to vector<64x1xf32>
    %337 = vector.broadcast %336 : vector<64x1xf32> to vector<64x128xf32>
    %338 = arith.mulf %337, %55 : vector<64x128xf32>
    %c35 = arith.constant 35 : index
    %c0_194 = arith.constant 0 : index
    %c0_195 = arith.constant 0 : index
    %339 = vector.load %arg7[%c35, %c0_194, %c0_195] : memref<55x64x128xf32, #tpu.memory_space<vmem>>, vector<1x64x128xf32>
    %340 = vector.shape_cast %339 : vector<1x64x128xf32> to vector<64x128xf32>
    %341 = vector.shape_cast %338 : vector<64x128xf32> to vector<1x64x128xf32>
    tpu.vector_store %arg7[%c35, %c0_194, %c0_195], %341 {strides = array<i32>} : memref<55x64x128xf32, #tpu.memory_space<vmem>>, vector<1x64x128xf32>,
    %c6_196 = arith.constant 6 : index
    %c0_197 = arith.constant 0 : index
    %c6_198 = arith.constant 6 : index
    %342 = vector.load %arg2[%c6_196, %c0_197, %c6_198] : memref<10x64x128xf32, #tpu.memory_space<vmem>>, vector<1x64x1xf32>
    %343 = vector.shape_cast %342 : vector<1x64x1xf32> to vector<64x1xf32>
    %344 = vector.shape_cast %343 : vector<64x1xf32> to vector<64x1xf32>
    %345 = vector.broadcast %344 : vector<64x1xf32> to vector<64x128xf32>
    %346 = arith.mulf %345, %66 : vector<64x128xf32>
    %c36 = arith.constant 36 : index
    %c0_199 = arith.constant 0 : index
    %c0_200 = arith.constant 0 : index
    %347 = vector.load %arg7[%c36, %c0_199, %c0_200] : memref<55x64x128xf32, #tpu.memory_space<vmem>>, vector<1x64x128xf32>
    %348 = vector.shape_cast %347 : vector<1x64x128xf32> to vector<64x128xf32>
    %349 = vector.shape_cast %346 : vector<64x128xf32> to vector<1x64x128xf32>
    tpu.vector_store %arg7[%c36, %c0_199, %c0_200], %349 {strides = array<i32>} : memref<55x64x128xf32, #tpu.memory_space<vmem>>, vector<1x64x128xf32>,
    %c7_201 = arith.constant 7 : index
    %c0_202 = arith.constant 0 : index
    %c8_203 = arith.constant 8 : index
    %350 = vector.load %arg2[%c7_201, %c0_202, %c8_203] : memref<10x64x128xf32, #tpu.memory_space<vmem>>, vector<1x64x1xf32>
    %351 = vector.shape_cast %350 : vector<1x64x1xf32> to vector<64x1xf32>
    %352 = vector.shape_cast %351 : vector<64x1xf32> to vector<64x1xf32>
    %353 = vector.broadcast %352 : vector<64x1xf32> to vector<64x128xf32>
    %c37 = arith.constant 37 : index
    %c0_204 = arith.constant 0 : index
    %c0_205 = arith.constant 0 : index
    %354 = vector.load %arg7[%c37, %c0_204, %c0_205] : memref<55x64x128xf32, #tpu.memory_space<vmem>>, vector<1x64x128xf32>
    %355 = vector.shape_cast %354 : vector<1x64x128xf32> to vector<64x128xf32>
    %356 = vector.shape_cast %353 : vector<64x128xf32> to vector<1x64x128xf32>
    tpu.vector_store %arg7[%c37, %c0_204, %c0_205], %356 {strides = array<i32>} : memref<55x64x128xf32, #tpu.memory_space<vmem>>, vector<1x64x128xf32>,
    %c7_206 = arith.constant 7 : index
    %c0_207 = arith.constant 0 : index
    %c2_208 = arith.constant 2 : index
    %357 = vector.load %arg2[%c7_206, %c0_207, %c2_208] : memref<10x64x128xf32, #tpu.memory_space<vmem>>, vector<1x64x1xf32>
    %358 = vector.shape_cast %357 : vector<1x64x1xf32> to vector<64x1xf32>
    %359 = vector.shape_cast %358 : vector<64x1xf32> to vector<64x1xf32>
    %360 = vector.broadcast %359 : vector<64x1xf32> to vector<64x128xf32>
    %361 = arith.mulf %360, %33 : vector<64x128xf32>
    %c38 = arith.constant 38 : index
    %c0_209 = arith.constant 0 : index
    %c0_210 = arith.constant 0 : index
    %362 = vector.load %arg7[%c38, %c0_209, %c0_210] : memref<55x64x128xf32, #tpu.memory_space<vmem>>, vector<1x64x128xf32>
    %363 = vector.shape_cast %362 : vector<1x64x128xf32> to vector<64x128xf32>
    %364 = vector.shape_cast %361 : vector<64x128xf32> to vector<1x64x128xf32>
    tpu.vector_store %arg7[%c38, %c0_209, %c0_210], %364 {strides = array<i32>} : memref<55x64x128xf32, #tpu.memory_space<vmem>>, vector<1x64x128xf32>,
    %c7_211 = arith.constant 7 : index
    %c0_212 = arith.constant 0 : index
    %c3_213 = arith.constant 3 : index
    %365 = vector.load %arg2[%c7_211, %c0_212, %c3_213] : memref<10x64x128xf32, #tpu.memory_space<vmem>>, vector<1x64x1xf32>
    %366 = vector.shape_cast %365 : vector<1x64x1xf32> to vector<64x1xf32>
    %367 = vector.shape_cast %366 : vector<64x1xf32> to vector<64x1xf32>
    %368 = vector.broadcast %367 : vector<64x1xf32> to vector<64x128xf32>
    %c39 = arith.constant 39 : index
    %c0_214 = arith.constant 0 : index
    %c0_215 = arith.constant 0 : index
    %369 = vector.load %arg7[%c39, %c0_214, %c0_215] : memref<55x64x128xf32, #tpu.memory_space<vmem>>, vector<1x64x128xf32>
    %370 = vector.shape_cast %369 : vector<1x64x128xf32> to vector<64x128xf32>
    %371 = vector.shape_cast %368 : vector<64x128xf32> to vector<1x64x128xf32>
    tpu.vector_store %arg7[%c39, %c0_214, %c0_215], %371 {strides = array<i32>} : memref<55x64x128xf32, #tpu.memory_space<vmem>>, vector<1x64x128xf32>,
    %c7_216 = arith.constant 7 : index
    %c0_217 = arith.constant 0 : index
    %c4_218 = arith.constant 4 : index
    %372 = vector.load %arg2[%c7_216, %c0_217, %c4_218] : memref<10x64x128xf32, #tpu.memory_space<vmem>>, vector<1x64x1xf32>
    %373 = vector.shape_cast %372 : vector<1x64x1xf32> to vector<64x1xf32>
    %374 = vector.shape_cast %373 : vector<64x1xf32> to vector<64x1xf32>
    %375 = vector.broadcast %374 : vector<64x1xf32> to vector<64x128xf32>
    %376 = arith.mulf %375, %44 : vector<64x128xf32>
    %c40 = arith.constant 40 : index
    %c0_219 = arith.constant 0 : index
    %c0_220 = arith.constant 0 : index
    %377 = vector.load %arg7[%c40, %c0_219, %c0_220] : memref<55x64x128xf32, #tpu.memory_space<vmem>>, vector<1x64x128xf32>
    %378 = vector.shape_cast %377 : vector<1x64x128xf32> to vector<64x128xf32>
    %379 = vector.shape_cast %376 : vector<64x128xf32> to vector<1x64x128xf32>
    tpu.vector_store %arg7[%c40, %c0_219, %c0_220], %379 {strides = array<i32>} : memref<55x64x128xf32, #tpu.memory_space<vmem>>, vector<1x64x128xf32>,
    %c8_221 = arith.constant 8 : index
    %c0_222 = arith.constant 0 : index
    %c8_223 = arith.constant 8 : index
    %380 = vector.load %arg2[%c8_221, %c0_222, %c8_223] : memref<10x64x128xf32, #tpu.memory_space<vmem>>, vector<1x64x1xf32>
    %381 = vector.shape_cast %380 : vector<1x64x1xf32> to vector<64x1xf32>
    %382 = vector.shape_cast %381 : vector<64x1xf32> to vector<64x1xf32>
    %383 = vector.broadcast %382 : vector<64x1xf32> to vector<64x128xf32>
    %c41 = arith.constant 41 : index
    %c0_224 = arith.constant 0 : index
    %c0_225 = arith.constant 0 : index
    %384 = vector.load %arg7[%c41, %c0_224, %c0_225] : memref<55x64x128xf32, #tpu.memory_space<vmem>>, vector<1x64x128xf32>
    %385 = vector.shape_cast %384 : vector<1x64x128xf32> to vector<64x128xf32>
    %386 = vector.shape_cast %383 : vector<64x128xf32> to vector<1x64x128xf32>
    tpu.vector_store %arg7[%c41, %c0_224, %c0_225], %386 {strides = array<i32>} : memref<55x64x128xf32, #tpu.memory_space<vmem>>, vector<1x64x128xf32>,
    %c8_226 = arith.constant 8 : index
    %c0_227 = arith.constant 0 : index
    %c1_228 = arith.constant 1 : index
    %387 = vector.load %arg2[%c8_226, %c0_227, %c1_228] : memref<10x64x128xf32, #tpu.memory_space<vmem>>, vector<1x64x1xf32>
    %388 = vector.shape_cast %387 : vector<1x64x1xf32> to vector<64x1xf32>
    %389 = vector.shape_cast %388 : vector<64x1xf32> to vector<64x1xf32>
    %390 = vector.broadcast %389 : vector<64x1xf32> to vector<64x128xf32>
    %391 = arith.mulf %390, %22 : vector<64x128xf32>
    %c42 = arith.constant 42 : index
    %c0_229 = arith.constant 0 : index
    %c0_230 = arith.constant 0 : index
    %392 = vector.load %arg7[%c42, %c0_229, %c0_230] : memref<55x64x128xf32, #tpu.memory_space<vmem>>, vector<1x64x128xf32>
    %393 = vector.shape_cast %392 : vector<1x64x128xf32> to vector<64x128xf32>
    %394 = vector.shape_cast %391 : vector<64x128xf32> to vector<1x64x128xf32>
    tpu.vector_store %arg7[%c42, %c0_229, %c0_230], %394 {strides = array<i32>} : memref<55x64x128xf32, #tpu.memory_space<vmem>>, vector<1x64x128xf32>,
    %c8_231 = arith.constant 8 : index
    %c0_232 = arith.constant 0 : index
    %c2_233 = arith.constant 2 : index
    %395 = vector.load %arg2[%c8_231, %c0_232, %c2_233] : memref<10x64x128xf32, #tpu.memory_space<vmem>>, vector<1x64x1xf32>
    %396 = vector.shape_cast %395 : vector<1x64x1xf32> to vector<64x1xf32>
    %397 = vector.shape_cast %396 : vector<64x1xf32> to vector<64x1xf32>
    %398 = vector.broadcast %397 : vector<64x1xf32> to vector<64x128xf32>
    %399 = arith.mulf %398, %33 : vector<64x128xf32>
    %c43 = arith.constant 43 : index
    %c0_234 = arith.constant 0 : index
    %c0_235 = arith.constant 0 : index
    %400 = vector.load %arg7[%c43, %c0_234, %c0_235] : memref<55x64x128xf32, #tpu.memory_space<vmem>>, vector<1x64x128xf32>
    %401 = vector.shape_cast %400 : vector<1x64x128xf32> to vector<64x128xf32>
    %402 = vector.shape_cast %399 : vector<64x128xf32> to vector<1x64x128xf32>
    tpu.vector_store %arg7[%c43, %c0_234, %c0_235], %402 {strides = array<i32>} : memref<55x64x128xf32, #tpu.memory_space<vmem>>, vector<1x64x128xf32>,
    %c8_236 = arith.constant 8 : index
    %c0_237 = arith.constant 0 : index
    %c3_238 = arith.constant 3 : index
    %403 = vector.load %arg2[%c8_236, %c0_237, %c3_238] : memref<10x64x128xf32, #tpu.memory_space<vmem>>, vector<1x64x1xf32>
    %404 = vector.shape_cast %403 : vector<1x64x1xf32> to vector<64x1xf32>
    %405 = vector.shape_cast %404 : vector<64x1xf32> to vector<64x1xf32>
    %406 = vector.broadcast %405 : vector<64x1xf32> to vector<64x128xf32>
    %c44 = arith.constant 44 : index
    %c0_239 = arith.constant 0 : index
    %c0_240 = arith.constant 0 : index
    %407 = vector.load %arg7[%c44, %c0_239, %c0_240] : memref<55x64x128xf32, #tpu.memory_space<vmem>>, vector<1x64x128xf32>
    %408 = vector.shape_cast %407 : vector<1x64x128xf32> to vector<64x128xf32>
    %409 = vector.shape_cast %406 : vector<64x128xf32> to vector<1x64x128xf32>
    tpu.vector_store %arg7[%c44, %c0_239, %c0_240], %409 {strides = array<i32>} : memref<55x64x128xf32, #tpu.memory_space<vmem>>, vector<1x64x128xf32>,
    %c8_241 = arith.constant 8 : index
    %c0_242 = arith.constant 0 : index
    %c4_243 = arith.constant 4 : index
    %410 = vector.load %arg2[%c8_241, %c0_242, %c4_243] : memref<10x64x128xf32, #tpu.memory_space<vmem>>, vector<1x64x1xf32>
    %411 = vector.shape_cast %410 : vector<1x64x1xf32> to vector<64x1xf32>
    %412 = vector.shape_cast %411 : vector<64x1xf32> to vector<64x1xf32>
    %413 = vector.broadcast %412 : vector<64x1xf32> to vector<64x128xf32>
    %414 = arith.mulf %413, %44 : vector<64x128xf32>
    %c45 = arith.constant 45 : index
    %c0_244 = arith.constant 0 : index
    %c0_245 = arith.constant 0 : index
    %415 = vector.load %arg7[%c45, %c0_244, %c0_245] : memref<55x64x128xf32, #tpu.memory_space<vmem>>, vector<1x64x128xf32>
    %416 = vector.shape_cast %415 : vector<1x64x128xf32> to vector<64x128xf32>
    %417 = vector.shape_cast %414 : vector<64x128xf32> to vector<1x64x128xf32>
    tpu.vector_store %arg7[%c45, %c0_244, %c0_245], %417 {strides = array<i32>} : memref<55x64x128xf32, #tpu.memory_space<vmem>>, vector<1x64x128xf32>,
    %c8_246 = arith.constant 8 : index
    %c0_247 = arith.constant 0 : index
    %c5_248 = arith.constant 5 : index
    %418 = vector.load %arg2[%c8_246, %c0_247, %c5_248] : memref<10x64x128xf32, #tpu.memory_space<vmem>>, vector<1x64x1xf32>
    %419 = vector.shape_cast %418 : vector<1x64x1xf32> to vector<64x1xf32>
    %420 = vector.shape_cast %419 : vector<64x1xf32> to vector<64x1xf32>
    %421 = vector.broadcast %420 : vector<64x1xf32> to vector<64x128xf32>
    %422 = arith.mulf %421, %55 : vector<64x128xf32>
    %c46 = arith.constant 46 : index
    %c0_249 = arith.constant 0 : index
    %c0_250 = arith.constant 0 : index
    %423 = vector.load %arg7[%c46, %c0_249, %c0_250] : memref<55x64x128xf32, #tpu.memory_space<vmem>>, vector<1x64x128xf32>
    %424 = vector.shape_cast %423 : vector<1x64x128xf32> to vector<64x128xf32>
    %425 = vector.shape_cast %422 : vector<64x128xf32> to vector<1x64x128xf32>
    tpu.vector_store %arg7[%c46, %c0_249, %c0_250], %425 {strides = array<i32>} : memref<55x64x128xf32, #tpu.memory_space<vmem>>, vector<1x64x128xf32>,
    %c9_251 = arith.constant 9 : index
    %c0_252 = arith.constant 0 : index
    %c8_253 = arith.constant 8 : index
    %426 = vector.load %arg2[%c9_251, %c0_252, %c8_253] : memref<10x64x128xf32, #tpu.memory_space<vmem>>, vector<1x64x1xf32>
    %427 = vector.shape_cast %426 : vector<1x64x1xf32> to vector<64x1xf32>
    %428 = vector.shape_cast %427 : vector<64x1xf32> to vector<64x1xf32>
    %429 = vector.broadcast %428 : vector<64x1xf32> to vector<64x128xf32>
    %c47 = arith.constant 47 : index
    %c0_254 = arith.constant 0 : index
    %c0_255 = arith.constant 0 : index
    %430 = vector.load %arg7[%c47, %c0_254, %c0_255] : memref<55x64x128xf32, #tpu.memory_space<vmem>>, vector<1x64x128xf32>
    %431 = vector.shape_cast %430 : vector<1x64x128xf32> to vector<64x128xf32>
    %432 = vector.shape_cast %429 : vector<64x128xf32> to vector<1x64x128xf32>
    tpu.vector_store %arg7[%c47, %c0_254, %c0_255], %432 {strides = array<i32>} : memref<55x64x128xf32, #tpu.memory_space<vmem>>, vector<1x64x128xf32>,
    %c9_256 = arith.constant 9 : index
    %c0_257 = arith.constant 0 : index
    %c0_258 = arith.constant 0 : index
    %433 = vector.load %arg2[%c9_256, %c0_257, %c0_258] : memref<10x64x128xf32, #tpu.memory_space<vmem>>, vector<1x64x1xf32>
    %434 = vector.shape_cast %433 : vector<1x64x1xf32> to vector<64x1xf32>
    %435 = vector.shape_cast %434 : vector<64x1xf32> to vector<64x1xf32>
    %436 = vector.broadcast %435 : vector<64x1xf32> to vector<64x128xf32>
    %437 = arith.mulf %436, %11 : vector<64x128xf32>
    %c48 = arith.constant 48 : index
    %c0_259 = arith.constant 0 : index
    %c0_260 = arith.constant 0 : index
    %438 = vector.load %arg7[%c48, %c0_259, %c0_260] : memref<55x64x128xf32, #tpu.memory_space<vmem>>, vector<1x64x128xf32>
    %439 = vector.shape_cast %438 : vector<1x64x128xf32> to vector<64x128xf32>
    %440 = vector.shape_cast %437 : vector<64x128xf32> to vector<1x64x128xf32>
    tpu.vector_store %arg7[%c48, %c0_259, %c0_260], %440 {strides = array<i32>} : memref<55x64x128xf32, #tpu.memory_space<vmem>>, vector<1x64x128xf32>,
    %c9_261 = arith.constant 9 : index
    %c0_262 = arith.constant 0 : index
    %c1_263 = arith.constant 1 : index
    %441 = vector.load %arg2[%c9_261, %c0_262, %c1_263] : memref<10x64x128xf32, #tpu.memory_space<vmem>>, vector<1x64x1xf32>
    %442 = vector.shape_cast %441 : vector<1x64x1xf32> to vector<64x1xf32>
    %443 = vector.shape_cast %442 : vector<64x1xf32> to vector<64x1xf32>
    %444 = vector.broadcast %443 : vector<64x1xf32> to vector<64x128xf32>
    %445 = arith.mulf %444, %22 : vector<64x128xf32>
    %c49 = arith.constant 49 : index
    %c0_264 = arith.constant 0 : index
    %c0_265 = arith.constant 0 : index
    %446 = vector.load %arg7[%c49, %c0_264, %c0_265] : memref<55x64x128xf32, #tpu.memory_space<vmem>>, vector<1x64x128xf32>
    %447 = vector.shape_cast %446 : vector<1x64x128xf32> to vector<64x128xf32>
    %448 = vector.shape_cast %445 : vector<64x128xf32> to vector<1x64x128xf32>
    tpu.vector_store %arg7[%c49, %c0_264, %c0_265], %448 {strides = array<i32>} : memref<55x64x128xf32, #tpu.memory_space<vmem>>, vector<1x64x128xf32>,
    %c9_266 = arith.constant 9 : index
    %c0_267 = arith.constant 0 : index
    %c2_268 = arith.constant 2 : index
    %449 = vector.load %arg2[%c9_266, %c0_267, %c2_268] : memref<10x64x128xf32, #tpu.memory_space<vmem>>, vector<1x64x1xf32>
    %450 = vector.shape_cast %449 : vector<1x64x1xf32> to vector<64x1xf32>
    %451 = vector.shape_cast %450 : vector<64x1xf32> to vector<64x1xf32>
    %452 = vector.broadcast %451 : vector<64x1xf32> to vector<64x128xf32>
    %453 = arith.mulf %452, %33 : vector<64x128xf32>
    %c50 = arith.constant 50 : index
    %c0_269 = arith.constant 0 : index
    %c0_270 = arith.constant 0 : index
    %454 = vector.load %arg7[%c50, %c0_269, %c0_270] : memref<55x64x128xf32, #tpu.memory_space<vmem>>, vector<1x64x128xf32>
    %455 = vector.shape_cast %454 : vector<1x64x128xf32> to vector<64x128xf32>
    %456 = vector.shape_cast %453 : vector<64x128xf32> to vector<1x64x128xf32>
    tpu.vector_store %arg7[%c50, %c0_269, %c0_270], %456 {strides = array<i32>} : memref<55x64x128xf32, #tpu.memory_space<vmem>>, vector<1x64x128xf32>,
    %c9_271 = arith.constant 9 : index
    %c0_272 = arith.constant 0 : index
    %c3_273 = arith.constant 3 : index
    %457 = vector.load %arg2[%c9_271, %c0_272, %c3_273] : memref<10x64x128xf32, #tpu.memory_space<vmem>>, vector<1x64x1xf32>
    %458 = vector.shape_cast %457 : vector<1x64x1xf32> to vector<64x1xf32>
    %459 = vector.shape_cast %458 : vector<64x1xf32> to vector<64x1xf32>
    %460 = vector.broadcast %459 : vector<64x1xf32> to vector<64x128xf32>
    %c51 = arith.constant 51 : index
    %c0_274 = arith.constant 0 : index
    %c0_275 = arith.constant 0 : index
    %461 = vector.load %arg7[%c51, %c0_274, %c0_275] : memref<55x64x128xf32, #tpu.memory_space<vmem>>, vector<1x64x128xf32>
    %462 = vector.shape_cast %461 : vector<1x64x128xf32> to vector<64x128xf32>
    %463 = vector.shape_cast %460 : vector<64x128xf32> to vector<1x64x128xf32>
    tpu.vector_store %arg7[%c51, %c0_274, %c0_275], %463 {strides = array<i32>} : memref<55x64x128xf32, #tpu.memory_space<vmem>>, vector<1x64x128xf32>,
    %c9_276 = arith.constant 9 : index
    %c0_277 = arith.constant 0 : index
    %c4_278 = arith.constant 4 : index
    %464 = vector.load %arg2[%c9_276, %c0_277, %c4_278] : memref<10x64x128xf32, #tpu.memory_space<vmem>>, vector<1x64x1xf32>
    %465 = vector.shape_cast %464 : vector<1x64x1xf32> to vector<64x1xf32>
    %466 = vector.shape_cast %465 : vector<64x1xf32> to vector<64x1xf32>
    %467 = vector.broadcast %466 : vector<64x1xf32> to vector<64x128xf32>
    %468 = arith.mulf %467, %44 : vector<64x128xf32>
    %c52 = arith.constant 52 : index
    %c0_279 = arith.constant 0 : index
    %c0_280 = arith.constant 0 : index
    %469 = vector.load %arg7[%c52, %c0_279, %c0_280] : memref<55x64x128xf32, #tpu.memory_space<vmem>>, vector<1x64x128xf32>
    %470 = vector.shape_cast %469 : vector<1x64x128xf32> to vector<64x128xf32>
    %471 = vector.shape_cast %468 : vector<64x128xf32> to vector<1x64x128xf32>
    tpu.vector_store %arg7[%c52, %c0_279, %c0_280], %471 {strides = array<i32>} : memref<55x64x128xf32, #tpu.memory_space<vmem>>, vector<1x64x128xf32>,
    %c9_281 = arith.constant 9 : index
    %c0_282 = arith.constant 0 : index
    %c5_283 = arith.constant 5 : index
    %472 = vector.load %arg2[%c9_281, %c0_282, %c5_283] : memref<10x64x128xf32, #tpu.memory_space<vmem>>, vector<1x64x1xf32>
    %473 = vector.shape_cast %472 : vector<1x64x1xf32> to vector<64x1xf32>
    %474 = vector.shape_cast %473 : vector<64x1xf32> to vector<64x1xf32>
    %475 = vector.broadcast %474 : vector<64x1xf32> to vector<64x128xf32>
    %476 = arith.mulf %475, %55 : vector<64x128xf32>
    %c53 = arith.constant 53 : index
    %c0_284 = arith.constant 0 : index
    %c0_285 = arith.constant 0 : index
    %477 = vector.load %arg7[%c53, %c0_284, %c0_285] : memref<55x64x128xf32, #tpu.memory_space<vmem>>, vector<1x64x128xf32>
    %478 = vector.shape_cast %477 : vector<1x64x128xf32> to vector<64x128xf32>
    %479 = vector.shape_cast %476 : vector<64x128xf32> to vector<1x64x128xf32>
    tpu.vector_store %arg7[%c53, %c0_284, %c0_285], %479 {strides = array<i32>} : memref<55x64x128xf32, #tpu.memory_space<vmem>>, vector<1x64x128xf32>,
    %c9_286 = arith.constant 9 : index
    %c0_287 = arith.constant 0 : index
    %c6_288 = arith.constant 6 : index
    %480 = vector.load %arg2[%c9_286, %c0_287, %c6_288] : memref<10x64x128xf32, #tpu.memory_space<vmem>>, vector<1x64x1xf32>
    %481 = vector.shape_cast %480 : vector<1x64x1xf32> to vector<64x1xf32>
    %482 = vector.shape_cast %481 : vector<64x1xf32> to vector<64x1xf32>
    %483 = vector.broadcast %482 : vector<64x1xf32> to vector<64x128xf32>
    %484 = arith.mulf %483, %66 : vector<64x128xf32>
    %c54 = arith.constant 54 : index
    %c0_289 = arith.constant 0 : index
    %c0_290 = arith.constant 0 : index
    %485 = vector.load %arg7[%c54, %c0_289, %c0_290] : memref<55x64x128xf32, #tpu.memory_space<vmem>>, vector<1x64x128xf32>
    %486 = vector.shape_cast %485 : vector<1x64x128xf32> to vector<64x128xf32>
    %487 = vector.shape_cast %484 : vector<64x128xf32> to vector<1x64x128xf32>
    tpu.vector_store %arg7[%c54, %c0_289, %c0_290], %487 {strides = array<i32>} : memref<55x64x128xf32, #tpu.memory_space<vmem>>, vector<1x64x128xf32>,
    %488 = tpu.iota {dimensions = array<i32: 1>} : vector<2x128xi32>
    %c-2_i32_291 = arith.constant -2 : i32
    %489 = vector.broadcast %c-2_i32_291 : i32 to vector<2x128xi32>
    %490 = arith.addi %488, %489 : vector<2x128xi32>
    %c0_i32_292 = arith.constant 0 : i32
    %491 = vector.broadcast %c0_i32_292 : i32 to vector<2x128xi32>
    %492 = arith.cmpi sge, %490, %491 : vector<2x128xi32>
    %c-2_i32_293 = arith.constant -2 : i32
    %493 = vector.broadcast %c-2_i32_293 : i32 to vector<2x128xi32>
    %494 = arith.addi %488, %493 : vector<2x128xi32>
    %c128_i32_294 = arith.constant 128 : i32
    %495 = vector.broadcast %c128_i32_294 : i32 to vector<2x128xi32>
    %496 = arith.cmpi slt, %494, %495 : vector<2x128xi32>
    %497 = arith.andi %492, %496 : vector<2x128xi1>
    %c-1_i32_295 = arith.constant -1 : i32
    %498 = vector.broadcast %c-1_i32_295 : i32 to vector<2x128xi32>
    %499 = arith.addi %488, %498 : vector<2x128xi32>
    %c0_i32_296 = arith.constant 0 : i32
    %500 = vector.broadcast %c0_i32_296 : i32 to vector<2x128xi32>
    %501 = arith.cmpi sge, %499, %500 : vector<2x128xi32>
    %c-1_i32_297 = arith.constant -1 : i32
    %502 = vector.broadcast %c-1_i32_297 : i32 to vector<2x128xi32>
    %503 = arith.addi %488, %502 : vector<2x128xi32>
    %c128_i32_298 = arith.constant 128 : i32
    %504 = vector.broadcast %c128_i32_298 : i32 to vector<2x128xi32>
    %505 = arith.cmpi slt, %503, %504 : vector<2x128xi32>
    %506 = arith.andi %501, %505 : vector<2x128xi1>
    %c1_i32_299 = arith.constant 1 : i32
    %507 = vector.broadcast %c1_i32_299 : i32 to vector<2x128xi32>
    %508 = arith.addi %488, %507 : vector<2x128xi32>
    %c0_i32_300 = arith.constant 0 : i32
    %509 = vector.broadcast %c0_i32_300 : i32 to vector<2x128xi32>
    %510 = arith.cmpi sge, %508, %509 : vector<2x128xi32>
    %c1_i32_301 = arith.constant 1 : i32
    %511 = vector.broadcast %c1_i32_301 : i32 to vector<2x128xi32>
    %512 = arith.addi %488, %511 : vector<2x128xi32>
    %c128_i32_302 = arith.constant 128 : i32
    %513 = vector.broadcast %c128_i32_302 : i32 to vector<2x128xi32>
    %514 = arith.cmpi slt, %512, %513 : vector<2x128xi32>
    %515 = arith.andi %510, %514 : vector<2x128xi1>
    %516 = tpu.iota {dimensions = array<i32: 0>} : vector<8x128xi32>
    %cst = arith.constant 0.000000e+00 : f32
    %517 = vector.broadcast %cst : f32 to vector<8x128xf32>
    %c0_i32_303 = arith.constant 0 : i32
    %c8_i32 = arith.constant 8 : i32
    %518 = arith.addi %c0_i32_303, %c8_i32 : i32
    %c1_i32_304 = arith.constant 1 : i32
    %519 = scf.for %arg8 = %c0_i32_303 to %518 step %c1_i32_304 iter_args(%arg9 = %517) -> (vector<8x128xf32>)  : i32 {
      %526 = arith.index_cast %arg8 : i32 to index
      %c0_313 = arith.constant 0 : index
      %c0_314 = arith.constant 0 : index
      %527 = vector.load %arg1[%526, %c0_313, %c0_314] : memref<8x2x128xf32, #tpu.memory_space<vmem>>, vector<1x2x128xf32>
      %528 = vector.shape_cast %527 : vector<1x2x128xf32> to vector<2x128xf32>
      %c2_i32_315 = arith.constant 2 : i32
      %529 = tpu.dynamic_rotate %528 by %c2_i32_315 dim 1 : vector<2x128xf32>, i32 -> vector<2x128xf32>
      %cst_316 = arith.constant 0.000000e+00 : f32
      %530 = vector.broadcast %cst_316 : f32 to vector<2x128xf32>
      %531 = arith.select %497, %529, %530 : vector<2x128xi1>, vector<2x128xf32>
      %c1_i32_317 = arith.constant 1 : i32
      %532 = tpu.dynamic_rotate %528 by %c1_i32_317 dim 1 : vector<2x128xf32>, i32 -> vector<2x128xf32>
      %cst_318 = arith.constant 0.000000e+00 : f32
      %533 = vector.broadcast %cst_318 : f32 to vector<2x128xf32>
      %534 = arith.select %506, %532, %533 : vector<2x128xi1>, vector<2x128xf32>
      %c127_i32 = arith.constant 127 : i32
      %535 = tpu.dynamic_rotate %528 by %c127_i32 dim 1 : vector<2x128xf32>, i32 -> vector<2x128xf32>
      %cst_319 = arith.constant 0.000000e+00 : f32
      %536 = vector.broadcast %cst_319 : f32 to vector<2x128xf32>
      %537 = arith.select %515, %535, %536 : vector<2x128xi1>, vector<2x128xf32>
      %538 = tpu.concatenate %531, %534, %528, %537 in 0 : vector<2x128xf32>, vector<2x128xf32>, vector<2x128xf32>, vector<2x128xf32> -> vector<8x128xf32>
      %c0_320 = arith.constant 0 : index
      %c0_321 = arith.constant 0 : index
      %c0_322 = arith.constant 0 : index
      %539 = vector.load %arg2[%c0_320, %c0_321, %c0_322] : memref<10x64x128xf32, #tpu.memory_space<vmem>>, vector<1x64x8xf32>
      %540 = vector.shape_cast %539 : vector<1x64x8xf32> to vector<64x8xf32>
      %cst_323 = arith.constant dense<0.000000e+00> : vector<64x128xf32>
      %541 = tpu.matmul %540, %538, %cst_323 {dimension_numbers = #tpu.dot_dimension_numbers<[1], [0], [0], [1], [0, 0, 1, 1], [], []>} : vector<64x8xf32>, vector<8x128xf32>, vector<64x128xf32> -> vector<64x128xf32>
      %c0_324 = arith.constant 0 : index
      %c0_325 = arith.constant 0 : index
      %c0_326 = arith.constant 0 : index
      %542 = vector.load %arg7[%c0_324, %c0_325, %c0_326] : memref<55x64x128xf32, #tpu.memory_space<vmem>>, vector<1x64x128xf32>
      %543 = vector.shape_cast %542 : vector<1x64x128xf32> to vector<64x128xf32>
      %544 = arith.addf %541, %543 : vector<64x128xf32>
      %cst_327 = arith.constant 0.000000e+00 : f32
      %545 = vector.broadcast %cst_327 : f32 to vector<64x128xf32>
      %546 = arith.cmpf ogt, %544, %545 : vector<64x128xf32>
      %cst_328 = arith.constant 0.000000e+00 : f32
      %547 = vector.broadcast %cst_328 : f32 to vector<64x128xf32>
      %548 = arith.minimumf %544, %547 : vector<64x128xf32>
      %549 = math.exp %548 : vector<64x128xf32>
      %cst_329 = arith.constant 1.000000e+00 : f32
      %550 = vector.broadcast %cst_329 : f32 to vector<64x128xf32>
      %551 = arith.subf %549, %550 : vector<64x128xf32>
      %552 = arith.select %546, %544, %551 : vector<64x128xi1>, vector<64x128xf32>
      %c1_330 = arith.constant 1 : index
      %c0_331 = arith.constant 0 : index
      %c0_332 = arith.constant 0 : index
      %553 = vector.load %arg7[%c1_330, %c0_331, %c0_332] : memref<55x64x128xf32, #tpu.memory_space<vmem>>, vector<1x64x128xf32>
      %554 = vector.shape_cast %553 : vector<1x64x128xf32> to vector<64x128xf32>
      %c5_333 = arith.constant 5 : index
      %c0_334 = arith.constant 0 : index
      %c0_335 = arith.constant 0 : index
      %555 = vector.load %arg7[%c5_333, %c0_334, %c0_335] : memref<55x64x128xf32, #tpu.memory_space<vmem>>, vector<1x64x128xf32>
      %556 = vector.shape_cast %555 : vector<1x64x128xf32> to vector<64x128xf32>
      %c11_336 = arith.constant 11 : index
      %c0_337 = arith.constant 0 : index
      %c0_338 = arith.constant 0 : index
      %557 = vector.load %arg7[%c11_336, %c0_337, %c0_338] : memref<55x64x128xf32, #tpu.memory_space<vmem>>, vector<1x64x128xf32>
      %558 = vector.shape_cast %557 : vector<1x64x128xf32> to vector<64x128xf32>
      %c3_i32_339 = arith.constant 3 : i32
      %559 = tpu.dynamic_rotate %552 by %c3_i32_339 dim 1 : vector<64x128xf32>, i32 -> vector<64x128xf32>
      %c12_340 = arith.constant 12 : index
      %c0_341 = arith.constant 0 : index
      %c0_342 = arith.constant 0 : index
      %560 = vector.load %arg7[%c12_340, %c0_341, %c0_342] : memref<55x64x128xf32, #tpu.memory_space<vmem>>, vector<1x64x128xf32>
      %561 = vector.shape_cast %560 : vector<1x64x128xf32> to vector<64x128xf32>
      %562 = arith.mulf %561, %559 : vector<64x128xf32>
      %563 = arith.addf %558, %562 : vector<64x128xf32>
      %c2_i32_343 = arith.constant 2 : i32
      %564 = tpu.dynamic_rotate %552 by %c2_i32_343 dim 1 : vector<64x128xf32>, i32 -> vector<64x128xf32>
      %c6_344 = arith.constant 6 : index
      %c0_345 = arith.constant 0 : index
      %c0_346 = arith.constant 0 : index
      %565 = vector.load %arg7[%c6_344, %c0_345, %c0_346] : memref<55x64x128xf32, #tpu.memory_space<vmem>>, vector<1x64x128xf32>
      %566 = vector.shape_cast %565 : vector<1x64x128xf32> to vector<64x128xf32>
      %567 = arith.mulf %566, %564 : vector<64x128xf32>
      %568 = arith.addf %556, %567 : vector<64x128xf32>
      %c13_347 = arith.constant 13 : index
      %c0_348 = arith.constant 0 : index
      %c0_349 = arith.constant 0 : index
      %569 = vector.load %arg7[%c13_347, %c0_348, %c0_349] : memref<55x64x128xf32, #tpu.memory_space<vmem>>, vector<1x64x128xf32>
      %570 = vector.shape_cast %569 : vector<1x64x128xf32> to vector<64x128xf32>
      %571 = arith.mulf %570, %564 : vector<64x128xf32>
      %572 = arith.addf %563, %571 : vector<64x128xf32>
      %c1_i32_350 = arith.constant 1 : i32
      %573 = tpu.dynamic_rotate %552 by %c1_i32_350 dim 1 : vector<64x128xf32>, i32 -> vector<64x128xf32>
      %c2_351 = arith.constant 2 : index
      %c0_352 = arith.constant 0 : index
      %c0_353 = arith.constant 0 : index
      %574 = vector.load %arg7[%c2_351, %c0_352, %c0_353] : memref<55x64x128xf32, #tpu.memory_space<vmem>>, vector<1x64x128xf32>
      %575 = vector.shape_cast %574 : vector<1x64x128xf32> to vector<64x128xf32>
      %576 = arith.mulf %575, %573 : vector<64x128xf32>
      %577 = arith.addf %554, %576 : vector<64x128xf32>
      %c7_354 = arith.constant 7 : index
      %c0_355 = arith.constant 0 : index
      %c0_356 = arith.constant 0 : index
      %578 = vector.load %arg7[%c7_354, %c0_355, %c0_356] : memref<55x64x128xf32, #tpu.memory_space<vmem>>, vector<1x64x128xf32>
      %579 = vector.shape_cast %578 : vector<1x64x128xf32> to vector<64x128xf32>
      %580 = arith.mulf %579, %573 : vector<64x128xf32>
      %581 = arith.addf %568, %580 : vector<64x128xf32>
      %c14_357 = arith.constant 14 : index
      %c0_358 = arith.constant 0 : index
      %c0_359 = arith.constant 0 : index
      %582 = vector.load %arg7[%c14_357, %c0_358, %c0_359] : memref<55x64x128xf32, #tpu.memory_space<vmem>>, vector<1x64x128xf32>
      %583 = vector.shape_cast %582 : vector<1x64x128xf32> to vector<64x128xf32>
      %584 = arith.mulf %583, %573 : vector<64x128xf32>
      %585 = arith.addf %572, %584 : vector<64x128xf32>
      %c3_360 = arith.constant 3 : index
      %c0_361 = arith.constant 0 : index
      %c0_362 = arith.constant 0 : index
      %586 = vector.load %arg7[%c3_360, %c0_361, %c0_362] : memref<55x64x128xf32, #tpu.memory_space<vmem>>, vector<1x64x128xf32>
      %587 = vector.shape_cast %586 : vector<1x64x128xf32> to vector<64x128xf32>
      %588 = arith.mulf %587, %552 : vector<64x128xf32>
      %589 = arith.addf %577, %588 : vector<64x128xf32>
      %c8_363 = arith.constant 8 : index
      %c0_364 = arith.constant 0 : index
      %c0_365 = arith.constant 0 : index
      %590 = vector.load %arg7[%c8_363, %c0_364, %c0_365] : memref<55x64x128xf32, #tpu.memory_space<vmem>>, vector<1x64x128xf32>
      %591 = vector.shape_cast %590 : vector<1x64x128xf32> to vector<64x128xf32>
      %592 = arith.mulf %591, %552 : vector<64x128xf32>
      %593 = arith.addf %581, %592 : vector<64x128xf32>
      %c15_366 = arith.constant 15 : index
      %c0_367 = arith.constant 0 : index
      %c0_368 = arith.constant 0 : index
      %594 = vector.load %arg7[%c15_366, %c0_367, %c0_368] : memref<55x64x128xf32, #tpu.memory_space<vmem>>, vector<1x64x128xf32>
      %595 = vector.shape_cast %594 : vector<1x64x128xf32> to vector<64x128xf32>
      %596 = arith.mulf %595, %552 : vector<64x128xf32>
      %597 = arith.addf %585, %596 : vector<64x128xf32>
      %c127_i32_369 = arith.constant 127 : i32
      %598 = tpu.dynamic_rotate %552 by %c127_i32_369 dim 1 : vector<64x128xf32>, i32 -> vector<64x128xf32>
      %c4_370 = arith.constant 4 : index
      %c0_371 = arith.constant 0 : index
      %c0_372 = arith.constant 0 : index
      %599 = vector.load %arg7[%c4_370, %c0_371, %c0_372] : memref<55x64x128xf32, #tpu.memory_space<vmem>>, vector<1x64x128xf32>
      %600 = vector.shape_cast %599 : vector<1x64x128xf32> to vector<64x128xf32>
      %601 = arith.mulf %600, %598 : vector<64x128xf32>
      %602 = arith.addf %589, %601 : vector<64x128xf32>
      %c9_373 = arith.constant 9 : index
      %c0_374 = arith.constant 0 : index
      %c0_375 = arith.constant 0 : index
      %603 = vector.load %arg7[%c9_373, %c0_374, %c0_375] : memref<55x64x128xf32, #tpu.memory_space<vmem>>, vector<1x64x128xf32>
      %604 = vector.shape_cast %603 : vector<1x64x128xf32> to vector<64x128xf32>
      %605 = arith.mulf %604, %598 : vector<64x128xf32>
      %606 = arith.addf %593, %605 : vector<64x128xf32>
      %c16_376 = arith.constant 16 : index
      %c0_377 = arith.constant 0 : index
      %c0_378 = arith.constant 0 : index
      %607 = vector.load %arg7[%c16_376, %c0_377, %c0_378] : memref<55x64x128xf32, #tpu.memory_space<vmem>>, vector<1x64x128xf32>
      %608 = vector.shape_cast %607 : vector<1x64x128xf32> to vector<64x128xf32>
      %609 = arith.mulf %608, %598 : vector<64x128xf32>
      %610 = arith.addf %597, %609 : vector<64x128xf32>
      %c126_i32 = arith.constant 126 : i32
      %611 = tpu.dynamic_rotate %552 by %c126_i32 dim 1 : vector<64x128xf32>, i32 -> vector<64x128xf32>
      %c10_379 = arith.constant 10 : index
      %c0_380 = arith.constant 0 : index
      %c0_381 = arith.constant 0 : index
      %612 = vector.load %arg7[%c10_379, %c0_380, %c0_381] : memref<55x64x128xf32, #tpu.memory_space<vmem>>, vector<1x64x128xf32>
      %613 = vector.shape_cast %612 : vector<1x64x128xf32> to vector<64x128xf32>
      %614 = arith.mulf %613, %611 : vector<64x128xf32>
      %615 = arith.addf %606, %614 : vector<64x128xf32>
      %c17_382 = arith.constant 17 : index
      %c0_383 = arith.constant 0 : index
      %c0_384 = arith.constant 0 : index
      %616 = vector.load %arg7[%c17_382, %c0_383, %c0_384] : memref<55x64x128xf32, #tpu.memory_space<vmem>>, vector<1x64x128xf32>
      %617 = vector.shape_cast %616 : vector<1x64x128xf32> to vector<64x128xf32>
      %618 = arith.mulf %617, %611 : vector<64x128xf32>
      %619 = arith.addf %610, %618 : vector<64x128xf32>
      %c125_i32 = arith.constant 125 : i32
      %620 = tpu.dynamic_rotate %552 by %c125_i32 dim 1 : vector<64x128xf32>, i32 -> vector<64x128xf32>
      %c18_385 = arith.constant 18 : index
      %c0_386 = arith.constant 0 : index
      %c0_387 = arith.constant 0 : index
      %621 = vector.load %arg7[%c18_385, %c0_386, %c0_387] : memref<55x64x128xf32, #tpu.memory_space<vmem>>, vector<1x64x128xf32>
      %622 = vector.shape_cast %621 : vector<1x64x128xf32> to vector<64x128xf32>
      %623 = arith.mulf %622, %620 : vector<64x128xf32>
      %624 = arith.addf %619, %623 : vector<64x128xf32>
      %cst_388 = arith.constant 0.000000e+00 : f32
      %625 = vector.broadcast %cst_388 : f32 to vector<64x128xf32>
      %626 = arith.cmpf ogt, %602, %625 : vector<64x128xf32>
      %cst_389 = arith.constant 0.000000e+00 : f32
      %627 = vector.broadcast %cst_389 : f32 to vector<64x128xf32>
      %628 = arith.minimumf %602, %627 : vector<64x128xf32>
      %629 = math.exp %628 : vector<64x128xf32>
      %cst_390 = arith.constant 1.000000e+00 : f32
      %630 = vector.broadcast %cst_390 : f32 to vector<64x128xf32>
      %631 = arith.subf %629, %630 : vector<64x128xf32>
      %632 = arith.select %626, %602, %631 : vector<64x128xi1>, vector<64x128xf32>
      %cst_391 = arith.constant 0.000000e+00 : f32
      %633 = vector.broadcast %cst_391 : f32 to vector<64x128xf32>
      %634 = arith.cmpf ogt, %615, %633 : vector<64x128xf32>
      %cst_392 = arith.constant 0.000000e+00 : f32
      %635 = vector.broadcast %cst_392 : f32 to vector<64x128xf32>
      %636 = arith.minimumf %615, %635 : vector<64x128xf32>
      %637 = math.exp %636 : vector<64x128xf32>
      %cst_393 = arith.constant 1.000000e+00 : f32
      %638 = vector.broadcast %cst_393 : f32 to vector<64x128xf32>
      %639 = arith.subf %637, %638 : vector<64x128xf32>
      %640 = arith.select %634, %615, %639 : vector<64x128xi1>, vector<64x128xf32>
      %641 = arith.addf %632, %640 : vector<64x128xf32>
      %cst_394 = arith.constant 0.000000e+00 : f32
      %642 = vector.broadcast %cst_394 : f32 to vector<64x128xf32>
      %643 = arith.cmpf ogt, %624, %642 : vector<64x128xf32>
      %cst_395 = arith.constant 0.000000e+00 : f32
      %644 = vector.broadcast %cst_395 : f32 to vector<64x128xf32>
      %645 = arith.minimumf %624, %644 : vector<64x128xf32>
      %646 = math.exp %645 : vector<64x128xf32>
      %cst_396 = arith.constant 1.000000e+00 : f32
      %647 = vector.broadcast %cst_396 : f32 to vector<64x128xf32>
      %648 = arith.subf %646, %647 : vector<64x128xf32>
      %649 = arith.select %643, %624, %648 : vector<64x128xi1>, vector<64x128xf32>
      %650 = arith.addf %641, %649 : vector<64x128xf32>
      %c19_397 = arith.constant 19 : index
      %c0_398 = arith.constant 0 : index
      %c0_399 = arith.constant 0 : index
      %651 = vector.load %arg7[%c19_397, %c0_398, %c0_399] : memref<55x64x128xf32, #tpu.memory_space<vmem>>, vector<1x64x128xf32>
      %652 = vector.shape_cast %651 : vector<1x64x128xf32> to vector<64x128xf32>
      %c23_400 = arith.constant 23 : index
      %c0_401 = arith.constant 0 : index
      %c0_402 = arith.constant 0 : index
      %653 = vector.load %arg7[%c23_400, %c0_401, %c0_402] : memref<55x64x128xf32, #tpu.memory_space<vmem>>, vector<1x64x128xf32>
      %654 = vector.shape_cast %653 : vector<1x64x128xf32> to vector<64x128xf32>
      %c29_403 = arith.constant 29 : index
      %c0_404 = arith.constant 0 : index
      %c0_405 = arith.constant 0 : index
      %655 = vector.load %arg7[%c29_403, %c0_404, %c0_405] : memref<55x64x128xf32, #tpu.memory_space<vmem>>, vector<1x64x128xf32>
      %656 = vector.shape_cast %655 : vector<1x64x128xf32> to vector<64x128xf32>
      %c3_i32_406 = arith.constant 3 : i32
      %657 = tpu.dynamic_rotate %650 by %c3_i32_406 dim 1 : vector<64x128xf32>, i32 -> vector<64x128xf32>
      %c30_407 = arith.constant 30 : index
      %c0_408 = arith.constant 0 : index
      %c0_409 = arith.constant 0 : index
      %658 = vector.load %arg7[%c30_407, %c0_408, %c0_409] : memref<55x64x128xf32, #tpu.memory_space<vmem>>, vector<1x64x128xf32>
      %659 = vector.shape_cast %658 : vector<1x64x128xf32> to vector<64x128xf32>
      %660 = arith.mulf %659, %657 : vector<64x128xf32>
      %661 = arith.addf %656, %660 : vector<64x128xf32>
      %c2_i32_410 = arith.constant 2 : i32
      %662 = tpu.dynamic_rotate %650 by %c2_i32_410 dim 1 : vector<64x128xf32>, i32 -> vector<64x128xf32>
      %c24_411 = arith.constant 24 : index
      %c0_412 = arith.constant 0 : index
      %c0_413 = arith.constant 0 : index
      %663 = vector.load %arg7[%c24_411, %c0_412, %c0_413] : memref<55x64x128xf32, #tpu.memory_space<vmem>>, vector<1x64x128xf32>
      %664 = vector.shape_cast %663 : vector<1x64x128xf32> to vector<64x128xf32>
      %665 = arith.mulf %664, %662 : vector<64x128xf32>
      %666 = arith.addf %654, %665 : vector<64x128xf32>
      %c31_414 = arith.constant 31 : index
      %c0_415 = arith.constant 0 : index
      %c0_416 = arith.constant 0 : index
      %667 = vector.load %arg7[%c31_414, %c0_415, %c0_416] : memref<55x64x128xf32, #tpu.memory_space<vmem>>, vector<1x64x128xf32>
      %668 = vector.shape_cast %667 : vector<1x64x128xf32> to vector<64x128xf32>
      %669 = arith.mulf %668, %662 : vector<64x128xf32>
      %670 = arith.addf %661, %669 : vector<64x128xf32>
      %c1_i32_417 = arith.constant 1 : i32
      %671 = tpu.dynamic_rotate %650 by %c1_i32_417 dim 1 : vector<64x128xf32>, i32 -> vector<64x128xf32>
      %c20_418 = arith.constant 20 : index
      %c0_419 = arith.constant 0 : index
      %c0_420 = arith.constant 0 : index
      %672 = vector.load %arg7[%c20_418, %c0_419, %c0_420] : memref<55x64x128xf32, #tpu.memory_space<vmem>>, vector<1x64x128xf32>
      %673 = vector.shape_cast %672 : vector<1x64x128xf32> to vector<64x128xf32>
      %674 = arith.mulf %673, %671 : vector<64x128xf32>
      %675 = arith.addf %652, %674 : vector<64x128xf32>
      %c25_421 = arith.constant 25 : index
      %c0_422 = arith.constant 0 : index
      %c0_423 = arith.constant 0 : index
      %676 = vector.load %arg7[%c25_421, %c0_422, %c0_423] : memref<55x64x128xf32, #tpu.memory_space<vmem>>, vector<1x64x128xf32>
      %677 = vector.shape_cast %676 : vector<1x64x128xf32> to vector<64x128xf32>
      %678 = arith.mulf %677, %671 : vector<64x128xf32>
      %679 = arith.addf %666, %678 : vector<64x128xf32>
      %c32_424 = arith.constant 32 : index
      %c0_425 = arith.constant 0 : index
      %c0_426 = arith.constant 0 : index
      %680 = vector.load %arg7[%c32_424, %c0_425, %c0_426] : memref<55x64x128xf32, #tpu.memory_space<vmem>>, vector<1x64x128xf32>
      %681 = vector.shape_cast %680 : vector<1x64x128xf32> to vector<64x128xf32>
      %682 = arith.mulf %681, %671 : vector<64x128xf32>
      %683 = arith.addf %670, %682 : vector<64x128xf32>
      %c21_427 = arith.constant 21 : index
      %c0_428 = arith.constant 0 : index
      %c0_429 = arith.constant 0 : index
      %684 = vector.load %arg7[%c21_427, %c0_428, %c0_429] : memref<55x64x128xf32, #tpu.memory_space<vmem>>, vector<1x64x128xf32>
      %685 = vector.shape_cast %684 : vector<1x64x128xf32> to vector<64x128xf32>
      %686 = arith.mulf %685, %650 : vector<64x128xf32>
      %687 = arith.addf %675, %686 : vector<64x128xf32>
      %c26_430 = arith.constant 26 : index
      %c0_431 = arith.constant 0 : index
      %c0_432 = arith.constant 0 : index
      %688 = vector.load %arg7[%c26_430, %c0_431, %c0_432] : memref<55x64x128xf32, #tpu.memory_space<vmem>>, vector<1x64x128xf32>
      %689 = vector.shape_cast %688 : vector<1x64x128xf32> to vector<64x128xf32>
      %690 = arith.mulf %689, %650 : vector<64x128xf32>
      %691 = arith.addf %679, %690 : vector<64x128xf32>
      %c33_433 = arith.constant 33 : index
      %c0_434 = arith.constant 0 : index
      %c0_435 = arith.constant 0 : index
      %692 = vector.load %arg7[%c33_433, %c0_434, %c0_435] : memref<55x64x128xf32, #tpu.memory_space<vmem>>, vector<1x64x128xf32>
      %693 = vector.shape_cast %692 : vector<1x64x128xf32> to vector<64x128xf32>
      %694 = arith.mulf %693, %650 : vector<64x128xf32>
      %695 = arith.addf %683, %694 : vector<64x128xf32>
      %c127_i32_436 = arith.constant 127 : i32
      %696 = tpu.dynamic_rotate %650 by %c127_i32_436 dim 1 : vector<64x128xf32>, i32 -> vector<64x128xf32>
      %c22_437 = arith.constant 22 : index
      %c0_438 = arith.constant 0 : index
      %c0_439 = arith.constant 0 : index
      %697 = vector.load %arg7[%c22_437, %c0_438, %c0_439] : memref<55x64x128xf32, #tpu.memory_space<vmem>>, vector<1x64x128xf32>
      %698 = vector.shape_cast %697 : vector<1x64x128xf32> to vector<64x128xf32>
      %699 = arith.mulf %698, %696 : vector<64x128xf32>
      %700 = arith.addf %687, %699 : vector<64x128xf32>
      %c27_440 = arith.constant 27 : index
      %c0_441 = arith.constant 0 : index
      %c0_442 = arith.constant 0 : index
      %701 = vector.load %arg7[%c27_440, %c0_441, %c0_442] : memref<55x64x128xf32, #tpu.memory_space<vmem>>, vector<1x64x128xf32>
      %702 = vector.shape_cast %701 : vector<1x64x128xf32> to vector<64x128xf32>
      %703 = arith.mulf %702, %696 : vector<64x128xf32>
      %704 = arith.addf %691, %703 : vector<64x128xf32>
      %c34_443 = arith.constant 34 : index
      %c0_444 = arith.constant 0 : index
      %c0_445 = arith.constant 0 : index
      %705 = vector.load %arg7[%c34_443, %c0_444, %c0_445] : memref<55x64x128xf32, #tpu.memory_space<vmem>>, vector<1x64x128xf32>
      %706 = vector.shape_cast %705 : vector<1x64x128xf32> to vector<64x128xf32>
      %707 = arith.mulf %706, %696 : vector<64x128xf32>
      %708 = arith.addf %695, %707 : vector<64x128xf32>
      %c126_i32_446 = arith.constant 126 : i32
      %709 = tpu.dynamic_rotate %650 by %c126_i32_446 dim 1 : vector<64x128xf32>, i32 -> vector<64x128xf32>
      %c28_447 = arith.constant 28 : index
      %c0_448 = arith.constant 0 : index
      %c0_449 = arith.constant 0 : index
      %710 = vector.load %arg7[%c28_447, %c0_448, %c0_449] : memref<55x64x128xf32, #tpu.memory_space<vmem>>, vector<1x64x128xf32>
      %711 = vector.shape_cast %710 : vector<1x64x128xf32> to vector<64x128xf32>
      %712 = arith.mulf %711, %709 : vector<64x128xf32>
      %713 = arith.addf %704, %712 : vector<64x128xf32>
      %c35_450 = arith.constant 35 : index
      %c0_451 = arith.constant 0 : index
      %c0_452 = arith.constant 0 : index
      %714 = vector.load %arg7[%c35_450, %c0_451, %c0_452] : memref<55x64x128xf32, #tpu.memory_space<vmem>>, vector<1x64x128xf32>
      %715 = vector.shape_cast %714 : vector<1x64x128xf32> to vector<64x128xf32>
      %716 = arith.mulf %715, %709 : vector<64x128xf32>
      %717 = arith.addf %708, %716 : vector<64x128xf32>
      %c125_i32_453 = arith.constant 125 : i32
      %718 = tpu.dynamic_rotate %650 by %c125_i32_453 dim 1 : vector<64x128xf32>, i32 -> vector<64x128xf32>
      %c36_454 = arith.constant 36 : index
      %c0_455 = arith.constant 0 : index
      %c0_456 = arith.constant 0 : index
      %719 = vector.load %arg7[%c36_454, %c0_455, %c0_456] : memref<55x64x128xf32, #tpu.memory_space<vmem>>, vector<1x64x128xf32>
      %720 = vector.shape_cast %719 : vector<1x64x128xf32> to vector<64x128xf32>
      %721 = arith.mulf %720, %718 : vector<64x128xf32>
      %722 = arith.addf %717, %721 : vector<64x128xf32>
      %cst_457 = arith.constant 0.000000e+00 : f32
      %723 = vector.broadcast %cst_457 : f32 to vector<64x128xf32>
      %724 = arith.cmpf ogt, %700, %723 : vector<64x128xf32>
      %cst_458 = arith.constant 0.000000e+00 : f32
      %725 = vector.broadcast %cst_458 : f32 to vector<64x128xf32>
      %726 = arith.minimumf %700, %725 : vector<64x128xf32>
      %727 = math.exp %726 : vector<64x128xf32>
      %cst_459 = arith.constant 1.000000e+00 : f32
      %728 = vector.broadcast %cst_459 : f32 to vector<64x128xf32>
      %729 = arith.subf %727, %728 : vector<64x128xf32>
      %730 = arith.select %724, %700, %729 : vector<64x128xi1>, vector<64x128xf32>
      %cst_460 = arith.constant 0.000000e+00 : f32
      %731 = vector.broadcast %cst_460 : f32 to vector<64x128xf32>
      %732 = arith.cmpf ogt, %713, %731 : vector<64x128xf32>
      %cst_461 = arith.constant 0.000000e+00 : f32
      %733 = vector.broadcast %cst_461 : f32 to vector<64x128xf32>
      %734 = arith.minimumf %713, %733 : vector<64x128xf32>
      %735 = math.exp %734 : vector<64x128xf32>
      %cst_462 = arith.constant 1.000000e+00 : f32
      %736 = vector.broadcast %cst_462 : f32 to vector<64x128xf32>
      %737 = arith.subf %735, %736 : vector<64x128xf32>
      %738 = arith.select %732, %713, %737 : vector<64x128xi1>, vector<64x128xf32>
      %739 = arith.addf %730, %738 : vector<64x128xf32>
      %cst_463 = arith.constant 0.000000e+00 : f32
      %740 = vector.broadcast %cst_463 : f32 to vector<64x128xf32>
      %741 = arith.cmpf ogt, %722, %740 : vector<64x128xf32>
      %cst_464 = arith.constant 0.000000e+00 : f32
      %742 = vector.broadcast %cst_464 : f32 to vector<64x128xf32>
      %743 = arith.minimumf %722, %742 : vector<64x128xf32>
      %744 = math.exp %743 : vector<64x128xf32>
      %cst_465 = arith.constant 1.000000e+00 : f32
      %745 = vector.broadcast %cst_465 : f32 to vector<64x128xf32>
      %746 = arith.subf %744, %745 : vector<64x128xf32>
      %747 = arith.select %741, %722, %746 : vector<64x128xi1>, vector<64x128xf32>
      %748 = arith.addf %739, %747 : vector<64x128xf32>
      %c37_466 = arith.constant 37 : index
      %c0_467 = arith.constant 0 : index
      %c0_468 = arith.constant 0 : index
      %749 = vector.load %arg7[%c37_466, %c0_467, %c0_468] : memref<55x64x128xf32, #tpu.memory_space<vmem>>, vector<1x64x128xf32>
      %750 = vector.shape_cast %749 : vector<1x64x128xf32> to vector<64x128xf32>
      %c41_469 = arith.constant 41 : index
      %c0_470 = arith.constant 0 : index
      %c0_471 = arith.constant 0 : index
      %751 = vector.load %arg7[%c41_469, %c0_470, %c0_471] : memref<55x64x128xf32, #tpu.memory_space<vmem>>, vector<1x64x128xf32>
      %752 = vector.shape_cast %751 : vector<1x64x128xf32> to vector<64x128xf32>
      %c47_472 = arith.constant 47 : index
      %c0_473 = arith.constant 0 : index
      %c0_474 = arith.constant 0 : index
      %753 = vector.load %arg7[%c47_472, %c0_473, %c0_474] : memref<55x64x128xf32, #tpu.memory_space<vmem>>, vector<1x64x128xf32>
      %754 = vector.shape_cast %753 : vector<1x64x128xf32> to vector<64x128xf32>
      %c3_i32_475 = arith.constant 3 : i32
      %755 = tpu.dynamic_rotate %748 by %c3_i32_475 dim 1 : vector<64x128xf32>, i32 -> vector<64x128xf32>
      %c48_476 = arith.constant 48 : index
      %c0_477 = arith.constant 0 : index
      %c0_478 = arith.constant 0 : index
      %756 = vector.load %arg7[%c48_476, %c0_477, %c0_478] : memref<55x64x128xf32, #tpu.memory_space<vmem>>, vector<1x64x128xf32>
      %757 = vector.shape_cast %756 : vector<1x64x128xf32> to vector<64x128xf32>
      %758 = arith.mulf %757, %755 : vector<64x128xf32>
      %759 = arith.addf %754, %758 : vector<64x128xf32>
      %c2_i32_479 = arith.constant 2 : i32
      %760 = tpu.dynamic_rotate %748 by %c2_i32_479 dim 1 : vector<64x128xf32>, i32 -> vector<64x128xf32>
      %c42_480 = arith.constant 42 : index
      %c0_481 = arith.constant 0 : index
      %c0_482 = arith.constant 0 : index
      %761 = vector.load %arg7[%c42_480, %c0_481, %c0_482] : memref<55x64x128xf32, #tpu.memory_space<vmem>>, vector<1x64x128xf32>
      %762 = vector.shape_cast %761 : vector<1x64x128xf32> to vector<64x128xf32>
      %763 = arith.mulf %762, %760 : vector<64x128xf32>
      %764 = arith.addf %752, %763 : vector<64x128xf32>
      %c49_483 = arith.constant 49 : index
      %c0_484 = arith.constant 0 : index
      %c0_485 = arith.constant 0 : index
      %765 = vector.load %arg7[%c49_483, %c0_484, %c0_485] : memref<55x64x128xf32, #tpu.memory_space<vmem>>, vector<1x64x128xf32>
      %766 = vector.shape_cast %765 : vector<1x64x128xf32> to vector<64x128xf32>
      %767 = arith.mulf %766, %760 : vector<64x128xf32>
      %768 = arith.addf %759, %767 : vector<64x128xf32>
      %c1_i32_486 = arith.constant 1 : i32
      %769 = tpu.dynamic_rotate %748 by %c1_i32_486 dim 1 : vector<64x128xf32>, i32 -> vector<64x128xf32>
      %c38_487 = arith.constant 38 : index
      %c0_488 = arith.constant 0 : index
      %c0_489 = arith.constant 0 : index
      %770 = vector.load %arg7[%c38_487, %c0_488, %c0_489] : memref<55x64x128xf32, #tpu.memory_space<vmem>>, vector<1x64x128xf32>
      %771 = vector.shape_cast %770 : vector<1x64x128xf32> to vector<64x128xf32>
      %772 = arith.mulf %771, %769 : vector<64x128xf32>
      %773 = arith.addf %750, %772 : vector<64x128xf32>
      %c43_490 = arith.constant 43 : index
      %c0_491 = arith.constant 0 : index
      %c0_492 = arith.constant 0 : index
      %774 = vector.load %arg7[%c43_490, %c0_491, %c0_492] : memref<55x64x128xf32, #tpu.memory_space<vmem>>, vector<1x64x128xf32>
      %775 = vector.shape_cast %774 : vector<1x64x128xf32> to vector<64x128xf32>
      %776 = arith.mulf %775, %769 : vector<64x128xf32>
      %777 = arith.addf %764, %776 : vector<64x128xf32>
      %c50_493 = arith.constant 50 : index
      %c0_494 = arith.constant 0 : index
      %c0_495 = arith.constant 0 : index
      %778 = vector.load %arg7[%c50_493, %c0_494, %c0_495] : memref<55x64x128xf32, #tpu.memory_space<vmem>>, vector<1x64x128xf32>
      %779 = vector.shape_cast %778 : vector<1x64x128xf32> to vector<64x128xf32>
      %780 = arith.mulf %779, %769 : vector<64x128xf32>
      %781 = arith.addf %768, %780 : vector<64x128xf32>
      %c39_496 = arith.constant 39 : index
      %c0_497 = arith.constant 0 : index
      %c0_498 = arith.constant 0 : index
      %782 = vector.load %arg7[%c39_496, %c0_497, %c0_498] : memref<55x64x128xf32, #tpu.memory_space<vmem>>, vector<1x64x128xf32>
      %783 = vector.shape_cast %782 : vector<1x64x128xf32> to vector<64x128xf32>
      %784 = arith.mulf %783, %748 : vector<64x128xf32>
      %785 = arith.addf %773, %784 : vector<64x128xf32>
      %c44_499 = arith.constant 44 : index
      %c0_500 = arith.constant 0 : index
      %c0_501 = arith.constant 0 : index
      %786 = vector.load %arg7[%c44_499, %c0_500, %c0_501] : memref<55x64x128xf32, #tpu.memory_space<vmem>>, vector<1x64x128xf32>
      %787 = vector.shape_cast %786 : vector<1x64x128xf32> to vector<64x128xf32>
      %788 = arith.mulf %787, %748 : vector<64x128xf32>
      %789 = arith.addf %777, %788 : vector<64x128xf32>
      %c51_502 = arith.constant 51 : index
      %c0_503 = arith.constant 0 : index
      %c0_504 = arith.constant 0 : index
      %790 = vector.load %arg7[%c51_502, %c0_503, %c0_504] : memref<55x64x128xf32, #tpu.memory_space<vmem>>, vector<1x64x128xf32>
      %791 = vector.shape_cast %790 : vector<1x64x128xf32> to vector<64x128xf32>
      %792 = arith.mulf %791, %748 : vector<64x128xf32>
      %793 = arith.addf %781, %792 : vector<64x128xf32>
      %c127_i32_505 = arith.constant 127 : i32
      %794 = tpu.dynamic_rotate %748 by %c127_i32_505 dim 1 : vector<64x128xf32>, i32 -> vector<64x128xf32>
      %c40_506 = arith.constant 40 : index
      %c0_507 = arith.constant 0 : index
      %c0_508 = arith.constant 0 : index
      %795 = vector.load %arg7[%c40_506, %c0_507, %c0_508] : memref<55x64x128xf32, #tpu.memory_space<vmem>>, vector<1x64x128xf32>
      %796 = vector.shape_cast %795 : vector<1x64x128xf32> to vector<64x128xf32>
      %797 = arith.mulf %796, %794 : vector<64x128xf32>
      %798 = arith.addf %785, %797 : vector<64x128xf32>
      %c45_509 = arith.constant 45 : index
      %c0_510 = arith.constant 0 : index
      %c0_511 = arith.constant 0 : index
      %799 = vector.load %arg7[%c45_509, %c0_510, %c0_511] : memref<55x64x128xf32, #tpu.memory_space<vmem>>, vector<1x64x128xf32>
      %800 = vector.shape_cast %799 : vector<1x64x128xf32> to vector<64x128xf32>
      %801 = arith.mulf %800, %794 : vector<64x128xf32>
      %802 = arith.addf %789, %801 : vector<64x128xf32>
      %c52_512 = arith.constant 52 : index
      %c0_513 = arith.constant 0 : index
      %c0_514 = arith.constant 0 : index
      %803 = vector.load %arg7[%c52_512, %c0_513, %c0_514] : memref<55x64x128xf32, #tpu.memory_space<vmem>>, vector<1x64x128xf32>
      %804 = vector.shape_cast %803 : vector<1x64x128xf32> to vector<64x128xf32>
      %805 = arith.mulf %804, %794 : vector<64x128xf32>
      %806 = arith.addf %793, %805 : vector<64x128xf32>
      %c126_i32_515 = arith.constant 126 : i32
      %807 = tpu.dynamic_rotate %748 by %c126_i32_515 dim 1 : vector<64x128xf32>, i32 -> vector<64x128xf32>
      %c46_516 = arith.constant 46 : index
      %c0_517 = arith.constant 0 : index
      %c0_518 = arith.constant 0 : index
      %808 = vector.load %arg7[%c46_516, %c0_517, %c0_518] : memref<55x64x128xf32, #tpu.memory_space<vmem>>, vector<1x64x128xf32>
      %809 = vector.shape_cast %808 : vector<1x64x128xf32> to vector<64x128xf32>
      %810 = arith.mulf %809, %807 : vector<64x128xf32>
      %811 = arith.addf %802, %810 : vector<64x128xf32>
      %c53_519 = arith.constant 53 : index
      %c0_520 = arith.constant 0 : index
      %c0_521 = arith.constant 0 : index
      %812 = vector.load %arg7[%c53_519, %c0_520, %c0_521] : memref<55x64x128xf32, #tpu.memory_space<vmem>>, vector<1x64x128xf32>
      %813 = vector.shape_cast %812 : vector<1x64x128xf32> to vector<64x128xf32>
      %814 = arith.mulf %813, %807 : vector<64x128xf32>
      %815 = arith.addf %806, %814 : vector<64x128xf32>
      %c125_i32_522 = arith.constant 125 : i32
      %816 = tpu.dynamic_rotate %748 by %c125_i32_522 dim 1 : vector<64x128xf32>, i32 -> vector<64x128xf32>
      %c54_523 = arith.constant 54 : index
      %c0_524 = arith.constant 0 : index
      %c0_525 = arith.constant 0 : index
      %817 = vector.load %arg7[%c54_523, %c0_524, %c0_525] : memref<55x64x128xf32, #tpu.memory_space<vmem>>, vector<1x64x128xf32>
      %818 = vector.shape_cast %817 : vector<1x64x128xf32> to vector<64x128xf32>
      %819 = arith.mulf %818, %816 : vector<64x128xf32>
      %820 = arith.addf %815, %819 : vector<64x128xf32>
      %cst_526 = arith.constant 0.000000e+00 : f32
      %821 = vector.broadcast %cst_526 : f32 to vector<64x128xf32>
      %822 = arith.cmpf ogt, %798, %821 : vector<64x128xf32>
      %cst_527 = arith.constant 0.000000e+00 : f32
      %823 = vector.broadcast %cst_527 : f32 to vector<64x128xf32>
      %824 = arith.minimumf %798, %823 : vector<64x128xf32>
      %825 = math.exp %824 : vector<64x128xf32>
      %cst_528 = arith.constant 1.000000e+00 : f32
      %826 = vector.broadcast %cst_528 : f32 to vector<64x128xf32>
      %827 = arith.subf %825, %826 : vector<64x128xf32>
      %828 = arith.select %822, %798, %827 : vector<64x128xi1>, vector<64x128xf32>
      %cst_529 = arith.constant 0.000000e+00 : f32
      %829 = vector.broadcast %cst_529 : f32 to vector<64x128xf32>
      %830 = arith.cmpf ogt, %811, %829 : vector<64x128xf32>
      %cst_530 = arith.constant 0.000000e+00 : f32
      %831 = vector.broadcast %cst_530 : f32 to vector<64x128xf32>
      %832 = arith.minimumf %811, %831 : vector<64x128xf32>
      %833 = math.exp %832 : vector<64x128xf32>
      %cst_531 = arith.constant 1.000000e+00 : f32
      %834 = vector.broadcast %cst_531 : f32 to vector<64x128xf32>
      %835 = arith.subf %833, %834 : vector<64x128xf32>
      %836 = arith.select %830, %811, %835 : vector<64x128xi1>, vector<64x128xf32>
      %837 = arith.addf %828, %836 : vector<64x128xf32>
      %cst_532 = arith.constant 0.000000e+00 : f32
      %838 = vector.broadcast %cst_532 : f32 to vector<64x128xf32>
      %839 = arith.cmpf ogt, %820, %838 : vector<64x128xf32>
      %cst_533 = arith.constant 0.000000e+00 : f32
      %840 = vector.broadcast %cst_533 : f32 to vector<64x128xf32>
      %841 = arith.minimumf %820, %840 : vector<64x128xf32>
      %842 = math.exp %841 : vector<64x128xf32>
      %cst_534 = arith.constant 1.000000e+00 : f32
      %843 = vector.broadcast %cst_534 : f32 to vector<64x128xf32>
      %844 = arith.subf %842, %843 : vector<64x128xf32>
      %845 = arith.select %839, %820, %844 : vector<64x128xi1>, vector<64x128xf32>
      %846 = arith.addf %837, %845 : vector<64x128xf32>
      %cst_535 = arith.constant dense<0.000000e+00> : vector<64xf32>
      %847 = vector.multi_reduction <add>, %846, %cst_535 [1] : vector<64x128xf32> to vector<64xf32>
      %848 = vector.shape_cast %847 : vector<64xf32> to vector<64x1xf32>
      %cst_536 = arith.constant 1.280000e+02 : f32
      %849 = vector.broadcast %cst_536 : f32 to vector<64x1xf32>
      %850 = arith.divf %848, %849 : vector<64x1xf32>
      %c0_537 = arith.constant 0 : index
      %c0_538 = arith.constant 0 : index
      %851 = vector.load %arg3[%c0_537, %c0_538] : memref<64x128xf32, #tpu.memory_space<vmem>>, vector<64x128xf32>
      %852 = vector.broadcast %850 : vector<64x1xf32> to vector<64x128xf32>
      %853 = arith.mulf %852, %851 : vector<64x128xf32>
      %cst_539 = arith.constant dense<0.000000e+00> : vector<128xf32>
      %854 = vector.multi_reduction <add>, %853, %cst_539 [0] : vector<64x128xf32> to vector<128xf32>
      %855 = vector.shape_cast %854 : vector<128xf32> to vector<1x128xf32>
      %856 = vector.broadcast %arg8 : i32 to vector<8x128xi32>
      %857 = arith.cmpi eq, %516, %856 : vector<8x128xi32>
      %cst_540 = arith.constant 0.000000e+00 : f32
      %858 = vector.shape_cast %855 : vector<1x128xf32> to vector<1x128xf32>
      %859 = vector.broadcast %858 : vector<1x128xf32> to vector<8x128xf32>
      %860 = vector.broadcast %cst_540 : f32 to vector<8x128xf32>
      %861 = arith.select %857, %859, %860 : vector<8x128xi1>, vector<8x128xf32>
      %862 = arith.addf %arg9, %861 : vector<8x128xf32>
      scf.yield %862 : vector<8x128xf32>
    }
    %c8_i32_305 = arith.constant 8 : i32
    %c0_306 = arith.constant 0 : index
    %c0_307 = arith.constant 0 : index
    %520 = vector.load %arg4[%c0_306, %c0_307] : memref<128x128xf32, #tpu.memory_space<vmem>>, vector<128x128xf32>
    %cst_308 = arith.constant dense<0.000000e+00> : vector<8x128xf32>
    %521 = tpu.matmul %519, %520, %cst_308 {dimension_numbers = #tpu.dot_dimension_numbers<[1], [0], [0], [1], [0, 0, 1, 1], [], []>} : vector<8x128xf32>, vector<128x128xf32>, vector<8x128xf32> -> vector<8x128xf32>
    %c0_309 = arith.constant 0 : index
    %c0_310 = arith.constant 0 : index
    %522 = vector.load %arg5[%c0_309, %c0_310] : memref<1x128xf32, #tpu.memory_space<vmem>>, vector<1x128xf32>
    %523 = vector.broadcast %522 : vector<1x128xf32> to vector<8x128xf32>
    %524 = arith.addf %521, %523 : vector<8x128xf32>
    %c0_311 = arith.constant 0 : index
    %c0_312 = arith.constant 0 : index
    %525 = vector.load %arg6[%c0_311, %c0_312] : memref<8x128xf32, #tpu.memory_space<vmem>>, vector<8x128xf32>
    tpu.vector_store %arg6[%c0_311, %c0_312], %524 {strides = array<i32>} : memref<8x128xf32, #tpu.memory_space<vmem>>, vector<8x128xf32>,
    return
  }
  func.func @transform_0(%arg0: i32) -> (i32, i32, i32) {
    %c0_i32 = arith.constant 0 : i32
    %c0_i32_0 = arith.constant 0 : i32
    %c0_i32_1 = arith.constant 0 : i32
    return %arg0, %c0_i32, %c0_i32_0 : i32, i32, i32
  }
  func.func @transform_1(%arg0: i32) -> (i32, i32, i32) {
    %c0_i32 = arith.constant 0 : i32
    %c0_i32_0 = arith.constant 0 : i32
    %c0_i32_1 = arith.constant 0 : i32
    %c0_i32_2 = arith.constant 0 : i32
    return %c0_i32, %c0_i32_0, %c0_i32_1 : i32, i32, i32
  }
  func.func @transform_2(%arg0: i32) -> (i32, i32) {
    %c0_i32 = arith.constant 0 : i32
    %c0_i32_0 = arith.constant 0 : i32
    %c0_i32_1 = arith.constant 0 : i32
    return %c0_i32, %c0_i32_0 : i32, i32
  }
  func.func @transform_3(%arg0: i32) -> (i32, i32) {
    %c0_i32 = arith.constant 0 : i32
    %c0_i32_0 = arith.constant 0 : i32
    %c0_i32_1 = arith.constant 0 : i32
    return %c0_i32, %c0_i32_0 : i32, i32
  }
  func.func @transform_4(%arg0: i32) -> (i32, i32) {
    %c0_i32 = arith.constant 0 : i32
    %c0_i32_0 = arith.constant 0 : i32
    %c0_i32_1 = arith.constant 0 : i32
    return %c0_i32, %c0_i32_0 : i32, i32
  }
  func.func @transform_5(%arg0: i32) -> (i32, i32) {
    %c0_i32 = arith.constant 0 : i32
    %c0_i32_0 = arith.constant 0 : i32
    return %arg0, %c0_i32 : i32, i32
  }
}

</mosaic_0001>

<llo_original>
// kernel: gavel_forward.1
$region0: #{gavel_forward.1}
  #allocation0 [shape = 'u32[]', space=smem, size = 0x4, offset = 0x4, fixed_abs, tag = 'smem constant byte address 0x4 - core index']
  #allocation1 [shape = 'u32[144,128]{1,0:T(1,128)}', space=vmem, size = 0x12000, scoped, tag = 'internal scratch']
  #allocation2 [shape = 'f32[55,64,128]{2,1,0:T(8,128)}', space=vmem, size = 0x1b8000, scoped, tag = 'scratch operand']
  %s0 = inlined_call_operand.vmem [shape: f32[16,2,128], index: 0, kind: input, shape index: {}]
  %s1 = inlined_call_operand.hbm [shape: f32[10,64,128], index: 1, kind: input, shape index: {}]
  %s2 = inlined_call_operand.vmem [shape: f32[64,128], index: 2, kind: input, shape index: {}]
  %s3 = inlined_call_operand.vmem [shape: f32[128,128], index: 3, kind: input, shape index: {}]
  %s4 = inlined_call_operand.vmem [shape: f32[1,128], index: 4, kind: input, shape index: {}]
  %s5 = inlined_call_operand.vmem [shape: f32[16,128], index: 5, kind: output, shape index: {}]
  %s6 = sld [smem:[#allocation0]]
  $region64: #{gavel_forward.1} parent=0
    _
  %s8 = ssub.s32 1, %s6
  %s9 = scalar_select 0, %s8, %s6
  $region1: #{gavel_forward.1} parent=0
    #allocation3 [shape = 'u8[327680]{0}', space=vmem, size = 0x50000, scoped, tag = 'input window, operand 1, single buffered']
    #allocation4 [shape = 's32[2]{0}', space=sflag, size = 0x8, scoped, tag = 'scoped memory for gavel_forward.1']
    %10 = vsyncpa [#allocation4], 0
    loop: start=0, step=1, limit=4
    $region2: #{gavel_forward.1} parent=1 // loop_pre_header
      _
    $region3: #{gavel_forward.1} parent=1 // loop_header
      %s12 = sphi 0, %s16
      %p13 = scmp.ge.s32.totalorder %s12, 4
      %s22 = sphi 0, %s24
      %s25 = sphi 0, %s22
      %s26 = sphi 0, %s25
      %s42 = sphi 0, %s26
      %s46 = sphi 0, %s46
      %s48 = sphi 0, %s46
      %s49 = sphi 0, %s48
      %s63 = sphi 0, %s49
      %s67 = sphi 0, %s67
      %s69 = sphi 0, %s67
      %s70 = sphi 0, %s69
      %s84 = sphi 0, %s70
      %s88 = sphi 0, %s88
      %s90 = sphi 0, %s88
      %s91 = sphi 0, %s90
      %s105 = sphi 0, %s91
      %s109 = sphi 0, %s109
      %s111 = sphi 0, %s109
      %s112 = sphi 0, %s111
      %s126 = sphi 0, %s112
      %s132 = sphi 0, %s134
      %s135 = sphi 0, %s132
      %s136 = sphi 0, %s135
      %s152 = sphi 0, %s136
    $region4: #{gavel_forward.1} parent=1 // loop_header_branch
      %15 = sbr.rel (%p13) target = $region8
    $region5: #{gavel_forward.1} parent=1 // loop_body
      %s17 = ssub.s32 %s12, 1
      %s18 = ssub.s32 %s12, 2
      %s19 = sadd.s32 %s12, 1
      %s20 = ssub.s32 %s12, %s19
      %p21 = scmp.eq.s32.totalorder %s20, 0
      %s23 = sadd.s32 %s22, 1
      %s24 = scalar_select %p21, %s22, %s23
      %p27 = pneg %p21
      %p28 = scmp.eq.s32.totalorder %s12, 1
      %p29 = por %p27, %p28
      %p30 = scmp.ne.s32.totalorder %s22, %s25
      %p31 = scmp.eq.s32.totalorder %s12, 0
      %p32 = por %p30, %p31
      %p33 = scmp.ne.s32.totalorder %s22, %s25
      %p34 = scmp.eq.s32.totalorder %s17, 1
      %p35 = por %p33, %p34
      %p36 = scmp.ne.s32.totalorder %s25, %s26
      %p37 = scmp.eq.s32.totalorder %s17, 0
      %p38 = por %p36, %p37
      %p39 = scmp.ne.s32.totalorder %s25, %s26
      %p40 = scmp.eq.s32.totalorder %s18, 1
      %p41 = por %p39, %p40
      %p43 = scmp.ne.s32.totalorder %s26, %s42
      %p44 = scmp.eq.s32.totalorder %s18, 0
      %p45 = por %p43, %p44
      %s47 = sadd.s32 %s46, 1
      %p50 = scmp.eq.s32.totalorder %s12, 1
      %p51 = scmp.ne.s32.totalorder %s46, %s48
      %p52 = scmp.eq.s32.totalorder %s12, 0
      %p53 = por %p51, %p52
      %p54 = scmp.ne.s32.totalorder %s46, %s48
      %p55 = scmp.eq.s32.totalorder %s17, 1
      %p56 = por %p54, %p55
      %p57 = scmp.ne.s32.totalorder %s48, %s49
      %p58 = scmp.eq.s32.totalorder %s17, 0
      %p59 = por %p57, %p58
      %p60 = scmp.ne.s32.totalorder %s48, %s49
      %p61 = scmp.eq.s32.totalorder %s18, 1
      %p62 = por %p60, %p61
      %p64 = scmp.ne.s32.totalorder %s49, %s63
      %p65 = scmp.eq.s32.totalorder %s18, 0
      %p66 = por %p64, %p65
      %s68 = sadd.s32 %s67, 1
      %p71 = scmp.eq.s32.totalorder %s12, 1
      %p72 = scmp.ne.s32.totalorder %s67, %s69
      %p73 = scmp.eq.s32.totalorder %s12, 0
      %p74 = por %p72, %p73
      %p75 = scmp.ne.s32.totalorder %s67, %s69
      %p76 = scmp.eq.s32.totalorder %s17, 1
      %p77 = por %p75, %p76
      %p78 = scmp.ne.s32.totalorder %s69, %s70
      %p79 = scmp.eq.s32.totalorder %s17, 0
      %p80 = por %p78, %p79
      %p81 = scmp.ne.s32.totalorder %s69, %s70
      %p82 = scmp.eq.s32.totalorder %s18, 1
      %p83 = por %p81, %p82
      %p85 = scmp.ne.s32.totalorder %s70, %s84
      %p86 = scmp.eq.s32.totalorder %s18, 0
      %p87 = por %p85, %p86
      %s89 = sadd.s32 %s88, 1
      %p92 = scmp.eq.s32.totalorder %s12, 1
      %p93 = scmp.ne.s32.totalorder %s88, %s90
      %p94 = scmp.eq.s32.totalorder %s12, 0
      %p95 = por %p93, %p94
      %p96 = scmp.ne.s32.totalorder %s88, %s90
      %p97 = scmp.eq.s32.totalorder %s17, 1
      %p98 = por %p96, %p97
      %p99 = scmp.ne.s32.totalorder %s90, %s91
      %p100 = scmp.eq.s32.totalorder %s17, 0
      %p101 = por %p99, %p100
      %p102 = scmp.ne.s32.totalorder %s90, %s91
      %p103 = scmp.eq.s32.totalorder %s18, 1
      %p104 = por %p102, %p103
      %p106 = scmp.ne.s32.totalorder %s91, %s105
      %p107 = scmp.eq.s32.totalorder %s18, 0
      %p108 = por %p106, %p107
      %s110 = sadd.s32 %s109, 1
      %p113 = scmp.eq.s32.totalorder %s12, 1
      %p114 = scmp.ne.s32.totalorder %s109, %s111
      %p115 = scmp.eq.s32.totalorder %s12, 0
      %p116 = por %p114, %p115
      %p117 = scmp.ne.s32.totalorder %s109, %s111
      %p118 = scmp.eq.s32.totalorder %s17, 1
      %p119 = por %p117, %p118
      %p120 = scmp.ne.s32.totalorder %s111, %s112
      %p121 = scmp.eq.s32.totalorder %s17, 0
      %p122 = por %p120, %p121
      %p123 = scmp.ne.s32.totalorder %s111, %s112
      %p124 = scmp.eq.s32.totalorder %s18, 1
      %p125 = por %p123, %p124
      %p127 = scmp.ne.s32.totalorder %s112, %s126
      %p128 = scmp.eq.s32.totalorder %s18, 0
      %p129 = por %p127, %p128
      %s130 = ssub.s32 %s12, %s19
      %p131 = scmp.eq.s32.totalorder %s130, 0
      %s133 = sadd.s32 %s132, 1
      %s134 = scalar_select %p131, %s132, %s133
      %p137 = pneg %p131
      %p138 = scmp.eq.s32.totalorder %s12, 1
      %p139 = por %p137, %p138
      %p140 = scmp.ne.s32.totalorder %s132, %s135
      %p141 = scmp.eq.s32.totalorder %s12, 0
      %p142 = por %p140, %p141
      %p143 = scmp.ne.s32.totalorder %s132, %s135
      %p144 = scmp.eq.s32.totalorder %s17, 1
      %p145 = por %p143, %p144
      %p146 = scmp.ne.s32.totalorder %s135, %s136
      %p147 = scmp.eq.s32.totalorder %s17, 0
      %p148 = por %p146, %p147
      %p149 = scmp.ne.s32.totalorder %s135, %s136
      %p150 = scmp.eq.s32.totalorder %s18, 1
      %p151 = por %p149, %p150
      %p153 = scmp.ne.s32.totalorder %s136, %s152
      %p154 = scmp.eq.s32.totalorder %s18, 0
      %p155 = por %p153, %p154
      %p156 = scmp.le.s32.totalorder 1, %s12
      %p157 = scmp.lt.s32.totalorder %s12, 3
      %p158 = pnand %p156, %p157
      %p159 = pneg %p158
      // Predicated region
      $region9: #{gavel_forward.1} parent=5 // pred_check
        _
      $region10: #{gavel_forward.1} parent=5 // pred_check_branch
        %161 = sbr.rel (%p158) target = $region12
      $region11: #{gavel_forward.1} parent=5 // pred_region
        %s162 = ssub.s32 %s12, 1
        // Predicated region
        $region13: #{gavel_forward.1} parent=11 // pred_check
          %p163 = pneg %p59
        $region14: #{gavel_forward.1} parent=11 // pred_check_branch
          %165 = sbr.rel (%p163) target = $region16
        $region15: #{gavel_forward.1} parent=11 // pred_region
          %s167 = ssub.s32 10240, 10240
          %168 = vsyncadd [#allocation4], %s167
          %s169 = sshll.u32 [#allocation3], 4
          %s170 = int_to_ptr.vmem [resolvable:$true] %s169
          %175 = dma.hbm_to_vmem [thread:$0]  %s1, 10240, %s170, [#allocation4], 128, 128, 8
        $region16: #{gavel_forward.1} parent=11 // pred_fallthru
          _
        // Predicated region
        $region17: #{gavel_forward.1} parent=11 // pred_check
          %p176 = pneg %p80
        $region18: #{gavel_forward.1} parent=11 // pred_check_branch
          %178 = sbr.rel (%p176) target = $region20
        $region19: #{gavel_forward.1} parent=11 // pred_region
          _
        $region20: #{gavel_forward.1} parent=11 // pred_fallthru
          _
        // Predicated region
        $region21: #{gavel_forward.1} parent=11 // pred_check
          %p179 = pneg %p101
        $region22: #{gavel_forward.1} parent=11 // pred_check_branch
          %181 = sbr.rel (%p179) target = $region24
        $region23: #{gavel_forward.1} parent=11 // pred_region
          _
        $region24: #{gavel_forward.1} parent=11 // pred_fallthru
          _
        // Predicated region
        $region25: #{gavel_forward.1} parent=11 // pred_check
          %p182 = pneg %p122
        $region26: #{gavel_forward.1} parent=11 // pred_check_branch
          %184 = sbr.rel (%p182) target = $region28
        $region27: #{gavel_forward.1} parent=11 // pred_region
          _
        $region28: #{gavel_forward.1} parent=11 // pred_fallthru
          _
      $region12: #{gavel_forward.1} parent=5 // pred_fallthru
        _
      %p185 = scmp.lt.s32.totalorder %s12, 2
      // Predicated region
      $region29: #{gavel_forward.1} parent=5 // pred_check
        %p186 = pneg %p185
      $region30: #{gavel_forward.1} parent=5 // pred_check_branch
        %188 = sbr.rel (%p186) target = $region32
      $region31: #{gavel_forward.1} parent=5 // pred_region
        // Predicated region
        $region33: #{gavel_forward.1} parent=31 // pred_check
          %p189 = pneg %p32
        $region34: #{gavel_forward.1} parent=31 // pred_check_branch
          %191 = sbr.rel (%p189) target = $region36
        $region35: #{gavel_forward.1} parent=31 // pred_region
          %s192 = smul.u32 8, %s12
          %p193 = scmp.lt.s32.totalorder %s192, 15
          %s194 = scalar_select %p193, %s192, 15
          %s195 = smul.addr %s194, 2
          %s196 = scalar_lea.vmem %s0, %s195
          %s197 = smul.u32 8, %s12
        $region36: #{gavel_forward.1} parent=31 // pred_fallthru
          _
      $region32: #{gavel_forward.1} parent=5 // pred_fallthru
        _
      %p198 = scmp.le.s32.totalorder 1, %s12
      %p199 = scmp.lt.s32.totalorder %s12, 3
      %p200 = pnand %p198, %p199
      %p201 = pneg %p200
      // Predicated region
      $region37: #{gavel_forward.1} parent=5 // pred_check
        _
      $region38: #{gavel_forward.1} parent=5 // pred_check_branch
        %203 = sbr.rel (%p200) target = $region40
      $region39: #{gavel_forward.1} parent=5 // pred_region
        %s204 = ssub.s32 %s12, 1
        // Predicated region
        $region41: #{gavel_forward.1} parent=39 // pred_check
          %p205 = pneg %p59
        $region42: #{gavel_forward.1} parent=39 // pred_check_branch
          %207 = sbr.rel (%p205) target = $region44
        $region43: #{gavel_forward.1} parent=39 // pred_region
          %208 = dma.done [#allocation4], 10240
        $region44: #{gavel_forward.1} parent=39 // pred_fallthru
          _
        %s209 = smul.u32 8, %s17
        %p210 = scmp.lt.s32.totalorder %s209, 15
        %s211 = scalar_select %p210, %s209, 15
        %s212 = smul.addr %s211, 2
        %s213 = scalar_lea.vmem %s0, %s212
        %p214 = pneg %p38
        %p215 = pneg %p35
        %p216 = pneg %p59
        %p217 = pneg %p56
        %p218 = pneg %p80
        %p219 = pneg %p77
        %p220 = pneg %p101
        %p221 = pneg %p98
        %p222 = pneg %p122
        %p223 = pneg %p119
        %p224 = pneg %p148
        %p225 = pneg %p145
        %p226 = scmp.lt.s32.totalorder %s17, 1
        %s227 = scalar_select %p226, %s17, 1
        %s228 = smul.addr %s227, 8
        %s229 = scalar_lea.vmem %s5, %s228
        %s230 = smul.u32 8, %s17
        %p231 = scmp.lt.s32.totalorder %s230, 15
        %s232 = scalar_select %p231, %s230, 15
        %s233 = smul.addr %s232, 2
        %s234 = scalar_lea.vmem %s0, %s233
        %s235 = smul.u32 8, %s17
        %p236 = scmp.lt.s32.totalorder %s17, 1
        %s237 = scalar_select %p236, %s17, 1
        %s238 = smul.addr %s237, 8
        %s239 = scalar_lea.vmem %s5, %s238
        %v240 = vlaneseq
        %v241 = vand.u32 %v240, 127
        %v242 = vadd.s32 %v241, 4294967293
        %vm243 = vcmp.ge.s32.totalorder %v242, 0
        %vm244 = vcmp.lt.s32.totalorder %v242, 128
        %vm245 = vmand %vm243, %vm244
        %v246 = vsel %vm245, 1, 0
        %v247 = vcvt.s32.f32 %v246
        %v248 = vadd.s32 %v241, 4294967294
        %vm249 = vcmp.ge.s32.totalorder %v248, 0
        %vm250 = vcmp.lt.s32.totalorder %v248, 128
        %vm251 = vmand %vm249, %vm250
        %v252 = vsel %vm251, 1, 0
        %v253 = vcvt.s32.f32 %v252
        %v254 = vadd.s32 %v241, 4294967295
        %vm255 = vcmp.ge.s32.totalorder %v254, 0
        %vm256 = vcmp.lt.s32.totalorder %v254, 128
        %vm257 = vmand %vm255, %vm256
        %v258 = vsel %vm257, 1, 0
        %v259 = vcvt.s32.f32 %v258
        %v260 = vadd.s32 %v241, 1
        %vm261 = vcmp.ge.s32.totalorder %v260, 0
        %vm262 = vcmp.lt.s32.totalorder %v260, 128
        %vm263 = vmand %vm261, %vm262
        %v264 = vsel %vm263, 1, 0
        %v265 = vcvt.s32.f32 %v264
        %v266 = vadd.s32 %v241, 2
        %vm267 = vcmp.ge.s32.totalorder %v266, 0
        %vm268 = vcmp.lt.s32.totalorder %v266, 128
        %vm269 = vmand %vm267, %vm268
        %v270 = vsel %vm269, 1, 0
        %v271 = vcvt.s32.f32 %v270
        %v272 = vadd.s32 %v241, 3
        %vm273 = vcmp.ge.s32.totalorder %v272, 0
        %vm274 = vcmp.lt.s32.totalorder %v272, 128
        %vm275 = vmand %vm273, %vm274
        %v276 = vsel %vm275, 1, 0
        %v277 = vcvt.s32.f32 %v276
        %v278 = vld [vmem:[#allocation3] sm:$0xff]
        %v279 = vld [vmem:[#allocation3 + $0x8] sm:$0xff]
        %v280 = vld [vmem:[#allocation3 + $0x10] sm:$0xff]
        %v281 = vld [vmem:[#allocation3 + $0x18] sm:$0xff]
        %v282 = vld [vmem:[#allocation3 + $0x20] sm:$0xff]
        %v283 = vld [vmem:[#allocation3 + $0x28] sm:$0xff]
        %v284 = vld [vmem:[#allocation3 + $0x30] sm:$0xff]
        %v285 = vld [vmem:[#allocation3 + $0x38] sm:$0xff]
        %287 = vset.pattern.permute.xlu0 8
        %288 = vperm.xlu0 %287, %v278
        %v289 = vpop.permute.xlu0 %288
        %292 = vset.pattern.permute.xlu0 8
        %293 = vperm.xlu0 %292, %v279
        %v294 = vpop.permute.xlu0 %293
        %297 = vset.pattern.permute.xlu0 8
        %298 = vperm.xlu0 %297, %v280
        %v299 = vpop.permute.xlu0 %298
        %302 = vset.pattern.permute.xlu0 8
        %303 = vperm.xlu0 %302, %v281
        %v304 = vpop.permute.xlu0 %303
        %307 = vset.pattern.permute.xlu0 8
        %308 = vperm.xlu0 %307, %v282
        %v309 = vpop.permute.xlu0 %308
        %312 = vset.pattern.permute.xlu0 8
        %313 = vperm.xlu0 %312, %v283
        %v314 = vpop.permute.xlu0 %313
        %317 = vset.pattern.permute.xlu0 8
        %318 = vperm.xlu0 %317, %v284
        %v319 = vpop.permute.xlu0 %318
        %322 = vset.pattern.permute.xlu0 8
        %323 = vperm.xlu0 %322, %v285
        %v324 = vpop.permute.xlu0 %323
        %326 = vst [vmem:[#allocation2] sm:$0xff] %v289
        %327 = vst [vmem:[#allocation2 + $0x8] sm:$0xff] %v294
        %328 = vst [vmem:[#allocation2 + $0x10] sm:$0xff] %v299
        %329 = vst [vmem:[#allocation2 + $0x18] sm:$0xff] %v304
        %330 = vst [vmem:[#allocation2 + $0x20] sm:$0xff] %v309
        %331 = vst [vmem:[#allocation2 + $0x28] sm:$0xff] %v314
        %332 = vst [vmem:[#allocation2 + $0x30] sm:$0xff] %v319
        %333 = vst [vmem:[#allocation2 + $0x38] sm:$0xff] %v324
        %s334 = scalar_lea.vmem [#allocation3], 64
        %v335 = vld [vmem:[%s334] sm:$0xff]
        %v336 = vld [vmem:[%s334 + $0x8] sm:$0xff]
        %v337 = vld [vmem:[%s334 + $0x10] sm:$0xff]
        %v338 = vld [vmem:[%s334 + $0x18] sm:$0xff]
        %v339 = vld [vmem:[%s334 + $0x20] sm:$0xff]
        %v340 = vld [vmem:[%s334 + $0x28] sm:$0xff]
        %v341 = vld [vmem:[%s334 + $0x30] sm:$0xff]
        %v342 = vld [vmem:[%s334 + $0x38] sm:$0xff]
        %344 = vset.pattern.permute.xlu0 8
        %345 = vperm.xlu0 %344, %v335
        %v346 = vpop.permute.xlu0 %345
        %349 = vset.pattern.permute.xlu0 8
        %350 = vperm.xlu0 %349, %v336
        %v351 = vpop.permute.xlu0 %350
        %354 = vset.pattern.permute.xlu0 8
        %355 = vperm.xlu0 %354, %v337
        %v356 = vpop.permute.xlu0 %355
        %359 = vset.pattern.permute.xlu0 8
        %360 = vperm.xlu0 %359, %v338
        %v361 = vpop.permute.xlu0 %360
        %364 = vset.pattern.permute.xlu0 8
        %365 = vperm.xlu0 %364, %v339
        %v366 = vpop.permute.xlu0 %365
        %369 = vset.pattern.permute.xlu0 8
        %370 = vperm.xlu0 %369, %v340
        %v371 = vpop.permute.xlu0 %370
        %374 = vset.pattern.permute.xlu0 8
        %375 = vperm.xlu0 %374, %v341
        %v376 = vpop.permute.xlu0 %375
        %379 = vset.pattern.permute.xlu0 8
        %380 = vperm.xlu0 %379, %v342
        %v381 = vpop.permute.xlu0 %380
        %s383 = scalar_lea.vmem [#allocation2], 64
        %384 = vst [vmem:[%s383] sm:$0xff] %v346
        %385 = vst [vmem:[%s383 + $0x8] sm:$0xff] %v351
        %386 = vst [vmem:[%s383 + $0x10] sm:$0xff] %v356
        %387 = vst [vmem:[%s383 + $0x18] sm:$0xff] %v361
        %388 = vst [vmem:[%s383 + $0x20] sm:$0xff] %v366
        %389 = vst [vmem:[%s383 + $0x28] sm:$0xff] %v371
        %390 = vst [vmem:[%s383 + $0x30] sm:$0xff] %v376
        %391 = vst [vmem:[%s383 + $0x38] sm:$0xff] %v381
        %v392 = vld [vmem:[%s334] sm:$0xff]
        %v393 = vld [vmem:[%s334 + $0x8] sm:$0xff]
        %v394 = vld [vmem:[%s334 + $0x10] sm:$0xff]
        %v395 = vld [vmem:[%s334 + $0x18] sm:$0xff]
        %v396 = vld [vmem:[%s334 + $0x20] sm:$0xff]
        %v397 = vld [vmem:[%s334 + $0x28] sm:$0xff]
        %v398 = vld [vmem:[%s334 + $0x30] sm:$0xff]
        %v399 = vld [vmem:[%s334 + $0x38] sm:$0xff]
        %401 = vset.pattern.permute.xlu0 2
        %402 = vperm.xlu0 %401, %v392
        %v403 = vpop.permute.xlu0 %402
        %406 = vset.pattern.permute.xlu0 2
        %407 = vperm.xlu0 %406, %v393
        %v408 = vpop.permute.xlu0 %407
        %411 = vset.pattern.permute.xlu0 2
        %412 = vperm.xlu0 %411, %v394
        %v413 = vpop.permute.xlu0 %412
        %416 = vset.pattern.permute.xlu0 2
        %417 = vperm.xlu0 %416, %v395
        %v418 = vpop.permute.xlu0 %417
        %421 = vset.pattern.permute.xlu0 2
        %422 = vperm.xlu0 %421, %v396
        %v423 = vpop.permute.xlu0 %422
        %426 = vset.pattern.permute.xlu0 2
        %427 = vperm.xlu0 %426, %v397
        %v428 = vpop.permute.xlu0 %427
        %431 = vset.pattern.permute.xlu0 2
        %432 = vperm.xlu0 %431, %v398
        %v433 = vpop.permute.xlu0 %432
        %436 = vset.pattern.permute.xlu0 2
        %437 = vperm.xlu0 %436, %v399
        %v438 = vpop.permute.xlu0 %437
        %v440 = vmul.f32 %v403, %v259
        %v441 = vmul.f32 %v408, %v259
        %v442 = vmul.f32 %v413, %v259
        %v443 = vmul.f32 %v418, %v259
        %v444 = vmul.f32 %v423, %v259
        %v445 = vmul.f32 %v428, %v259
        %v446 = vmul.f32 %v433, %v259
        %v447 = vmul.f32 %v438, %v259
        %s448 = scalar_lea.vmem [#allocation2], 128
        %449 = vst [vmem:[%s448] sm:$0xff] %v440
        %450 = vst [vmem:[%s448 + $0x8] sm:$0xff] %v441
        %451 = vst [vmem:[%s448 + $0x10] sm:$0xff] %v442
        %452 = vst [vmem:[%s448 + $0x18] sm:$0xff] %v443
        %453 = vst [vmem:[%s448 + $0x20] sm:$0xff] %v444
        %454 = vst [vmem:[%s448 + $0x28] sm:$0xff] %v445
        %455 = vst [vmem:[%s448 + $0x30] sm:$0xff] %v446
        %456 = vst [vmem:[%s448 + $0x38] sm:$0xff] %v447
        %v457 = vld [vmem:[%s334] sm:$0xff]
        %v458 = vld [vmem:[%s334 + $0x8] sm:$0xff]
        %v459 = vld [vmem:[%s334 + $0x10] sm:$0xff]
        %v460 = vld [vmem:[%s334 + $0x18] sm:$0xff]
        %v461 = vld [vmem:[%s334 + $0x20] sm:$0xff]
        %v462 = vld [vmem:[%s334 + $0x28] sm:$0xff]
        %v463 = vld [vmem:[%s334 + $0x30] sm:$0xff]
        %v464 = vld [vmem:[%s334 + $0x38] sm:$0xff]
        %466 = vset.pattern.permute.xlu0 3
        %467 = vperm.xlu0 %466, %v457
        %v468 = vpop.permute.xlu0 %467
        %471 = vset.pattern.permute.xlu0 3
        %472 = vperm.xlu0 %471, %v458
        %v473 = vpop.permute.xlu0 %472
        %476 = vset.pattern.permute.xlu0 3
        %477 = vperm.xlu0 %476, %v459
        %v478 = vpop.permute.xlu0 %477
        %481 = vset.pattern.permute.xlu0 3
        %482 = vperm.xlu0 %481, %v460
        %v483 = vpop.permute.xlu0 %482
        %486 = vset.pattern.permute.xlu0 3
        %487 = vperm.xlu0 %486, %v461
        %v488 = vpop.permute.xlu0 %487
        %491 = vset.pattern.permute.xlu0 3
        %492 = vperm.xlu0 %491, %v462
        %v493 = vpop.permute.xlu0 %492
        %496 = vset.pattern.permute.xlu0 3
        %497 = vperm.xlu0 %496, %v463
        %v498 = vpop.permute.xlu0 %497
        %501 = vset.pattern.permute.xlu0 3
        %502 = vperm.xlu0 %501, %v464
        %v503 = vpop.permute.xlu0 %502
        %s505 = scalar_lea.vmem [#allocation2], 192
        %506 = vst [vmem:[%s505] sm:$0xff] %v468
        %507 = vst [vmem:[%s505 + $0x8] sm:$0xff] %v473
        %508 = vst [vmem:[%s505 + $0x10] sm:$0xff] %v478
        %509 = vst [vmem:[%s505 + $0x18] sm:$0xff] %v483
        %510 = vst [vmem:[%s505 + $0x20] sm:$0xff] %v488
        %511 = vst [vmem:[%s505 + $0x28] sm:$0xff] %v493
        %512 = vst [vmem:[%s505 + $0x30] sm:$0xff] %v498
        %513 = vst [vmem:[%s505 + $0x38] sm:$0xff] %v503
        %v514 = vld [vmem:[%s334] sm:$0xff]
        %v515 = vld [vmem:[%s334 + $0x8] sm:$0xff]
        %v516 = vld [vmem:[%s334 + $0x10] sm:$0xff]
        %v517 = vld [vmem:[%s334 + $0x18] sm:$0xff]
        %v518 = vld [vmem:[%s334 + $0x20] sm:$0xff]
        %v519 = vld [vmem:[%s334 + $0x28] sm:$0xff]
        %v520 = vld [vmem:[%s334 + $0x30] sm:$0xff]
        %v521 = vld [vmem:[%s334 + $0x38] sm:$0xff]
        %523 = vset.pattern.permute.xlu0 4
        %524 = vperm.xlu0 %523, %v514
        %v525 = vpop.permute.xlu0 %524
        %528 = vset.pattern.permute.xlu0 4
        %529 = vperm.xlu0 %528, %v515
        %v530 = vpop.permute.xlu0 %529
        %533 = vset.pattern.permute.xlu0 4
        %534 = vperm.xlu0 %533, %v516
        %v535 = vpop.permute.xlu0 %534
        %538 = vset.pattern.permute.xlu0 4
        %539 = vperm.xlu0 %538, %v517
        %v540 = vpop.permute.xlu0 %539
        %543 = vset.pattern.permute.xlu0 4
        %544 = vperm.xlu0 %543, %v518
        %v545 = vpop.permute.xlu0 %544
        %548 = vset.pattern.permute.xlu0 4
        %549 = vperm.xlu0 %548, %v519
        %v550 = vpop.permute.xlu0 %549
        %553 = vset.pattern.permute.xlu0 4
        %554 = vperm.xlu0 %553, %v520
        %v555 = vpop.permute.xlu0 %554
        %558 = vset.pattern.permute.xlu0 4
        %559 = vperm.xlu0 %558, %v521
        %v560 = vpop.permute.xlu0 %559
        %v562 = vmul.f32 %v525, %v265
        %v563 = vmul.f32 %v530, %v265
        %v564 = vmul.f32 %v535, %v265
        %v565 = vmul.f32 %v540, %v265
        %v566 = vmul.f32 %v545, %v265
        %v567 = vmul.f32 %v550, %v265
        %v568 = vmul.f32 %v555, %v265
        %v569 = vmul.f32 %v560, %v265
        %s570 = scalar_lea.vmem [#allocation2], 256
        %571 = vst [vmem:[%s570] sm:$0xff] %v562
        %572 = vst [vmem:[%s570 + $0x8] sm:$0xff] %v563
        %573 = vst [vmem:[%s570 + $0x10] sm:$0xff] %v564
        %574 = vst [vmem:[%s570 + $0x18] sm:$0xff] %v565
        %575 = vst [vmem:[%s570 + $0x20] sm:$0xff] %v566
        %576 = vst [vmem:[%s570 + $0x28] sm:$0xff] %v567
        %577 = vst [vmem:[%s570 + $0x30] sm:$0xff] %v568
        %578 = vst [vmem:[%s570 + $0x38] sm:$0xff] %v569
        %s579 = scalar_lea.vmem [#allocation3], 128
        %v580 = vld [vmem:[%s579] sm:$0xff]
        %v581 = vld [vmem:[%s579 + $0x8] sm:$0xff]
        %v582 = vld [vmem:[%s579 + $0x10] sm:$0xff]
        %v583 = vld [vmem:[%s579 + $0x18] sm:$0xff]
        %v584 = vld [vmem:[%s579 + $0x20] sm:$0xff]
        %v585 = vld [vmem:[%s579 + $0x28] sm:$0xff]
        %v586 = vld [vmem:[%s579 + $0x30] sm:$0xff]
        %v587 = vld [vmem:[%s579 + $0x38] sm:$0xff]
        %589 = vset.pattern.permute.xlu0 8
        %590 = vperm.xlu0 %589, %v580
        %v591 = vpop.permute.xlu0 %590
        %594 = vset.pattern.permute.xlu0 8
        %595 = vperm.xlu0 %594, %v581
        %v596 = vpop.permute.xlu0 %595
        %599 = vset.pattern.permute.xlu0 8
        %600 = vperm.xlu0 %599, %v582
        %v601 = vpop.permute.xlu0 %600
        %604 = vset.pattern.permute.xlu0 8
        %605 = vperm.xlu0 %604, %v583
        %v606 = vpop.permute.xlu0 %605
        %609 = vset.pattern.permute.xlu0 8
        %610 = vperm.xlu0 %609, %v584
        %v611 = vpop.permute.xlu0 %610
        %614 = vset.pattern.permute.xlu0 8
        %615 = vperm.xlu0 %614, %v585
        %v616 = vpop.permute.xlu0 %615
        %619 = vset.pattern.permute.xlu0 8
        %620 = vperm.xlu0 %619, %v586
        %v621 = vpop.permute.xlu0 %620
        %624 = vset.pattern.permute.xlu0 8
        %625 = vperm.xlu0 %624, %v587
        %v626 = vpop.permute.xlu0 %625
        %s628 = scalar_lea.vmem [#allocation2], 320
        %629 = vst [vmem:[%s628] sm:$0xff] %v591
        %630 = vst [vmem:[%s628 + $0x8] sm:$0xff] %v596
        %631 = vst [vmem:[%s628 + $0x10] sm:$0xff] %v601
        %632 = vst [vmem:[%s628 + $0x18] sm:$0xff] %v606
        %633 = vst [vmem:[%s628 + $0x20] sm:$0xff] %v611
        %634 = vst [vmem:[%s628 + $0x28] sm:$0xff] %v616
        %635 = vst [vmem:[%s628 + $0x30] sm:$0xff] %v621
        %636 = vst [vmem:[%s628 + $0x38] sm:$0xff] %v626
        %v637 = vld [vmem:[%s579] sm:$0xff]
        %v638 = vld [vmem:[%s579 + $0x8] sm:$0xff]
        %v639 = vld [vmem:[%s579 + $0x10] sm:$0xff]
        %v640 = vld [vmem:[%s579 + $0x18] sm:$0xff]
        %v641 = vld [vmem:[%s579 + $0x20] sm:$0xff]
        %v642 = vld [vmem:[%s579 + $0x28] sm:$0xff]
        %v643 = vld [vmem:[%s579 + $0x30] sm:$0xff]
        %v644 = vld [vmem:[%s579 + $0x38] sm:$0xff]
        %646 = vset.pattern.permute.xlu0 1
        %647 = vperm.xlu0 %646, %v637
        %v648 = vpop.permute.xlu0 %647
        %651 = vset.pattern.permute.xlu0 1
        %652 = vperm.xlu0 %651, %v638
        %v653 = vpop.permute.xlu0 %652
        %656 = vset.pattern.permute.xlu0 1
        %657 = vperm.xlu0 %656, %v639
        %v658 = vpop.permute.xlu0 %657
        %661 = vset.pattern.permute.xlu0 1
        %662 = vperm.xlu0 %661, %v640
        %v663 = vpop.permute.xlu0 %662
        %666 = vset.pattern.permute.xlu0 1
        %667 = vperm.xlu0 %666, %v641
        %v668 = vpop.permute.xlu0 %667
        %671 = vset.pattern.permute.xlu0 1
        %672 = vperm.xlu0 %671, %v642
        %v673 = vpop.permute.xlu0 %672
        %676 = vset.pattern.permute.xlu0 1
        %677 = vperm.xlu0 %676, %v643
        %v678 = vpop.permute.xlu0 %677
        %681 = vset.pattern.permute.xlu0 1
        %682 = vperm.xlu0 %681, %v644
        %v683 = vpop.permute.xlu0 %682
        %v685 = vmul.f32 %v648, %v253
        %v686 = vmul.f32 %v653, %v253
        %v687 = vmul.f32 %v658, %v253
        %v688 = vmul.f32 %v663, %v253
        %v689 = vmul.f32 %v668, %v253
        %v690 = vmul.f32 %v673, %v253
        %v691 = vmul.f32 %v678, %v253
        %v692 = vmul.f32 %v683, %v253
        %s693 = scalar_lea.vmem [#allocation2], 384
        %694 = vst [vmem:[%s693] sm:$0xff] %v685
        %695 = vst [vmem:[%s693 + $0x8] sm:$0xff] %v686
        %696 = vst [vmem:[%s693 + $0x10] sm:$0xff] %v687
        %697 = vst [vmem:[%s693 + $0x18] sm:$0xff] %v688
        %698 = vst [vmem:[%s693 + $0x20] sm:$0xff] %v689
        %699 = vst [vmem:[%s693 + $0x28] sm:$0xff] %v690
        %700 = vst [vmem:[%s693 + $0x30] sm:$0xff] %v691
        %701 = vst [vmem:[%s693 + $0x38] sm:$0xff] %v692
        %v702 = vld [vmem:[%s579] sm:$0xff]
        %v703 = vld [vmem:[%s579 + $0x8] sm:$0xff]
        %v704 = vld [vmem:[%s579 + $0x10] sm:$0xff]
        %v705 = vld [vmem:[%s579 + $0x18] sm:$0xff]
        %v706 = vld [vmem:[%s579 + $0x20] sm:$0xff]
        %v707 = vld [vmem:[%s579 + $0x28] sm:$0xff]
        %v708 = vld [vmem:[%s579 + $0x30] sm:$0xff]
        %v709 = vld [vmem:[%s579 + $0x38] sm:$0xff]
        %711 = vset.pattern.permute.xlu0 2
        %712 = vperm.xlu0 %711, %v702
        %v713 = vpop.permute.xlu0 %712
        %716 = vset.pattern.permute.xlu0 2
        %717 = vperm.xlu0 %716, %v703
        %v718 = vpop.permute.xlu0 %717
        %721 = vset.pattern.permute.xlu0 2
        %722 = vperm.xlu0 %721, %v704
        %v723 = vpop.permute.xlu0 %722
        %726 = vset.pattern.permute.xlu0 2
        %727 = vperm.xlu0 %726, %v705
        %v728 = vpop.permute.xlu0 %727
        %731 = vset.pattern.permute.xlu0 2
        %732 = vperm.xlu0 %731, %v706
        %v733 = vpop.permute.xlu0 %732
        %736 = vset.pattern.permute.xlu0 2
        %737 = vperm.xlu0 %736, %v707
        %v738 = vpop.permute.xlu0 %737
        %741 = vset.pattern.permute.xlu0 2
        %742 = vperm.xlu0 %741, %v708
        %v743 = vpop.permute.xlu0 %742
        %746 = vset.pattern.permute.xlu0 2
        %747 = vperm.xlu0 %746, %v709
        %v748 = vpop.permute.xlu0 %747
        %v750 = vmul.f32 %v713, %v259
        %v751 = vmul.f32 %v718, %v259
        %v752 = vmul.f32 %v723, %v259
        %v753 = vmul.f32 %v728, %v259
        %v754 = vmul.f32 %v733, %v259
        %v755 = vmul.f32 %v738, %v259
        %v756 = vmul.f32 %v743, %v259
        %v757 = vmul.f32 %v748, %v259
        %s758 = scalar_lea.vmem [#allocation2], 448
        %759 = vst [vmem:[%s758] sm:$0xff] %v750
        %760 = vst [vmem:[%s758 + $0x8] sm:$0xff] %v751
        %761 = vst [vmem:[%s758 + $0x10] sm:$0xff] %v752
        %762 = vst [vmem:[%s758 + $0x18] sm:$0xff] %v753
        %763 = vst [vmem:[%s758 + $0x20] sm:$0xff] %v754
        %764 = vst [vmem:[%s758 + $0x28] sm:$0xff] %v755
        %765 = vst [vmem:[%s758 + $0x30] sm:$0xff] %v756
        %766 = vst [vmem:[%s758 + $0x38] sm:$0xff] %v757
        %v767 = vld [vmem:[%s579] sm:$0xff]
        %v768 = vld [vmem:[%s579 + $0x8] sm:$0xff]
        %v769 = vld [vmem:[%s579 + $0x10] sm:$0xff]
        %v770 = vld [vmem:[%s579 + $0x18] sm:$0xff]
        %v771 = vld [vmem:[%s579 + $0x20] sm:$0xff]
        %v772 = vld [vmem:[%s579 + $0x28] sm:$0xff]
        %v773 = vld [vmem:[%s579 + $0x30] sm:$0xff]
        %v774 = vld [vmem:[%s579 + $0x38] sm:$0xff]
        %776 = vset.pattern.permute.xlu0 3
        %777 = vperm.xlu0 %776, %v767
        %v778 = vpop.permute.xlu0 %777
        %781 = vset.pattern.permute.xlu0 3
        %782 = vperm.xlu0 %781, %v768
        %v783 = vpop.permute.xlu0 %782
        %786 = vset.pattern.permute.xlu0 3
        %787 = vperm.xlu0 %786, %v769
        %v788 = vpop.permute.xlu0 %787
        %791 = vset.pattern.permute.xlu0 3
        %792 = vperm.xlu0 %791, %v770
        %v793 = vpop.permute.xlu0 %792
        %796 = vset.pattern.permute.xlu0 3
        %797 = vperm.xlu0 %796, %v771
        %v798 = vpop.permute.xlu0 %797
        %801 = vset.pattern.permute.xlu0 3
        %802 = vperm.xlu0 %801, %v772
        %v803 = vpop.permute.xlu0 %802
        %806 = vset.pattern.permute.xlu0 3
        %807 = vperm.xlu0 %806, %v773
        %v808 = vpop.permute.xlu0 %807
        %811 = vset.pattern.permute.xlu0 3
        %812 = vperm.xlu0 %811, %v774
        %v813 = vpop.permute.xlu0 %812
        %s815 = scalar_lea.vmem [#allocation2], 512
        %816 = vst [vmem:[%s815] sm:$0xff] %v778
        %817 = vst [vmem:[%s815 + $0x8] sm:$0xff] %v783
        %818 = vst [vmem:[%s815 + $0x10] sm:$0xff] %v788
        %819 = vst [vmem:[%s815 + $0x18] sm:$0xff] %v793
        %820 = vst [vmem:[%s815 + $0x20] sm:$0xff] %v798
        %821 = vst [vmem:[%s815 + $0x28] sm:$0xff] %v803
        %822 = vst [vmem:[%s815 + $0x30] sm:$0xff] %v808
        %823 = vst [vmem:[%s815 + $0x38] sm:$0xff] %v813
        %v824 = vld [vmem:[%s579] sm:$0xff]
        %v825 = vld [vmem:[%s579 + $0x8] sm:$0xff]
        %v826 = vld [vmem:[%s579 + $0x10] sm:$0xff]
        %v827 = vld [vmem:[%s579 + $0x18] sm:$0xff]
        %v828 = vld [vmem:[%s579 + $0x20] sm:$0xff]
        %v829 = vld [vmem:[%s579 + $0x28] sm:$0xff]
        %v830 = vld [vmem:[%s579 + $0x30] sm:$0xff]
        %v831 = vld [vmem:[%s579 + $0x38] sm:$0xff]
        %833 = vset.pattern.permute.xlu0 4
        %834 = vperm.xlu0 %833, %v824
        %v835 = vpop.permute.xlu0 %834
        %838 = vset.pattern.permute.xlu0 4
        %839 = vperm.xlu0 %838, %v825
        %v840 = vpop.permute.xlu0 %839
        %843 = vset.pattern.permute.xlu0 4
        %844 = vperm.xlu0 %843, %v826
        %v845 = vpop.permute.xlu0 %844
        %848 = vset.pattern.permute.xlu0 4
        %849 = vperm.xlu0 %848, %v827
        %v850 = vpop.permute.xlu0 %849
        %853 = vset.pattern.permute.xlu0 4
        %854 = vperm.xlu0 %853, %v828
        %v855 = vpop.permute.xlu0 %854
        %858 = vset.pattern.permute.xlu0 4
        %859 = vperm.xlu0 %858, %v829
        %v860 = vpop.permute.xlu0 %859
        %863 = vset.pattern.permute.xlu0 4
        %864 = vperm.xlu0 %863, %v830
        %v865 = vpop.permute.xlu0 %864
        %868 = vset.pattern.permute.xlu0 4
        %869 = vperm.xlu0 %868, %v831
        %v870 = vpop.permute.xlu0 %869
        %v872 = vmul.f32 %v835, %v265
        %v873 = vmul.f32 %v840, %v265
        %v874 = vmul.f32 %v845, %v265
        %v875 = vmul.f32 %v850, %v265
        %v876 = vmul.f32 %v855, %v265
        %v877 = vmul.f32 %v860, %v265
        %v878 = vmul.f32 %v865, %v265
        %v879 = vmul.f32 %v870, %v265
        %s880 = scalar_lea.vmem [#allocation2], 576
        %881 = vst [vmem:[%s880] sm:$0xff] %v872
        %882 = vst [vmem:[%s880 + $0x8] sm:$0xff] %v873
        %883 = vst [vmem:[%s880 + $0x10] sm:$0xff] %v874
        %884 = vst [vmem:[%s880 + $0x18] sm:$0xff] %v875
        %885 = vst [vmem:[%s880 + $0x20] sm:$0xff] %v876
        %886 = vst [vmem:[%s880 + $0x28] sm:$0xff] %v877
        %887 = vst [vmem:[%s880 + $0x30] sm:$0xff] %v878
        %888 = vst [vmem:[%s880 + $0x38] sm:$0xff] %v879
        %v889 = vld [vmem:[%s579] sm:$0xff]
        %v890 = vld [vmem:[%s579 + $0x8] sm:$0xff]
        %v891 = vld [vmem:[%s579 + $0x10] sm:$0xff]
        %v892 = vld [vmem:[%s579 + $0x18] sm:$0xff]
        %v893 = vld [vmem:[%s579 + $0x20] sm:$0xff]
        %v894 = vld [vmem:[%s579 + $0x28] sm:$0xff]
        %v895 = vld [vmem:[%s579 + $0x30] sm:$0xff]
        %v896 = vld [vmem:[%s579 + $0x38] sm:$0xff]
        %898 = vset.pattern.permute.xlu0 5
        %899 = vperm.xlu0 %898, %v889
        %v900 = vpop.permute.xlu0 %899
        %903 = vset.pattern.permute.xlu0 5
        %904 = vperm.xlu0 %903, %v890
        %v905 = vpop.permute.xlu0 %904
        %908 = vset.pattern.permute.xlu0 5
        %909 = vperm.xlu0 %908, %v891
        %v910 = vpop.permute.xlu0 %909
        %913 = vset.pattern.permute.xlu0 5
        %914 = vperm.xlu0 %913, %v892
        %v915 = vpop.permute.xlu0 %914
        %918 = vset.pattern.permute.xlu0 5
        %919 = vperm.xlu0 %918, %v893
        %v920 = vpop.permute.xlu0 %919
        %923 = vset.pattern.permute.xlu0 5
        %924 = vperm.xlu0 %923, %v894
        %v925 = vpop.permute.xlu0 %924
        %928 = vset.pattern.permute.xlu0 5
        %929 = vperm.xlu0 %928, %v895
        %v930 = vpop.permute.xlu0 %929
        %933 = vset.pattern.permute.xlu0 5
        %934 = vperm.xlu0 %933, %v896
        %v935 = vpop.permute.xlu0 %934
        %v937 = vmul.f32 %v900, %v271
        %v938 = vmul.f32 %v905, %v271
        %v939 = vmul.f32 %v910, %v271
        %v940 = vmul.f32 %v915, %v271
        %v941 = vmul.f32 %v920, %v271
        %v942 = vmul.f32 %v925, %v271
        %v943 = vmul.f32 %v930, %v271
        %v944 = vmul.f32 %v935, %v271
        %s945 = scalar_lea.vmem [#allocation2], 640
        %946 = vst [vmem:[%s945] sm:$0xff] %v937
        %947 = vst [vmem:[%s945 + $0x8] sm:$0xff] %v938
        %948 = vst [vmem:[%s945 + $0x10] sm:$0xff] %v939
        %949 = vst [vmem:[%s945 + $0x18] sm:$0xff] %v940
        %950 = vst [vmem:[%s945 + $0x20] sm:$0xff] %v941
        %951 = vst [vmem:[%s945 + $0x28] sm:$0xff] %v942
        %952 = vst [vmem:[%s945 + $0x30] sm:$0xff] %v943
        %953 = vst [vmem:[%s945 + $0x38] sm:$0xff] %v944
        %s954 = scalar_lea.vmem [#allocation3], 192
        %v955 = vld [vmem:[%s954] sm:$0xff]
        %v956 = vld [vmem:[%s954 + $0x8] sm:$0xff]
        %v957 = vld [vmem:[%s954 + $0x10] sm:$0xff]
        %v958 = vld [vmem:[%s954 + $0x18] sm:$0xff]
        %v959 = vld [vmem:[%s954 + $0x20] sm:$0xff]
        %v960 = vld [vmem:[%s954 + $0x28] sm:$0xff]
        %v961 = vld [vmem:[%s954 + $0x30] sm:$0xff]
        %v962 = vld [vmem:[%s954 + $0x38] sm:$0xff]
        %964 = vset.pattern.permute.xlu0 8
        %965 = vperm.xlu0 %964, %v955
        %v966 = vpop.permute.xlu0 %965
        %969 = vset.pattern.permute.xlu0 8
        %970 = vperm.xlu0 %969, %v956
        %v971 = vpop.permute.xlu0 %970
        %974 = vset.pattern.permute.xlu0 8
        %975 = vperm.xlu0 %974, %v957
        %v976 = vpop.permute.xlu0 %975
        %979 = vset.pattern.permute.xlu0 8
        %980 = vperm.xlu0 %979, %v958
        %v981 = vpop.permute.xlu0 %980
        %984 = vset.pattern.permute.xlu0 8
        %985 = vperm.xlu0 %984, %v959
        %v986 = vpop.permute.xlu0 %985
        %989 = vset.pattern.permute.xlu0 8
        %990 = vperm.xlu0 %989, %v960
        %v991 = vpop.permute.xlu0 %990
        %994 = vset.pattern.permute.xlu0 8
        %995 = vperm.xlu0 %994, %v961
        %v996 = vpop.permute.xlu0 %995
        %999 = vset.pattern.permute.xlu0 8
        %1000 = vperm.xlu0 %999, %v962
        %v1001 = vpop.permute.xlu0 %1000
        %s1003 = scalar_lea.vmem [#allocation2], 704
        %1004 = vst [vmem:[%s1003] sm:$0xff] %v966
        %1005 = vst [vmem:[%s1003 + $0x8] sm:$0xff] %v971
        %1006 = vst [vmem:[%s1003 + $0x10] sm:$0xff] %v976
        %1007 = vst [vmem:[%s1003 + $0x18] sm:$0xff] %v981
        %1008 = vst [vmem:[%s1003 + $0x20] sm:$0xff] %v986
        %1009 = vst [vmem:[%s1003 + $0x28] sm:$0xff] %v991
        %1010 = vst [vmem:[%s1003 + $0x30] sm:$0xff] %v996
        %1011 = vst [vmem:[%s1003 + $0x38] sm:$0xff] %v1001
        %v1012 = vld [vmem:[%s954] sm:$0xff]
        %v1013 = vld [vmem:[%s954 + $0x8] sm:$0xff]
        %v1014 = vld [vmem:[%s954 + $0x10] sm:$0xff]
        %v1015 = vld [vmem:[%s954 + $0x18] sm:$0xff]
        %v1016 = vld [vmem:[%s954 + $0x20] sm:$0xff]
        %v1017 = vld [vmem:[%s954 + $0x28] sm:$0xff]
        %v1018 = vld [vmem:[%s954 + $0x30] sm:$0xff]
        %v1019 = vld [vmem:[%s954 + $0x38] sm:$0xff]
        %1021 = vset.pattern.permute.xlu0 0
        %1022 = vperm.xlu0 %1021, %v1012
        %v1023 = vpop.permute.xlu0 %1022
        %1026 = vset.pattern.permute.xlu0 0
        %1027 = vperm.xlu0 %1026, %v1013
        %v1028 = vpop.permute.xlu0 %1027
        %1031 = vset.pattern.permute.xlu0 0
        %1032 = vperm.xlu0 %1031, %v1014
        %v1033 = vpop.permute.xlu0 %1032
        %1036 = vset.pattern.permute.xlu0 0
        %1037 = vperm.xlu0 %1036, %v1015
        %v1038 = vpop.permute.xlu0 %1037
        %1041 = vset.pattern.permute.xlu0 0
        %1042 = vperm.xlu0 %1041, %v1016
        %v1043 = vpop.permute.xlu0 %1042
        %1046 = vset.pattern.permute.xlu0 0
        %1047 = vperm.xlu0 %1046, %v1017
        %v1048 = vpop.permute.xlu0 %1047
        %1051 = vset.pattern.permute.xlu0 0
        %1052 = vperm.xlu0 %1051, %v1018
        %v1053 = vpop.permute.xlu0 %1052
        %1056 = vset.pattern.permute.xlu0 0
        %1057 = vperm.xlu0 %1056, %v1019
        %v1058 = vpop.permute.xlu0 %1057
        %v1060 = vmul.f32 %v1023, %v247
        %v1061 = vmul.f32 %v1028, %v247
        %v1062 = vmul.f32 %v1033, %v247
        %v1063 = vmul.f32 %v1038, %v247
        %v1064 = vmul.f32 %v1043, %v247
        %v1065 = vmul.f32 %v1048, %v247
        %v1066 = vmul.f32 %v1053, %v247
        %v1067 = vmul.f32 %v1058, %v247
        %s1068 = scalar_lea.vmem [#allocation2], 768
        %1069 = vst [vmem:[%s1068] sm:$0xff] %v1060
        %1070 = vst [vmem:[%s1068 + $0x8] sm:$0xff] %v1061
        %1071 = vst [vmem:[%s1068 + $0x10] sm:$0xff] %v1062
        %1072 = vst [vmem:[%s1068 + $0x18] sm:$0xff] %v1063
        %1073 = vst [vmem:[%s1068 + $0x20] sm:$0xff] %v1064
        %1074 = vst [vmem:[%s1068 + $0x28] sm:$0xff] %v1065
        %1075 = vst [vmem:[%s1068 + $0x30] sm:$0xff] %v1066
        %1076 = vst [vmem:[%s1068 + $0x38] sm:$0xff] %v1067
        %v1077 = vld [vmem:[%s954] sm:$0xff]
        %v1078 = vld [vmem:[%s954 + $0x8] sm:$0xff]
        %v1079 = vld [vmem:[%s954 + $0x10] sm:$0xff]
        %v1080 = vld [vmem:[%s954 + $0x18] sm:$0xff]
        %v1081 = vld [vmem:[%s954 + $0x20] sm:$0xff]
        %v1082 = vld [vmem:[%s954 + $0x28] sm:$0xff]
        %v1083 = vld [vmem:[%s954 + $0x30] sm:$0xff]
        %v1084 = vld [vmem:[%s954 + $0x38] sm:$0xff]
        %1086 = vset.pattern.permute.xlu0 1
        %1087 = vperm.xlu0 %1086, %v1077
        %v1088 = vpop.permute.xlu0 %1087
        %1091 = vset.pattern.permute.xlu0 1
        %1092 = vperm.xlu0 %1091, %v1078
        %v1093 = vpop.permute.xlu0 %1092
        %1096 = vset.pattern.permute.xlu0 1
        %1097 = vperm.xlu0 %1096, %v1079
        %v1098 = vpop.permute.xlu0 %1097
        %1101 = vset.pattern.permute.xlu0 1
        %1102 = vperm.xlu0 %1101, %v1080
        %v1103 = vpop.permute.xlu0 %1102
        %1106 = vset.pattern.permute.xlu0 1
        %1107 = vperm.xlu0 %1106, %v1081
        %v1108 = vpop.permute.xlu0 %1107
        %1111 = vset.pattern.permute.xlu0 1
        %1112 = vperm.xlu0 %1111, %v1082
        %v1113 = vpop.permute.xlu0 %1112
        %1116 = vset.pattern.permute.xlu0 1
        %1117 = vperm.xlu0 %1116, %v1083
        %v1118 = vpop.permute.xlu0 %1117
        %1121 = vset.pattern.permute.xlu0 1
        %1122 = vperm.xlu0 %1121, %v1084
        %v1123 = vpop.permute.xlu0 %1122
        %v1125 = vmul.f32 %v1088, %v253
        %v1126 = vmul.f32 %v1093, %v253
        %v1127 = vmul.f32 %v1098, %v253
        %v1128 = vmul.f32 %v1103, %v253
        %v1129 = vmul.f32 %v1108, %v253
        %v1130 = vmul.f32 %v1113, %v253
        %v1131 = vmul.f32 %v1118, %v253
        %v1132 = vmul.f32 %v1123, %v253
        %s1133 = scalar_lea.vmem [#allocation2], 832
        %1134 = vst [vmem:[%s1133] sm:$0xff] %v1125
        %1135 = vst [vmem:[%s1133 + $0x8] sm:$0xff] %v1126
        %1136 = vst [vmem:[%s1133 + $0x10] sm:$0xff] %v1127
        %1137 = vst [vmem:[%s1133 + $0x18] sm:$0xff] %v1128
        %1138 = vst [vmem:[%s1133 + $0x20] sm:$0xff] %v1129
        %1139 = vst [vmem:[%s1133 + $0x28] sm:$0xff] %v1130
        %1140 = vst [vmem:[%s1133 + $0x30] sm:$0xff] %v1131
        %1141 = vst [vmem:[%s1133 + $0x38] sm:$0xff] %v1132
        %v1142 = vld [vmem:[%s954] sm:$0xff]
        %v1143 = vld [vmem:[%s954 + $0x8] sm:$0xff]
        %v1144 = vld [vmem:[%s954 + $0x10] sm:$0xff]
        %v1145 = vld [vmem:[%s954 + $0x18] sm:$0xff]
        %v1146 = vld [vmem:[%s954 + $0x20] sm:$0xff]
        %v1147 = vld [vmem:[%s954 + $0x28] sm:$0xff]
        %v1148 = vld [vmem:[%s954 + $0x30] sm:$0xff]
        %v1149 = vld [vmem:[%s954 + $0x38] sm:$0xff]
        %1151 = vset.pattern.permute.xlu0 2
        %1152 = vperm.xlu0 %1151, %v1142
        %v1153 = vpop.permute.xlu0 %1152
        %1156 = vset.pattern.permute.xlu0 2
        %1157 = vperm.xlu0 %1156, %v1143
        %v1158 = vpop.permute.xlu0 %1157
        %1161 = vset.pattern.permute.xlu0 2
        %1162 = vperm.xlu0 %1161, %v1144
        %v1163 = vpop.permute.xlu0 %1162
        %1166 = vset.pattern.permute.xlu0 2
        %1167 = vperm.xlu0 %1166, %v1145
        %v1168 = vpop.permute.xlu0 %1167
        %1171 = vset.pattern.permute.xlu0 2
        %1172 = vperm.xlu0 %1171, %v1146
        %v1173 = vpop.permute.xlu0 %1172
        %1176 = vset.pattern.permute.xlu0 2
        %1177 = vperm.xlu0 %1176, %v1147
        %v1178 = vpop.permute.xlu0 %1177
        %1181 = vset.pattern.permute.xlu0 2
        %1182 = vperm.xlu0 %1181, %v1148
        %v1183 = vpop.permute.xlu0 %1182
        %1186 = vset.pattern.permute.xlu0 2
        %1187 = vperm.xlu0 %1186, %v1149
        %v1188 = vpop.permute.xlu0 %1187
        %v1190 = vmul.f32 %v1153, %v259
        %v1191 = vmul.f32 %v1158, %v259
        %v1192 = vmul.f32 %v1163, %v259
        %v1193 = vmul.f32 %v1168, %v259
        %v1194 = vmul.f32 %v1173, %v259
        %v1195 = vmul.f32 %v1178, %v259
        %v1196 = vmul.f32 %v1183, %v259
        %v1197 = vmul.f32 %v1188, %v259
        %s1198 = scalar_lea.vmem [#allocation2], 896
        %1199 = vst [vmem:[%s1198] sm:$0xff] %v1190
        %1200 = vst [vmem:[%s1198 + $0x8] sm:$0xff] %v1191
        %1201 = vst [vmem:[%s1198 + $0x10] sm:$0xff] %v1192
        %1202 = vst [vmem:[%s1198 + $0x18] sm:$0xff] %v1193
        %1203 = vst [vmem:[%s1198 + $0x20] sm:$0xff] %v1194
        %1204 = vst [vmem:[%s1198 + $0x28] sm:$0xff] %v1195
        %1205 = vst [vmem:[%s1198 + $0x30] sm:$0xff] %v1196
        %1206 = vst [vmem:[%s1198 + $0x38] sm:$0xff] %v1197
        %v1207 = vld [vmem:[%s954] sm:$0xff]
        %v1208 = vld [vmem:[%s954 + $0x8] sm:$0xff]
        %v1209 = vld [vmem:[%s954 + $0x10] sm:$0xff]
        %v1210 = vld [vmem:[%s954 + $0x18] sm:$0xff]
        %v1211 = vld [vmem:[%s954 + $0x20] sm:$0xff]
        %v1212 = vld [vmem:[%s954 + $0x28] sm:$0xff]
        %v1213 = vld [vmem:[%s954 + $0x30] sm:$0xff]
        %v1214 = vld [vmem:[%s954 + $0x38] sm:$0xff]
        %1216 = vset.pattern.permute.xlu0 3
        %1217 = vperm.xlu0 %1216, %v1207
        %v1218 = vpop.permute.xlu0 %1217
        %1221 = vset.pattern.permute.xlu0 3
        %1222 = vperm.xlu0 %1221, %v1208
        %v1223 = vpop.permute.xlu0 %1222
        %1226 = vset.pattern.permute.xlu0 3
        %1227 = vperm.xlu0 %1226, %v1209
        %v1228 = vpop.permute.xlu0 %1227
        %1231 = vset.pattern.permute.xlu0 3
        %1232 = vperm.xlu0 %1231, %v1210
        %v1233 = vpop.permute.xlu0 %1232
        %1236 = vset.pattern.permute.xlu0 3
        %1237 = vperm.xlu0 %1236, %v1211
        %v1238 = vpop.permute.xlu0 %1237
        %1241 = vset.pattern.permute.xlu0 3
        %1242 = vperm.xlu0 %1241, %v1212
        %v1243 = vpop.permute.xlu0 %1242
        %1246 = vset.pattern.permute.xlu0 3
        %1247 = vperm.xlu0 %1246, %v1213
        %v1248 = vpop.permute.xlu0 %1247
        %1251 = vset.pattern.permute.xlu0 3
        %1252 = vperm.xlu0 %1251, %v1214
        %v1253 = vpop.permute.xlu0 %1252
        %s1255 = scalar_lea.vmem [#allocation2], 960
        %1256 = vst [vmem:[%s1255] sm:$0xff] %v1218
        %1257 = vst [vmem:[%s1255 + $0x8] sm:$0xff] %v1223
        %1258 = vst [vmem:[%s1255 + $0x10] sm:$0xff] %v1228
        %1259 = vst [vmem:[%s1255 + $0x18] sm:$0xff] %v1233
        %1260 = vst [vmem:[%s1255 + $0x20] sm:$0xff] %v1238
        %1261 = vst [vmem:[%s1255 + $0x28] sm:$0xff] %v1243
        %1262 = vst [vmem:[%s1255 + $0x30] sm:$0xff] %v1248
        %1263 = vst [vmem:[%s1255 + $0x38] sm:$0xff] %v1253
        %v1264 = vld [vmem:[%s954] sm:$0xff]
        %v1265 = vld [vmem:[%s954 + $0x8] sm:$0xff]
        %v1266 = vld [vmem:[%s954 + $0x10] sm:$0xff]
        %v1267 = vld [vmem:[%s954 + $0x18] sm:$0xff]
        %v1268 = vld [vmem:[%s954 + $0x20] sm:$0xff]
        %v1269 = vld [vmem:[%s954 + $0x28] sm:$0xff]
        %v1270 = vld [vmem:[%s954 + $0x30] sm:$0xff]
        %v1271 = vld [vmem:[%s954 + $0x38] sm:$0xff]
        %1273 = vset.pattern.permute.xlu0 4
        %1274 = vperm.xlu0 %1273, %v1264
        %v1275 = vpop.permute.xlu0 %1274
        %1278 = vset.pattern.permute.xlu0 4
        %1279 = vperm.xlu0 %1278, %v1265
        %v1280 = vpop.permute.xlu0 %1279
        %1283 = vset.pattern.permute.xlu0 4
        %1284 = vperm.xlu0 %1283, %v1266
        %v1285 = vpop.permute.xlu0 %1284
        %1288 = vset.pattern.permute.xlu0 4
        %1289 = vperm.xlu0 %1288, %v1267
        %v1290 = vpop.permute.xlu0 %1289
        %1293 = vset.pattern.permute.xlu0 4
        %1294 = vperm.xlu0 %1293, %v1268
        %v1295 = vpop.permute.xlu0 %1294
        %1298 = vset.pattern.permute.xlu0 4
        %1299 = vperm.xlu0 %1298, %v1269
        %v1300 = vpop.permute.xlu0 %1299
        %1303 = vset.pattern.permute.xlu0 4
        %1304 = vperm.xlu0 %1303, %v1270
        %v1305 = vpop.permute.xlu0 %1304
        %1308 = vset.pattern.permute.xlu0 4
        %1309 = vperm.xlu0 %1308, %v1271
        %v1310 = vpop.permute.xlu0 %1309
        %v1312 = vmul.f32 %v1275, %v265
        %v1313 = vmul.f32 %v1280, %v265
        %v1314 = vmul.f32 %v1285, %v265
        %v1315 = vmul.f32 %v1290, %v265
        %v1316 = vmul.f32 %v1295, %v265
        %v1317 = vmul.f32 %v1300, %v265
        %v1318 = vmul.f32 %v1305, %v265
        %v1319 = vmul.f32 %v1310, %v265
        %s1320 = scalar_lea.vmem [#allocation2], 1024
        %1321 = vst [vmem:[%s1320] sm:$0xff] %v1312
        %1322 = vst [vmem:[%s1320 + $0x8] sm:$0xff] %v1313
        %1323 = vst [vmem:[%s1320 + $0x10] sm:$0xff] %v1314
        %1324 = vst [vmem:[%s1320 + $0x18] sm:$0xff] %v1315
        %1325 = vst [vmem:[%s1320 + $0x20] sm:$0xff] %v1316
        %1326 = vst [vmem:[%s1320 + $0x28] sm:$0xff] %v1317
        %1327 = vst [vmem:[%s1320 + $0x30] sm:$0xff] %v1318
        %1328 = vst [vmem:[%s1320 + $0x38] sm:$0xff] %v1319
        %v1329 = vld [vmem:[%s954] sm:$0xff]
        %v1330 = vld [vmem:[%s954 + $0x8] sm:$0xff]
        %v1331 = vld [vmem:[%s954 + $0x10] sm:$0xff]
        %v1332 = vld [vmem:[%s954 + $0x18] sm:$0xff]
        %v1333 = vld [vmem:[%s954 + $0x20] sm:$0xff]
        %v1334 = vld [vmem:[%s954 + $0x28] sm:$0xff]
        %v1335 = vld [vmem:[%s954 + $0x30] sm:$0xff]
        %v1336 = vld [vmem:[%s954 + $0x38] sm:$0xff]
        %1338 = vset.pattern.permute.xlu0 5
        %1339 = vperm.xlu0 %1338, %v1329
        %v1340 = vpop.permute.xlu0 %1339
        %1343 = vset.pattern.permute.xlu0 5
        %1344 = vperm.xlu0 %1343, %v1330
        %v1345 = vpop.permute.xlu0 %1344
        %1348 = vset.pattern.permute.xlu0 5
        %1349 = vperm.xlu0 %1348, %v1331
        %v1350 = vpop.permute.xlu0 %1349
        %1353 = vset.pattern.permute.xlu0 5
        %1354 = vperm.xlu0 %1353, %v1332
        %v1355 = vpop.permute.xlu0 %1354
        %1358 = vset.pattern.permute.xlu0 5
        %1359 = vperm.xlu0 %1358, %v1333
        %v1360 = vpop.permute.xlu0 %1359
        %1363 = vset.pattern.permute.xlu0 5
        %1364 = vperm.xlu0 %1363, %v1334
        %v1365 = vpop.permute.xlu0 %1364
        %1368 = vset.pattern.permute.xlu0 5
        %1369 = vperm.xlu0 %1368, %v1335
        %v1370 = vpop.permute.xlu0 %1369
        %1373 = vset.pattern.permute.xlu0 5
        %1374 = vperm.xlu0 %1373, %v1336
        %v1375 = vpop.permute.xlu0 %1374
        %v1377 = vmul.f32 %v1340, %v271
        %v1378 = vmul.f32 %v1345, %v271
        %v1379 = vmul.f32 %v1350, %v271
        %v1380 = vmul.f32 %v1355, %v271
        %v1381 = vmul.f32 %v1360, %v271
        %v1382 = vmul.f32 %v1365, %v271
        %v1383 = vmul.f32 %v1370, %v271
        %v1384 = vmul.f32 %v1375, %v271
        %s1385 = scalar_lea.vmem [#allocation2], 1088
        %1386 = vst [vmem:[%s1385] sm:$0xff] %v1377
        %1387 = vst [vmem:[%s1385 + $0x8] sm:$0xff] %v1378
        %1388 = vst [vmem:[%s1385 + $0x10] sm:$0xff] %v1379
        %1389 = vst [vmem:[%s1385 + $0x18] sm:$0xff] %v1380
        %1390 = vst [vmem:[%s1385 + $0x20] sm:$0xff] %v1381
        %1391 = vst [vmem:[%s1385 + $0x28] sm:$0xff] %v1382
        %1392 = vst [vmem:[%s1385 + $0x30] sm:$0xff] %v1383
        %1393 = vst [vmem:[%s1385 + $0x38] sm:$0xff] %v1384
        %v1394 = vld [vmem:[%s954] sm:$0xff]
        %v1395 = vld [vmem:[%s954 + $0x8] sm:$0xff]
        %v1396 = vld [vmem:[%s954 + $0x10] sm:$0xff]
        %v1397 = vld [vmem:[%s954 + $0x18] sm:$0xff]
        %v1398 = vld [vmem:[%s954 + $0x20] sm:$0xff]
        %v1399 = vld [vmem:[%s954 + $0x28] sm:$0xff]
        %v1400 = vld [vmem:[%s954 + $0x30] sm:$0xff]
        %v1401 = vld [vmem:[%s954 + $0x38] sm:$0xff]
        %1403 = vset.pattern.permute.xlu0 6
        %1404 = vperm.xlu0 %1403, %v1394
        %v1405 = vpop.permute.xlu0 %1404
        %1408 = vset.pattern.permute.xlu0 6
        %1409 = vperm.xlu0 %1408, %v1395
        %v1410 = vpop.permute.xlu0 %1409
        %1413 = vset.pattern.permute.xlu0 6
        %1414 = vperm.xlu0 %1413, %v1396
        %v1415 = vpop.permute.xlu0 %1414
        %1418 = vset.pattern.permute.xlu0 6
        %1419 = vperm.xlu0 %1418, %v1397
        %v1420 = vpop.permute.xlu0 %1419
        %1423 = vset.pattern.permute.xlu0 6
        %1424 = vperm.xlu0 %1423, %v1398
        %v1425 = vpop.permute.xlu0 %1424
        %1428 = vset.pattern.permute.xlu0 6
        %1429 = vperm.xlu0 %1428, %v1399
        %v1430 = vpop.permute.xlu0 %1429
        %1433 = vset.pattern.permute.xlu0 6
        %1434 = vperm.xlu0 %1433, %v1400
        %v1435 = vpop.permute.xlu0 %1434
        %1438 = vset.pattern.permute.xlu0 6
        %1439 = vperm.xlu0 %1438, %v1401
        %v1440 = vpop.permute.xlu0 %1439
        %v1442 = vmul.f32 %v1405, %v277
        %v1443 = vmul.f32 %v1410, %v277
        %v1444 = vmul.f32 %v1415, %v277
        %v1445 = vmul.f32 %v1420, %v277
        %v1446 = vmul.f32 %v1425, %v277
        %v1447 = vmul.f32 %v1430, %v277
        %v1448 = vmul.f32 %v1435, %v277
        %v1449 = vmul.f32 %v1440, %v277
        %s1450 = scalar_lea.vmem [#allocation2], 1152
        %1451 = vst [vmem:[%s1450] sm:$0xff] %v1442
        %1452 = vst [vmem:[%s1450 + $0x8] sm:$0xff] %v1443
        %1453 = vst [vmem:[%s1450 + $0x10] sm:$0xff] %v1444
        %1454 = vst [vmem:[%s1450 + $0x18] sm:$0xff] %v1445
        %1455 = vst [vmem:[%s1450 + $0x20] sm:$0xff] %v1446
        %1456 = vst [vmem:[%s1450 + $0x28] sm:$0xff] %v1447
        %1457 = vst [vmem:[%s1450 + $0x30] sm:$0xff] %v1448
        %1458 = vst [vmem:[%s1450 + $0x38] sm:$0xff] %v1449
        %s1459 = scalar_lea.vmem [#allocation3], 256
        %v1460 = vld [vmem:[%s1459] sm:$0xff]
        %v1461 = vld [vmem:[%s1459 + $0x8] sm:$0xff]
        %v1462 = vld [vmem:[%s1459 + $0x10] sm:$0xff]
        %v1463 = vld [vmem:[%s1459 + $0x18] sm:$0xff]
        %v1464 = vld [vmem:[%s1459 + $0x20] sm:$0xff]
        %v1465 = vld [vmem:[%s1459 + $0x28] sm:$0xff]
        %v1466 = vld [vmem:[%s1459 + $0x30] sm:$0xff]
        %v1467 = vld [vmem:[%s1459 + $0x38] sm:$0xff]
        %1469 = vset.pattern.permute.xlu0 8
        %1470 = vperm.xlu0 %1469, %v1460
        %v1471 = vpop.permute.xlu0 %1470
        %1474 = vset.pattern.permute.xlu0 8
        %1475 = vperm.xlu0 %1474, %v1461
        %v1476 = vpop.permute.xlu0 %1475
        %1479 = vset.pattern.permute.xlu0 8
        %1480 = vperm.xlu0 %1479, %v1462
        %v1481 = vpop.permute.xlu0 %1480
        %1484 = vset.pattern.permute.xlu0 8
        %1485 = vperm.xlu0 %1484, %v1463
        %v1486 = vpop.permute.xlu0 %1485
        %1489 = vset.pattern.permute.xlu0 8
        %1490 = vperm.xlu0 %1489, %v1464
        %v1491 = vpop.permute.xlu0 %1490
        %1494 = vset.pattern.permute.xlu0 8
        %1495 = vperm.xlu0 %1494, %v1465
        %v1496 = vpop.permute.xlu0 %1495
        %1499 = vset.pattern.permute.xlu0 8
        %1500 = vperm.xlu0 %1499, %v1466
        %v1501 = vpop.permute.xlu0 %1500
        %1504 = vset.pattern.permute.xlu0 8
        %1505 = vperm.xlu0 %1504, %v1467
        %v1506 = vpop.permute.xlu0 %1505
        %s1508 = scalar_lea.vmem [#allocation2], 1216
        %1509 = vst [vmem:[%s1508] sm:$0xff] %v1471
        %1510 = vst [vmem:[%s1508 + $0x8] sm:$0xff] %v1476
        %1511 = vst [vmem:[%s1508 + $0x10] sm:$0xff] %v1481
        %1512 = vst [vmem:[%s1508 + $0x18] sm:$0xff] %v1486
        %1513 = vst [vmem:[%s1508 + $0x20] sm:$0xff] %v1491
        %1514 = vst [vmem:[%s1508 + $0x28] sm:$0xff] %v1496
        %1515 = vst [vmem:[%s1508 + $0x30] sm:$0xff] %v1501
        %1516 = vst [vmem:[%s1508 + $0x38] sm:$0xff] %v1506
        %v1517 = vld [vmem:[%s1459] sm:$0xff]
        %v1518 = vld [vmem:[%s1459 + $0x8] sm:$0xff]
        %v1519 = vld [vmem:[%s1459 + $0x10] sm:$0xff]
        %v1520 = vld [vmem:[%s1459 + $0x18] sm:$0xff]
        %v1521 = vld [vmem:[%s1459 + $0x20] sm:$0xff]
        %v1522 = vld [vmem:[%s1459 + $0x28] sm:$0xff]
        %v1523 = vld [vmem:[%s1459 + $0x30] sm:$0xff]
        %v1524 = vld [vmem:[%s1459 + $0x38] sm:$0xff]
        %1526 = vset.pattern.permute.xlu0 2
        %1527 = vperm.xlu0 %1526, %v1517
        %v1528 = vpop.permute.xlu0 %1527
        %1531 = vset.pattern.permute.xlu0 2
        %1532 = vperm.xlu0 %1531, %v1518
        %v1533 = vpop.permute.xlu0 %1532
        %1536 = vset.pattern.permute.xlu0 2
        %1537 = vperm.xlu0 %1536, %v1519
        %v1538 = vpop.permute.xlu0 %1537
        %1541 = vset.pattern.permute.xlu0 2
        %1542 = vperm.xlu0 %1541, %v1520
        %v1543 = vpop.permute.xlu0 %1542
        %1546 = vset.pattern.permute.xlu0 2
        %1547 = vperm.xlu0 %1546, %v1521
        %v1548 = vpop.permute.xlu0 %1547
        %1551 = vset.pattern.permute.xlu0 2
        %1552 = vperm.xlu0 %1551, %v1522
        %v1553 = vpop.permute.xlu0 %1552
        %1556 = vset.pattern.permute.xlu0 2
        %1557 = vperm.xlu0 %1556, %v1523
        %v1558 = vpop.permute.xlu0 %1557
        %1561 = vset.pattern.permute.xlu0 2
        %1562 = vperm.xlu0 %1561, %v1524
        %v1563 = vpop.permute.xlu0 %1562
        %v1565 = vmul.f32 %v1528, %v259
        %v1566 = vmul.f32 %v1533, %v259
        %v1567 = vmul.f32 %v1538, %v259
        %v1568 = vmul.f32 %v1543, %v259
        %v1569 = vmul.f32 %v1548, %v259
        %v1570 = vmul.f32 %v1553, %v259
        %v1571 = vmul.f32 %v1558, %v259
        %v1572 = vmul.f32 %v1563, %v259
        %s1573 = scalar_lea.vmem [#allocation2], 1280
        %1574 = vst [vmem:[%s1573] sm:$0xff] %v1565
        %1575 = vst [vmem:[%s1573 + $0x8] sm:$0xff] %v1566
        %1576 = vst [vmem:[%s1573 + $0x10] sm:$0xff] %v1567
        %1577 = vst [vmem:[%s1573 + $0x18] sm:$0xff] %v1568
        %1578 = vst [vmem:[%s1573 + $0x20] sm:$0xff] %v1569
        %1579 = vst [vmem:[%s1573 + $0x28] sm:$0xff] %v1570
        %1580 = vst [vmem:[%s1573 + $0x30] sm:$0xff] %v1571
        %1581 = vst [vmem:[%s1573 + $0x38] sm:$0xff] %v1572
        %v1582 = vld [vmem:[%s1459] sm:$0xff]
        %v1583 = vld [vmem:[%s1459 + $0x8] sm:$0xff]
        %v1584 = vld [vmem:[%s1459 + $0x10] sm:$0xff]
        %v1585 = vld [vmem:[%s1459 + $0x18] sm:$0xff]
        %v1586 = vld [vmem:[%s1459 + $0x20] sm:$0xff]
        %v1587 = vld [vmem:[%s1459 + $0x28] sm:$0xff]
        %v1588 = vld [vmem:[%s1459 + $0x30] sm:$0xff]
        %v1589 = vld [vmem:[%s1459 + $0x38] sm:$0xff]
        %1591 = vset.pattern.permute.xlu0 3
        %1592 = vperm.xlu0 %1591, %v1582
        %v1593 = vpop.permute.xlu0 %1592
        %1596 = vset.pattern.permute.xlu0 3
        %1597 = vperm.xlu0 %1596, %v1583
        %v1598 = vpop.permute.xlu0 %1597
        %1601 = vset.pattern.permute.xlu0 3
        %1602 = vperm.xlu0 %1601, %v1584
        %v1603 = vpop.permute.xlu0 %1602
        %1606 = vset.pattern.permute.xlu0 3
        %1607 = vperm.xlu0 %1606, %v1585
        %v1608 = vpop.permute.xlu0 %1607
        %1611 = vset.pattern.permute.xlu0 3
        %1612 = vperm.xlu0 %1611, %v1586
        %v1613 = vpop.permute.xlu0 %1612
        %1616 = vset.pattern.permute.xlu0 3
        %1617 = vperm.xlu0 %1616, %v1587
        %v1618 = vpop.permute.xlu0 %1617
        %1621 = vset.pattern.permute.xlu0 3
        %1622 = vperm.xlu0 %1621, %v1588
        %v1623 = vpop.permute.xlu0 %1622
        %1626 = vset.pattern.permute.xlu0 3
        %1627 = vperm.xlu0 %1626, %v1589
        %v1628 = vpop.permute.xlu0 %1627
        %s1630 = scalar_lea.vmem [#allocation2], 1344
        %1631 = vst [vmem:[%s1630] sm:$0xff] %v1593
        %1632 = vst [vmem:[%s1630 + $0x8] sm:$0xff] %v1598
        %1633 = vst [vmem:[%s1630 + $0x10] sm:$0xff] %v1603
        %1634 = vst [vmem:[%s1630 + $0x18] sm:$0xff] %v1608
        %1635 = vst [vmem:[%s1630 + $0x20] sm:$0xff] %v1613
        %1636 = vst [vmem:[%s1630 + $0x28] sm:$0xff] %v1618
        %1637 = vst [vmem:[%s1630 + $0x30] sm:$0xff] %v1623
        %1638 = vst [vmem:[%s1630 + $0x38] sm:$0xff] %v1628
        %v1639 = vld [vmem:[%s1459] sm:$0xff]
        %v1640 = vld [vmem:[%s1459 + $0x8] sm:$0xff]
        %v1641 = vld [vmem:[%s1459 + $0x10] sm:$0xff]
        %v1642 = vld [vmem:[%s1459 + $0x18] sm:$0xff]
        %v1643 = vld [vmem:[%s1459 + $0x20] sm:$0xff]
        %v1644 = vld [vmem:[%s1459 + $0x28] sm:$0xff]
        %v1645 = vld [vmem:[%s1459 + $0x30] sm:$0xff]
        %v1646 = vld [vmem:[%s1459 + $0x38] sm:$0xff]
        %1648 = vset.pattern.permute.xlu0 4
        %1649 = vperm.xlu0 %1648, %v1639
        %v1650 = vpop.permute.xlu0 %1649
        %1653 = vset.pattern.permute.xlu0 4
        %1654 = vperm.xlu0 %1653, %v1640
        %v1655 = vpop.permute.xlu0 %1654
        %1658 = vset.pattern.permute.xlu0 4
        %1659 = vperm.xlu0 %1658, %v1641
        %v1660 = vpop.permute.xlu0 %1659
        %1663 = vset.pattern.permute.xlu0 4
        %1664 = vperm.xlu0 %1663, %v1642
        %v1665 = vpop.permute.xlu0 %1664
        %1668 = vset.pattern.permute.xlu0 4
        %1669 = vperm.xlu0 %1668, %v1643
        %v1670 = vpop.permute.xlu0 %1669
        %1673 = vset.pattern.permute.xlu0 4
        %1674 = vperm.xlu0 %1673, %v1644
        %v1675 = vpop.permute.xlu0 %1674
        %1678 = vset.pattern.permute.xlu0 4
        %1679 = vperm.xlu0 %1678, %v1645
        %v1680 = vpop.permute.xlu0 %1679
        %1683 = vset.pattern.permute.xlu0 4
        %1684 = vperm.xlu0 %1683, %v1646
        %v1685 = vpop.permute.xlu0 %1684
        %v1687 = vmul.f32 %v1650, %v265
        %v1688 = vmul.f32 %v1655, %v265
        %v1689 = vmul.f32 %v1660, %v265
        %v1690 = vmul.f32 %v1665, %v265
        %v1691 = vmul.f32 %v1670, %v265
        %v1692 = vmul.f32 %v1675, %v265
        %v1693 = vmul.f32 %v1680, %v265
        %v1694 = vmul.f32 %v1685, %v265
        %s1695 = scalar_lea.vmem [#allocation2], 1408
        %1696 = vst [vmem:[%s1695] sm:$0xff] %v1687
        %1697 = vst [vmem:[%s1695 + $0x8] sm:$0xff] %v1688
        %1698 = vst [vmem:[%s1695 + $0x10] sm:$0xff] %v1689
        %1699 = vst [vmem:[%s1695 + $0x18] sm:$0xff] %v1690
        %1700 = vst [vmem:[%s1695 + $0x20] sm:$0xff] %v1691
        %1701 = vst [vmem:[%s1695 + $0x28] sm:$0xff] %v1692
        %1702 = vst [vmem:[%s1695 + $0x30] sm:$0xff] %v1693
        %1703 = vst [vmem:[%s1695 + $0x38] sm:$0xff] %v1694
        %s1704 = scalar_lea.vmem [#allocation3], 320
        %v1705 = vld [vmem:[%s1704] sm:$0xff]
        %v1706 = vld [vmem:[%s1704 + $0x8] sm:$0xff]
        %v1707 = vld [vmem:[%s1704 + $0x10] sm:$0xff]
        %v1708 = vld [vmem:[%s1704 + $0x18] sm:$0xff]
        %v1709 = vld [vmem:[%s1704 + $0x20] sm:$0xff]
        %v1710 = vld [vmem:[%s1704 + $0x28] sm:$0xff]
        %v1711 = vld [vmem:[%s1704 + $0x30] sm:$0xff]
        %v1712 = vld [vmem:[%s1704 + $0x38] sm:$0xff]
        %1714 = vset.pattern.permute.xlu0 8
        %1715 = vperm.xlu0 %1714, %v1705
        %v1716 = vpop.permute.xlu0 %1715
        %1719 = vset.pattern.permute.xlu0 8
        %1720 = vperm.xlu0 %1719, %v1706
        %v1721 = vpop.permute.xlu0 %1720
        %1724 = vset.pattern.permute.xlu0 8
        %1725 = vperm.xlu0 %1724, %v1707
        %v1726 = vpop.permute.xlu0 %1725
        %1729 = vset.pattern.permute.xlu0 8
        %1730 = vperm.xlu0 %1729, %v1708
        %v1731 = vpop.permute.xlu0 %1730
        %1734 = vset.pattern.permute.xlu0 8
        %1735 = vperm.xlu0 %1734, %v1709
        %v1736 = vpop.permute.xlu0 %1735
        %1739 = vset.pattern.permute.xlu0 8
        %1740 = vperm.xlu0 %1739, %v1710
        %v1741 = vpop.permute.xlu0 %1740
        %1744 = vset.pattern.permute.xlu0 8
        %1745 = vperm.xlu0 %1744, %v1711
        %v1746 = vpop.permute.xlu0 %1745
        %1749 = vset.pattern.permute.xlu0 8
        %1750 = vperm.xlu0 %1749, %v1712
        %v1751 = vpop.permute.xlu0 %1750
        %s1753 = scalar_lea.vmem [#allocation2], 1472
        %1754 = vst [vmem:[%s1753] sm:$0xff] %v1716
        %1755 = vst [vmem:[%s1753 + $0x8] sm:$0xff] %v1721
        %1756 = vst [vmem:[%s1753 + $0x10] sm:$0xff] %v1726
        %1757 = vst [vmem:[%s1753 + $0x18] sm:$0xff] %v1731
        %1758 = vst [vmem:[%s1753 + $0x20] sm:$0xff] %v1736
        %1759 = vst [vmem:[%s1753 + $0x28] sm:$0xff] %v1741
        %1760 = vst [vmem:[%s1753 + $0x30] sm:$0xff] %v1746
        %1761 = vst [vmem:[%s1753 + $0x38] sm:$0xff] %v1751
        %v1762 = vld [vmem:[%s1704] sm:$0xff]
        %v1763 = vld [vmem:[%s1704 + $0x8] sm:$0xff]
        %v1764 = vld [vmem:[%s1704 + $0x10] sm:$0xff]
        %v1765 = vld [vmem:[%s1704 + $0x18] sm:$0xff]
        %v1766 = vld [vmem:[%s1704 + $0x20] sm:$0xff]
        %v1767 = vld [vmem:[%s1704 + $0x28] sm:$0xff]
        %v1768 = vld [vmem:[%s1704 + $0x30] sm:$0xff]
        %v1769 = vld [vmem:[%s1704 + $0x38] sm:$0xff]
        %1771 = vset.pattern.permute.xlu0 1
        %1772 = vperm.xlu0 %1771, %v1762
        %v1773 = vpop.permute.xlu0 %1772
        %1776 = vset.pattern.permute.xlu0 1
        %1777 = vperm.xlu0 %1776, %v1763
        %v1778 = vpop.permute.xlu0 %1777
        %1781 = vset.pattern.permute.xlu0 1
        %1782 = vperm.xlu0 %1781, %v1764
        %v1783 = vpop.permute.xlu0 %1782
        %1786 = vset.pattern.permute.xlu0 1
        %1787 = vperm.xlu0 %1786, %v1765
        %v1788 = vpop.permute.xlu0 %1787
        %1791 = vset.pattern.permute.xlu0 1
        %1792 = vperm.xlu0 %1791, %v1766
        %v1793 = vpop.permute.xlu0 %1792
        %1796 = vset.pattern.permute.xlu0 1
        %1797 = vperm.xlu0 %1796, %v1767
        %v1798 = vpop.permute.xlu0 %1797
        %1801 = vset.pattern.permute.xlu0 1
        %1802 = vperm.xlu0 %1801, %v1768
        %v1803 = vpop.permute.xlu0 %1802
        %1806 = vset.pattern.permute.xlu0 1
        %1807 = vperm.xlu0 %1806, %v1769
        %v1808 = vpop.permute.xlu0 %1807
        %v1810 = vmul.f32 %v1773, %v253
        %v1811 = vmul.f32 %v1778, %v253
        %v1812 = vmul.f32 %v1783, %v253
        %v1813 = vmul.f32 %v1788, %v253
        %v1814 = vmul.f32 %v1793, %v253
        %v1815 = vmul.f32 %v1798, %v253
        %v1816 = vmul.f32 %v1803, %v253
        %v1817 = vmul.f32 %v1808, %v253
        %s1818 = scalar_lea.vmem [#allocation2], 1536
        %1819 = vst [vmem:[%s1818] sm:$0xff] %v1810
        %1820 = vst [vmem:[%s1818 + $0x8] sm:$0xff] %v1811
        %1821 = vst [vmem:[%s1818 + $0x10] sm:$0xff] %v1812
        %1822 = vst [vmem:[%s1818 + $0x18] sm:$0xff] %v1813
        %1823 = vst [vmem:[%s1818 + $0x20] sm:$0xff] %v1814
        %1824 = vst [vmem:[%s1818 + $0x28] sm:$0xff] %v1815
        %1825 = vst [vmem:[%s1818 + $0x30] sm:$0xff] %v1816
        %1826 = vst [vmem:[%s1818 + $0x38] sm:$0xff] %v1817
        %v1827 = vld [vmem:[%s1704] sm:$0xff]
        %v1828 = vld [vmem:[%s1704 + $0x8] sm:$0xff]
        %v1829 = vld [vmem:[%s1704 + $0x10] sm:$0xff]
        %v1830 = vld [vmem:[%s1704 + $0x18] sm:$0xff]
        %v1831 = vld [vmem:[%s1704 + $0x20] sm:$0xff]
        %v1832 = vld [vmem:[%s1704 + $0x28] sm:$0xff]
        %v1833 = vld [vmem:[%s1704 + $0x30] sm:$0xff]
        %v1834 = vld [vmem:[%s1704 + $0x38] sm:$0xff]
        %1836 = vset.pattern.permute.xlu0 2
        %1837 = vperm.xlu0 %1836, %v1827
        %v1838 = vpop.permute.xlu0 %1837
        %1841 = vset.pattern.permute.xlu0 2
        %1842 = vperm.xlu0 %1841, %v1828
        %v1843 = vpop.permute.xlu0 %1842
        %1846 = vset.pattern.permute.xlu0 2
        %1847 = vperm.xlu0 %1846, %v1829
        %v1848 = vpop.permute.xlu0 %1847
        %1851 = vset.pattern.permute.xlu0 2
        %1852 = vperm.xlu0 %1851, %v1830
        %v1853 = vpop.permute.xlu0 %1852
        %1856 = vset.pattern.permute.xlu0 2
        %1857 = vperm.xlu0 %1856, %v1831
        %v1858 = vpop.permute.xlu0 %1857
        %1861 = vset.pattern.permute.xlu0 2
        %1862 = vperm.xlu0 %1861, %v1832
        %v1863 = vpop.permute.xlu0 %1862
        %1866 = vset.pattern.permute.xlu0 2
        %1867 = vperm.xlu0 %1866, %v1833
        %v1868 = vpop.permute.xlu0 %1867
        %1871 = vset.pattern.permute.xlu0 2
        %1872 = vperm.xlu0 %1871, %v1834
        %v1873 = vpop.permute.xlu0 %1872
        %v1875 = vmul.f32 %v1838, %v259
        %v1876 = vmul.f32 %v1843, %v259
        %v1877 = vmul.f32 %v1848, %v259
        %v1878 = vmul.f32 %v1853, %v259
        %v1879 = vmul.f32 %v1858, %v259
        %v1880 = vmul.f32 %v1863, %v259
        %v1881 = vmul.f32 %v1868, %v259
        %v1882 = vmul.f32 %v1873, %v259
        %s1883 = scalar_lea.vmem [#allocation2], 1600
        %1884 = vst [vmem:[%s1883] sm:$0xff] %v1875
        %1885 = vst [vmem:[%s1883 + $0x8] sm:$0xff] %v1876
        %1886 = vst [vmem:[%s1883 + $0x10] sm:$0xff] %v1877
        %1887 = vst [vmem:[%s1883 + $0x18] sm:$0xff] %v1878
        %1888 = vst [vmem:[%s1883 + $0x20] sm:$0xff] %v1879
        %1889 = vst [vmem:[%s1883 + $0x28] sm:$0xff] %v1880
        %1890 = vst [vmem:[%s1883 + $0x30] sm:$0xff] %v1881
        %1891 = vst [vmem:[%s1883 + $0x38] sm:$0xff] %v1882
        %v1892 = vld [vmem:[%s1704] sm:$0xff]
        %v1893 = vld [vmem:[%s1704 + $0x8] sm:$0xff]
        %v1894 = vld [vmem:[%s1704 + $0x10] sm:$0xff]
        %v1895 = vld [vmem:[%s1704 + $0x18] sm:$0xff]
        %v1896 = vld [vmem:[%s1704 + $0x20] sm:$0xff]
        %v1897 = vld [vmem:[%s1704 + $0x28] sm:$0xff]
        %v1898 = vld [vmem:[%s1704 + $0x30] sm:$0xff]
        %v1899 = vld [vmem:[%s1704 + $0x38] sm:$0xff]
        %1901 = vset.pattern.permute.xlu0 3
        %1902 = vperm.xlu0 %1901, %v1892
        %v1903 = vpop.permute.xlu0 %1902
        %1906 = vset.pattern.permute.xlu0 3
        %1907 = vperm.xlu0 %1906, %v1893
        %v1908 = vpop.permute.xlu0 %1907
        %1911 = vset.pattern.permute.xlu0 3
        %1912 = vperm.xlu0 %1911, %v1894
        %v1913 = vpop.permute.xlu0 %1912
        %1916 = vset.pattern.permute.xlu0 3
        %1917 = vperm.xlu0 %1916, %v1895
        %v1918 = vpop.permute.xlu0 %1917
        %1921 = vset.pattern.permute.xlu0 3
        %1922 = vperm.xlu0 %1921, %v1896
        %v1923 = vpop.permute.xlu0 %1922
        %1926 = vset.pattern.permute.xlu0 3
        %1927 = vperm.xlu0 %1926, %v1897
        %v1928 = vpop.permute.xlu0 %1927
        %1931 = vset.pattern.permute.xlu0 3
        %1932 = vperm.xlu0 %1931, %v1898
        %v1933 = vpop.permute.xlu0 %1932
        %1936 = vset.pattern.permute.xlu0 3
        %1937 = vperm.xlu0 %1936, %v1899
        %v1938 = vpop.permute.xlu0 %1937
        %s1940 = scalar_lea.vmem [#allocation2], 1664
        %1941 = vst [vmem:[%s1940] sm:$0xff] %v1903
        %1942 = vst [vmem:[%s1940 + $0x8] sm:$0xff] %v1908
        %1943 = vst [vmem:[%s1940 + $0x10] sm:$0xff] %v1913
        %1944 = vst [vmem:[%s1940 + $0x18] sm:$0xff] %v1918
        %1945 = vst [vmem:[%s1940 + $0x20] sm:$0xff] %v1923
        %1946 = vst [vmem:[%s1940 + $0x28] sm:$0xff] %v1928
        %1947 = vst [vmem:[%s1940 + $0x30] sm:$0xff] %v1933
        %1948 = vst [vmem:[%s1940 + $0x38] sm:$0xff] %v1938
        %v1949 = vld [vmem:[%s1704] sm:$0xff]
        %v1950 = vld [vmem:[%s1704 + $0x8] sm:$0xff]
        %v1951 = vld [vmem:[%s1704 + $0x10] sm:$0xff]
        %v1952 = vld [vmem:[%s1704 + $0x18] sm:$0xff]
        %v1953 = vld [vmem:[%s1704 + $0x20] sm:$0xff]
        %v1954 = vld [vmem:[%s1704 + $0x28] sm:$0xff]
        %v1955 = vld [vmem:[%s1704 + $0x30] sm:$0xff]
        %v1956 = vld [vmem:[%s1704 + $0x38] sm:$0xff]
        %1958 = vset.pattern.permute.xlu0 4
        %1959 = vperm.xlu0 %1958, %v1949
        %v1960 = vpop.permute.xlu0 %1959
        %1963 = vset.pattern.permute.xlu0 4
        %1964 = vperm.xlu0 %1963, %v1950
        %v1965 = vpop.permute.xlu0 %1964
        %1968 = vset.pattern.permute.xlu0 4
        %1969 = vperm.xlu0 %1968, %v1951
        %v1970 = vpop.permute.xlu0 %1969
        %1973 = vset.pattern.permute.xlu0 4
        %1974 = vperm.xlu0 %1973, %v1952
        %v1975 = vpop.permute.xlu0 %1974
        %1978 = vset.pattern.permute.xlu0 4
        %1979 = vperm.xlu0 %1978, %v1953
        %v1980 = vpop.permute.xlu0 %1979
        %1983 = vset.pattern.permute.xlu0 4
        %1984 = vperm.xlu0 %1983, %v1954
        %v1985 = vpop.permute.xlu0 %1984
        %1988 = vset.pattern.permute.xlu0 4
        %1989 = vperm.xlu0 %1988, %v1955
        %v1990 = vpop.permute.xlu0 %1989
        %1993 = vset.pattern.permute.xlu0 4
        %1994 = vperm.xlu0 %1993, %v1956
        %v1995 = vpop.permute.xlu0 %1994
        %v1997 = vmul.f32 %v1960, %v265
        %v1998 = vmul.f32 %v1965, %v265
        %v1999 = vmul.f32 %v1970, %v265
        %v2000 = vmul.f32 %v1975, %v265
        %v2001 = vmul.f32 %v1980, %v265
        %v2002 = vmul.f32 %v1985, %v265
        %v2003 = vmul.f32 %v1990, %v265
        %v2004 = vmul.f32 %v1995, %v265
        %s2005 = scalar_lea.vmem [#allocation2], 1728
        %2006 = vst [vmem:[%s2005] sm:$0xff] %v1997
        %2007 = vst [vmem:[%s2005 + $0x8] sm:$0xff] %v1998
        %2008 = vst [vmem:[%s2005 + $0x10] sm:$0xff] %v1999
        %2009 = vst [vmem:[%s2005 + $0x18] sm:$0xff] %v2000
        %2010 = vst [vmem:[%s2005 + $0x20] sm:$0xff] %v2001
        %2011 = vst [vmem:[%s2005 + $0x28] sm:$0xff] %v2002
        %2012 = vst [vmem:[%s2005 + $0x30] sm:$0xff] %v2003
        %2013 = vst [vmem:[%s2005 + $0x38] sm:$0xff] %v2004
        %v2014 = vld [vmem:[%s1704] sm:$0xff]
        %v2015 = vld [vmem:[%s1704 + $0x8] sm:$0xff]
        %v2016 = vld [vmem:[%s1704 + $0x10] sm:$0xff]
        %v2017 = vld [vmem:[%s1704 + $0x18] sm:$0xff]
        %v2018 = vld [vmem:[%s1704 + $0x20] sm:$0xff]
        %v2019 = vld [vmem:[%s1704 + $0x28] sm:$0xff]
        %v2020 = vld [vmem:[%s1704 + $0x30] sm:$0xff]
        %v2021 = vld [vmem:[%s1704 + $0x38] sm:$0xff]
        %2023 = vset.pattern.permute.xlu0 5
        %2024 = vperm.xlu0 %2023, %v2014
        %v2025 = vpop.permute.xlu0 %2024
        %2028 = vset.pattern.permute.xlu0 5
        %2029 = vperm.xlu0 %2028, %v2015
        %v2030 = vpop.permute.xlu0 %2029
        %2033 = vset.pattern.permute.xlu0 5
        %2034 = vperm.xlu0 %2033, %v2016
        %v2035 = vpop.permute.xlu0 %2034
        %2038 = vset.pattern.permute.xlu0 5
        %2039 = vperm.xlu0 %2038, %v2017
        %v2040 = vpop.permute.xlu0 %2039
        %2043 = vset.pattern.permute.xlu0 5
        %2044 = vperm.xlu0 %2043, %v2018
        %v2045 = vpop.permute.xlu0 %2044
        %2048 = vset.pattern.permute.xlu0 5
        %2049 = vperm.xlu0 %2048, %v2019
        %v2050 = vpop.permute.xlu0 %2049
        %2053 = vset.pattern.permute.xlu0 5
        %2054 = vperm.xlu0 %2053, %v2020
        %v2055 = vpop.permute.xlu0 %2054
        %2058 = vset.pattern.permute.xlu0 5
        %2059 = vperm.xlu0 %2058, %v2021
        %v2060 = vpop.permute.xlu0 %2059
        %v2062 = vmul.f32 %v2025, %v271
        %v2063 = vmul.f32 %v2030, %v271
        %v2064 = vmul.f32 %v2035, %v271
        %v2065 = vmul.f32 %v2040, %v271
        %v2066 = vmul.f32 %v2045, %v271
        %v2067 = vmul.f32 %v2050, %v271
        %v2068 = vmul.f32 %v2055, %v271
        %v2069 = vmul.f32 %v2060, %v271
        %s2070 = scalar_lea.vmem [#allocation2], 1792
        %2071 = vst [vmem:[%s2070] sm:$0xff] %v2062
        %2072 = vst [vmem:[%s2070 + $0x8] sm:$0xff] %v2063
        %2073 = vst [vmem:[%s2070 + $0x10] sm:$0xff] %v2064
        %2074 = vst [vmem:[%s2070 + $0x18] sm:$0xff] %v2065
        %2075 = vst [vmem:[%s2070 + $0x20] sm:$0xff] %v2066
        %2076 = vst [vmem:[%s2070 + $0x28] sm:$0xff] %v2067
        %2077 = vst [vmem:[%s2070 + $0x30] sm:$0xff] %v2068
        %2078 = vst [vmem:[%s2070 + $0x38] sm:$0xff] %v2069
        %s2079 = scalar_lea.vmem [#allocation3], 384
        %v2080 = vld [vmem:[%s2079] sm:$0xff]
        %v2081 = vld [vmem:[%s2079 + $0x8] sm:$0xff]
        %v2082 = vld [vmem:[%s2079 + $0x10] sm:$0xff]
        %v2083 = vld [vmem:[%s2079 + $0x18] sm:$0xff]
        %v2084 = vld [vmem:[%s2079 + $0x20] sm:$0xff]
        %v2085 = vld [vmem:[%s2079 + $0x28] sm:$0xff]
        %v2086 = vld [vmem:[%s2079 + $0x30] sm:$0xff]
        %v2087 = vld [vmem:[%s2079 + $0x38] sm:$0xff]
        %2089 = vset.pattern.permute.xlu0 8
        %2090 = vperm.xlu0 %2089, %v2080
        %v2091 = vpop.permute.xlu0 %2090
        %2094 = vset.pattern.permute.xlu0 8
        %2095 = vperm.xlu0 %2094, %v2081
        %v2096 = vpop.permute.xlu0 %2095
        %2099 = vset.pattern.permute.xlu0 8
        %2100 = vperm.xlu0 %2099, %v2082
        %v2101 = vpop.permute.xlu0 %2100
        %2104 = vset.pattern.permute.xlu0 8
        %2105 = vperm.xlu0 %2104, %v2083
        %v2106 = vpop.permute.xlu0 %2105
        %2109 = vset.pattern.permute.xlu0 8
        %2110 = vperm.xlu0 %2109, %v2084
        %v2111 = vpop.permute.xlu0 %2110
        %2114 = vset.pattern.permute.xlu0 8
        %2115 = vperm.xlu0 %2114, %v2085
        %v2116 = vpop.permute.xlu0 %2115
        %2119 = vset.pattern.permute.xlu0 8
        %2120 = vperm.xlu0 %2119, %v2086
        %v2121 = vpop.permute.xlu0 %2120
        %2124 = vset.pattern.permute.xlu0 8
        %2125 = vperm.xlu0 %2124, %v2087
        %v2126 = vpop.permute.xlu0 %2125
        %s2128 = scalar_lea.vmem [#allocation2], 1856
        %2129 = vst [vmem:[%s2128] sm:$0xff] %v2091
        %2130 = vst [vmem:[%s2128 + $0x8] sm:$0xff] %v2096
        %2131 = vst [vmem:[%s2128 + $0x10] sm:$0xff] %v2101
        %2132 = vst [vmem:[%s2128 + $0x18] sm:$0xff] %v2106
        %2133 = vst [vmem:[%s2128 + $0x20] sm:$0xff] %v2111
        %2134 = vst [vmem:[%s2128 + $0x28] sm:$0xff] %v2116
        %2135 = vst [vmem:[%s2128 + $0x30] sm:$0xff] %v2121
        %2136 = vst [vmem:[%s2128 + $0x38] sm:$0xff] %v2126
        %v2137 = vld [vmem:[%s2079] sm:$0xff]
        %v2138 = vld [vmem:[%s2079 + $0x8] sm:$0xff]
        %v2139 = vld [vmem:[%s2079 + $0x10] sm:$0xff]
        %v2140 = vld [vmem:[%s2079 + $0x18] sm:$0xff]
        %v2141 = vld [vmem:[%s2079 + $0x20] sm:$0xff]
        %v2142 = vld [vmem:[%s2079 + $0x28] sm:$0xff]
        %v2143 = vld [vmem:[%s2079 + $0x30] sm:$0xff]
        %v2144 = vld [vmem:[%s2079 + $0x38] sm:$0xff]
        %2146 = vset.pattern.permute.xlu0 0
        %2147 = vperm.xlu0 %2146, %v2137
        %v2148 = vpop.permute.xlu0 %2147
        %2151 = vset.pattern.permute.xlu0 0
        %2152 = vperm.xlu0 %2151, %v2138
        %v2153 = vpop.permute.xlu0 %2152
        %2156 = vset.pattern.permute.xlu0 0
        %2157 = vperm.xlu0 %2156, %v2139
        %v2158 = vpop.permute.xlu0 %2157
        %2161 = vset.pattern.permute.xlu0 0
        %2162 = vperm.xlu0 %2161, %v2140
        %v2163 = vpop.permute.xlu0 %2162
        %2166 = vset.pattern.permute.xlu0 0
        %2167 = vperm.xlu0 %2166, %v2141
        %v2168 = vpop.permute.xlu0 %2167
        %2171 = vset.pattern.permute.xlu0 0
        %2172 = vperm.xlu0 %2171, %v2142
        %v2173 = vpop.permute.xlu0 %2172
        %2176 = vset.pattern.permute.xlu0 0
        %2177 = vperm.xlu0 %2176, %v2143
        %v2178 = vpop.permute.xlu0 %2177
        %2181 = vset.pattern.permute.xlu0 0
        %2182 = vperm.xlu0 %2181, %v2144
        %v2183 = vpop.permute.xlu0 %2182
        %v2185 = vmul.f32 %v2148, %v247
        %v2186 = vmul.f32 %v2153, %v247
        %v2187 = vmul.f32 %v2158, %v247
        %v2188 = vmul.f32 %v2163, %v247
        %v2189 = vmul.f32 %v2168, %v247
        %v2190 = vmul.f32 %v2173, %v247
        %v2191 = vmul.f32 %v2178, %v247
        %v2192 = vmul.f32 %v2183, %v247
        %s2193 = scalar_lea.vmem [#allocation2], 1920
        %2194 = vst [vmem:[%s2193] sm:$0xff] %v2185
        %2195 = vst [vmem:[%s2193 + $0x8] sm:$0xff] %v2186
        %2196 = vst [vmem:[%s2193 + $0x10] sm:$0xff] %v2187
        %2197 = vst [vmem:[%s2193 + $0x18] sm:$0xff] %v2188
        %2198 = vst [vmem:[%s2193 + $0x20] sm:$0xff] %v2189
        %2199 = vst [vmem:[%s2193 + $0x28] sm:$0xff] %v2190
        %2200 = vst [vmem:[%s2193 + $0x30] sm:$0xff] %v2191
        %2201 = vst [vmem:[%s2193 + $0x38] sm:$0xff] %v2192
        %v2202 = vld [vmem:[%s2079] sm:$0xff]
        %v2203 = vld [vmem:[%s2079 + $0x8] sm:$0xff]
        %v2204 = vld [vmem:[%s2079 + $0x10] sm:$0xff]
        %v2205 = vld [vmem:[%s2079 + $0x18] sm:$0xff]
        %v2206 = vld [vmem:[%s2079 + $0x20] sm:$0xff]
        %v2207 = vld [vmem:[%s2079 + $0x28] sm:$0xff]
        %v2208 = vld [vmem:[%s2079 + $0x30] sm:$0xff]
        %v2209 = vld [vmem:[%s2079 + $0x38] sm:$0xff]
        %2211 = vset.pattern.permute.xlu0 1
        %2212 = vperm.xlu0 %2211, %v2202
        %v2213 = vpop.permute.xlu0 %2212
        %2216 = vset.pattern.permute.xlu0 1
        %2217 = vperm.xlu0 %2216, %v2203
        %v2218 = vpop.permute.xlu0 %2217
        %2221 = vset.pattern.permute.xlu0 1
        %2222 = vperm.xlu0 %2221, %v2204
        %v2223 = vpop.permute.xlu0 %2222
        %2226 = vset.pattern.permute.xlu0 1
        %2227 = vperm.xlu0 %2226, %v2205
        %v2228 = vpop.permute.xlu0 %2227
        %2231 = vset.pattern.permute.xlu0 1
        %2232 = vperm.xlu0 %2231, %v2206
        %v2233 = vpop.permute.xlu0 %2232
        %2236 = vset.pattern.permute.xlu0 1
        %2237 = vperm.xlu0 %2236, %v2207
        %v2238 = vpop.permute.xlu0 %2237
        %2241 = vset.pattern.permute.xlu0 1
        %2242 = vperm.xlu0 %2241, %v2208
        %v2243 = vpop.permute.xlu0 %2242
        %2246 = vset.pattern.permute.xlu0 1
        %2247 = vperm.xlu0 %2246, %v2209
        %v2248 = vpop.permute.xlu0 %2247
        %v2250 = vmul.f32 %v2213, %v253
        %v2251 = vmul.f32 %v2218, %v253
        %v2252 = vmul.f32 %v2223, %v253
        %v2253 = vmul.f32 %v2228, %v253
        %v2254 = vmul.f32 %v2233, %v253
        %v2255 = vmul.f32 %v2238, %v253
        %v2256 = vmul.f32 %v2243, %v253
        %v2257 = vmul.f32 %v2248, %v253
        %s2258 = scalar_lea.vmem [#allocation2], 1984
        %2259 = vst [vmem:[%s2258] sm:$0xff] %v2250
        %2260 = vst [vmem:[%s2258 + $0x8] sm:$0xff] %v2251
        %2261 = vst [vmem:[%s2258 + $0x10] sm:$0xff] %v2252
        %2262 = vst [vmem:[%s2258 + $0x18] sm:$0xff] %v2253
        %2263 = vst [vmem:[%s2258 + $0x20] sm:$0xff] %v2254
        %2264 = vst [vmem:[%s2258 + $0x28] sm:$0xff] %v2255
        %2265 = vst [vmem:[%s2258 + $0x30] sm:$0xff] %v2256
        %2266 = vst [vmem:[%s2258 + $0x38] sm:$0xff] %v2257
        %v2267 = vld [vmem:[%s2079] sm:$0xff]
        %v2268 = vld [vmem:[%s2079 + $0x8] sm:$0xff]
        %v2269 = vld [vmem:[%s2079 + $0x10] sm:$0xff]
        %v2270 = vld [vmem:[%s2079 + $0x18] sm:$0xff]
        %v2271 = vld [vmem:[%s2079 + $0x20] sm:$0xff]
        %v2272 = vld [vmem:[%s2079 + $0x28] sm:$0xff]
        %v2273 = vld [vmem:[%s2079 + $0x30] sm:$0xff]
        %v2274 = vld [vmem:[%s2079 + $0x38] sm:$0xff]
        %2276 = vset.pattern.permute.xlu0 2
        %2277 = vperm.xlu0 %2276, %v2267
        %v2278 = vpop.permute.xlu0 %2277
        %2281 = vset.pattern.permute.xlu0 2
        %2282 = vperm.xlu0 %2281, %v2268
        %v2283 = vpop.permute.xlu0 %2282
        %2286 = vset.pattern.permute.xlu0 2
        %2287 = vperm.xlu0 %2286, %v2269
        %v2288 = vpop.permute.xlu0 %2287
        %2291 = vset.pattern.permute.xlu0 2
        %2292 = vperm.xlu0 %2291, %v2270
        %v2293 = vpop.permute.xlu0 %2292
        %2296 = vset.pattern.permute.xlu0 2
        %2297 = vperm.xlu0 %2296, %v2271
        %v2298 = vpop.permute.xlu0 %2297
        %2301 = vset.pattern.permute.xlu0 2
        %2302 = vperm.xlu0 %2301, %v2272
        %v2303 = vpop.permute.xlu0 %2302
        %2306 = vset.pattern.permute.xlu0 2
        %2307 = vperm.xlu0 %2306, %v2273
        %v2308 = vpop.permute.xlu0 %2307
        %2311 = vset.pattern.permute.xlu0 2
        %2312 = vperm.xlu0 %2311, %v2274
        %v2313 = vpop.permute.xlu0 %2312
        %v2315 = vmul.f32 %v2278, %v259
        %v2316 = vmul.f32 %v2283, %v259
        %v2317 = vmul.f32 %v2288, %v259
        %v2318 = vmul.f32 %v2293, %v259
        %v2319 = vmul.f32 %v2298, %v259
        %v2320 = vmul.f32 %v2303, %v259
        %v2321 = vmul.f32 %v2308, %v259
        %v2322 = vmul.f32 %v2313, %v259
        %s2323 = scalar_lea.vmem [#allocation2], 2048
        %2324 = vst [vmem:[%s2323] sm:$0xff] %v2315
        %2325 = vst [vmem:[%s2323 + $0x8] sm:$0xff] %v2316
        %2326 = vst [vmem:[%s2323 + $0x10] sm:$0xff] %v2317
        %2327 = vst [vmem:[%s2323 + $0x18] sm:$0xff] %v2318
        %2328 = vst [vmem:[%s2323 + $0x20] sm:$0xff] %v2319
        %2329 = vst [vmem:[%s2323 + $0x28] sm:$0xff] %v2320
        %2330 = vst [vmem:[%s2323 + $0x30] sm:$0xff] %v2321
        %2331 = vst [vmem:[%s2323 + $0x38] sm:$0xff] %v2322
        %v2332 = vld [vmem:[%s2079] sm:$0xff]
        %v2333 = vld [vmem:[%s2079 + $0x8] sm:$0xff]
        %v2334 = vld [vmem:[%s2079 + $0x10] sm:$0xff]
        %v2335 = vld [vmem:[%s2079 + $0x18] sm:$0xff]
        %v2336 = vld [vmem:[%s2079 + $0x20] sm:$0xff]
        %v2337 = vld [vmem:[%s2079 + $0x28] sm:$0xff]
        %v2338 = vld [vmem:[%s2079 + $0x30] sm:$0xff]
        %v2339 = vld [vmem:[%s2079 + $0x38] sm:$0xff]
        %2341 = vset.pattern.permute.xlu0 3
        %2342 = vperm.xlu0 %2341, %v2332
        %v2343 = vpop.permute.xlu0 %2342
        %2346 = vset.pattern.permute.xlu0 3
        %2347 = vperm.xlu0 %2346, %v2333
        %v2348 = vpop.permute.xlu0 %2347
        %2351 = vset.pattern.permute.xlu0 3
        %2352 = vperm.xlu0 %2351, %v2334
        %v2353 = vpop.permute.xlu0 %2352
        %2356 = vset.pattern.permute.xlu0 3
        %2357 = vperm.xlu0 %2356, %v2335
        %v2358 = vpop.permute.xlu0 %2357
        %2361 = vset.pattern.permute.xlu0 3
        %2362 = vperm.xlu0 %2361, %v2336
        %v2363 = vpop.permute.xlu0 %2362
        %2366 = vset.pattern.permute.xlu0 3
        %2367 = vperm.xlu0 %2366, %v2337
        %v2368 = vpop.permute.xlu0 %2367
        %2371 = vset.pattern.permute.xlu0 3
        %2372 = vperm.xlu0 %2371, %v2338
        %v2373 = vpop.permute.xlu0 %2372
        %2376 = vset.pattern.permute.xlu0 3
        %2377 = vperm.xlu0 %2376, %v2339
        %v2378 = vpop.permute.xlu0 %2377
        %s2380 = scalar_lea.vmem [#allocation2], 2112
        %2381 = vst [vmem:[%s2380] sm:$0xff] %v2343
        %2382 = vst [vmem:[%s2380 + $0x8] sm:$0xff] %v2348
        %2383 = vst [vmem:[%s2380 + $0x10] sm:$0xff] %v2353
        %2384 = vst [vmem:[%s2380 + $0x18] sm:$0xff] %v2358
        %2385 = vst [vmem:[%s2380 + $0x20] sm:$0xff] %v2363
        %2386 = vst [vmem:[%s2380 + $0x28] sm:$0xff] %v2368
        %2387 = vst [vmem:[%s2380 + $0x30] sm:$0xff] %v2373
        %2388 = vst [vmem:[%s2380 + $0x38] sm:$0xff] %v2378
        %v2389 = vld [vmem:[%s2079] sm:$0xff]
        %v2390 = vld [vmem:[%s2079 + $0x8] sm:$0xff]
        %v2391 = vld [vmem:[%s2079 + $0x10] sm:$0xff]
        %v2392 = vld [vmem:[%s2079 + $0x18] sm:$0xff]
        %v2393 = vld [vmem:[%s2079 + $0x20] sm:$0xff]
        %v2394 = vld [vmem:[%s2079 + $0x28] sm:$0xff]
        %v2395 = vld [vmem:[%s2079 + $0x30] sm:$0xff]
        %v2396 = vld [vmem:[%s2079 + $0x38] sm:$0xff]
        %2398 = vset.pattern.permute.xlu0 4
        %2399 = vperm.xlu0 %2398, %v2389
        %v2400 = vpop.permute.xlu0 %2399
        %2403 = vset.pattern.permute.xlu0 4
        %2404 = vperm.xlu0 %2403, %v2390
        %v2405 = vpop.permute.xlu0 %2404
        %2408 = vset.pattern.permute.xlu0 4
        %2409 = vperm.xlu0 %2408, %v2391
        %v2410 = vpop.permute.xlu0 %2409
        %2413 = vset.pattern.permute.xlu0 4
        %2414 = vperm.xlu0 %2413, %v2392
        %v2415 = vpop.permute.xlu0 %2414
        %2418 = vset.pattern.permute.xlu0 4
        %2419 = vperm.xlu0 %2418, %v2393
        %v2420 = vpop.permute.xlu0 %2419
        %2423 = vset.pattern.permute.xlu0 4
        %2424 = vperm.xlu0 %2423, %v2394
        %v2425 = vpop.permute.xlu0 %2424
        %2428 = vset.pattern.permute.xlu0 4
        %2429 = vperm.xlu0 %2428, %v2395
        %v2430 = vpop.permute.xlu0 %2429
        %2433 = vset.pattern.permute.xlu0 4
        %2434 = vperm.xlu0 %2433, %v2396
        %v2435 = vpop.permute.xlu0 %2434
        %v2437 = vmul.f32 %v2400, %v265
        %v2438 = vmul.f32 %v2405, %v265
        %v2439 = vmul.f32 %v2410, %v265
        %v2440 = vmul.f32 %v2415, %v265
        %v2441 = vmul.f32 %v2420, %v265
        %v2442 = vmul.f32 %v2425, %v265
        %v2443 = vmul.f32 %v2430, %v265
        %v2444 = vmul.f32 %v2435, %v265
        %s2445 = scalar_lea.vmem [#allocation2], 2176
        %2446 = vst [vmem:[%s2445] sm:$0xff] %v2437
        %2447 = vst [vmem:[%s2445 + $0x8] sm:$0xff] %v2438
        %2448 = vst [vmem:[%s2445 + $0x10] sm:$0xff] %v2439
        %2449 = vst [vmem:[%s2445 + $0x18] sm:$0xff] %v2440
        %2450 = vst [vmem:[%s2445 + $0x20] sm:$0xff] %v2441
        %2451 = vst [vmem:[%s2445 + $0x28] sm:$0xff] %v2442
        %2452 = vst [vmem:[%s2445 + $0x30] sm:$0xff] %v2443
        %2453 = vst [vmem:[%s2445 + $0x38] sm:$0xff] %v2444
        %v2454 = vld [vmem:[%s2079] sm:$0xff]
        %v2455 = vld [vmem:[%s2079 + $0x8] sm:$0xff]
        %v2456 = vld [vmem:[%s2079 + $0x10] sm:$0xff]
        %v2457 = vld [vmem:[%s2079 + $0x18] sm:$0xff]
        %v2458 = vld [vmem:[%s2079 + $0x20] sm:$0xff]
        %v2459 = vld [vmem:[%s2079 + $0x28] sm:$0xff]
        %v2460 = vld [vmem:[%s2079 + $0x30] sm:$0xff]
        %v2461 = vld [vmem:[%s2079 + $0x38] sm:$0xff]
        %2463 = vset.pattern.permute.xlu0 5
        %2464 = vperm.xlu0 %2463, %v2454
        %v2465 = vpop.permute.xlu0 %2464
        %2468 = vset.pattern.permute.xlu0 5
        %2469 = vperm.xlu0 %2468, %v2455
        %v2470 = vpop.permute.xlu0 %2469
        %2473 = vset.pattern.permute.xlu0 5
        %2474 = vperm.xlu0 %2473, %v2456
        %v2475 = vpop.permute.xlu0 %2474
        %2478 = vset.pattern.permute.xlu0 5
        %2479 = vperm.xlu0 %2478, %v2457
        %v2480 = vpop.permute.xlu0 %2479
        %2483 = vset.pattern.permute.xlu0 5
        %2484 = vperm.xlu0 %2483, %v2458
        %v2485 = vpop.permute.xlu0 %2484
        %2488 = vset.pattern.permute.xlu0 5
        %2489 = vperm.xlu0 %2488, %v2459
        %v2490 = vpop.permute.xlu0 %2489
        %2493 = vset.pattern.permute.xlu0 5
        %2494 = vperm.xlu0 %2493, %v2460
        %v2495 = vpop.permute.xlu0 %2494
        %2498 = vset.pattern.permute.xlu0 5
        %2499 = vperm.xlu0 %2498, %v2461
        %v2500 = vpop.permute.xlu0 %2499
        %v2502 = vmul.f32 %v2465, %v271
        %v2503 = vmul.f32 %v2470, %v271
        %v2504 = vmul.f32 %v2475, %v271
        %v2505 = vmul.f32 %v2480, %v271
        %v2506 = vmul.f32 %v2485, %v271
        %v2507 = vmul.f32 %v2490, %v271
        %v2508 = vmul.f32 %v2495, %v271
        %v2509 = vmul.f32 %v2500, %v271
        %s2510 = scalar_lea.vmem [#allocation2], 2240
        %2511 = vst [vmem:[%s2510] sm:$0xff] %v2502
        %2512 = vst [vmem:[%s2510 + $0x8] sm:$0xff] %v2503
        %2513 = vst [vmem:[%s2510 + $0x10] sm:$0xff] %v2504
        %2514 = vst [vmem:[%s2510 + $0x18] sm:$0xff] %v2505
        %2515 = vst [vmem:[%s2510 + $0x20] sm:$0xff] %v2506
        %2516 = vst [vmem:[%s2510 + $0x28] sm:$0xff] %v2507
        %2517 = vst [vmem:[%s2510 + $0x30] sm:$0xff] %v2508
        %2518 = vst [vmem:[%s2510 + $0x38] sm:$0xff] %v2509
        %v2519 = vld [vmem:[%s2079] sm:$0xff]
        %v2520 = vld [vmem:[%s2079 + $0x8] sm:$0xff]
        %v2521 = vld [vmem:[%s2079 + $0x10] sm:$0xff]
        %v2522 = vld [vmem:[%s2079 + $0x18] sm:$0xff]
        %v2523 = vld [vmem:[%s2079 + $0x20] sm:$0xff]
        %v2524 = vld [vmem:[%s2079 + $0x28] sm:$0xff]
        %v2525 = vld [vmem:[%s2079 + $0x30] sm:$0xff]
        %v2526 = vld [vmem:[%s2079 + $0x38] sm:$0xff]
        %2528 = vset.pattern.permute.xlu0 6
        %2529 = vperm.xlu0 %2528, %v2519
        %v2530 = vpop.permute.xlu0 %2529
        %2533 = vset.pattern.permute.xlu0 6
        %2534 = vperm.xlu0 %2533, %v2520
        %v2535 = vpop.permute.xlu0 %2534
        %2538 = vset.pattern.permute.xlu0 6
        %2539 = vperm.xlu0 %2538, %v2521
        %v2540 = vpop.permute.xlu0 %2539
        %2543 = vset.pattern.permute.xlu0 6
        %2544 = vperm.xlu0 %2543, %v2522
        %v2545 = vpop.permute.xlu0 %2544
        %2548 = vset.pattern.permute.xlu0 6
        %2549 = vperm.xlu0 %2548, %v2523
        %v2550 = vpop.permute.xlu0 %2549
        %2553 = vset.pattern.permute.xlu0 6
        %2554 = vperm.xlu0 %2553, %v2524
        %v2555 = vpop.permute.xlu0 %2554
        %2558 = vset.pattern.permute.xlu0 6
        %2559 = vperm.xlu0 %2558, %v2525
        %v2560 = vpop.permute.xlu0 %2559
        %2563 = vset.pattern.permute.xlu0 6
        %2564 = vperm.xlu0 %2563, %v2526
        %v2565 = vpop.permute.xlu0 %2564
        %v2567 = vmul.f32 %v2530, %v277
        %v2568 = vmul.f32 %v2535, %v277
        %v2569 = vmul.f32 %v2540, %v277
        %v2570 = vmul.f32 %v2545, %v277
        %v2571 = vmul.f32 %v2550, %v277
        %v2572 = vmul.f32 %v2555, %v277
        %v2573 = vmul.f32 %v2560, %v277
        %v2574 = vmul.f32 %v2565, %v277
        %s2575 = scalar_lea.vmem [#allocation2], 2304
        %2576 = vst [vmem:[%s2575] sm:$0xff] %v2567
        %2577 = vst [vmem:[%s2575 + $0x8] sm:$0xff] %v2568
        %2578 = vst [vmem:[%s2575 + $0x10] sm:$0xff] %v2569
        %2579 = vst [vmem:[%s2575 + $0x18] sm:$0xff] %v2570
        %2580 = vst [vmem:[%s2575 + $0x20] sm:$0xff] %v2571
        %2581 = vst [vmem:[%s2575 + $0x28] sm:$0xff] %v2572
        %2582 = vst [vmem:[%s2575 + $0x30] sm:$0xff] %v2573
        %2583 = vst [vmem:[%s2575 + $0x38] sm:$0xff] %v2574
        %s2584 = scalar_lea.vmem [#allocation3], 448
        %v2585 = vld [vmem:[%s2584] sm:$0xff]
        %v2586 = vld [vmem:[%s2584 + $0x8] sm:$0xff]
        %v2587 = vld [vmem:[%s2584 + $0x10] sm:$0xff]
        %v2588 = vld [vmem:[%s2584 + $0x18] sm:$0xff]
        %v2589 = vld [vmem:[%s2584 + $0x20] sm:$0xff]
        %v2590 = vld [vmem:[%s2584 + $0x28] sm:$0xff]
        %v2591 = vld [vmem:[%s2584 + $0x30] sm:$0xff]
        %v2592 = vld [vmem:[%s2584 + $0x38] sm:$0xff]
        %2594 = vset.pattern.permute.xlu0 8
        %2595 = vperm.xlu0 %2594, %v2585
        %v2596 = vpop.permute.xlu0 %2595
        %2599 = vset.pattern.permute.xlu0 8
        %2600 = vperm.xlu0 %2599, %v2586
        %v2601 = vpop.permute.xlu0 %2600
        %2604 = vset.pattern.permute.xlu0 8
        %2605 = vperm.xlu0 %2604, %v2587
        %v2606 = vpop.permute.xlu0 %2605
        %2609 = vset.pattern.permute.xlu0 8
        %2610 = vperm.xlu0 %2609, %v2588
        %v2611 = vpop.permute.xlu0 %2610
        %2614 = vset.pattern.permute.xlu0 8
        %2615 = vperm.xlu0 %2614, %v2589
        %v2616 = vpop.permute.xlu0 %2615
        %2619 = vset.pattern.permute.xlu0 8
        %2620 = vperm.xlu0 %2619, %v2590
        %v2621 = vpop.permute.xlu0 %2620
        %2624 = vset.pattern.permute.xlu0 8
        %2625 = vperm.xlu0 %2624, %v2591
        %v2626 = vpop.permute.xlu0 %2625
        %2629 = vset.pattern.permute.xlu0 8
        %2630 = vperm.xlu0 %2629, %v2592
        %v2631 = vpop.permute.xlu0 %2630
        %s2633 = scalar_lea.vmem [#allocation2], 2368
        %2634 = vst [vmem:[%s2633] sm:$0xff] %v2596
        %2635 = vst [vmem:[%s2633 + $0x8] sm:$0xff] %v2601
        %2636 = vst [vmem:[%s2633 + $0x10] sm:$0xff] %v2606
        %2637 = vst [vmem:[%s2633 + $0x18] sm:$0xff] %v2611
        %2638 = vst [vmem:[%s2633 + $0x20] sm:$0xff] %v2616
        %2639 = vst [vmem:[%s2633 + $0x28] sm:$0xff] %v2621
        %2640 = vst [vmem:[%s2633 + $0x30] sm:$0xff] %v2626
        %2641 = vst [vmem:[%s2633 + $0x38] sm:$0xff] %v2631
        %v2642 = vld [vmem:[%s2584] sm:$0xff]
        %v2643 = vld [vmem:[%s2584 + $0x8] sm:$0xff]
        %v2644 = vld [vmem:[%s2584 + $0x10] sm:$0xff]
        %v2645 = vld [vmem:[%s2584 + $0x18] sm:$0xff]
        %v2646 = vld [vmem:[%s2584 + $0x20] sm:$0xff]
        %v2647 = vld [vmem:[%s2584 + $0x28] sm:$0xff]
        %v2648 = vld [vmem:[%s2584 + $0x30] sm:$0xff]
        %v2649 = vld [vmem:[%s2584 + $0x38] sm:$0xff]
        %2651 = vset.pattern.permute.xlu0 2
        %2652 = vperm.xlu0 %2651, %v2642
        %v2653 = vpop.permute.xlu0 %2652
        %2656 = vset.pattern.permute.xlu0 2
        %2657 = vperm.xlu0 %2656, %v2643
        %v2658 = vpop.permute.xlu0 %2657
        %2661 = vset.pattern.permute.xlu0 2
        %2662 = vperm.xlu0 %2661, %v2644
        %v2663 = vpop.permute.xlu0 %2662
        %2666 = vset.pattern.permute.xlu0 2
        %2667 = vperm.xlu0 %2666, %v2645
        %v2668 = vpop.permute.xlu0 %2667
        %2671 = vset.pattern.permute.xlu0 2
        %2672 = vperm.xlu0 %2671, %v2646
        %v2673 = vpop.permute.xlu0 %2672
        %2676 = vset.pattern.permute.xlu0 2
        %2677 = vperm.xlu0 %2676, %v2647
        %v2678 = vpop.permute.xlu0 %2677
        %2681 = vset.pattern.permute.xlu0 2
        %2682 = vperm.xlu0 %2681, %v2648
        %v2683 = vpop.permute.xlu0 %2682
        %2686 = vset.pattern.permute.xlu0 2
        %2687 = vperm.xlu0 %2686, %v2649
        %v2688 = vpop.permute.xlu0 %2687
        %v2690 = vmul.f32 %v2653, %v259
        %v2691 = vmul.f32 %v2658, %v259
        %v2692 = vmul.f32 %v2663, %v259
        %v2693 = vmul.f32 %v2668, %v259
        %v2694 = vmul.f32 %v2673, %v259
        %v2695 = vmul.f32 %v2678, %v259
        %v2696 = vmul.f32 %v2683, %v259
        %v2697 = vmul.f32 %v2688, %v259
        %s2698 = scalar_lea.vmem [#allocation2], 2432
        %2699 = vst [vmem:[%s2698] sm:$0xff] %v2690
        %2700 = vst [vmem:[%s2698 + $0x8] sm:$0xff] %v2691
        %2701 = vst [vmem:[%s2698 + $0x10] sm:$0xff] %v2692
        %2702 = vst [vmem:[%s2698 + $0x18] sm:$0xff] %v2693
        %2703 = vst [vmem:[%s2698 + $0x20] sm:$0xff] %v2694
        %2704 = vst [vmem:[%s2698 + $0x28] sm:$0xff] %v2695
        %2705 = vst [vmem:[%s2698 + $0x30] sm:$0xff] %v2696
        %2706 = vst [vmem:[%s2698 + $0x38] sm:$0xff] %v2697
        %v2707 = vld [vmem:[%s2584] sm:$0xff]
        %v2708 = vld [vmem:[%s2584 + $0x8] sm:$0xff]
        %v2709 = vld [vmem:[%s2584 + $0x10] sm:$0xff]
        %v2710 = vld [vmem:[%s2584 + $0x18] sm:$0xff]
        %v2711 = vld [vmem:[%s2584 + $0x20] sm:$0xff]
        %v2712 = vld [vmem:[%s2584 + $0x28] sm:$0xff]
        %v2713 = vld [vmem:[%s2584 + $0x30] sm:$0xff]
        %v2714 = vld [vmem:[%s2584 + $0x38] sm:$0xff]
        %2716 = vset.pattern.permute.xlu0 3
        %2717 = vperm.xlu0 %2716, %v2707
        %v2718 = vpop.permute.xlu0 %2717
        %2721 = vset.pattern.permute.xlu0 3
        %2722 = vperm.xlu0 %2721, %v2708
        %v2723 = vpop.permute.xlu0 %2722
        %2726 = vset.pattern.permute.xlu0 3
        %2727 = vperm.xlu0 %2726, %v2709
        %v2728 = vpop.permute.xlu0 %2727
        %2731 = vset.pattern.permute.xlu0 3
        %2732 = vperm.xlu0 %2731, %v2710
        %v2733 = vpop.permute.xlu0 %2732
        %2736 = vset.pattern.permute.xlu0 3
        %2737 = vperm.xlu0 %2736, %v2711
        %v2738 = vpop.permute.xlu0 %2737
        %2741 = vset.pattern.permute.xlu0 3
        %2742 = vperm.xlu0 %2741, %v2712
        %v2743 = vpop.permute.xlu0 %2742
        %2746 = vset.pattern.permute.xlu0 3
        %2747 = vperm.xlu0 %2746, %v2713
        %v2748 = vpop.permute.xlu0 %2747
        %2751 = vset.pattern.permute.xlu0 3
        %2752 = vperm.xlu0 %2751, %v2714
        %v2753 = vpop.permute.xlu0 %2752
        %s2755 = scalar_lea.vmem [#allocation2], 2496
        %2756 = vst [vmem:[%s2755] sm:$0xff] %v2718
        %2757 = vst [vmem:[%s2755 + $0x8] sm:$0xff] %v2723
        %2758 = vst [vmem:[%s2755 + $0x10] sm:$0xff] %v2728
        %2759 = vst [vmem:[%s2755 + $0x18] sm:$0xff] %v2733
        %2760 = vst [vmem:[%s2755 + $0x20] sm:$0xff] %v2738
        %2761 = vst [vmem:[%s2755 + $0x28] sm:$0xff] %v2743
        %2762 = vst [vmem:[%s2755 + $0x30] sm:$0xff] %v2748
        %2763 = vst [vmem:[%s2755 + $0x38] sm:$0xff] %v2753
        %v2764 = vld [vmem:[%s2584] sm:$0xff]
        %v2765 = vld [vmem:[%s2584 + $0x8] sm:$0xff]
        %v2766 = vld [vmem:[%s2584 + $0x10] sm:$0xff]
        %v2767 = vld [vmem:[%s2584 + $0x18] sm:$0xff]
        %v2768 = vld [vmem:[%s2584 + $0x20] sm:$0xff]
        %v2769 = vld [vmem:[%s2584 + $0x28] sm:$0xff]
        %v2770 = vld [vmem:[%s2584 + $0x30] sm:$0xff]
        %v2771 = vld [vmem:[%s2584 + $0x38] sm:$0xff]
        %2773 = vset.pattern.permute.xlu0 4
        %2774 = vperm.xlu0 %2773, %v2764
        %v2775 = vpop.permute.xlu0 %2774
        %2778 = vset.pattern.permute.xlu0 4
        %2779 = vperm.xlu0 %2778, %v2765
        %v2780 = vpop.permute.xlu0 %2779
        %2783 = vset.pattern.permute.xlu0 4
        %2784 = vperm.xlu0 %2783, %v2766
        %v2785 = vpop.permute.xlu0 %2784
        %2788 = vset.pattern.permute.xlu0 4
        %2789 = vperm.xlu0 %2788, %v2767
        %v2790 = vpop.permute.xlu0 %2789
        %2793 = vset.pattern.permute.xlu0 4
        %2794 = vperm.xlu0 %2793, %v2768
        %v2795 = vpop.permute.xlu0 %2794
        %2798 = vset.pattern.permute.xlu0 4
        %2799 = vperm.xlu0 %2798, %v2769
        %v2800 = vpop.permute.xlu0 %2799
        %2803 = vset.pattern.permute.xlu0 4
        %2804 = vperm.xlu0 %2803, %v2770
        %v2805 = vpop.permute.xlu0 %2804
        %2808 = vset.pattern.permute.xlu0 4
        %2809 = vperm.xlu0 %2808, %v2771
        %v2810 = vpop.permute.xlu0 %2809
        %v2812 = vmul.f32 %v2775, %v265
        %v2813 = vmul.f32 %v2780, %v265
        %v2814 = vmul.f32 %v2785, %v265
        %v2815 = vmul.f32 %v2790, %v265
        %v2816 = vmul.f32 %v2795, %v265
        %v2817 = vmul.f32 %v2800, %v265
        %v2818 = vmul.f32 %v2805, %v265
        %v2819 = vmul.f32 %v2810, %v265
        %s2820 = scalar_lea.vmem [#allocation2], 2560
        %2821 = vst [vmem:[%s2820] sm:$0xff] %v2812
        %2822 = vst [vmem:[%s2820 + $0x8] sm:$0xff] %v2813
        %2823 = vst [vmem:[%s2820 + $0x10] sm:$0xff] %v2814
        %2824 = vst [vmem:[%s2820 + $0x18] sm:$0xff] %v2815
        %2825 = vst [vmem:[%s2820 + $0x20] sm:$0xff] %v2816
        %2826 = vst [vmem:[%s2820 + $0x28] sm:$0xff] %v2817
        %2827 = vst [vmem:[%s2820 + $0x30] sm:$0xff] %v2818
        %2828 = vst [vmem:[%s2820 + $0x38] sm:$0xff] %v2819
        %s2829 = scalar_lea.vmem [#allocation3], 512
        %v2830 = vld [vmem:[%s2829] sm:$0xff]
        %v2831 = vld [vmem:[%s2829 + $0x8] sm:$0xff]
        %v2832 = vld [vmem:[%s2829 + $0x10] sm:$0xff]
        %v2833 = vld [vmem:[%s2829 + $0x18] sm:$0xff]
        %v2834 = vld [vmem:[%s2829 + $0x20] sm:$0xff]
        %v2835 = vld [vmem:[%s2829 + $0x28] sm:$0xff]
        %v2836 = vld [vmem:[%s2829 + $0x30] sm:$0xff]
        %v2837 = vld [vmem:[%s2829 + $0x38] sm:$0xff]
        %2839 = vset.pattern.permute.xlu0 8
        %2840 = vperm.xlu0 %2839, %v2830
        %v2841 = vpop.permute.xlu0 %2840
        %2844 = vset.pattern.permute.xlu0 8
        %2845 = vperm.xlu0 %2844, %v2831
        %v2846 = vpop.permute.xlu0 %2845
        %2849 = vset.pattern.permute.xlu0 8
        %2850 = vperm.xlu0 %2849, %v2832
        %v2851 = vpop.permute.xlu0 %2850
        %2854 = vset.pattern.permute.xlu0 8
        %2855 = vperm.xlu0 %2854, %v2833
        %v2856 = vpop.permute.xlu0 %2855
        %2859 = vset.pattern.permute.xlu0 8
        %2860 = vperm.xlu0 %2859, %v2834
        %v2861 = vpop.permute.xlu0 %2860
        %2864 = vset.pattern.permute.xlu0 8
        %2865 = vperm.xlu0 %2864, %v2835
        %v2866 = vpop.permute.xlu0 %2865
        %2869 = vset.pattern.permute.xlu0 8
        %2870 = vperm.xlu0 %2869, %v2836
        %v2871 = vpop.permute.xlu0 %2870
        %2874 = vset.pattern.permute.xlu0 8
        %2875 = vperm.xlu0 %2874, %v2837
        %v2876 = vpop.permute.xlu0 %2875
        %s2878 = scalar_lea.vmem [#allocation2], 2624
        %2879 = vst [vmem:[%s2878] sm:$0xff] %v2841
        %2880 = vst [vmem:[%s2878 + $0x8] sm:$0xff] %v2846
        %2881 = vst [vmem:[%s2878 + $0x10] sm:$0xff] %v2851
        %2882 = vst [vmem:[%s2878 + $0x18] sm:$0xff] %v2856
        %2883 = vst [vmem:[%s2878 + $0x20] sm:$0xff] %v2861
        %2884 = vst [vmem:[%s2878 + $0x28] sm:$0xff] %v2866
        %2885 = vst [vmem:[%s2878 + $0x30] sm:$0xff] %v2871
        %2886 = vst [vmem:[%s2878 + $0x38] sm:$0xff] %v2876
        %v2887 = vld [vmem:[%s2829] sm:$0xff]
        %v2888 = vld [vmem:[%s2829 + $0x8] sm:$0xff]
        %v2889 = vld [vmem:[%s2829 + $0x10] sm:$0xff]
        %v2890 = vld [vmem:[%s2829 + $0x18] sm:$0xff]
        %v2891 = vld [vmem:[%s2829 + $0x20] sm:$0xff]
        %v2892 = vld [vmem:[%s2829 + $0x28] sm:$0xff]
        %v2893 = vld [vmem:[%s2829 + $0x30] sm:$0xff]
        %v2894 = vld [vmem:[%s2829 + $0x38] sm:$0xff]
        %2896 = vset.pattern.permute.xlu0 1
        %2897 = vperm.xlu0 %2896, %v2887
        %v2898 = vpop.permute.xlu0 %2897
        %2901 = vset.pattern.permute.xlu0 1
        %2902 = vperm.xlu0 %2901, %v2888
        %v2903 = vpop.permute.xlu0 %2902
        %2906 = vset.pattern.permute.xlu0 1
        %2907 = vperm.xlu0 %2906, %v2889
        %v2908 = vpop.permute.xlu0 %2907
        %2911 = vset.pattern.permute.xlu0 1
        %2912 = vperm.xlu0 %2911, %v2890
        %v2913 = vpop.permute.xlu0 %2912
        %2916 = vset.pattern.permute.xlu0 1
        %2917 = vperm.xlu0 %2916, %v2891
        %v2918 = vpop.permute.xlu0 %2917
        %2921 = vset.pattern.permute.xlu0 1
        %2922 = vperm.xlu0 %2921, %v2892
        %v2923 = vpop.permute.xlu0 %2922
        %2926 = vset.pattern.permute.xlu0 1
        %2927 = vperm.xlu0 %2926, %v2893
        %v2928 = vpop.permute.xlu0 %2927
        %2931 = vset.pattern.permute.xlu0 1
        %2932 = vperm.xlu0 %2931, %v2894
        %v2933 = vpop.permute.xlu0 %2932
        %v2935 = vmul.f32 %v2898, %v253
        %v2936 = vmul.f32 %v2903, %v253
        %v2937 = vmul.f32 %v2908, %v253
        %v2938 = vmul.f32 %v2913, %v253
        %v2939 = vmul.f32 %v2918, %v253
        %v2940 = vmul.f32 %v2923, %v253
        %v2941 = vmul.f32 %v2928, %v253
        %v2942 = vmul.f32 %v2933, %v253
        %s2943 = scalar_lea.vmem [#allocation2], 2688
        %2944 = vst [vmem:[%s2943] sm:$0xff] %v2935
        %2945 = vst [vmem:[%s2943 + $0x8] sm:$0xff] %v2936
        %2946 = vst [vmem:[%s2943 + $0x10] sm:$0xff] %v2937
        %2947 = vst [vmem:[%s2943 + $0x18] sm:$0xff] %v2938
        %2948 = vst [vmem:[%s2943 + $0x20] sm:$0xff] %v2939
        %2949 = vst [vmem:[%s2943 + $0x28] sm:$0xff] %v2940
        %2950 = vst [vmem:[%s2943 + $0x30] sm:$0xff] %v2941
        %2951 = vst [vmem:[%s2943 + $0x38] sm:$0xff] %v2942
        %v2952 = vld [vmem:[%s2829] sm:$0xff]
        %v2953 = vld [vmem:[%s2829 + $0x8] sm:$0xff]
        %v2954 = vld [vmem:[%s2829 + $0x10] sm:$0xff]
        %v2955 = vld [vmem:[%s2829 + $0x18] sm:$0xff]
        %v2956 = vld [vmem:[%s2829 + $0x20] sm:$0xff]
        %v2957 = vld [vmem:[%s2829 + $0x28] sm:$0xff]
        %v2958 = vld [vmem:[%s2829 + $0x30] sm:$0xff]
        %v2959 = vld [vmem:[%s2829 + $0x38] sm:$0xff]
        %2961 = vset.pattern.permute.xlu0 2
        %2962 = vperm.xlu0 %2961, %v2952
        %v2963 = vpop.permute.xlu0 %2962
        %2966 = vset.pattern.permute.xlu0 2
        %2967 = vperm.xlu0 %2966, %v2953
        %v2968 = vpop.permute.xlu0 %2967
        %2971 = vset.pattern.permute.xlu0 2
        %2972 = vperm.xlu0 %2971, %v2954
        %v2973 = vpop.permute.xlu0 %2972
        %2976 = vset.pattern.permute.xlu0 2
        %2977 = vperm.xlu0 %2976, %v2955
        %v2978 = vpop.permute.xlu0 %2977
        %2981 = vset.pattern.permute.xlu0 2
        %2982 = vperm.xlu0 %2981, %v2956
        %v2983 = vpop.permute.xlu0 %2982
        %2986 = vset.pattern.permute.xlu0 2
        %2987 = vperm.xlu0 %2986, %v2957
        %v2988 = vpop.permute.xlu0 %2987
        %2991 = vset.pattern.permute.xlu0 2
        %2992 = vperm.xlu0 %2991, %v2958
        %v2993 = vpop.permute.xlu0 %2992
        %2996 = vset.pattern.permute.xlu0 2
        %2997 = vperm.xlu0 %2996, %v2959
        %v2998 = vpop.permute.xlu0 %2997
        %v3000 = vmul.f32 %v2963, %v259
        %v3001 = vmul.f32 %v2968, %v259
        %v3002 = vmul.f32 %v2973, %v259
        %v3003 = vmul.f32 %v2978, %v259
        %v3004 = vmul.f32 %v2983, %v259
        %v3005 = vmul.f32 %v2988, %v259
        %v3006 = vmul.f32 %v2993, %v259
        %v3007 = vmul.f32 %v2998, %v259
        %s3008 = scalar_lea.vmem [#allocation2], 2752
        %3009 = vst [vmem:[%s3008] sm:$0xff] %v3000
        %3010 = vst [vmem:[%s3008 + $0x8] sm:$0xff] %v3001
        %3011 = vst [vmem:[%s3008 + $0x10] sm:$0xff] %v3002
        %3012 = vst [vmem:[%s3008 + $0x18] sm:$0xff] %v3003
        %3013 = vst [vmem:[%s3008 + $0x20] sm:$0xff] %v3004
        %3014 = vst [vmem:[%s3008 + $0x28] sm:$0xff] %v3005
        %3015 = vst [vmem:[%s3008 + $0x30] sm:$0xff] %v3006
        %3016 = vst [vmem:[%s3008 + $0x38] sm:$0xff] %v3007
        %v3017 = vld [vmem:[%s2829] sm:$0xff]
        %v3018 = vld [vmem:[%s2829 + $0x8] sm:$0xff]
        %v3019 = vld [vmem:[%s2829 + $0x10] sm:$0xff]
        %v3020 = vld [vmem:[%s2829 + $0x18] sm:$0xff]
        %v3021 = vld [vmem:[%s2829 + $0x20] sm:$0xff]
        %v3022 = vld [vmem:[%s2829 + $0x28] sm:$0xff]
        %v3023 = vld [vmem:[%s2829 + $0x30] sm:$0xff]
        %v3024 = vld [vmem:[%s2829 + $0x38] sm:$0xff]
        %3026 = vset.pattern.permute.xlu0 3
        %3027 = vperm.xlu0 %3026, %v3017
        %v3028 = vpop.permute.xlu0 %3027
        %3031 = vset.pattern.permute.xlu0 3
        %3032 = vperm.xlu0 %3031, %v3018
        %v3033 = vpop.permute.xlu0 %3032
        %3036 = vset.pattern.permute.xlu0 3
        %3037 = vperm.xlu0 %3036, %v3019
        %v3038 = vpop.permute.xlu0 %3037
        %3041 = vset.pattern.permute.xlu0 3
        %3042 = vperm.xlu0 %3041, %v3020
        %v3043 = vpop.permute.xlu0 %3042
        %3046 = vset.pattern.permute.xlu0 3
        %3047 = vperm.xlu0 %3046, %v3021
        %v3048 = vpop.permute.xlu0 %3047
        %3051 = vset.pattern.permute.xlu0 3
        %3052 = vperm.xlu0 %3051, %v3022
        %v3053 = vpop.permute.xlu0 %3052
        %3056 = vset.pattern.permute.xlu0 3
        %3057 = vperm.xlu0 %3056, %v3023
        %v3058 = vpop.permute.xlu0 %3057
        %3061 = vset.pattern.permute.xlu0 3
        %3062 = vperm.xlu0 %3061, %v3024
        %v3063 = vpop.permute.xlu0 %3062
        %s3065 = scalar_lea.vmem [#allocation2], 2816
        %3066 = vst [vmem:[%s3065] sm:$0xff] %v3028
        %3067 = vst [vmem:[%s3065 + $0x8] sm:$0xff] %v3033
        %3068 = vst [vmem:[%s3065 + $0x10] sm:$0xff] %v3038
        %3069 = vst [vmem:[%s3065 + $0x18] sm:$0xff] %v3043
        %3070 = vst [vmem:[%s3065 + $0x20] sm:$0xff] %v3048
        %3071 = vst [vmem:[%s3065 + $0x28] sm:$0xff] %v3053
        %3072 = vst [vmem:[%s3065 + $0x30] sm:$0xff] %v3058
        %3073 = vst [vmem:[%s3065 + $0x38] sm:$0xff] %v3063
        %v3074 = vld [vmem:[%s2829] sm:$0xff]
        %v3075 = vld [vmem:[%s2829 + $0x8] sm:$0xff]
        %v3076 = vld [vmem:[%s2829 + $0x10] sm:$0xff]
        %v3077 = vld [vmem:[%s2829 + $0x18] sm:$0xff]
        %v3078 = vld [vmem:[%s2829 + $0x20] sm:$0xff]
        %v3079 = vld [vmem:[%s2829 + $0x28] sm:$0xff]
        %v3080 = vld [vmem:[%s2829 + $0x30] sm:$0xff]
        %v3081 = vld [vmem:[%s2829 + $0x38] sm:$0xff]
        %3083 = vset.pattern.permute.xlu0 4
        %3084 = vperm.xlu0 %3083, %v3074
        %v3085 = vpop.permute.xlu0 %3084
        %3088 = vset.pattern.permute.xlu0 4
        %3089 = vperm.xlu0 %3088, %v3075
        %v3090 = vpop.permute.xlu0 %3089
        %3093 = vset.pattern.permute.xlu0 4
        %3094 = vperm.xlu0 %3093, %v3076
        %v3095 = vpop.permute.xlu0 %3094
        %3098 = vset.pattern.permute.xlu0 4
        %3099 = vperm.xlu0 %3098, %v3077
        %v3100 = vpop.permute.xlu0 %3099
        %3103 = vset.pattern.permute.xlu0 4
        %3104 = vperm.xlu0 %3103, %v3078
        %v3105 = vpop.permute.xlu0 %3104
        %3108 = vset.pattern.permute.xlu0 4
        %3109 = vperm.xlu0 %3108, %v3079
        %v3110 = vpop.permute.xlu0 %3109
        %3113 = vset.pattern.permute.xlu0 4
        %3114 = vperm.xlu0 %3113, %v3080
        %v3115 = vpop.permute.xlu0 %3114
        %3118 = vset.pattern.permute.xlu0 4
        %3119 = vperm.xlu0 %3118, %v3081
        %v3120 = vpop.permute.xlu0 %3119
        %v3122 = vmul.f32 %v3085, %v265
        %v3123 = vmul.f32 %v3090, %v265
        %v3124 = vmul.f32 %v3095, %v265
        %v3125 = vmul.f32 %v3100, %v265
        %v3126 = vmul.f32 %v3105, %v265
        %v3127 = vmul.f32 %v3110, %v265
        %v3128 = vmul.f32 %v3115, %v265
        %v3129 = vmul.f32 %v3120, %v265
        %s3130 = scalar_lea.vmem [#allocation2], 2880
        %3131 = vst [vmem:[%s3130] sm:$0xff] %v3122
        %3132 = vst [vmem:[%s3130 + $0x8] sm:$0xff] %v3123
        %3133 = vst [vmem:[%s3130 + $0x10] sm:$0xff] %v3124
        %3134 = vst [vmem:[%s3130 + $0x18] sm:$0xff] %v3125
        %3135 = vst [vmem:[%s3130 + $0x20] sm:$0xff] %v3126
        %3136 = vst [vmem:[%s3130 + $0x28] sm:$0xff] %v3127
        %3137 = vst [vmem:[%s3130 + $0x30] sm:$0xff] %v3128
        %3138 = vst [vmem:[%s3130 + $0x38] sm:$0xff] %v3129
        %v3139 = vld [vmem:[%s2829] sm:$0xff]
        %v3140 = vld [vmem:[%s2829 + $0x8] sm:$0xff]
        %v3141 = vld [vmem:[%s2829 + $0x10] sm:$0xff]
        %v3142 = vld [vmem:[%s2829 + $0x18] sm:$0xff]
        %v3143 = vld [vmem:[%s2829 + $0x20] sm:$0xff]
        %v3144 = vld [vmem:[%s2829 + $0x28] sm:$0xff]
        %v3145 = vld [vmem:[%s2829 + $0x30] sm:$0xff]
        %v3146 = vld [vmem:[%s2829 + $0x38] sm:$0xff]
        %3148 = vset.pattern.permute.xlu0 5
        %3149 = vperm.xlu0 %3148, %v3139
        %v3150 = vpop.permute.xlu0 %3149
        %3153 = vset.pattern.permute.xlu0 5
        %3154 = vperm.xlu0 %3153, %v3140
        %v3155 = vpop.permute.xlu0 %3154
        %3158 = vset.pattern.permute.xlu0 5
        %3159 = vperm.xlu0 %3158, %v3141
        %v3160 = vpop.permute.xlu0 %3159
        %3163 = vset.pattern.permute.xlu0 5
        %3164 = vperm.xlu0 %3163, %v3142
        %v3165 = vpop.permute.xlu0 %3164
        %3168 = vset.pattern.permute.xlu0 5
        %3169 = vperm.xlu0 %3168, %v3143
        %v3170 = vpop.permute.xlu0 %3169
        %3173 = vset.pattern.permute.xlu0 5
        %3174 = vperm.xlu0 %3173, %v3144
        %v3175 = vpop.permute.xlu0 %3174
        %3178 = vset.pattern.permute.xlu0 5
        %3179 = vperm.xlu0 %3178, %v3145
        %v3180 = vpop.permute.xlu0 %3179
        %3183 = vset.pattern.permute.xlu0 5
        %3184 = vperm.xlu0 %3183, %v3146
        %v3185 = vpop.permute.xlu0 %3184
        %v3187 = vmul.f32 %v3150, %v271
        %v3188 = vmul.f32 %v3155, %v271
        %v3189 = vmul.f32 %v3160, %v271
        %v3190 = vmul.f32 %v3165, %v271
        %v3191 = vmul.f32 %v3170, %v271
        %v3192 = vmul.f32 %v3175, %v271
        %v3193 = vmul.f32 %v3180, %v271
        %v3194 = vmul.f32 %v3185, %v271
        %s3195 = scalar_lea.vmem [#allocation2], 2944
        %3196 = vst [vmem:[%s3195] sm:$0xff] %v3187
        %3197 = vst [vmem:[%s3195 + $0x8] sm:$0xff] %v3188
        %3198 = vst [vmem:[%s3195 + $0x10] sm:$0xff] %v3189
        %3199 = vst [vmem:[%s3195 + $0x18] sm:$0xff] %v3190
        %3200 = vst [vmem:[%s3195 + $0x20] sm:$0xff] %v3191
        %3201 = vst [vmem:[%s3195 + $0x28] sm:$0xff] %v3192
        %3202 = vst [vmem:[%s3195 + $0x30] sm:$0xff] %v3193
        %3203 = vst [vmem:[%s3195 + $0x38] sm:$0xff] %v3194
        %s3204 = scalar_lea.vmem [#allocation3], 576
        %v3205 = vld [vmem:[%s3204] sm:$0xff]
        %v3206 = vld [vmem:[%s3204 + $0x8] sm:$0xff]
        %v3207 = vld [vmem:[%s3204 + $0x10] sm:$0xff]
        %v3208 = vld [vmem:[%s3204 + $0x18] sm:$0xff]
        %v3209 = vld [vmem:[%s3204 + $0x20] sm:$0xff]
        %v3210 = vld [vmem:[%s3204 + $0x28] sm:$0xff]
        %v3211 = vld [vmem:[%s3204 + $0x30] sm:$0xff]
        %v3212 = vld [vmem:[%s3204 + $0x38] sm:$0xff]
        %3214 = vset.pattern.permute.xlu0 8
        %3215 = vperm.xlu0 %3214, %v3205
        %v3216 = vpop.permute.xlu0 %3215
        %3219 = vset.pattern.permute.xlu0 8
        %3220 = vperm.xlu0 %3219, %v3206
        %v3221 = vpop.permute.xlu0 %3220
        %3224 = vset.pattern.permute.xlu0 8
        %3225 = vperm.xlu0 %3224, %v3207
        %v3226 = vpop.permute.xlu0 %3225
        %3229 = vset.pattern.permute.xlu0 8
        %3230 = vperm.xlu0 %3229, %v3208
        %v3231 = vpop.permute.xlu0 %3230
        %3234 = vset.pattern.permute.xlu0 8
        %3235 = vperm.xlu0 %3234, %v3209
        %v3236 = vpop.permute.xlu0 %3235
        %3239 = vset.pattern.permute.xlu0 8
        %3240 = vperm.xlu0 %3239, %v3210
        %v3241 = vpop.permute.xlu0 %3240
        %3244 = vset.pattern.permute.xlu0 8
        %3245 = vperm.xlu0 %3244, %v3211
        %v3246 = vpop.permute.xlu0 %3245
        %3249 = vset.pattern.permute.xlu0 8
        %3250 = vperm.xlu0 %3249, %v3212
        %v3251 = vpop.permute.xlu0 %3250
        %s3253 = scalar_lea.vmem [#allocation2], 3008
        %3254 = vst [vmem:[%s3253] sm:$0xff] %v3216
        %3255 = vst [vmem:[%s3253 + $0x8] sm:$0xff] %v3221
        %3256 = vst [vmem:[%s3253 + $0x10] sm:$0xff] %v3226
        %3257 = vst [vmem:[%s3253 + $0x18] sm:$0xff] %v3231
        %3258 = vst [vmem:[%s3253 + $0x20] sm:$0xff] %v3236
        %3259 = vst [vmem:[%s3253 + $0x28] sm:$0xff] %v3241
        %3260 = vst [vmem:[%s3253 + $0x30] sm:$0xff] %v3246
        %3261 = vst [vmem:[%s3253 + $0x38] sm:$0xff] %v3251
        %v3262 = vld [vmem:[%s3204] sm:$0xff]
        %v3263 = vld [vmem:[%s3204 + $0x8] sm:$0xff]
        %v3264 = vld [vmem:[%s3204 + $0x10] sm:$0xff]
        %v3265 = vld [vmem:[%s3204 + $0x18] sm:$0xff]
        %v3266 = vld [vmem:[%s3204 + $0x20] sm:$0xff]
        %v3267 = vld [vmem:[%s3204 + $0x28] sm:$0xff]
        %v3268 = vld [vmem:[%s3204 + $0x30] sm:$0xff]
        %v3269 = vld [vmem:[%s3204 + $0x38] sm:$0xff]
        %3271 = vset.pattern.permute.xlu0 0
        %3272 = vperm.xlu0 %3271, %v3262
        %v3273 = vpop.permute.xlu0 %3272
        %3276 = vset.pattern.permute.xlu0 0
        %3277 = vperm.xlu0 %3276, %v3263
        %v3278 = vpop.permute.xlu0 %3277
        %3281 = vset.pattern.permute.xlu0 0
        %3282 = vperm.xlu0 %3281, %v3264
        %v3283 = vpop.permute.xlu0 %3282
        %3286 = vset.pattern.permute.xlu0 0
        %3287 = vperm.xlu0 %3286, %v3265
        %v3288 = vpop.permute.xlu0 %3287
        %3291 = vset.pattern.permute.xlu0 0
        %3292 = vperm.xlu0 %3291, %v3266
        %v3293 = vpop.permute.xlu0 %3292
        %3296 = vset.pattern.permute.xlu0 0
        %3297 = vperm.xlu0 %3296, %v3267
        %v3298 = vpop.permute.xlu0 %3297
        %3301 = vset.pattern.permute.xlu0 0
        %3302 = vperm.xlu0 %3301, %v3268
        %v3303 = vpop.permute.xlu0 %3302
        %3306 = vset.pattern.permute.xlu0 0
        %3307 = vperm.xlu0 %3306, %v3269
        %v3308 = vpop.permute.xlu0 %3307
        %v3310 = vmul.f32 %v3273, %v247
        %v3311 = vmul.f32 %v3278, %v247
        %v3312 = vmul.f32 %v3283, %v247
        %v3313 = vmul.f32 %v3288, %v247
        %v3314 = vmul.f32 %v3293, %v247
        %v3315 = vmul.f32 %v3298, %v247
        %v3316 = vmul.f32 %v3303, %v247
        %v3317 = vmul.f32 %v3308, %v247
        %s3318 = scalar_lea.vmem [#allocation2], 3072
        %3319 = vst [vmem:[%s3318] sm:$0xff] %v3310
        %3320 = vst [vmem:[%s3318 + $0x8] sm:$0xff] %v3311
        %3321 = vst [vmem:[%s3318 + $0x10] sm:$0xff] %v3312
        %3322 = vst [vmem:[%s3318 + $0x18] sm:$0xff] %v3313
        %3323 = vst [vmem:[%s3318 + $0x20] sm:$0xff] %v3314
        %3324 = vst [vmem:[%s3318 + $0x28] sm:$0xff] %v3315
        %3325 = vst [vmem:[%s3318 + $0x30] sm:$0xff] %v3316
        %3326 = vst [vmem:[%s3318 + $0x38] sm:$0xff] %v3317
        %v3327 = vld [vmem:[%s3204] sm:$0xff]
        %v3328 = vld [vmem:[%s3204 + $0x8] sm:$0xff]
        %v3329 = vld [vmem:[%s3204 + $0x10] sm:$0xff]
        %v3330 = vld [vmem:[%s3204 + $0x18] sm:$0xff]
        %v3331 = vld [vmem:[%s3204 + $0x20] sm:$0xff]
        %v3332 = vld [vmem:[%s3204 + $0x28] sm:$0xff]
        %v3333 = vld [vmem:[%s3204 + $0x30] sm:$0xff]
        %v3334 = vld [vmem:[%s3204 + $0x38] sm:$0xff]
        %3336 = vset.pattern.permute.xlu0 1
        %3337 = vperm.xlu0 %3336, %v3327
        %v3338 = vpop.permute.xlu0 %3337
        %3341 = vset.pattern.permute.xlu0 1
        %3342 = vperm.xlu0 %3341, %v3328
        %v3343 = vpop.permute.xlu0 %3342
        %3346 = vset.pattern.permute.xlu0 1
        %3347 = vperm.xlu0 %3346, %v3329
        %v3348 = vpop.permute.xlu0 %3347
        %3351 = vset.pattern.permute.xlu0 1
        %3352 = vperm.xlu0 %3351, %v3330
        %v3353 = vpop.permute.xlu0 %3352
        %3356 = vset.pattern.permute.xlu0 1
        %3357 = vperm.xlu0 %3356, %v3331
        %v3358 = vpop.permute.xlu0 %3357
        %3361 = vset.pattern.permute.xlu0 1
        %3362 = vperm.xlu0 %3361, %v3332
        %v3363 = vpop.permute.xlu0 %3362
        %3366 = vset.pattern.permute.xlu0 1
        %3367 = vperm.xlu0 %3366, %v3333
        %v3368 = vpop.permute.xlu0 %3367
        %3371 = vset.pattern.permute.xlu0 1
        %3372 = vperm.xlu0 %3371, %v3334
        %v3373 = vpop.permute.xlu0 %3372
        %v3375 = vmul.f32 %v3338, %v253
        %v3376 = vmul.f32 %v3343, %v253
        %v3377 = vmul.f32 %v3348, %v253
        %v3378 = vmul.f32 %v3353, %v253
        %v3379 = vmul.f32 %v3358, %v253
        %v3380 = vmul.f32 %v3363, %v253
        %v3381 = vmul.f32 %v3368, %v253
        %v3382 = vmul.f32 %v3373, %v253
        %s3383 = scalar_lea.vmem [#allocation2], 3136
        %3384 = vst [vmem:[%s3383] sm:$0xff] %v3375
        %3385 = vst [vmem:[%s3383 + $0x8] sm:$0xff] %v3376
        %3386 = vst [vmem:[%s3383 + $0x10] sm:$0xff] %v3377
        %3387 = vst [vmem:[%s3383 + $0x18] sm:$0xff] %v3378
        %3388 = vst [vmem:[%s3383 + $0x20] sm:$0xff] %v3379
        %3389 = vst [vmem:[%s3383 + $0x28] sm:$0xff] %v3380
        %3390 = vst [vmem:[%s3383 + $0x30] sm:$0xff] %v3381
        %3391 = vst [vmem:[%s3383 + $0x38] sm:$0xff] %v3382
        %v3392 = vld [vmem:[%s3204] sm:$0xff]
        %v3393 = vld [vmem:[%s3204 + $0x8] sm:$0xff]
        %v3394 = vld [vmem:[%s3204 + $0x10] sm:$0xff]
        %v3395 = vld [vmem:[%s3204 + $0x18] sm:$0xff]
        %v3396 = vld [vmem:[%s3204 + $0x20] sm:$0xff]
        %v3397 = vld [vmem:[%s3204 + $0x28] sm:$0xff]
        %v3398 = vld [vmem:[%s3204 + $0x30] sm:$0xff]
        %v3399 = vld [vmem:[%s3204 + $0x38] sm:$0xff]
        %3401 = vset.pattern.permute.xlu0 2
        %3402 = vperm.xlu0 %3401, %v3392
        %v3403 = vpop.permute.xlu0 %3402
        %3406 = vset.pattern.permute.xlu0 2
        %3407 = vperm.xlu0 %3406, %v3393
        %v3408 = vpop.permute.xlu0 %3407
        %3411 = vset.pattern.permute.xlu0 2
        %3412 = vperm.xlu0 %3411, %v3394
        %v3413 = vpop.permute.xlu0 %3412
        %3416 = vset.pattern.permute.xlu0 2
        %3417 = vperm.xlu0 %3416, %v3395
        %v3418 = vpop.permute.xlu0 %3417
        %3421 = vset.pattern.permute.xlu0 2
        %3422 = vperm.xlu0 %3421, %v3396
        %v3423 = vpop.permute.xlu0 %3422
        %3426 = vset.pattern.permute.xlu0 2
        %3427 = vperm.xlu0 %3426, %v3397
        %v3428 = vpop.permute.xlu0 %3427
        %3431 = vset.pattern.permute.xlu0 2
        %3432 = vperm.xlu0 %3431, %v3398
        %v3433 = vpop.permute.xlu0 %3432
        %3436 = vset.pattern.permute.xlu0 2
        %3437 = vperm.xlu0 %3436, %v3399
        %v3438 = vpop.permute.xlu0 %3437
        %v3440 = vmul.f32 %v3403, %v259
        %v3441 = vmul.f32 %v3408, %v259
        %v3442 = vmul.f32 %v3413, %v259
        %v3443 = vmul.f32 %v3418, %v259
        %v3444 = vmul.f32 %v3423, %v259
        %v3445 = vmul.f32 %v3428, %v259
        %v3446 = vmul.f32 %v3433, %v259
        %v3447 = vmul.f32 %v3438, %v259
        %s3448 = scalar_lea.vmem [#allocation2], 3200
        %3449 = vst [vmem:[%s3448] sm:$0xff] %v3440
        %3450 = vst [vmem:[%s3448 + $0x8] sm:$0xff] %v3441
        %3451 = vst [vmem:[%s3448 + $0x10] sm:$0xff] %v3442
        %3452 = vst [vmem:[%s3448 + $0x18] sm:$0xff] %v3443
        %3453 = vst [vmem:[%s3448 + $0x20] sm:$0xff] %v3444
        %3454 = vst [vmem:[%s3448 + $0x28] sm:$0xff] %v3445
        %3455 = vst [vmem:[%s3448 + $0x30] sm:$0xff] %v3446
        %3456 = vst [vmem:[%s3448 + $0x38] sm:$0xff] %v3447
        %v3457 = vld [vmem:[%s3204] sm:$0xff]
        %v3458 = vld [vmem:[%s3204 + $0x8] sm:$0xff]
        %v3459 = vld [vmem:[%s3204 + $0x10] sm:$0xff]
        %v3460 = vld [vmem:[%s3204 + $0x18] sm:$0xff]
        %v3461 = vld [vmem:[%s3204 + $0x20] sm:$0xff]
        %v3462 = vld [vmem:[%s3204 + $0x28] sm:$0xff]
        %v3463 = vld [vmem:[%s3204 + $0x30] sm:$0xff]
        %v3464 = vld [vmem:[%s3204 + $0x38] sm:$0xff]
        %3466 = vset.pattern.permute.xlu0 3
        %3467 = vperm.xlu0 %3466, %v3457
        %v3468 = vpop.permute.xlu0 %3467
        %3471 = vset.pattern.permute.xlu0 3
        %3472 = vperm.xlu0 %3471, %v3458
        %v3473 = vpop.permute.xlu0 %3472
        %3476 = vset.pattern.permute.xlu0 3
        %3477 = vperm.xlu0 %3476, %v3459
        %v3478 = vpop.permute.xlu0 %3477
        %3481 = vset.pattern.permute.xlu0 3
        %3482 = vperm.xlu0 %3481, %v3460
        %v3483 = vpop.permute.xlu0 %3482
        %3486 = vset.pattern.permute.xlu0 3
        %3487 = vperm.xlu0 %3486, %v3461
        %v3488 = vpop.permute.xlu0 %3487
        %3491 = vset.pattern.permute.xlu0 3
        %3492 = vperm.xlu0 %3491, %v3462
        %v3493 = vpop.permute.xlu0 %3492
        %3496 = vset.pattern.permute.xlu0 3
        %3497 = vperm.xlu0 %3496, %v3463
        %v3498 = vpop.permute.xlu0 %3497
        %3501 = vset.pattern.permute.xlu0 3
        %3502 = vperm.xlu0 %3501, %v3464
        %v3503 = vpop.permute.xlu0 %3502
        %s3505 = scalar_lea.vmem [#allocation2], 3264
        %3506 = vst [vmem:[%s3505] sm:$0xff] %v3468
        %3507 = vst [vmem:[%s3505 + $0x8] sm:$0xff] %v3473
        %3508 = vst [vmem:[%s3505 + $0x10] sm:$0xff] %v3478
        %3509 = vst [vmem:[%s3505 + $0x18] sm:$0xff] %v3483
        %3510 = vst [vmem:[%s3505 + $0x20] sm:$0xff] %v3488
        %3511 = vst [vmem:[%s3505 + $0x28] sm:$0xff] %v3493
        %3512 = vst [vmem:[%s3505 + $0x30] sm:$0xff] %v3498
        %3513 = vst [vmem:[%s3505 + $0x38] sm:$0xff] %v3503
        %v3514 = vld [vmem:[%s3204] sm:$0xff]
        %v3515 = vld [vmem:[%s3204 + $0x8] sm:$0xff]
        %v3516 = vld [vmem:[%s3204 + $0x10] sm:$0xff]
        %v3517 = vld [vmem:[%s3204 + $0x18] sm:$0xff]
        %v3518 = vld [vmem:[%s3204 + $0x20] sm:$0xff]
        %v3519 = vld [vmem:[%s3204 + $0x28] sm:$0xff]
        %v3520 = vld [vmem:[%s3204 + $0x30] sm:$0xff]
        %v3521 = vld [vmem:[%s3204 + $0x38] sm:$0xff]
        %3523 = vset.pattern.permute.xlu0 4
        %3524 = vperm.xlu0 %3523, %v3514
        %v3525 = vpop.permute.xlu0 %3524
        %3528 = vset.pattern.permute.xlu0 4
        %3529 = vperm.xlu0 %3528, %v3515
        %v3530 = vpop.permute.xlu0 %3529
        %3533 = vset.pattern.permute.xlu0 4
        %3534 = vperm.xlu0 %3533, %v3516
        %v3535 = vpop.permute.xlu0 %3534
        %3538 = vset.pattern.permute.xlu0 4
        %3539 = vperm.xlu0 %3538, %v3517
        %v3540 = vpop.permute.xlu0 %3539
        %3543 = vset.pattern.permute.xlu0 4
        %3544 = vperm.xlu0 %3543, %v3518
        %v3545 = vpop.permute.xlu0 %3544
        %3548 = vset.pattern.permute.xlu0 4
        %3549 = vperm.xlu0 %3548, %v3519
        %v3550 = vpop.permute.xlu0 %3549
        %3553 = vset.pattern.permute.xlu0 4
        %3554 = vperm.xlu0 %3553, %v3520
        %v3555 = vpop.permute.xlu0 %3554
        %3558 = vset.pattern.permute.xlu0 4
        %3559 = vperm.xlu0 %3558, %v3521
        %v3560 = vpop.permute.xlu0 %3559
        %v3562 = vmul.f32 %v3525, %v265
        %v3563 = vmul.f32 %v3530, %v265
        %v3564 = vmul.f32 %v3535, %v265
        %v3565 = vmul.f32 %v3540, %v265
        %v3566 = vmul.f32 %v3545, %v265
        %v3567 = vmul.f32 %v3550, %v265
        %v3568 = vmul.f32 %v3555, %v265
        %v3569 = vmul.f32 %v3560, %v265
        %s3570 = scalar_lea.vmem [#allocation2], 3328
        %3571 = vst [vmem:[%s3570] sm:$0xff] %v3562
        %3572 = vst [vmem:[%s3570 + $0x8] sm:$0xff] %v3563
        %3573 = vst [vmem:[%s3570 + $0x10] sm:$0xff] %v3564
        %3574 = vst [vmem:[%s3570 + $0x18] sm:$0xff] %v3565
        %3575 = vst [vmem:[%s3570 + $0x20] sm:$0xff] %v3566
        %3576 = vst [vmem:[%s3570 + $0x28] sm:$0xff] %v3567
        %3577 = vst [vmem:[%s3570 + $0x30] sm:$0xff] %v3568
        %3578 = vst [vmem:[%s3570 + $0x38] sm:$0xff] %v3569
        %v3579 = vld [vmem:[%s3204] sm:$0xff]
        %v3580 = vld [vmem:[%s3204 + $0x8] sm:$0xff]
        %v3581 = vld [vmem:[%s3204 + $0x10] sm:$0xff]
        %v3582 = vld [vmem:[%s3204 + $0x18] sm:$0xff]
        %v3583 = vld [vmem:[%s3204 + $0x20] sm:$0xff]
        %v3584 = vld [vmem:[%s3204 + $0x28] sm:$0xff]
        %v3585 = vld [vmem:[%s3204 + $0x30] sm:$0xff]
        %v3586 = vld [vmem:[%s3204 + $0x38] sm:$0xff]
        %3588 = vset.pattern.permute.xlu0 5
        %3589 = vperm.xlu0 %3588, %v3579
        %v3590 = vpop.permute.xlu0 %3589
        %3593 = vset.pattern.permute.xlu0 5
        %3594 = vperm.xlu0 %3593, %v3580
        %v3595 = vpop.permute.xlu0 %3594
        %3598 = vset.pattern.permute.xlu0 5
        %3599 = vperm.xlu0 %3598, %v3581
        %v3600 = vpop.permute.xlu0 %3599
        %3603 = vset.pattern.permute.xlu0 5
        %3604 = vperm.xlu0 %3603, %v3582
        %v3605 = vpop.permute.xlu0 %3604
        %3608 = vset.pattern.permute.xlu0 5
        %3609 = vperm.xlu0 %3608, %v3583
        %v3610 = vpop.permute.xlu0 %3609
        %3613 = vset.pattern.permute.xlu0 5
        %3614 = vperm.xlu0 %3613, %v3584
        %v3615 = vpop.permute.xlu0 %3614
        %3618 = vset.pattern.permute.xlu0 5
        %3619 = vperm.xlu0 %3618, %v3585
        %v3620 = vpop.permute.xlu0 %3619
        %3623 = vset.pattern.permute.xlu0 5
        %3624 = vperm.xlu0 %3623, %v3586
        %v3625 = vpop.permute.xlu0 %3624
        %v3627 = vmul.f32 %v3590, %v271
        %v3628 = vmul.f32 %v3595, %v271
        %v3629 = vmul.f32 %v3600, %v271
        %v3630 = vmul.f32 %v3605, %v271
        %v3631 = vmul.f32 %v3610, %v271
        %v3632 = vmul.f32 %v3615, %v271
        %v3633 = vmul.f32 %v3620, %v271
        %v3634 = vmul.f32 %v3625, %v271
        %s3635 = scalar_lea.vmem [#allocation2], 3392
        %3636 = vst [vmem:[%s3635] sm:$0xff] %v3627
        %3637 = vst [vmem:[%s3635 + $0x8] sm:$0xff] %v3628
        %3638 = vst [vmem:[%s3635 + $0x10] sm:$0xff] %v3629
        %3639 = vst [vmem:[%s3635 + $0x18] sm:$0xff] %v3630
        %3640 = vst [vmem:[%s3635 + $0x20] sm:$0xff] %v3631
        %3641 = vst [vmem:[%s3635 + $0x28] sm:$0xff] %v3632
        %3642 = vst [vmem:[%s3635 + $0x30] sm:$0xff] %v3633
        %3643 = vst [vmem:[%s3635 + $0x38] sm:$0xff] %v3634
        %v3644 = vld [vmem:[%s3204] sm:$0xff]
        %v3645 = vld [vmem:[%s3204 + $0x8] sm:$0xff]
        %v3646 = vld [vmem:[%s3204 + $0x10] sm:$0xff]
        %v3647 = vld [vmem:[%s3204 + $0x18] sm:$0xff]
        %v3648 = vld [vmem:[%s3204 + $0x20] sm:$0xff]
        %v3649 = vld [vmem:[%s3204 + $0x28] sm:$0xff]
        %v3650 = vld [vmem:[%s3204 + $0x30] sm:$0xff]
        %v3651 = vld [vmem:[%s3204 + $0x38] sm:$0xff]
        %3653 = vset.pattern.permute.xlu0 6
        %3654 = vperm.xlu0 %3653, %v3644
        %v3655 = vpop.permute.xlu0 %3654
        %3658 = vset.pattern.permute.xlu0 6
        %3659 = vperm.xlu0 %3658, %v3645
        %v3660 = vpop.permute.xlu0 %3659
        %3663 = vset.pattern.permute.xlu0 6
        %3664 = vperm.xlu0 %3663, %v3646
        %v3665 = vpop.permute.xlu0 %3664
        %3668 = vset.pattern.permute.xlu0 6
        %3669 = vperm.xlu0 %3668, %v3647
        %v3670 = vpop.permute.xlu0 %3669
        %3673 = vset.pattern.permute.xlu0 6
        %3674 = vperm.xlu0 %3673, %v3648
        %v3675 = vpop.permute.xlu0 %3674
        %3678 = vset.pattern.permute.xlu0 6
        %3679 = vperm.xlu0 %3678, %v3649
        %v3680 = vpop.permute.xlu0 %3679
        %3683 = vset.pattern.permute.xlu0 6
        %3684 = vperm.xlu0 %3683, %v3650
        %v3685 = vpop.permute.xlu0 %3684
        %3688 = vset.pattern.permute.xlu0 6
        %3689 = vperm.xlu0 %3688, %v3651
        %v3690 = vpop.permute.xlu0 %3689
        %v3692 = vmul.f32 %v3655, %v277
        %v3693 = vmul.f32 %v3660, %v277
        %v3694 = vmul.f32 %v3665, %v277
        %v3695 = vmul.f32 %v3670, %v277
        %v3696 = vmul.f32 %v3675, %v277
        %v3697 = vmul.f32 %v3680, %v277
        %v3698 = vmul.f32 %v3685, %v277
        %v3699 = vmul.f32 %v3690, %v277
        %s3700 = scalar_lea.vmem [#allocation2], 3456
        %3701 = vst [vmem:[%s3700] sm:$0xff] %v3692
        %3702 = vst [vmem:[%s3700 + $0x8] sm:$0xff] %v3693
        %3703 = vst [vmem:[%s3700 + $0x10] sm:$0xff] %v3694
        %3704 = vst [vmem:[%s3700 + $0x18] sm:$0xff] %v3695
        %3705 = vst [vmem:[%s3700 + $0x20] sm:$0xff] %v3696
        %3706 = vst [vmem:[%s3700 + $0x28] sm:$0xff] %v3697
        %3707 = vst [vmem:[%s3700 + $0x30] sm:$0xff] %v3698
        %3708 = vst [vmem:[%s3700 + $0x38] sm:$0xff] %v3699
        %v3709 = vlaneseq
        %v3710 = vshrl.u32 %v3709, 7
        loop: start=0, step=1, limit=8
        $region45: #{gavel_forward.1} parent=39 // loop_pre_header
          _
        $region46: #{gavel_forward.1} parent=39 // loop_header
          %s3712 = sphi 0, %s3716
          %p3713 = scmp.ge.s32.totalorder %s3712, 8
          %v3717 = vphi 0.0, %v5916
        $region47: #{gavel_forward.1} parent=39 // loop_header_branch
          %3715 = sbr.rel (%p3713) target = $region51
        $region48: #{gavel_forward.1} parent=39 // loop_body
          %s3718 = smul.u32 %s3712, 2
          %s3719 = scalar_lea.vmem %s234, %s3718
          %v3720 = vld [vmem:[%s3719] sm:$0x3]
          %3721 = vrot.lane.b32.xlu0 %v3720, 2
          %v3722 = vpop.permute.xlu0 %3721
          %v3723 = vsel %vm251, %v3722, 0.0
          %3724 = vrot.lane.b32.xlu0 %v3720, 1
          %v3725 = vpop.permute.xlu0 %3724
          %v3726 = vsel %vm257, %v3725, 0.0
          %3727 = vrot.lane.b32.xlu0 %v3720, 127
          %v3728 = vpop.permute.xlu0 %3727
          %v3729 = vsel %vm263, %v3728, 0.0
          %v3731 = vrot.slane %v3726, 6
          %v3734 = vrot.slane %v3720, 4
          %v3737 = vrot.slane %v3729, 2
          %vm3739 = vcmask 1041408
          %v3740 = vsel %vm3739, %v3723, %v3731
          %vm3741 = vcmask 1043456
          %v3742 = vsel %vm3741, %v3740, %v3734
          %vm3743 = vcmask 1045504
          %v3744 = vsel %vm3743, %v3742, %v3737
          %v3745 = vld [vmem:[#allocation3] sm:$0xff]
          %v3746 = vld [vmem:[#allocation3 + $0x8] sm:$0xff]
          %v3747 = vld [vmem:[#allocation3 + $0x10] sm:$0xff]
          %v3748 = vld [vmem:[#allocation3 + $0x18] sm:$0xff]
          %v3749 = vld [vmem:[#allocation3 + $0x20] sm:$0xff]
          %v3750 = vld [vmem:[#allocation3 + $0x28] sm:$0xff]
          %v3751 = vld [vmem:[#allocation3 + $0x30] sm:$0xff]
          %v3752 = vld [vmem:[#allocation3 + $0x38] sm:$0xff]
          %v3753 = vld [vmem:[#allocation2] sm:$0xff]
          %v3754 = vld [vmem:[#allocation2 + $0x8] sm:$0xff]
          %v3755 = vld [vmem:[#allocation2 + $0x10] sm:$0xff]
          %v3756 = vld [vmem:[#allocation2 + $0x18] sm:$0xff]
          %v3757 = vld [vmem:[#allocation2 + $0x20] sm:$0xff]
          %v3758 = vld [vmem:[#allocation2 + $0x28] sm:$0xff]
          %v3759 = vld [vmem:[#allocation2 + $0x30] sm:$0xff]
          %v3760 = vld [vmem:[#allocation2 + $0x38] sm:$0xff]
          %vm3761 = vcmask 64512
          %v3763 = vsel %vm3761, %v3745, 0
          %v3766 = vsel %vm3761, %v3746, 0
          %v3769 = vsel %vm3761, %v3747, 0
          %v3772 = vsel %vm3761, %v3748, 0
          %v3775 = vsel %vm3761, %v3749, 0
          %v3778 = vsel %vm3761, %v3750, 0
          %v3781 = vsel %vm3761, %v3751, 0
          %v3784 = vsel %vm3761, %v3752, 0
          %3786 = vmatprep.subr.mxu0 0.0
          %3787 = vmatpush1.msra.mxu0 %v3744
          %3788 = vmatprep.subr.mxu0 0.0
          %3789 = vmatpush1.msra.mxu0 0.0
          %3790 = vmatprep.subr.mxu0 0.0
          %3791 = vmatpush1.msra.mxu0 0.0
          %3792 = vmatprep.subr.mxu0 0.0
          %3793 = vmatpush1.msra.mxu0 0.0
          %3794 = vmatprep.subr.mxu0 0.0
          %3795 = vmatpush1.msra.mxu0 0.0
          %3796 = vmatprep.subr.mxu0 0.0
          %3797 = vmatpush1.msra.mxu0 0.0
          %3798 = vmatprep.subr.mxu0 0.0
          %3799 = vmatpush1.msra.mxu0 0.0
          %3800 = vmatprep.subr.mxu0 0.0
          %3801 = vmatpush1.msra.mxu0 0.0
          %3802 = vmatprep.subr.mxu0 0.0
          %3803 = vmatpush1.msra.mxu0 0.0
          %3804 = vmatprep.subr.mxu0 0.0
          %3805 = vmatpush1.msra.mxu0 0.0
          %3806 = vmatprep.subr.mxu0 0.0
          %3807 = vmatpush1.msra.mxu0 0.0
          %3808 = vmatprep.subr.mxu0 0.0
          %3809 = vmatpush1.msra.mxu0 0.0
          %3810 = vmatprep.subr.mxu0 0.0
          %3811 = vmatpush1.msra.mxu0 0.0
          %3812 = vmatprep.subr.mxu0 0.0
          %3813 = vmatpush1.msra.mxu0 0.0
          %3814 = vmatprep.subr.mxu0 0.0
          %3815 = vmatpush1.msra.mxu0 0.0
          %3816 = vmatprep.subr.mxu0 0.0
          %3817 = vmatpush1.msra.mxu0 0.0
          %3818 = vmatprep.subr.mxu0 0.0
          %3819 = vmatpush1.msra.mxu0 0.0
          %3820 = vmatprep.subr.mxu0 0.0
          %3821 = vmatpush1.msra.mxu0 0.0
          %3822 = vmatprep.subr.mxu0 0.0
          %3823 = vmatpush1.msra.mxu0 0.0
          %3824 = vmatprep.subr.mxu0 0.0
          %3825 = vmatpush1.msra.mxu0 0.0
          %3826 = vmatprep.subr.mxu0 0.0
          %3827 = vmatpush1.msra.mxu0 0.0
          %3828 = vmatprep.subr.mxu0 0.0
          %3829 = vmatpush1.msra.mxu0 0.0
          %3830 = vmatprep.subr.mxu0 0.0
          %3831 = vmatpush1.msra.mxu0 0.0
          %3832 = vmatprep.subr.mxu0 0.0
          %3833 = vmatpush1.msra.mxu0 0.0
          %3834 = vmatprep.subr.mxu0 0.0
          %3835 = vmatpush1.msra.mxu0 0.0
          %3836 = vmatprep.subr.mxu0 0.0
          %3837 = vmatpush1.msra.mxu0 0.0
          %3838 = vmatprep.subr.mxu0 0.0
          %3839 = vmatpush1.msra.mxu0 0.0
          %3840 = vmatprep.subr.mxu0 0.0
          %3841 = vmatpush1.msra.mxu0 0.0
          %3842 = vmatprep.subr.mxu0 0.0
          %3843 = vmatpush1.msra.mxu0 0.0
          %3844 = vmatprep.subr.mxu0 0.0
          %3845 = vmatpush1.msra.mxu0 0.0
          %3846 = vmatprep.subr.mxu0 0.0
          %3847 = vmatpush1.msra.mxu0 0.0
          %3848 = vmatprep.subr.mxu0 0.0
          %3849 = vmatpush1.msra.mxu0 0.0
          %3850 = vmatprep.mubr.f32.mxu0 0.0
          %3851 = vmatmul.mubr.f32.gmra.mrb[0].mxu0 %v3763
          %v3852 = vpop.f32.mrb[0].mxu0
          %v3853 = vadd.f32 %v3753, %v3852
          %v3854 = vpop.f32.mrb[0].mxu0
          %3855 = vmatprep.mubr.f32.mxu0 0.0
          %3856 = vmatmul.mubr.f32.gmra.mrb[0].mxu0 %v3766
          %v3857 = vpop.f32.mrb[0].mxu0
          %v3858 = vadd.f32 %v3754, %v3857
          %v3859 = vpop.f32.mrb[0].mxu0
          %3860 = vmatprep.mubr.f32.mxu0 0.0
          %3861 = vmatmul.mubr.f32.gmra.mrb[0].mxu0 %v3769
          %v3862 = vpop.f32.mrb[0].mxu0
          %v3863 = vadd.f32 %v3755, %v3862
          %v3864 = vpop.f32.mrb[0].mxu0
          %3865 = vmatprep.mubr.f32.mxu0 0.0
          %3866 = vmatmul.mubr.f32.gmra.mrb[0].mxu0 %v3772
          %v3867 = vpop.f32.mrb[0].mxu0
          %v3868 = vadd.f32 %v3756, %v3867
          %v3869 = vpop.f32.mrb[0].mxu0
          %3870 = vmatprep.mubr.f32.mxu0 0.0
          %3871 = vmatmul.mubr.f32.gmra.mrb[0].mxu0 %v3775
          %v3872 = vpop.f32.mrb[0].mxu0
          %v3873 = vadd.f32 %v3757, %v3872
          %v3874 = vpop.f32.mrb[0].mxu0
          %3875 = vmatprep.mubr.f32.mxu0 0.0
          %3876 = vmatmul.mubr.f32.gmra.mrb[0].mxu0 %v3778
          %v3877 = vpop.f32.mrb[0].mxu0
          %v3878 = vadd.f32 %v3758, %v3877
          %v3879 = vpop.f32.mrb[0].mxu0
          %3880 = vmatprep.mubr.f32.mxu0 0.0
          %3881 = vmatmul.mubr.f32.gmra.mrb[0].mxu0 %v3781
          %v3882 = vpop.f32.mrb[0].mxu0
          %v3883 = vadd.f32 %v3759, %v3882
          %v3884 = vpop.f32.mrb[0].mxu0
          %3885 = vmatprep.mubr.f32.mxu0 0.0
          %3886 = vmatmul.mubr.f32.gmra.mrb[0].mxu0 %v3784
          %v3887 = vpop.f32.mrb[0].mxu0
          %v3888 = vadd.f32 %v3760, %v3887
          %v3889 = vpop.f32.mrb[0].mxu0
          %3890 = vdwg.mxu0
          %vm3891 = vcmp.gt.f32.partialorder %v3853, 0.0
          %vm3892 = vcmp.gt.f32.partialorder %v3858, 0.0
          %vm3893 = vcmp.gt.f32.partialorder %v3863, 0.0
          %vm3894 = vcmp.gt.f32.partialorder %v3868, 0.0
          %vm3895 = vcmp.gt.f32.partialorder %v3873, 0.0
          %vm3896 = vcmp.gt.f32.partialorder %v3878, 0.0
          %vm3897 = vcmp.gt.f32.partialorder %v3883, 0.0
          %vm3898 = vcmp.gt.f32.partialorder %v3888, 0.0
          %v3899 = vmin.f32 %v3853, 0.0
          %v3900 = vmin.f32 %v3858, 0.0
          %v3901 = vmin.f32 %v3863, 0.0
          %v3902 = vmin.f32 %v3868, 0.0
          %v3903 = vmin.f32 %v3873, 0.0
          %v3904 = vmin.f32 %v3878, 0.0
          %v3905 = vmin.f32 %v3883, 0.0
          %v3906 = vmin.f32 %v3888, 0.0
          %v3907 = vmul.f32 %v3899, 1.442695
          %v3908 = vpow.pop %v3907
          %v3909 = vmul.f32 %v3900, 1.442695
          %v3910 = vpow.pop %v3909
          %v3911 = vmul.f32 %v3901, 1.442695
          %v3912 = vpow.pop %v3911
          %v3913 = vmul.f32 %v3902, 1.442695
          %v3914 = vpow.pop %v3913
          %v3915 = vmul.f32 %v3903, 1.442695
          %v3916 = vpow.pop %v3915
          %v3917 = vmul.f32 %v3904, 1.442695
          %v3918 = vpow.pop %v3917
          %v3919 = vmul.f32 %v3905, 1.442695
          %v3920 = vpow.pop %v3919
          %v3921 = vmul.f32 %v3906, 1.442695
          %v3922 = vpow.pop %v3921
          %v3923 = vsub.f32 %v3908, 1.0
          %v3924 = vsub.f32 %v3910, 1.0
          %v3925 = vsub.f32 %v3912, 1.0
          %v3926 = vsub.f32 %v3914, 1.0
          %v3927 = vsub.f32 %v3916, 1.0
          %v3928 = vsub.f32 %v3918, 1.0
          %v3929 = vsub.f32 %v3920, 1.0
          %v3930 = vsub.f32 %v3922, 1.0
          %v3931 = vsel %vm3891, %v3853, %v3923
          %v3932 = vsel %vm3892, %v3858, %v3924
          %v3933 = vsel %vm3893, %v3863, %v3925
          %v3934 = vsel %vm3894, %v3868, %v3926
          %v3935 = vsel %vm3895, %v3873, %v3927
          %v3936 = vsel %vm3896, %v3878, %v3928
          %v3937 = vsel %vm3897, %v3883, %v3929
          %v3938 = vsel %vm3898, %v3888, %v3930
          %v3939 = vld [vmem:[%s383] sm:$0xff]
          %v3940 = vld [vmem:[%s383 + $0x8] sm:$0xff]
          %v3941 = vld [vmem:[%s383 + $0x10] sm:$0xff]
          %v3942 = vld [vmem:[%s383 + $0x18] sm:$0xff]
          %v3943 = vld [vmem:[%s383 + $0x20] sm:$0xff]
          %v3944 = vld [vmem:[%s383 + $0x28] sm:$0xff]
          %v3945 = vld [vmem:[%s383 + $0x30] sm:$0xff]
          %v3946 = vld [vmem:[%s383 + $0x38] sm:$0xff]
          %v3947 = vld [vmem:[%s628] sm:$0xff]
          %v3948 = vld [vmem:[%s628 + $0x8] sm:$0xff]
          %v3949 = vld [vmem:[%s628 + $0x10] sm:$0xff]
          %v3950 = vld [vmem:[%s628 + $0x18] sm:$0xff]
          %v3951 = vld [vmem:[%s628 + $0x20] sm:$0xff]
          %v3952 = vld [vmem:[%s628 + $0x28] sm:$0xff]
          %v3953 = vld [vmem:[%s628 + $0x30] sm:$0xff]
          %v3954 = vld [vmem:[%s628 + $0x38] sm:$0xff]
          %v3955 = vld [vmem:[%s1003] sm:$0xff]
          %v3956 = vld [vmem:[%s1003 + $0x8] sm:$0xff]
          %v3957 = vld [vmem:[%s1003 + $0x10] sm:$0xff]
          %v3958 = vld [vmem:[%s1003 + $0x18] sm:$0xff]
          %v3959 = vld [vmem:[%s1003 + $0x20] sm:$0xff]
          %v3960 = vld [vmem:[%s1003 + $0x28] sm:$0xff]
          %v3961 = vld [vmem:[%s1003 + $0x30] sm:$0xff]
          %v3962 = vld [vmem:[%s1003 + $0x38] sm:$0xff]
          %3963 = vrot.lane.b32.xlu0 %v3931, 3
          %v3964 = vpop.permute.xlu0 %3963
          %3965 = vrot.lane.b32.xlu0 %v3932, 3
          %v3966 = vpop.permute.xlu0 %3965
          %3967 = vrot.lane.b32.xlu0 %v3933, 3
          %v3968 = vpop.permute.xlu0 %3967
          %3969 = vrot.lane.b32.xlu0 %v3934, 3
          %v3970 = vpop.permute.xlu0 %3969
          %3971 = vrot.lane.b32.xlu0 %v3935, 3
          %v3972 = vpop.permute.xlu0 %3971
          %3973 = vrot.lane.b32.xlu0 %v3936, 3
          %v3974 = vpop.permute.xlu0 %3973
          %3975 = vrot.lane.b32.xlu0 %v3937, 3
          %v3976 = vpop.permute.xlu0 %3975
          %3977 = vrot.lane.b32.xlu0 %v3938, 3
          %v3978 = vpop.permute.xlu0 %3977
          %v3979 = vld [vmem:[%s1068] sm:$0xff]
          %v3980 = vld [vmem:[%s1068 + $0x8] sm:$0xff]
          %v3981 = vld [vmem:[%s1068 + $0x10] sm:$0xff]
          %v3982 = vld [vmem:[%s1068 + $0x18] sm:$0xff]
          %v3983 = vld [vmem:[%s1068 + $0x20] sm:$0xff]
          %v3984 = vld [vmem:[%s1068 + $0x28] sm:$0xff]
          %v3985 = vld [vmem:[%s1068 + $0x30] sm:$0xff]
          %v3986 = vld [vmem:[%s1068 + $0x38] sm:$0xff]
          %v3987 = vmul.f32 %v3979, %v3964
          %v3988 = vmul.f32 %v3980, %v3966
          %v3989 = vmul.f32 %v3981, %v3968
          %v3990 = vmul.f32 %v3982, %v3970
          %v3991 = vmul.f32 %v3983, %v3972
          %v3992 = vmul.f32 %v3984, %v3974
          %v3993 = vmul.f32 %v3985, %v3976
          %v3994 = vmul.f32 %v3986, %v3978
          %v3995 = vadd.f32 %v3955, %v3987
          %v3996 = vadd.f32 %v3956, %v3988
          %v3997 = vadd.f32 %v3957, %v3989
          %v3998 = vadd.f32 %v3958, %v3990
          %v3999 = vadd.f32 %v3959, %v3991
          %v4000 = vadd.f32 %v3960, %v3992
          %v4001 = vadd.f32 %v3961, %v3993
          %v4002 = vadd.f32 %v3962, %v3994
          %4003 = vrot.lane.b32.xlu0 %v3931, 2
          %v4004 = vpop.permute.xlu0 %4003
          %4005 = vrot.lane.b32.xlu0 %v3932, 2
          %v4006 = vpop.permute.xlu0 %4005
          %4007 = vrot.lane.b32.xlu0 %v3933, 2
          %v4008 = vpop.permute.xlu0 %4007
          %4009 = vrot.lane.b32.xlu0 %v3934, 2
          %v4010 = vpop.permute.xlu0 %4009
          %4011 = vrot.lane.b32.xlu0 %v3935, 2
          %v4012 = vpop.permute.xlu0 %4011
          %4013 = vrot.lane.b32.xlu0 %v3936, 2
          %v4014 = vpop.permute.xlu0 %4013
          %4015 = vrot.lane.b32.xlu0 %v3937, 2
          %v4016 = vpop.permute.xlu0 %4015
          %4017 = vrot.lane.b32.xlu0 %v3938, 2
          %v4018 = vpop.permute.xlu0 %4017
          %v4019 = vld [vmem:[%s693] sm:$0xff]
          %v4020 = vld [vmem:[%s693 + $0x8] sm:$0xff]
          %v4021 = vld [vmem:[%s693 + $0x10] sm:$0xff]
          %v4022 = vld [vmem:[%s693 + $0x18] sm:$0xff]
          %v4023 = vld [vmem:[%s693 + $0x20] sm:$0xff]
          %v4024 = vld [vmem:[%s693 + $0x28] sm:$0xff]
          %v4025 = vld [vmem:[%s693 + $0x30] sm:$0xff]
          %v4026 = vld [vmem:[%s693 + $0x38] sm:$0xff]
          %v4027 = vmul.f32 %v4019, %v4004
          %v4028 = vmul.f32 %v4020, %v4006
          %v4029 = vmul.f32 %v4021, %v4008
          %v4030 = vmul.f32 %v4022, %v4010
          %v4031 = vmul.f32 %v4023, %v4012
          %v4032 = vmul.f32 %v4024, %v4014
          %v4033 = vmul.f32 %v4025, %v4016
          %v4034 = vmul.f32 %v4026, %v4018
          %v4035 = vadd.f32 %v3947, %v4027
          %v4036 = vadd.f32 %v3948, %v4028
          %v4037 = vadd.f32 %v3949, %v4029
          %v4038 = vadd.f32 %v3950, %v4030
          %v4039 = vadd.f32 %v3951, %v4031
          %v4040 = vadd.f32 %v3952, %v4032
          %v4041 = vadd.f32 %v3953, %v4033
          %v4042 = vadd.f32 %v3954, %v4034
          %v4043 = vld [vmem:[%s1133] sm:$0xff]
          %v4044 = vld [vmem:[%s1133 + $0x8] sm:$0xff]
          %v4045 = vld [vmem:[%s1133 + $0x10] sm:$0xff]
          %v4046 = vld [vmem:[%s1133 + $0x18] sm:$0xff]
          %v4047 = vld [vmem:[%s1133 + $0x20] sm:$0xff]
          %v4048 = vld [vmem:[%s1133 + $0x28] sm:$0xff]
          %v4049 = vld [vmem:[%s1133 + $0x30] sm:$0xff]
          %v4050 = vld [vmem:[%s1133 + $0x38] sm:$0xff]
          %v4051 = vmul.f32 %v4043, %v4004
          %v4052 = vmul.f32 %v4044, %v4006
          %v4053 = vmul.f32 %v4045, %v4008
          %v4054 = vmul.f32 %v4046, %v4010
          %v4055 = vmul.f32 %v4047, %v4012
          %v4056 = vmul.f32 %v4048, %v4014
          %v4057 = vmul.f32 %v4049, %v4016
          %v4058 = vmul.f32 %v4050, %v4018
          %v4059 = vadd.f32 %v3995, %v4051
          %v4060 = vadd.f32 %v3996, %v4052
          %v4061 = vadd.f32 %v3997, %v4053
          %v4062 = vadd.f32 %v3998, %v4054
          %v4063 = vadd.f32 %v3999, %v4055
          %v4064 = vadd.f32 %v4000, %v4056
          %v4065 = vadd.f32 %v4001, %v4057
          %v4066 = vadd.f32 %v4002, %v4058
          %4067 = vrot.lane.b32.xlu0 %v3931, 1
          %v4068 = vpop.permute.xlu0 %4067
          %4069 = vrot.lane.b32.xlu0 %v3932, 1
          %v4070 = vpop.permute.xlu0 %4069
          %4071 = vrot.lane.b32.xlu0 %v3933, 1
          %v4072 = vpop.permute.xlu0 %4071
          %4073 = vrot.lane.b32.xlu0 %v3934, 1
          %v4074 = vpop.permute.xlu0 %4073
          %4075 = vrot.lane.b32.xlu0 %v3935, 1
          %v4076 = vpop.permute.xlu0 %4075
          %4077 = vrot.lane.b32.xlu0 %v3936, 1
          %v4078 = vpop.permute.xlu0 %4077
          %4079 = vrot.lane.b32.xlu0 %v3937, 1
          %v4080 = vpop.permute.xlu0 %4079
          %4081 = vrot.lane.b32.xlu0 %v3938, 1
          %v4082 = vpop.permute.xlu0 %4081
          %v4083 = vld [vmem:[%s448] sm:$0xff]
          %v4084 = vld [vmem:[%s448 + $0x8] sm:$0xff]
          %v4085 = vld [vmem:[%s448 + $0x10] sm:$0xff]
          %v4086 = vld [vmem:[%s448 + $0x18] sm:$0xff]
          %v4087 = vld [vmem:[%s448 + $0x20] sm:$0xff]
          %v4088 = vld [vmem:[%s448 + $0x28] sm:$0xff]
          %v4089 = vld [vmem:[%s448 + $0x30] sm:$0xff]
          %v4090 = vld [vmem:[%s448 + $0x38] sm:$0xff]
          %v4091 = vmul.f32 %v4083, %v4068
          %v4092 = vmul.f32 %v4084, %v4070
          %v4093 = vmul.f32 %v4085, %v4072
          %v4094 = vmul.f32 %v4086, %v4074
          %v4095 = vmul.f32 %v4087, %v4076
          %v4096 = vmul.f32 %v4088, %v4078
          %v4097 = vmul.f32 %v4089, %v4080
          %v4098 = vmul.f32 %v4090, %v4082
          %v4099 = vadd.f32 %v3939, %v4091
          %v4100 = vadd.f32 %v3940, %v4092
          %v4101 = vadd.f32 %v3941, %v4093
          %v4102 = vadd.f32 %v3942, %v4094
          %v4103 = vadd.f32 %v3943, %v4095
          %v4104 = vadd.f32 %v3944, %v4096
          %v4105 = vadd.f32 %v3945, %v4097
          %v4106 = vadd.f32 %v3946, %v4098
          %v4107 = vld [vmem:[%s758] sm:$0xff]
          %v4108 = vld [vmem:[%s758 + $0x8] sm:$0xff]
          %v4109 = vld [vmem:[%s758 + $0x10] sm:$0xff]
          %v4110 = vld [vmem:[%s758 + $0x18] sm:$0xff]
          %v4111 = vld [vmem:[%s758 + $0x20] sm:$0xff]
          %v4112 = vld [vmem:[%s758 + $0x28] sm:$0xff]
          %v4113 = vld [vmem:[%s758 + $0x30] sm:$0xff]
          %v4114 = vld [vmem:[%s758 + $0x38] sm:$0xff]
          %v4115 = vmul.f32 %v4107, %v4068
          %v4116 = vmul.f32 %v4108, %v4070
          %v4117 = vmul.f32 %v4109, %v4072
          %v4118 = vmul.f32 %v4110, %v4074
          %v4119 = vmul.f32 %v4111, %v4076
          %v4120 = vmul.f32 %v4112, %v4078
          %v4121 = vmul.f32 %v4113, %v4080
          %v4122 = vmul.f32 %v4114, %v4082
          %v4123 = vadd.f32 %v4035, %v4115
          %v4124 = vadd.f32 %v4036, %v4116
          %v4125 = vadd.f32 %v4037, %v4117
          %v4126 = vadd.f32 %v4038, %v4118
          %v4127 = vadd.f32 %v4039, %v4119
          %v4128 = vadd.f32 %v4040, %v4120
          %v4129 = vadd.f32 %v4041, %v4121
          %v4130 = vadd.f32 %v4042, %v4122
          %v4131 = vld [vmem:[%s1198] sm:$0xff]
          %v4132 = vld [vmem:[%s1198 + $0x8] sm:$0xff]
          %v4133 = vld [vmem:[%s1198 + $0x10] sm:$0xff]
          %v4134 = vld [vmem:[%s1198 + $0x18] sm:$0xff]
          %v4135 = vld [vmem:[%s1198 + $0x20] sm:$0xff]
          %v4136 = vld [vmem:[%s1198 + $0x28] sm:$0xff]
          %v4137 = vld [vmem:[%s1198 + $0x30] sm:$0xff]
          %v4138 = vld [vmem:[%s1198 + $0x38] sm:$0xff]
          %v4139 = vmul.f32 %v4131, %v4068
          %v4140 = vmul.f32 %v4132, %v4070
          %v4141 = vmul.f32 %v4133, %v4072
          %v4142 = vmul.f32 %v4134, %v4074
          %v4143 = vmul.f32 %v4135, %v4076
          %v4144 = vmul.f32 %v4136, %v4078
          %v4145 = vmul.f32 %v4137, %v4080
          %v4146 = vmul.f32 %v4138, %v4082
          %v4147 = vadd.f32 %v4059, %v4139
          %v4148 = vadd.f32 %v4060, %v4140
          %v4149 = vadd.f32 %v4061, %v4141
          %v4150 = vadd.f32 %v4062, %v4142
          %v4151 = vadd.f32 %v4063, %v4143
          %v4152 = vadd.f32 %v4064, %v4144
          %v4153 = vadd.f32 %v4065, %v4145
          %v4154 = vadd.f32 %v4066, %v4146
          %v4155 = vld [vmem:[%s505] sm:$0xff]
          %v4156 = vld [vmem:[%s505 + $0x8] sm:$0xff]
          %v4157 = vld [vmem:[%s505 + $0x10] sm:$0xff]
          %v4158 = vld [vmem:[%s505 + $0x18] sm:$0xff]
          %v4159 = vld [vmem:[%s505 + $0x20] sm:$0xff]
          %v4160 = vld [vmem:[%s505 + $0x28] sm:$0xff]
          %v4161 = vld [vmem:[%s505 + $0x30] sm:$0xff]
          %v4162 = vld [vmem:[%s505 + $0x38] sm:$0xff]
          %v4163 = vmul.f32 %v4155, %v3931
          %v4164 = vmul.f32 %v4156, %v3932
          %v4165 = vmul.f32 %v4157, %v3933
          %v4166 = vmul.f32 %v4158, %v3934
          %v4167 = vmul.f32 %v4159, %v3935
          %v4168 = vmul.f32 %v4160, %v3936
          %v4169 = vmul.f32 %v4161, %v3937
          %v4170 = vmul.f32 %v4162, %v3938
          %v4171 = vadd.f32 %v4099, %v4163
          %v4172 = vadd.f32 %v4100, %v4164
          %v4173 = vadd.f32 %v4101, %v4165
          %v4174 = vadd.f32 %v4102, %v4166
          %v4175 = vadd.f32 %v4103, %v4167
          %v4176 = vadd.f32 %v4104, %v4168
          %v4177 = vadd.f32 %v4105, %v4169
          %v4178 = vadd.f32 %v4106, %v4170
          %v4179 = vld [vmem:[%s815] sm:$0xff]
          %v4180 = vld [vmem:[%s815 + $0x8] sm:$0xff]
          %v4181 = vld [vmem:[%s815 + $0x10] sm:$0xff]
          %v4182 = vld [vmem:[%s815 + $0x18] sm:$0xff]
          %v4183 = vld [vmem:[%s815 + $0x20] sm:$0xff]
          %v4184 = vld [vmem:[%s815 + $0x28] sm:$0xff]
          %v4185 = vld [vmem:[%s815 + $0x30] sm:$0xff]
          %v4186 = vld [vmem:[%s815 + $0x38] sm:$0xff]
          %v4187 = vmul.f32 %v4179, %v3931
          %v4188 = vmul.f32 %v4180, %v3932
          %v4189 = vmul.f32 %v4181, %v3933
          %v4190 = vmul.f32 %v4182, %v3934
          %v4191 = vmul.f32 %v4183, %v3935
          %v4192 = vmul.f32 %v4184, %v3936
          %v4193 = vmul.f32 %v4185, %v3937
          %v4194 = vmul.f32 %v4186, %v3938
          %v4195 = vadd.f32 %v4123, %v4187
          %v4196 = vadd.f32 %v4124, %v4188
          %v4197 = vadd.f32 %v4125, %v4189
          %v4198 = vadd.f32 %v4126, %v4190
          %v4199 = vadd.f32 %v4127, %v4191
          %v4200 = vadd.f32 %v4128, %v4192
          %v4201 = vadd.f32 %v4129, %v4193
          %v4202 = vadd.f32 %v4130, %v4194
          %v4203 = vld [vmem:[%s1255] sm:$0xff]
          %v4204 = vld [vmem:[%s1255 + $0x8] sm:$0xff]
          %v4205 = vld [vmem:[%s1255 + $0x10] sm:$0xff]
          %v4206 = vld [vmem:[%s1255 + $0x18] sm:$0xff]
          %v4207 = vld [vmem:[%s1255 + $0x20] sm:$0xff]
          %v4208 = vld [vmem:[%s1255 + $0x28] sm:$0xff]
          %v4209 = vld [vmem:[%s1255 + $0x30] sm:$0xff]
          %v4210 = vld [vmem:[%s1255 + $0x38] sm:$0xff]
          %v4211 = vmul.f32 %v4203, %v3931
          %v4212 = vmul.f32 %v4204, %v3932
          %v4213 = vmul.f32 %v4205, %v3933
          %v4214 = vmul.f32 %v4206, %v3934
          %v4215 = vmul.f32 %v4207, %v3935
          %v4216 = vmul.f32 %v4208, %v3936
          %v4217 = vmul.f32 %v4209, %v3937
          %v4218 = vmul.f32 %v4210, %v3938
          %v4219 = vadd.f32 %v4147, %v4211
          %v4220 = vadd.f32 %v4148, %v4212
          %v4221 = vadd.f32 %v4149, %v4213
          %v4222 = vadd.f32 %v4150, %v4214
          %v4223 = vadd.f32 %v4151, %v4215
          %v4224 = vadd.f32 %v4152, %v4216
          %v4225 = vadd.f32 %v4153, %v4217
          %v4226 = vadd.f32 %v4154, %v4218
          %4227 = vrot.lane.b32.xlu0 %v3931, 127
          %v4228 = vpop.permute.xlu0 %4227
          %4229 = vrot.lane.b32.xlu0 %v3932, 127
          %v4230 = vpop.permute.xlu0 %4229
          %4231 = vrot.lane.b32.xlu0 %v3933, 127
          %v4232 = vpop.permute.xlu0 %4231
          %4233 = vrot.lane.b32.xlu0 %v3934, 127
          %v4234 = vpop.permute.xlu0 %4233
          %4235 = vrot.lane.b32.xlu0 %v3935, 127
          %v4236 = vpop.permute.xlu0 %4235
          %4237 = vrot.lane.b32.xlu0 %v3936, 127
          %v4238 = vpop.permute.xlu0 %4237
          %4239 = vrot.lane.b32.xlu0 %v3937, 127
          %v4240 = vpop.permute.xlu0 %4239
          %4241 = vrot.lane.b32.xlu0 %v3938, 127
          %v4242 = vpop.permute.xlu0 %4241
          %v4243 = vld [vmem:[%s570] sm:$0xff]
          %v4244 = vld [vmem:[%s570 + $0x8] sm:$0xff]
          %v4245 = vld [vmem:[%s570 + $0x10] sm:$0xff]
          %v4246 = vld [vmem:[%s570 + $0x18] sm:$0xff]
          %v4247 = vld [vmem:[%s570 + $0x20] sm:$0xff]
          %v4248 = vld [vmem:[%s570 + $0x28] sm:$0xff]
          %v4249 = vld [vmem:[%s570 + $0x30] sm:$0xff]
          %v4250 = vld [vmem:[%s570 + $0x38] sm:$0xff]
          %v4251 = vmul.f32 %v4243, %v4228
          %v4252 = vmul.f32 %v4244, %v4230
          %v4253 = vmul.f32 %v4245, %v4232
          %v4254 = vmul.f32 %v4246, %v4234
          %v4255 = vmul.f32 %v4247, %v4236
          %v4256 = vmul.f32 %v4248, %v4238
          %v4257 = vmul.f32 %v4249, %v4240
          %v4258 = vmul.f32 %v4250, %v4242
          %v4259 = vadd.f32 %v4171, %v4251
          %v4260 = vadd.f32 %v4172, %v4252
          %v4261 = vadd.f32 %v4173, %v4253
          %v4262 = vadd.f32 %v4174, %v4254
          %v4263 = vadd.f32 %v4175, %v4255
          %v4264 = vadd.f32 %v4176, %v4256
          %v4265 = vadd.f32 %v4177, %v4257
          %v4266 = vadd.f32 %v4178, %v4258
          %v4267 = vld [vmem:[%s880] sm:$0xff]
          %v4268 = vld [vmem:[%s880 + $0x8] sm:$0xff]
          %v4269 = vld [vmem:[%s880 + $0x10] sm:$0xff]
          %v4270 = vld [vmem:[%s880 + $0x18] sm:$0xff]
          %v4271 = vld [vmem:[%s880 + $0x20] sm:$0xff]
          %v4272 = vld [vmem:[%s880 + $0x28] sm:$0xff]
          %v4273 = vld [vmem:[%s880 + $0x30] sm:$0xff]
          %v4274 = vld [vmem:[%s880 + $0x38] sm:$0xff]
          %v4275 = vmul.f32 %v4267, %v4228
          %v4276 = vmul.f32 %v4268, %v4230
          %v4277 = vmul.f32 %v4269, %v4232
          %v4278 = vmul.f32 %v4270, %v4234
          %v4279 = vmul.f32 %v4271, %v4236
          %v4280 = vmul.f32 %v4272, %v4238
          %v4281 = vmul.f32 %v4273, %v4240
          %v4282 = vmul.f32 %v4274, %v4242
          %v4283 = vadd.f32 %v4195, %v4275
          %v4284 = vadd.f32 %v4196, %v4276
          %v4285 = vadd.f32 %v4197, %v4277
          %v4286 = vadd.f32 %v4198, %v4278
          %v4287 = vadd.f32 %v4199, %v4279
          %v4288 = vadd.f32 %v4200, %v4280
          %v4289 = vadd.f32 %v4201, %v4281
          %v4290 = vadd.f32 %v4202, %v4282
          %v4291 = vld [vmem:[%s1320] sm:$0xff]
          %v4292 = vld [vmem:[%s1320 + $0x8] sm:$0xff]
          %v4293 = vld [vmem:[%s1320 + $0x10] sm:$0xff]
          %v4294 = vld [vmem:[%s1320 + $0x18] sm:$0xff]
          %v4295 = vld [vmem:[%s1320 + $0x20] sm:$0xff]
          %v4296 = vld [vmem:[%s1320 + $0x28] sm:$0xff]
          %v4297 = vld [vmem:[%s1320 + $0x30] sm:$0xff]
          %v4298 = vld [vmem:[%s1320 + $0x38] sm:$0xff]
          %v4299 = vmul.f32 %v4291, %v4228
          %v4300 = vmul.f32 %v4292, %v4230
          %v4301 = vmul.f32 %v4293, %v4232
          %v4302 = vmul.f32 %v4294, %v4234
          %v4303 = vmul.f32 %v4295, %v4236
          %v4304 = vmul.f32 %v4296, %v4238
          %v4305 = vmul.f32 %v4297, %v4240
          %v4306 = vmul.f32 %v4298, %v4242
          %v4307 = vadd.f32 %v4219, %v4299
          %v4308 = vadd.f32 %v4220, %v4300
          %v4309 = vadd.f32 %v4221, %v4301
          %v4310 = vadd.f32 %v4222, %v4302
          %v4311 = vadd.f32 %v4223, %v4303
          %v4312 = vadd.f32 %v4224, %v4304
          %v4313 = vadd.f32 %v4225, %v4305
          %v4314 = vadd.f32 %v4226, %v4306
          %4315 = vrot.lane.b32.xlu0 %v3931, 126
          %v4316 = vpop.permute.xlu0 %4315
          %4317 = vrot.lane.b32.xlu0 %v3932, 126
          %v4318 = vpop.permute.xlu0 %4317
          %4319 = vrot.lane.b32.xlu0 %v3933, 126
          %v4320 = vpop.permute.xlu0 %4319
          %4321 = vrot.lane.b32.xlu0 %v3934, 126
          %v4322 = vpop.permute.xlu0 %4321
          %4323 = vrot.lane.b32.xlu0 %v3935, 126
          %v4324 = vpop.permute.xlu0 %4323
          %4325 = vrot.lane.b32.xlu0 %v3936, 126
          %v4326 = vpop.permute.xlu0 %4325
          %4327 = vrot.lane.b32.xlu0 %v3937, 126
          %v4328 = vpop.permute.xlu0 %4327
          %4329 = vrot.lane.b32.xlu0 %v3938, 126
          %v4330 = vpop.permute.xlu0 %4329
          %v4331 = vld [vmem:[%s945] sm:$0xff]
          %v4332 = vld [vmem:[%s945 + $0x8] sm:$0xff]
          %v4333 = vld [vmem:[%s945 + $0x10] sm:$0xff]
          %v4334 = vld [vmem:[%s945 + $0x18] sm:$0xff]
          %v4335 = vld [vmem:[%s945 + $0x20] sm:$0xff]
          %v4336 = vld [vmem:[%s945 + $0x28] sm:$0xff]
          %v4337 = vld [vmem:[%s945 + $0x30] sm:$0xff]
          %v4338 = vld [vmem:[%s945 + $0x38] sm:$0xff]
          %v4339 = vmul.f32 %v4331, %v4316
          %v4340 = vmul.f32 %v4332, %v4318
          %v4341 = vmul.f32 %v4333, %v4320
          %v4342 = vmul.f32 %v4334, %v4322
          %v4343 = vmul.f32 %v4335, %v4324
          %v4344 = vmul.f32 %v4336, %v4326
          %v4345 = vmul.f32 %v4337, %v4328
          %v4346 = vmul.f32 %v4338, %v4330
          %v4347 = vadd.f32 %v4283, %v4339
          %v4348 = vadd.f32 %v4284, %v4340
          %v4349 = vadd.f32 %v4285, %v4341
          %v4350 = vadd.f32 %v4286, %v4342
          %v4351 = vadd.f32 %v4287, %v4343
          %v4352 = vadd.f32 %v4288, %v4344
          %v4353 = vadd.f32 %v4289, %v4345
          %v4354 = vadd.f32 %v4290, %v4346
          %v4355 = vld [vmem:[%s1385] sm:$0xff]
          %v4356 = vld [vmem:[%s1385 + $0x8] sm:$0xff]
          %v4357 = vld [vmem:[%s1385 + $0x10] sm:$0xff]
          %v4358 = vld [vmem:[%s1385 + $0x18] sm:$0xff]
          %v4359 = vld [vmem:[%s1385 + $0x20] sm:$0xff]
          %v4360 = vld [vmem:[%s1385 + $0x28] sm:$0xff]
          %v4361 = vld [vmem:[%s1385 + $0x30] sm:$0xff]
          %v4362 = vld [vmem:[%s1385 + $0x38] sm:$0xff]
          %v4363 = vmul.f32 %v4355, %v4316
          %v4364 = vmul.f32 %v4356, %v4318
          %v4365 = vmul.f32 %v4357, %v4320
          %v4366 = vmul.f32 %v4358, %v4322
          %v4367 = vmul.f32 %v4359, %v4324
          %v4368 = vmul.f32 %v4360, %v4326
          %v4369 = vmul.f32 %v4361, %v4328
          %v4370 = vmul.f32 %v4362, %v4330
          %v4371 = vadd.f32 %v4307, %v4363
          %v4372 = vadd.f32 %v4308, %v4364
          %v4373 = vadd.f32 %v4309, %v4365
          %v4374 = vadd.f32 %v4310, %v4366
          %v4375 = vadd.f32 %v4311, %v4367
          %v4376 = vadd.f32 %v4312, %v4368
          %v4377 = vadd.f32 %v4313, %v4369
          %v4378 = vadd.f32 %v4314, %v4370
          %4379 = vrot.lane.b32.xlu0 %v3931, 125
          %v4380 = vpop.permute.xlu0 %4379
          %4381 = vrot.lane.b32.xlu0 %v3932, 125
          %v4382 = vpop.permute.xlu0 %4381
          %4383 = vrot.lane.b32.xlu0 %v3933, 125
          %v4384 = vpop.permute.xlu0 %4383
          %4385 = vrot.lane.b32.xlu0 %v3934, 125
          %v4386 = vpop.permute.xlu0 %4385
          %4387 = vrot.lane.b32.xlu0 %v3935, 125
          %v4388 = vpop.permute.xlu0 %4387
          %4389 = vrot.lane.b32.xlu0 %v3936, 125
          %v4390 = vpop.permute.xlu0 %4389
          %4391 = vrot.lane.b32.xlu0 %v3937, 125
          %v4392 = vpop.permute.xlu0 %4391
          %4393 = vrot.lane.b32.xlu0 %v3938, 125
          %v4394 = vpop.permute.xlu0 %4393
          %v4395 = vld [vmem:[%s1450] sm:$0xff]
          %v4396 = vld [vmem:[%s1450 + $0x8] sm:$0xff]
          %v4397 = vld [vmem:[%s1450 + $0x10] sm:$0xff]
          %v4398 = vld [vmem:[%s1450 + $0x18] sm:$0xff]
          %v4399 = vld [vmem:[%s1450 + $0x20] sm:$0xff]
          %v4400 = vld [vmem:[%s1450 + $0x28] sm:$0xff]
          %v4401 = vld [vmem:[%s1450 + $0x30] sm:$0xff]
          %v4402 = vld [vmem:[%s1450 + $0x38] sm:$0xff]
          %v4403 = vmul.f32 %v4395, %v4380
          %v4404 = vmul.f32 %v4396, %v4382
          %v4405 = vmul.f32 %v4397, %v4384
          %v4406 = vmul.f32 %v4398, %v4386
          %v4407 = vmul.f32 %v4399, %v4388
          %v4408 = vmul.f32 %v4400, %v4390
          %v4409 = vmul.f32 %v4401, %v4392
          %v4410 = vmul.f32 %v4402, %v4394
          %v4411 = vadd.f32 %v4371, %v4403
          %v4412 = vadd.f32 %v4372, %v4404
          %v4413 = vadd.f32 %v4373, %v4405
          %v4414 = vadd.f32 %v4374, %v4406
          %v4415 = vadd.f32 %v4375, %v4407
          %v4416 = vadd.f32 %v4376, %v4408
          %v4417 = vadd.f32 %v4377, %v4409
          %v4418 = vadd.f32 %v4378, %v4410
          %vm4419 = vcmp.gt.f32.partialorder %v4259, 0.0
          %vm4420 = vcmp.gt.f32.partialorder %v4260, 0.0
          %vm4421 = vcmp.gt.f32.partialorder %v4261, 0.0
          %vm4422 = vcmp.gt.f32.partialorder %v4262, 0.0
          %vm4423 = vcmp.gt.f32.partialorder %v4263, 0.0
          %vm4424 = vcmp.gt.f32.partialorder %v4264, 0.0
          %vm4425 = vcmp.gt.f32.partialorder %v4265, 0.0
          %vm4426 = vcmp.gt.f32.partialorder %v4266, 0.0
          %v4427 = vmin.f32 %v4259, 0.0
          %v4428 = vmin.f32 %v4260, 0.0
          %v4429 = vmin.f32 %v4261, 0.0
          %v4430 = vmin.f32 %v4262, 0.0
          %v4431 = vmin.f32 %v4263, 0.0
          %v4432 = vmin.f32 %v4264, 0.0
          %v4433 = vmin.f32 %v4265, 0.0
          %v4434 = vmin.f32 %v4266, 0.0
          %v4435 = vmul.f32 %v4427, 1.442695
          %v4436 = vpow.pop %v4435
          %v4437 = vmul.f32 %v4428, 1.442695
          %v4438 = vpow.pop %v4437
          %v4439 = vmul.f32 %v4429, 1.442695
          %v4440 = vpow.pop %v4439
          %v4441 = vmul.f32 %v4430, 1.442695
          %v4442 = vpow.pop %v4441
          %v4443 = vmul.f32 %v4431, 1.442695
          %v4444 = vpow.pop %v4443
          %v4445 = vmul.f32 %v4432, 1.442695
          %v4446 = vpow.pop %v4445
          %v4447 = vmul.f32 %v4433, 1.442695
          %v4448 = vpow.pop %v4447
          %v4449 = vmul.f32 %v4434, 1.442695
          %v4450 = vpow.pop %v4449
          %v4451 = vsub.f32 %v4436, 1.0
          %v4452 = vsub.f32 %v4438, 1.0
          %v4453 = vsub.f32 %v4440, 1.0
          %v4454 = vsub.f32 %v4442, 1.0
          %v4455 = vsub.f32 %v4444, 1.0
          %v4456 = vsub.f32 %v4446, 1.0
          %v4457 = vsub.f32 %v4448, 1.0
          %v4458 = vsub.f32 %v4450, 1.0
          %v4459 = vsel %vm4419, %v4259, %v4451
          %v4460 = vsel %vm4420, %v4260, %v4452
          %v4461 = vsel %vm4421, %v4261, %v4453
          %v4462 = vsel %vm4422, %v4262, %v4454
          %v4463 = vsel %vm4423, %v4263, %v4455
          %v4464 = vsel %vm4424, %v4264, %v4456
          %v4465 = vsel %vm4425, %v4265, %v4457
          %v4466 = vsel %vm4426, %v4266, %v4458
          %vm4467 = vcmp.gt.f32.partialorder %v4347, 0.0
          %vm4468 = vcmp.gt.f32.partialorder %v4348, 0.0
          %vm4469 = vcmp.gt.f32.partialorder %v4349, 0.0
          %vm4470 = vcmp.gt.f32.partialorder %v4350, 0.0
          %vm4471 = vcmp.gt.f32.partialorder %v4351, 0.0
          %vm4472 = vcmp.gt.f32.partialorder %v4352, 0.0
          %vm4473 = vcmp.gt.f32.partialorder %v4353, 0.0
          %vm4474 = vcmp.gt.f32.partialorder %v4354, 0.0
          %v4475 = vmin.f32 %v4347, 0.0
          %v4476 = vmin.f32 %v4348, 0.0
          %v4477 = vmin.f32 %v4349, 0.0
          %v4478 = vmin.f32 %v4350, 0.0
          %v4479 = vmin.f32 %v4351, 0.0
          %v4480 = vmin.f32 %v4352, 0.0
          %v4481 = vmin.f32 %v4353, 0.0
          %v4482 = vmin.f32 %v4354, 0.0
          %v4483 = vmul.f32 %v4475, 1.442695
          %v4484 = vpow.pop %v4483
          %v4485 = vmul.f32 %v4476, 1.442695
          %v4486 = vpow.pop %v4485
          %v4487 = vmul.f32 %v4477, 1.442695
          %v4488 = vpow.pop %v4487
          %v4489 = vmul.f32 %v4478, 1.442695
          %v4490 = vpow.pop %v4489
          %v4491 = vmul.f32 %v4479, 1.442695
          %v4492 = vpow.pop %v4491
          %v4493 = vmul.f32 %v4480, 1.442695
          %v4494 = vpow.pop %v4493
          %v4495 = vmul.f32 %v4481, 1.442695
          %v4496 = vpow.pop %v4495
          %v4497 = vmul.f32 %v4482, 1.442695
          %v4498 = vpow.pop %v4497
          %v4499 = vsub.f32 %v4484, 1.0
          %v4500 = vsub.f32 %v4486, 1.0
          %v4501 = vsub.f32 %v4488, 1.0
          %v4502 = vsub.f32 %v4490, 1.0
          %v4503 = vsub.f32 %v4492, 1.0
          %v4504 = vsub.f32 %v4494, 1.0
          %v4505 = vsub.f32 %v4496, 1.0
          %v4506 = vsub.f32 %v4498, 1.0
          %v4507 = vsel %vm4467, %v4347, %v4499
          %v4508 = vsel %vm4468, %v4348, %v4500
          %v4509 = vsel %vm4469, %v4349, %v4501
          %v4510 = vsel %vm4470, %v4350, %v4502
          %v4511 = vsel %vm4471, %v4351, %v4503
          %v4512 = vsel %vm4472, %v4352, %v4504
          %v4513 = vsel %vm4473, %v4353, %v4505
          %v4514 = vsel %vm4474, %v4354, %v4506
          %v4515 = vadd.f32 %v4459, %v4507
          %v4516 = vadd.f32 %v4460, %v4508
          %v4517 = vadd.f32 %v4461, %v4509
          %v4518 = vadd.f32 %v4462, %v4510
          %v4519 = vadd.f32 %v4463, %v4511
          %v4520 = vadd.f32 %v4464, %v4512
          %v4521 = vadd.f32 %v4465, %v4513
          %v4522 = vadd.f32 %v4466, %v4514
          %vm4523 = vcmp.gt.f32.partialorder %v4411, 0.0
          %vm4524 = vcmp.gt.f32.partialorder %v4412, 0.0
          %vm4525 = vcmp.gt.f32.partialorder %v4413, 0.0
          %vm4526 = vcmp.gt.f32.partialorder %v4414, 0.0
          %vm4527 = vcmp.gt.f32.partialorder %v4415, 0.0
          %vm4528 = vcmp.gt.f32.partialorder %v4416, 0.0
          %vm4529 = vcmp.gt.f32.partialorder %v4417, 0.0
          %vm4530 = vcmp.gt.f32.partialorder %v4418, 0.0
          %v4531 = vmin.f32 %v4411, 0.0
          %v4532 = vmin.f32 %v4412, 0.0
          %v4533 = vmin.f32 %v4413, 0.0
          %v4534 = vmin.f32 %v4414, 0.0
          %v4535 = vmin.f32 %v4415, 0.0
          %v4536 = vmin.f32 %v4416, 0.0
          %v4537 = vmin.f32 %v4417, 0.0
          %v4538 = vmin.f32 %v4418, 0.0
          %v4539 = vmul.f32 %v4531, 1.442695
          %v4540 = vpow.pop %v4539
          %v4541 = vmul.f32 %v4532, 1.442695
          %v4542 = vpow.pop %v4541
          %v4543 = vmul.f32 %v4533, 1.442695
          %v4544 = vpow.pop %v4543
          %v4545 = vmul.f32 %v4534, 1.442695
          %v4546 = vpow.pop %v4545
          %v4547 = vmul.f32 %v4535, 1.442695
          %v4548 = vpow.pop %v4547
          %v4549 = vmul.f32 %v4536, 1.442695
          %v4550 = vpow.pop %v4549
          %v4551 = vmul.f32 %v4537, 1.442695
          %v4552 = vpow.pop %v4551
          %v4553 = vmul.f32 %v4538, 1.442695
          %v4554 = vpow.pop %v4553
          %v4555 = vsub.f32 %v4540, 1.0
          %v4556 = vsub.f32 %v4542, 1.0
          %v4557 = vsub.f32 %v4544, 1.0
          %v4558 = vsub.f32 %v4546, 1.0
          %v4559 = vsub.f32 %v4548, 1.0
          %v4560 = vsub.f32 %v4550, 1.0
          %v4561 = vsub.f32 %v4552, 1.0
          %v4562 = vsub.f32 %v4554, 1.0
          %v4563 = vsel %vm4523, %v4411, %v4555
          %v4564 = vsel %vm4524, %v4412, %v4556
          %v4565 = vsel %vm4525, %v4413, %v4557
          %v4566 = vsel %vm4526, %v4414, %v4558
          %v4567 = vsel %vm4527, %v4415, %v4559
          %v4568 = vsel %vm4528, %v4416, %v4560
          %v4569 = vsel %vm4529, %v4417, %v4561
          %v4570 = vsel %vm4530, %v4418, %v4562
          %v4571 = vadd.f32 %v4515, %v4563
          %v4572 = vadd.f32 %v4516, %v4564
          %v4573 = vadd.f32 %v4517, %v4565
          %v4574 = vadd.f32 %v4518, %v4566
          %v4575 = vadd.f32 %v4519, %v4567
          %v4576 = vadd.f32 %v4520, %v4568
          %v4577 = vadd.f32 %v4521, %v4569
          %v4578 = vadd.f32 %v4522, %v4570
          %v4579 = vld [vmem:[%s1508] sm:$0xff]
          %v4580 = vld [vmem:[%s1508 + $0x8] sm:$0xff]
          %v4581 = vld [vmem:[%s1508 + $0x10] sm:$0xff]
          %v4582 = vld [vmem:[%s1508 + $0x18] sm:$0xff]
          %v4583 = vld [vmem:[%s1508 + $0x20] sm:$0xff]
          %v4584 = vld [vmem:[%s1508 + $0x28] sm:$0xff]
          %v4585 = vld [vmem:[%s1508 + $0x30] sm:$0xff]
          %v4586 = vld [vmem:[%s1508 + $0x38] sm:$0xff]
          %v4587 = vld [vmem:[%s1753] sm:$0xff]
          %v4588 = vld [vmem:[%s1753 + $0x8] sm:$0xff]
          %v4589 = vld [vmem:[%s1753 + $0x10] sm:$0xff]
          %v4590 = vld [vmem:[%s1753 + $0x18] sm:$0xff]
          %v4591 = vld [vmem:[%s1753 + $0x20] sm:$0xff]
          %v4592 = vld [vmem:[%s1753 + $0x28] sm:$0xff]
          %v4593 = vld [vmem:[%s1753 + $0x30] sm:$0xff]
          %v4594 = vld [vmem:[%s1753 + $0x38] sm:$0xff]
          %v4595 = vld [vmem:[%s2128] sm:$0xff]
          %v4596 = vld [vmem:[%s2128 + $0x8] sm:$0xff]
          %v4597 = vld [vmem:[%s2128 + $0x10] sm:$0xff]
          %v4598 = vld [vmem:[%s2128 + $0x18] sm:$0xff]
          %v4599 = vld [vmem:[%s2128 + $0x20] sm:$0xff]
          %v4600 = vld [vmem:[%s2128 + $0x28] sm:$0xff]
          %v4601 = vld [vmem:[%s2128 + $0x30] sm:$0xff]
          %v4602 = vld [vmem:[%s2128 + $0x38] sm:$0xff]
          %4603 = vrot.lane.b32.xlu0 %v4571, 3
          %v4604 = vpop.permute.xlu0 %4603
          %4605 = vrot.lane.b32.xlu0 %v4572, 3
          %v4606 = vpop.permute.xlu0 %4605
          %4607 = vrot.lane.b32.xlu0 %v4573, 3
          %v4608 = vpop.permute.xlu0 %4607
          %4609 = vrot.lane.b32.xlu0 %v4574, 3
          %v4610 = vpop.permute.xlu0 %4609
          %4611 = vrot.lane.b32.xlu0 %v4575, 3
          %v4612 = vpop.permute.xlu0 %4611
          %4613 = vrot.lane.b32.xlu0 %v4576, 3
          %v4614 = vpop.permute.xlu0 %4613
          %4615 = vrot.lane.b32.xlu0 %v4577, 3
          %v4616 = vpop.permute.xlu0 %4615
          %4617 = vrot.lane.b32.xlu0 %v4578, 3
          %v4618 = vpop.permute.xlu0 %4617
          %v4619 = vld [vmem:[%s2193] sm:$0xff]
          %v4620 = vld [vmem:[%s2193 + $0x8] sm:$0xff]
          %v4621 = vld [vmem:[%s2193 + $0x10] sm:$0xff]
          %v4622 = vld [vmem:[%s2193 + $0x18] sm:$0xff]
          %v4623 = vld [vmem:[%s2193 + $0x20] sm:$0xff]
          %v4624 = vld [vmem:[%s2193 + $0x28] sm:$0xff]
          %v4625 = vld [vmem:[%s2193 + $0x30] sm:$0xff]
          %v4626 = vld [vmem:[%s2193 + $0x38] sm:$0xff]
          %v4627 = vmul.f32 %v4619, %v4604
          %v4628 = vmul.f32 %v4620, %v4606
          %v4629 = vmul.f32 %v4621, %v4608
          %v4630 = vmul.f32 %v4622, %v4610
          %v4631 = vmul.f32 %v4623, %v4612
          %v4632 = vmul.f32 %v4624, %v4614
          %v4633 = vmul.f32 %v4625, %v4616
          %v4634 = vmul.f32 %v4626, %v4618
          %v4635 = vadd.f32 %v4595, %v4627
          %v4636 = vadd.f32 %v4596, %v4628
          %v4637 = vadd.f32 %v4597, %v4629
          %v4638 = vadd.f32 %v4598, %v4630
          %v4639 = vadd.f32 %v4599, %v4631
          %v4640 = vadd.f32 %v4600, %v4632
          %v4641 = vadd.f32 %v4601, %v4633
          %v4642 = vadd.f32 %v4602, %v4634
          %4643 = vrot.lane.b32.xlu0 %v4571, 2
          %v4644 = vpop.permute.xlu0 %4643
          %4645 = vrot.lane.b32.xlu0 %v4572, 2
          %v4646 = vpop.permute.xlu0 %4645
          %4647 = vrot.lane.b32.xlu0 %v4573, 2
          %v4648 = vpop.permute.xlu0 %4647
          %4649 = vrot.lane.b32.xlu0 %v4574, 2
          %v4650 = vpop.permute.xlu0 %4649
          %4651 = vrot.lane.b32.xlu0 %v4575, 2
          %v4652 = vpop.permute.xlu0 %4651
          %4653 = vrot.lane.b32.xlu0 %v4576, 2
          %v4654 = vpop.permute.xlu0 %4653
          %4655 = vrot.lane.b32.xlu0 %v4577, 2
          %v4656 = vpop.permute.xlu0 %4655
          %4657 = vrot.lane.b32.xlu0 %v4578, 2
          %v4658 = vpop.permute.xlu0 %4657
          %v4659 = vld [vmem:[%s1818] sm:$0xff]
          %v4660 = vld [vmem:[%s1818 + $0x8] sm:$0xff]
          %v4661 = vld [vmem:[%s1818 + $0x10] sm:$0xff]
          %v4662 = vld [vmem:[%s1818 + $0x18] sm:$0xff]
          %v4663 = vld [vmem:[%s1818 + $0x20] sm:$0xff]
          %v4664 = vld [vmem:[%s1818 + $0x28] sm:$0xff]
          %v4665 = vld [vmem:[%s1818 + $0x30] sm:$0xff]
          %v4666 = vld [vmem:[%s1818 + $0x38] sm:$0xff]
          %v4667 = vmul.f32 %v4659, %v4644
          %v4668 = vmul.f32 %v4660, %v4646
          %v4669 = vmul.f32 %v4661, %v4648
          %v4670 = vmul.f32 %v4662, %v4650
          %v4671 = vmul.f32 %v4663, %v4652
          %v4672 = vmul.f32 %v4664, %v4654
          %v4673 = vmul.f32 %v4665, %v4656
          %v4674 = vmul.f32 %v4666, %v4658
          %v4675 = vadd.f32 %v4587, %v4667
          %v4676 = vadd.f32 %v4588, %v4668
          %v4677 = vadd.f32 %v4589, %v4669
          %v4678 = vadd.f32 %v4590, %v4670
          %v4679 = vadd.f32 %v4591, %v4671
          %v4680 = vadd.f32 %v4592, %v4672
          %v4681 = vadd.f32 %v4593, %v4673
          %v4682 = vadd.f32 %v4594, %v4674
          %v4683 = vld [vmem:[%s2258] sm:$0xff]
          %v4684 = vld [vmem:[%s2258 + $0x8] sm:$0xff]
          %v4685 = vld [vmem:[%s2258 + $0x10] sm:$0xff]
          %v4686 = vld [vmem:[%s2258 + $0x18] sm:$0xff]
          %v4687 = vld [vmem:[%s2258 + $0x20] sm:$0xff]
          %v4688 = vld [vmem:[%s2258 + $0x28] sm:$0xff]
          %v4689 = vld [vmem:[%s2258 + $0x30] sm:$0xff]
          %v4690 = vld [vmem:[%s2258 + $0x38] sm:$0xff]
          %v4691 = vmul.f32 %v4683, %v4644
          %v4692 = vmul.f32 %v4684, %v4646
          %v4693 = vmul.f32 %v4685, %v4648
          %v4694 = vmul.f32 %v4686, %v4650
          %v4695 = vmul.f32 %v4687, %v4652
          %v4696 = vmul.f32 %v4688, %v4654
          %v4697 = vmul.f32 %v4689, %v4656
          %v4698 = vmul.f32 %v4690, %v4658
          %v4699 = vadd.f32 %v4635, %v4691
          %v4700 = vadd.f32 %v4636, %v4692
          %v4701 = vadd.f32 %v4637, %v4693
          %v4702 = vadd.f32 %v4638, %v4694
          %v4703 = vadd.f32 %v4639, %v4695
          %v4704 = vadd.f32 %v4640, %v4696
          %v4705 = vadd.f32 %v4641, %v4697
          %v4706 = vadd.f32 %v4642, %v4698
          %4707 = vrot.lane.b32.xlu0 %v4571, 1
          %v4708 = vpop.permute.xlu0 %4707
          %4709 = vrot.lane.b32.xlu0 %v4572, 1
          %v4710 = vpop.permute.xlu0 %4709
          %4711 = vrot.lane.b32.xlu0 %v4573, 1
          %v4712 = vpop.permute.xlu0 %4711
          %4713 = vrot.lane.b32.xlu0 %v4574, 1
          %v4714 = vpop.permute.xlu0 %4713
          %4715 = vrot.lane.b32.xlu0 %v4575, 1
          %v4716 = vpop.permute.xlu0 %4715
          %4717 = vrot.lane.b32.xlu0 %v4576, 1
          %v4718 = vpop.permute.xlu0 %4717
          %4719 = vrot.lane.b32.xlu0 %v4577, 1
          %v4720 = vpop.permute.xlu0 %4719
          %4721 = vrot.lane.b32.xlu0 %v4578, 1
          %v4722 = vpop.permute.xlu0 %4721
          %v4723 = vld [vmem:[%s1573] sm:$0xff]
          %v4724 = vld [vmem:[%s1573 + $0x8] sm:$0xff]
          %v4725 = vld [vmem:[%s1573 + $0x10] sm:$0xff]
          %v4726 = vld [vmem:[%s1573 + $0x18] sm:$0xff]
          %v4727 = vld [vmem:[%s1573 + $0x20] sm:$0xff]
          %v4728 = vld [vmem:[%s1573 + $0x28] sm:$0xff]
          %v4729 = vld [vmem:[%s1573 + $0x30] sm:$0xff]
          %v4730 = vld [vmem:[%s1573 + $0x38] sm:$0xff]
          %v4731 = vmul.f32 %v4723, %v4708
          %v4732 = vmul.f32 %v4724, %v4710
          %v4733 = vmul.f32 %v4725, %v4712
          %v4734 = vmul.f32 %v4726, %v4714
          %v4735 = vmul.f32 %v4727, %v4716
          %v4736 = vmul.f32 %v4728, %v4718
          %v4737 = vmul.f32 %v4729, %v4720
          %v4738 = vmul.f32 %v4730, %v4722
          %v4739 = vadd.f32 %v4579, %v4731
          %v4740 = vadd.f32 %v4580, %v4732
          %v4741 = vadd.f32 %v4581, %v4733
          %v4742 = vadd.f32 %v4582, %v4734
          %v4743 = vadd.f32 %v4583, %v4735
          %v4744 = vadd.f32 %v4584, %v4736
          %v4745 = vadd.f32 %v4585, %v4737
          %v4746 = vadd.f32 %v4586, %v4738
          %v4747 = vld [vmem:[%s1883] sm:$0xff]
          %v4748 = vld [vmem:[%s1883 + $0x8] sm:$0xff]
          %v4749 = vld [vmem:[%s1883 + $0x10] sm:$0xff]
          %v4750 = vld [vmem:[%s1883 + $0x18] sm:$0xff]
          %v4751 = vld [vmem:[%s1883 + $0x20] sm:$0xff]
          %v4752 = vld [vmem:[%s1883 + $0x28] sm:$0xff]
          %v4753 = vld [vmem:[%s1883 + $0x30] sm:$0xff]
          %v4754 = vld [vmem:[%s1883 + $0x38] sm:$0xff]
          %v4755 = vmul.f32 %v4747, %v4708
          %v4756 = vmul.f32 %v4748, %v4710
          %v4757 = vmul.f32 %v4749, %v4712
          %v4758 = vmul.f32 %v4750, %v4714
          %v4759 = vmul.f32 %v4751, %v4716
          %v4760 = vmul.f32 %v4752, %v4718
          %v4761 = vmul.f32 %v4753, %v4720
          %v4762 = vmul.f32 %v4754, %v4722
          %v4763 = vadd.f32 %v4675, %v4755
          %v4764 = vadd.f32 %v4676, %v4756
          %v4765 = vadd.f32 %v4677, %v4757
          %v4766 = vadd.f32 %v4678, %v4758
          %v4767 = vadd.f32 %v4679, %v4759
          %v4768 = vadd.f32 %v4680, %v4760
          %v4769 = vadd.f32 %v4681, %v4761
          %v4770 = vadd.f32 %v4682, %v4762
          %v4771 = vld [vmem:[%s2323] sm:$0xff]
          %v4772 = vld [vmem:[%s2323 + $0x8] sm:$0xff]
          %v4773 = vld [vmem:[%s2323 + $0x10] sm:$0xff]
          %v4774 = vld [vmem:[%s2323 + $0x18] sm:$0xff]
          %v4775 = vld [vmem:[%s2323 + $0x20] sm:$0xff]
          %v4776 = vld [vmem:[%s2323 + $0x28] sm:$0xff]
          %v4777 = vld [vmem:[%s2323 + $0x30] sm:$0xff]
          %v4778 = vld [vmem:[%s2323 + $0x38] sm:$0xff]
          %v4779 = vmul.f32 %v4771, %v4708
          %v4780 = vmul.f32 %v4772, %v4710
          %v4781 = vmul.f32 %v4773, %v4712
          %v4782 = vmul.f32 %v4774, %v4714
          %v4783 = vmul.f32 %v4775, %v4716
          %v4784 = vmul.f32 %v4776, %v4718
          %v4785 = vmul.f32 %v4777, %v4720
          %v4786 = vmul.f32 %v4778, %v4722
          %v4787 = vadd.f32 %v4699, %v4779
          %v4788 = vadd.f32 %v4700, %v4780
          %v4789 = vadd.f32 %v4701, %v4781
          %v4790 = vadd.f32 %v4702, %v4782
          %v4791 = vadd.f32 %v4703, %v4783
          %v4792 = vadd.f32 %v4704, %v4784
          %v4793 = vadd.f32 %v4705, %v4785
          %v4794 = vadd.f32 %v4706, %v4786
          %v4795 = vld [vmem:[%s1630] sm:$0xff]
          %v4796 = vld [vmem:[%s1630 + $0x8] sm:$0xff]
          %v4797 = vld [vmem:[%s1630 + $0x10] sm:$0xff]
          %v4798 = vld [vmem:[%s1630 + $0x18] sm:$0xff]
          %v4799 = vld [vmem:[%s1630 + $0x20] sm:$0xff]
          %v4800 = vld [vmem:[%s1630 + $0x28] sm:$0xff]
          %v4801 = vld [vmem:[%s1630 + $0x30] sm:$0xff]
          %v4802 = vld [vmem:[%s1630 + $0x38] sm:$0xff]
          %v4803 = vmul.f32 %v4795, %v4571
          %v4804 = vmul.f32 %v4796, %v4572
          %v4805 = vmul.f32 %v4797, %v4573
          %v4806 = vmul.f32 %v4798, %v4574
          %v4807 = vmul.f32 %v4799, %v4575
          %v4808 = vmul.f32 %v4800, %v4576
          %v4809 = vmul.f32 %v4801, %v4577
          %v4810 = vmul.f32 %v4802, %v4578
          %v4811 = vadd.f32 %v4739, %v4803
          %v4812 = vadd.f32 %v4740, %v4804
          %v4813 = vadd.f32 %v4741, %v4805
          %v4814 = vadd.f32 %v4742, %v4806
          %v4815 = vadd.f32 %v4743, %v4807
          %v4816 = vadd.f32 %v4744, %v4808
          %v4817 = vadd.f32 %v4745, %v4809
          %v4818 = vadd.f32 %v4746, %v4810
          %v4819 = vld [vmem:[%s1940] sm:$0xff]
          %v4820 = vld [vmem:[%s1940 + $0x8] sm:$0xff]
          %v4821 = vld [vmem:[%s1940 + $0x10] sm:$0xff]
          %v4822 = vld [vmem:[%s1940 + $0x18] sm:$0xff]
          %v4823 = vld [vmem:[%s1940 + $0x20] sm:$0xff]
          %v4824 = vld [vmem:[%s1940 + $0x28] sm:$0xff]
          %v4825 = vld [vmem:[%s1940 + $0x30] sm:$0xff]
          %v4826 = vld [vmem:[%s1940 + $0x38] sm:$0xff]
          %v4827 = vmul.f32 %v4819, %v4571
          %v4828 = vmul.f32 %v4820, %v4572
          %v4829 = vmul.f32 %v4821, %v4573
          %v4830 = vmul.f32 %v4822, %v4574
          %v4831 = vmul.f32 %v4823, %v4575
          %v4832 = vmul.f32 %v4824, %v4576
          %v4833 = vmul.f32 %v4825, %v4577
          %v4834 = vmul.f32 %v4826, %v4578
          %v4835 = vadd.f32 %v4763, %v4827
          %v4836 = vadd.f32 %v4764, %v4828
          %v4837 = vadd.f32 %v4765, %v4829
          %v4838 = vadd.f32 %v4766, %v4830
          %v4839 = vadd.f32 %v4767, %v4831
          %v4840 = vadd.f32 %v4768, %v4832
          %v4841 = vadd.f32 %v4769, %v4833
          %v4842 = vadd.f32 %v4770, %v4834
          %v4843 = vld [vmem:[%s2380] sm:$0xff]
          %v4844 = vld [vmem:[%s2380 + $0x8] sm:$0xff]
          %v4845 = vld [vmem:[%s2380 + $0x10] sm:$0xff]
          %v4846 = vld [vmem:[%s2380 + $0x18] sm:$0xff]
          %v4847 = vld [vmem:[%s2380 + $0x20] sm:$0xff]
          %v4848 = vld [vmem:[%s2380 + $0x28] sm:$0xff]
          %v4849 = vld [vmem:[%s2380 + $0x30] sm:$0xff]
          %v4850 = vld [vmem:[%s2380 + $0x38] sm:$0xff]
          %v4851 = vmul.f32 %v4843, %v4571
          %v4852 = vmul.f32 %v4844, %v4572
          %v4853 = vmul.f32 %v4845, %v4573
          %v4854 = vmul.f32 %v4846, %v4574
          %v4855 = vmul.f32 %v4847, %v4575
          %v4856 = vmul.f32 %v4848, %v4576
          %v4857 = vmul.f32 %v4849, %v4577
          %v4858 = vmul.f32 %v4850, %v4578
          %v4859 = vadd.f32 %v4787, %v4851
          %v4860 = vadd.f32 %v4788, %v4852
          %v4861 = vadd.f32 %v4789, %v4853
          %v4862 = vadd.f32 %v4790, %v4854
          %v4863 = vadd.f32 %v4791, %v4855
          %v4864 = vadd.f32 %v4792, %v4856
          %v4865 = vadd.f32 %v4793, %v4857
          %v4866 = vadd.f32 %v4794, %v4858
          %4867 = vrot.lane.b32.xlu0 %v4571, 127
          %v4868 = vpop.permute.xlu0 %4867
          %4869 = vrot.lane.b32.xlu0 %v4572, 127
          %v4870 = vpop.permute.xlu0 %4869
          %4871 = vrot.lane.b32.xlu0 %v4573, 127
          %v4872 = vpop.permute.xlu0 %4871
          %4873 = vrot.lane.b32.xlu0 %v4574, 127
          %v4874 = vpop.permute.xlu0 %4873
          %4875 = vrot.lane.b32.xlu0 %v4575, 127
          %v4876 = vpop.permute.xlu0 %4875
          %4877 = vrot.lane.b32.xlu0 %v4576, 127
          %v4878 = vpop.permute.xlu0 %4877
          %4879 = vrot.lane.b32.xlu0 %v4577, 127
          %v4880 = vpop.permute.xlu0 %4879
          %4881 = vrot.lane.b32.xlu0 %v4578, 127
          %v4882 = vpop.permute.xlu0 %4881
          %v4883 = vld [vmem:[%s1695] sm:$0xff]
          %v4884 = vld [vmem:[%s1695 + $0x8] sm:$0xff]
          %v4885 = vld [vmem:[%s1695 + $0x10] sm:$0xff]
          %v4886 = vld [vmem:[%s1695 + $0x18] sm:$0xff]
          %v4887 = vld [vmem:[%s1695 + $0x20] sm:$0xff]
          %v4888 = vld [vmem:[%s1695 + $0x28] sm:$0xff]
          %v4889 = vld [vmem:[%s1695 + $0x30] sm:$0xff]
          %v4890 = vld [vmem:[%s1695 + $0x38] sm:$0xff]
          %v4891 = vmul.f32 %v4883, %v4868
          %v4892 = vmul.f32 %v4884, %v4870
          %v4893 = vmul.f32 %v4885, %v4872
          %v4894 = vmul.f32 %v4886, %v4874
          %v4895 = vmul.f32 %v4887, %v4876
          %v4896 = vmul.f32 %v4888, %v4878
          %v4897 = vmul.f32 %v4889, %v4880
          %v4898 = vmul.f32 %v4890, %v4882
          %v4899 = vadd.f32 %v4811, %v4891
          %v4900 = vadd.f32 %v4812, %v4892
          %v4901 = vadd.f32 %v4813, %v4893
          %v4902 = vadd.f32 %v4814, %v4894
          %v4903 = vadd.f32 %v4815, %v4895
          %v4904 = vadd.f32 %v4816, %v4896
          %v4905 = vadd.f32 %v4817, %v4897
          %v4906 = vadd.f32 %v4818, %v4898
          %v4907 = vld [vmem:[%s2005] sm:$0xff]
          %v4908 = vld [vmem:[%s2005 + $0x8] sm:$0xff]
          %v4909 = vld [vmem:[%s2005 + $0x10] sm:$0xff]
          %v4910 = vld [vmem:[%s2005 + $0x18] sm:$0xff]
          %v4911 = vld [vmem:[%s2005 + $0x20] sm:$0xff]
          %v4912 = vld [vmem:[%s2005 + $0x28] sm:$0xff]
          %v4913 = vld [vmem:[%s2005 + $0x30] sm:$0xff]
          %v4914 = vld [vmem:[%s2005 + $0x38] sm:$0xff]
          %v4915 = vmul.f32 %v4907, %v4868
          %v4916 = vmul.f32 %v4908, %v4870
          %v4917 = vmul.f32 %v4909, %v4872
          %v4918 = vmul.f32 %v4910, %v4874
          %v4919 = vmul.f32 %v4911, %v4876
          %v4920 = vmul.f32 %v4912, %v4878
          %v4921 = vmul.f32 %v4913, %v4880
          %v4922 = vmul.f32 %v4914, %v4882
          %v4923 = vadd.f32 %v4835, %v4915
          %v4924 = vadd.f32 %v4836, %v4916
          %v4925 = vadd.f32 %v4837, %v4917
          %v4926 = vadd.f32 %v4838, %v4918
          %v4927 = vadd.f32 %v4839, %v4919
          %v4928 = vadd.f32 %v4840, %v4920
          %v4929 = vadd.f32 %v4841, %v4921
          %v4930 = vadd.f32 %v4842, %v4922
          %v4931 = vld [vmem:[%s2445] sm:$0xff]
          %v4932 = vld [vmem:[%s2445 + $0x8] sm:$0xff]
          %v4933 = vld [vmem:[%s2445 + $0x10] sm:$0xff]
          %v4934 = vld [vmem:[%s2445 + $0x18] sm:$0xff]
          %v4935 = vld [vmem:[%s2445 + $0x20] sm:$0xff]
          %v4936 = vld [vmem:[%s2445 + $0x28] sm:$0xff]
          %v4937 = vld [vmem:[%s2445 + $0x30] sm:$0xff]
          %v4938 = vld [vmem:[%s2445 + $0x38] sm:$0xff]
          %v4939 = vmul.f32 %v4931, %v4868
          %v4940 = vmul.f32 %v4932, %v4870
          %v4941 = vmul.f32 %v4933, %v4872
          %v4942 = vmul.f32 %v4934, %v4874
          %v4943 = vmul.f32 %v4935, %v4876
          %v4944 = vmul.f32 %v4936, %v4878
          %v4945 = vmul.f32 %v4937, %v4880
          %v4946 = vmul.f32 %v4938, %v4882
          %v4947 = vadd.f32 %v4859, %v4939
          %v4948 = vadd.f32 %v4860, %v4940
          %v4949 = vadd.f32 %v4861, %v4941
          %v4950 = vadd.f32 %v4862, %v4942
          %v4951 = vadd.f32 %v4863, %v4943
          %v4952 = vadd.f32 %v4864, %v4944
          %v4953 = vadd.f32 %v4865, %v4945
          %v4954 = vadd.f32 %v4866, %v4946
          %4955 = vrot.lane.b32.xlu0 %v4571, 126
          %v4956 = vpop.permute.xlu0 %4955
          %4957 = vrot.lane.b32.xlu0 %v4572, 126
          %v4958 = vpop.permute.xlu0 %4957
          %4959 = vrot.lane.b32.xlu0 %v4573, 126
          %v4960 = vpop.permute.xlu0 %4959
          %4961 = vrot.lane.b32.xlu0 %v4574, 126
          %v4962 = vpop.permute.xlu0 %4961
          %4963 = vrot.lane.b32.xlu0 %v4575, 126
          %v4964 = vpop.permute.xlu0 %4963
          %4965 = vrot.lane.b32.xlu0 %v4576, 126
          %v4966 = vpop.permute.xlu0 %4965
          %4967 = vrot.lane.b32.xlu0 %v4577, 126
          %v4968 = vpop.permute.xlu0 %4967
          %4969 = vrot.lane.b32.xlu0 %v4578, 126
          %v4970 = vpop.permute.xlu0 %4969
          %v4971 = vld [vmem:[%s2070] sm:$0xff]
          %v4972 = vld [vmem:[%s2070 + $0x8] sm:$0xff]
          %v4973 = vld [vmem:[%s2070 + $0x10] sm:$0xff]
          %v4974 = vld [vmem:[%s2070 + $0x18] sm:$0xff]
          %v4975 = vld [vmem:[%s2070 + $0x20] sm:$0xff]
          %v4976 = vld [vmem:[%s2070 + $0x28] sm:$0xff]
          %v4977 = vld [vmem:[%s2070 + $0x30] sm:$0xff]
          %v4978 = vld [vmem:[%s2070 + $0x38] sm:$0xff]
          %v4979 = vmul.f32 %v4971, %v4956
          %v4980 = vmul.f32 %v4972, %v4958
          %v4981 = vmul.f32 %v4973, %v4960
          %v4982 = vmul.f32 %v4974, %v4962
          %v4983 = vmul.f32 %v4975, %v4964
          %v4984 = vmul.f32 %v4976, %v4966
          %v4985 = vmul.f32 %v4977, %v4968
          %v4986 = vmul.f32 %v4978, %v4970
          %v4987 = vadd.f32 %v4923, %v4979
          %v4988 = vadd.f32 %v4924, %v4980
          %v4989 = vadd.f32 %v4925, %v4981
          %v4990 = vadd.f32 %v4926, %v4982
          %v4991 = vadd.f32 %v4927, %v4983
          %v4992 = vadd.f32 %v4928, %v4984
          %v4993 = vadd.f32 %v4929, %v4985
          %v4994 = vadd.f32 %v4930, %v4986
          %v4995 = vld [vmem:[%s2510] sm:$0xff]
          %v4996 = vld [vmem:[%s2510 + $0x8] sm:$0xff]
          %v4997 = vld [vmem:[%s2510 + $0x10] sm:$0xff]
          %v4998 = vld [vmem:[%s2510 + $0x18] sm:$0xff]
          %v4999 = vld [vmem:[%s2510 + $0x20] sm:$0xff]
          %v5000 = vld [vmem:[%s2510 + $0x28] sm:$0xff]
          %v5001 = vld [vmem:[%s2510 + $0x30] sm:$0xff]
          %v5002 = vld [vmem:[%s2510 + $0x38] sm:$0xff]
          %v5003 = vmul.f32 %v4995, %v4956
          %v5004 = vmul.f32 %v4996, %v4958
          %v5005 = vmul.f32 %v4997, %v4960
          %v5006 = vmul.f32 %v4998, %v4962
          %v5007 = vmul.f32 %v4999, %v4964
          %v5008 = vmul.f32 %v5000, %v4966
          %v5009 = vmul.f32 %v5001, %v4968
          %v5010 = vmul.f32 %v5002, %v4970
          %v5011 = vadd.f32 %v4947, %v5003
          %v5012 = vadd.f32 %v4948, %v5004
          %v5013 = vadd.f32 %v4949, %v5005
          %v5014 = vadd.f32 %v4950, %v5006
          %v5015 = vadd.f32 %v4951, %v5007
          %v5016 = vadd.f32 %v4952, %v5008
          %v5017 = vadd.f32 %v4953, %v5009
          %v5018 = vadd.f32 %v4954, %v5010
          %5019 = vrot.lane.b32.xlu0 %v4571, 125
          %v5020 = vpop.permute.xlu0 %5019
          %5021 = vrot.lane.b32.xlu0 %v4572, 125
          %v5022 = vpop.permute.xlu0 %5021
          %5023 = vrot.lane.b32.xlu0 %v4573, 125
          %v5024 = vpop.permute.xlu0 %5023
          %5025 = vrot.lane.b32.xlu0 %v4574, 125
          %v5026 = vpop.permute.xlu0 %5025
          %5027 = vrot.lane.b32.xlu0 %v4575, 125
          %v5028 = vpop.permute.xlu0 %5027
          %5029 = vrot.lane.b32.xlu0 %v4576, 125
          %v5030 = vpop.permute.xlu0 %5029
          %5031 = vrot.lane.b32.xlu0 %v4577, 125
          %v5032 = vpop.permute.xlu0 %5031
          %5033 = vrot.lane.b32.xlu0 %v4578, 125
          %v5034 = vpop.permute.xlu0 %5033
          %v5035 = vld [vmem:[%s2575] sm:$0xff]
          %v5036 = vld [vmem:[%s2575 + $0x8] sm:$0xff]
          %v5037 = vld [vmem:[%s2575 + $0x10] sm:$0xff]
          %v5038 = vld [vmem:[%s2575 + $0x18] sm:$0xff]
          %v5039 = vld [vmem:[%s2575 + $0x20] sm:$0xff]
          %v5040 = vld [vmem:[%s2575 + $0x28] sm:$0xff]
          %v5041 = vld [vmem:[%s2575 + $0x30] sm:$0xff]
          %v5042 = vld [vmem:[%s2575 + $0x38] sm:$0xff]
          %v5043 = vmul.f32 %v5035, %v5020
          %v5044 = vmul.f32 %v5036, %v5022
          %v5045 = vmul.f32 %v5037, %v5024
          %v5046 = vmul.f32 %v5038, %v5026
          %v5047 = vmul.f32 %v5039, %v5028
          %v5048 = vmul.f32 %v5040, %v5030
          %v5049 = vmul.f32 %v5041, %v5032
          %v5050 = vmul.f32 %v5042, %v5034
          %v5051 = vadd.f32 %v5011, %v5043
          %v5052 = vadd.f32 %v5012, %v5044
          %v5053 = vadd.f32 %v5013, %v5045
          %v5054 = vadd.f32 %v5014, %v5046
          %v5055 = vadd.f32 %v5015, %v5047
          %v5056 = vadd.f32 %v5016, %v5048
          %v5057 = vadd.f32 %v5017, %v5049
          %v5058 = vadd.f32 %v5018, %v5050
          %vm5059 = vcmp.gt.f32.partialorder %v4899, 0.0
          %vm5060 = vcmp.gt.f32.partialorder %v4900, 0.0
          %vm5061 = vcmp.gt.f32.partialorder %v4901, 0.0
          %vm5062 = vcmp.gt.f32.partialorder %v4902, 0.0
          %vm5063 = vcmp.gt.f32.partialorder %v4903, 0.0
          %vm5064 = vcmp.gt.f32.partialorder %v4904, 0.0
          %vm5065 = vcmp.gt.f32.partialorder %v4905, 0.0
          %vm5066 = vcmp.gt.f32.partialorder %v4906, 0.0
          %v5067 = vmin.f32 %v4899, 0.0
          %v5068 = vmin.f32 %v4900, 0.0
          %v5069 = vmin.f32 %v4901, 0.0
          %v5070 = vmin.f32 %v4902, 0.0
          %v5071 = vmin.f32 %v4903, 0.0
          %v5072 = vmin.f32 %v4904, 0.0
          %v5073 = vmin.f32 %v4905, 0.0
          %v5074 = vmin.f32 %v4906, 0.0
          %v5075 = vmul.f32 %v5067, 1.442695
          %v5076 = vpow.pop %v5075
          %v5077 = vmul.f32 %v5068, 1.442695
          %v5078 = vpow.pop %v5077
          %v5079 = vmul.f32 %v5069, 1.442695
          %v5080 = vpow.pop %v5079
          %v5081 = vmul.f32 %v5070, 1.442695
          %v5082 = vpow.pop %v5081
          %v5083 = vmul.f32 %v5071, 1.442695
          %v5084 = vpow.pop %v5083
          %v5085 = vmul.f32 %v5072, 1.442695
          %v5086 = vpow.pop %v5085
          %v5087 = vmul.f32 %v5073, 1.442695
          %v5088 = vpow.pop %v5087
          %v5089 = vmul.f32 %v5074, 1.442695
          %v5090 = vpow.pop %v5089
          %v5091 = vsub.f32 %v5076, 1.0
          %v5092 = vsub.f32 %v5078, 1.0
          %v5093 = vsub.f32 %v5080, 1.0
          %v5094 = vsub.f32 %v5082, 1.0
          %v5095 = vsub.f32 %v5084, 1.0
          %v5096 = vsub.f32 %v5086, 1.0
          %v5097 = vsub.f32 %v5088, 1.0
          %v5098 = vsub.f32 %v5090, 1.0
          %v5099 = vsel %vm5059, %v4899, %v5091
          %v5100 = vsel %vm5060, %v4900, %v5092
          %v5101 = vsel %vm5061, %v4901, %v5093
          %v5102 = vsel %vm5062, %v4902, %v5094
          %v5103 = vsel %vm5063, %v4903, %v5095
          %v5104 = vsel %vm5064, %v4904, %v5096
          %v5105 = vsel %vm5065, %v4905, %v5097
          %v5106 = vsel %vm5066, %v4906, %v5098
          %vm5107 = vcmp.gt.f32.partialorder %v4987, 0.0
          %vm5108 = vcmp.gt.f32.partialorder %v4988, 0.0
          %vm5109 = vcmp.gt.f32.partialorder %v4989, 0.0
          %vm5110 = vcmp.gt.f32.partialorder %v4990, 0.0
          %vm5111 = vcmp.gt.f32.partialorder %v4991, 0.0
          %vm5112 = vcmp.gt.f32.partialorder %v4992, 0.0
          %vm5113 = vcmp.gt.f32.partialorder %v4993, 0.0
          %vm5114 = vcmp.gt.f32.partialorder %v4994, 0.0
          %v5115 = vmin.f32 %v4987, 0.0
          %v5116 = vmin.f32 %v4988, 0.0
          %v5117 = vmin.f32 %v4989, 0.0
          %v5118 = vmin.f32 %v4990, 0.0
          %v5119 = vmin.f32 %v4991, 0.0
          %v5120 = vmin.f32 %v4992, 0.0
          %v5121 = vmin.f32 %v4993, 0.0
          %v5122 = vmin.f32 %v4994, 0.0
          %v5123 = vmul.f32 %v5115, 1.442695
          %v5124 = vpow.pop %v5123
          %v5125 = vmul.f32 %v5116, 1.442695
          %v5126 = vpow.pop %v5125
          %v5127 = vmul.f32 %v5117, 1.442695
          %v5128 = vpow.pop %v5127
          %v5129 = vmul.f32 %v5118, 1.442695
          %v5130 = vpow.pop %v5129
          %v5131 = vmul.f32 %v5119, 1.442695
          %v5132 = vpow.pop %v5131
          %v5133 = vmul.f32 %v5120, 1.442695
          %v5134 = vpow.pop %v5133
          %v5135 = vmul.f32 %v5121, 1.442695
          %v5136 = vpow.pop %v5135
          %v5137 = vmul.f32 %v5122, 1.442695
          %v5138 = vpow.pop %v5137
          %v5139 = vsub.f32 %v5124, 1.0
          %v5140 = vsub.f32 %v5126, 1.0
          %v5141 = vsub.f32 %v5128, 1.0
          %v5142 = vsub.f32 %v5130, 1.0
          %v5143 = vsub.f32 %v5132, 1.0
          %v5144 = vsub.f32 %v5134, 1.0
          %v5145 = vsub.f32 %v5136, 1.0
          %v5146 = vsub.f32 %v5138, 1.0
          %v5147 = vsel %vm5107, %v4987, %v5139
          %v5148 = vsel %vm5108, %v4988, %v5140
          %v5149 = vsel %vm5109, %v4989, %v5141
          %v5150 = vsel %vm5110, %v4990, %v5142
          %v5151 = vsel %vm5111, %v4991, %v5143
          %v5152 = vsel %vm5112, %v4992, %v5144
          %v5153 = vsel %vm5113, %v4993, %v5145
          %v5154 = vsel %vm5114, %v4994, %v5146
          %v5155 = vadd.f32 %v5099, %v5147
          %v5156 = vadd.f32 %v5100, %v5148
          %v5157 = vadd.f32 %v5101, %v5149
          %v5158 = vadd.f32 %v5102, %v5150
          %v5159 = vadd.f32 %v5103, %v5151
          %v5160 = vadd.f32 %v5104, %v5152
          %v5161 = vadd.f32 %v5105, %v5153
          %v5162 = vadd.f32 %v5106, %v5154
          %vm5163 = vcmp.gt.f32.partialorder %v5051, 0.0
          %vm5164 = vcmp.gt.f32.partialorder %v5052, 0.0
          %vm5165 = vcmp.gt.f32.partialorder %v5053, 0.0
          %vm5166 = vcmp.gt.f32.partialorder %v5054, 0.0
          %vm5167 = vcmp.gt.f32.partialorder %v5055, 0.0
          %vm5168 = vcmp.gt.f32.partialorder %v5056, 0.0
          %vm5169 = vcmp.gt.f32.partialorder %v5057, 0.0
          %vm5170 = vcmp.gt.f32.partialorder %v5058, 0.0
          %v5171 = vmin.f32 %v5051, 0.0
          %v5172 = vmin.f32 %v5052, 0.0
          %v5173 = vmin.f32 %v5053, 0.0
          %v5174 = vmin.f32 %v5054, 0.0
          %v5175 = vmin.f32 %v5055, 0.0
          %v5176 = vmin.f32 %v5056, 0.0
          %v5177 = vmin.f32 %v5057, 0.0
          %v5178 = vmin.f32 %v5058, 0.0
          %v5179 = vmul.f32 %v5171, 1.442695
          %v5180 = vpow.pop %v5179
          %v5181 = vmul.f32 %v5172, 1.442695
          %v5182 = vpow.pop %v5181
          %v5183 = vmul.f32 %v5173, 1.442695
          %v5184 = vpow.pop %v5183
          %v5185 = vmul.f32 %v5174, 1.442695
          %v5186 = vpow.pop %v5185
          %v5187 = vmul.f32 %v5175, 1.442695
          %v5188 = vpow.pop %v5187
          %v5189 = vmul.f32 %v5176, 1.442695
          %v5190 = vpow.pop %v5189
          %v5191 = vmul.f32 %v5177, 1.442695
          %v5192 = vpow.pop %v5191
          %v5193 = vmul.f32 %v5178, 1.442695
          %v5194 = vpow.pop %v5193
          %v5195 = vsub.f32 %v5180, 1.0
          %v5196 = vsub.f32 %v5182, 1.0
          %v5197 = vsub.f32 %v5184, 1.0
          %v5198 = vsub.f32 %v5186, 1.0
          %v5199 = vsub.f32 %v5188, 1.0
          %v5200 = vsub.f32 %v5190, 1.0
          %v5201 = vsub.f32 %v5192, 1.0
          %v5202 = vsub.f32 %v5194, 1.0
          %v5203 = vsel %vm5163, %v5051, %v5195
          %v5204 = vsel %vm5164, %v5052, %v5196
          %v5205 = vsel %vm5165, %v5053, %v5197
          %v5206 = vsel %vm5166, %v5054, %v5198
          %v5207 = vsel %vm5167, %v5055, %v5199
          %v5208 = vsel %vm5168, %v5056, %v5200
          %v5209 = vsel %vm5169, %v5057, %v5201
          %v5210 = vsel %vm5170, %v5058, %v5202
          %v5211 = vadd.f32 %v5155, %v5203
          %v5212 = vadd.f32 %v5156, %v5204
          %v5213 = vadd.f32 %v5157, %v5205
          %v5214 = vadd.f32 %v5158, %v5206
          %v5215 = vadd.f32 %v5159, %v5207
          %v5216 = vadd.f32 %v5160, %v5208
          %v5217 = vadd.f32 %v5161, %v5209
          %v5218 = vadd.f32 %v5162, %v5210
          %v5219 = vld [vmem:[%s2633] sm:$0xff]
          %v5220 = vld [vmem:[%s2633 + $0x8] sm:$0xff]
          %v5221 = vld [vmem:[%s2633 + $0x10] sm:$0xff]
          %v5222 = vld [vmem:[%s2633 + $0x18] sm:$0xff]
          %v5223 = vld [vmem:[%s2633 + $0x20] sm:$0xff]
          %v5224 = vld [vmem:[%s2633 + $0x28] sm:$0xff]
          %v5225 = vld [vmem:[%s2633 + $0x30] sm:$0xff]
          %v5226 = vld [vmem:[%s2633 + $0x38] sm:$0xff]
          %v5227 = vld [vmem:[%s2878] sm:$0xff]
          %v5228 = vld [vmem:[%s2878 + $0x8] sm:$0xff]
          %v5229 = vld [vmem:[%s2878 + $0x10] sm:$0xff]
          %v5230 = vld [vmem:[%s2878 + $0x18] sm:$0xff]
          %v5231 = vld [vmem:[%s2878 + $0x20] sm:$0xff]
          %v5232 = vld [vmem:[%s2878 + $0x28] sm:$0xff]
          %v5233 = vld [vmem:[%s2878 + $0x30] sm:$0xff]
          %v5234 = vld [vmem:[%s2878 + $0x38] sm:$0xff]
          %v5235 = vld [vmem:[%s3253] sm:$0xff]
          %v5236 = vld [vmem:[%s3253 + $0x8] sm:$0xff]
          %v5237 = vld [vmem:[%s3253 + $0x10] sm:$0xff]
          %v5238 = vld [vmem:[%s3253 + $0x18] sm:$0xff]
          %v5239 = vld [vmem:[%s3253 + $0x20] sm:$0xff]
          %v5240 = vld [vmem:[%s3253 + $0x28] sm:$0xff]
          %v5241 = vld [vmem:[%s3253 + $0x30] sm:$0xff]
          %v5242 = vld [vmem:[%s3253 + $0x38] sm:$0xff]
          %5243 = vrot.lane.b32.xlu0 %v5211, 3
          %v5244 = vpop.permute.xlu0 %5243
          %5245 = vrot.lane.b32.xlu0 %v5212, 3
          %v5246 = vpop.permute.xlu0 %5245
          %5247 = vrot.lane.b32.xlu0 %v5213, 3
          %v5248 = vpop.permute.xlu0 %5247
          %5249 = vrot.lane.b32.xlu0 %v5214, 3
          %v5250 = vpop.permute.xlu0 %5249
          %5251 = vrot.lane.b32.xlu0 %v5215, 3
          %v5252 = vpop.permute.xlu0 %5251
          %5253 = vrot.lane.b32.xlu0 %v5216, 3
          %v5254 = vpop.permute.xlu0 %5253
          %5255 = vrot.lane.b32.xlu0 %v5217, 3
          %v5256 = vpop.permute.xlu0 %5255
          %5257 = vrot.lane.b32.xlu0 %v5218, 3
          %v5258 = vpop.permute.xlu0 %5257
          %v5259 = vld [vmem:[%s3318] sm:$0xff]
          %v5260 = vld [vmem:[%s3318 + $0x8] sm:$0xff]
          %v5261 = vld [vmem:[%s3318 + $0x10] sm:$0xff]
          %v5262 = vld [vmem:[%s3318 + $0x18] sm:$0xff]
          %v5263 = vld [vmem:[%s3318 + $0x20] sm:$0xff]
          %v5264 = vld [vmem:[%s3318 + $0x28] sm:$0xff]
          %v5265 = vld [vmem:[%s3318 + $0x30] sm:$0xff]
          %v5266 = vld [vmem:[%s3318 + $0x38] sm:$0xff]
          %v5267 = vmul.f32 %v5259, %v5244
          %v5268 = vmul.f32 %v5260, %v5246
          %v5269 = vmul.f32 %v5261, %v5248
          %v5270 = vmul.f32 %v5262, %v5250
          %v5271 = vmul.f32 %v5263, %v5252
          %v5272 = vmul.f32 %v5264, %v5254
          %v5273 = vmul.f32 %v5265, %v5256
          %v5274 = vmul.f32 %v5266, %v5258
          %v5275 = vadd.f32 %v5235, %v5267
          %v5276 = vadd.f32 %v5236, %v5268
          %v5277 = vadd.f32 %v5237, %v5269
          %v5278 = vadd.f32 %v5238, %v5270
          %v5279 = vadd.f32 %v5239, %v5271
          %v5280 = vadd.f32 %v5240, %v5272
          %v5281 = vadd.f32 %v5241, %v5273
          %v5282 = vadd.f32 %v5242, %v5274
          %5283 = vrot.lane.b32.xlu0 %v5211, 2
          %v5284 = vpop.permute.xlu0 %5283
          %5285 = vrot.lane.b32.xlu0 %v5212, 2
          %v5286 = vpop.permute.xlu0 %5285
          %5287 = vrot.lane.b32.xlu0 %v5213, 2
          %v5288 = vpop.permute.xlu0 %5287
          %5289 = vrot.lane.b32.xlu0 %v5214, 2
          %v5290 = vpop.permute.xlu0 %5289
          %5291 = vrot.lane.b32.xlu0 %v5215, 2
          %v5292 = vpop.permute.xlu0 %5291
          %5293 = vrot.lane.b32.xlu0 %v5216, 2
          %v5294 = vpop.permute.xlu0 %5293
          %5295 = vrot.lane.b32.xlu0 %v5217, 2
          %v5296 = vpop.permute.xlu0 %5295
          %5297 = vrot.lane.b32.xlu0 %v5218, 2
          %v5298 = vpop.permute.xlu0 %5297
          %v5299 = vld [vmem:[%s2943] sm:$0xff]
          %v5300 = vld [vmem:[%s2943 + $0x8] sm:$0xff]
          %v5301 = vld [vmem:[%s2943 + $0x10] sm:$0xff]
          %v5302 = vld [vmem:[%s2943 + $0x18] sm:$0xff]
          %v5303 = vld [vmem:[%s2943 + $0x20] sm:$0xff]
          %v5304 = vld [vmem:[%s2943 + $0x28] sm:$0xff]
          %v5305 = vld [vmem:[%s2943 + $0x30] sm:$0xff]
          %v5306 = vld [vmem:[%s2943 + $0x38] sm:$0xff]
          %v5307 = vmul.f32 %v5299, %v5284
          %v5308 = vmul.f32 %v5300, %v5286
          %v5309 = vmul.f32 %v5301, %v5288
          %v5310 = vmul.f32 %v5302, %v5290
          %v5311 = vmul.f32 %v5303, %v5292
          %v5312 = vmul.f32 %v5304, %v5294
          %v5313 = vmul.f32 %v5305, %v5296
          %v5314 = vmul.f32 %v5306, %v5298
          %v5315 = vadd.f32 %v5227, %v5307
          %v5316 = vadd.f32 %v5228, %v5308
          %v5317 = vadd.f32 %v5229, %v5309
          %v5318 = vadd.f32 %v5230, %v5310
          %v5319 = vadd.f32 %v5231, %v5311
          %v5320 = vadd.f32 %v5232, %v5312
          %v5321 = vadd.f32 %v5233, %v5313
          %v5322 = vadd.f32 %v5234, %v5314
          %v5323 = vld [vmem:[%s3383] sm:$0xff]
          %v5324 = vld [vmem:[%s3383 + $0x8] sm:$0xff]
          %v5325 = vld [vmem:[%s3383 + $0x10] sm:$0xff]
          %v5326 = vld [vmem:[%s3383 + $0x18] sm:$0xff]
          %v5327 = vld [vmem:[%s3383 + $0x20] sm:$0xff]
          %v5328 = vld [vmem:[%s3383 + $0x28] sm:$0xff]
          %v5329 = vld [vmem:[%s3383 + $0x30] sm:$0xff]
          %v5330 = vld [vmem:[%s3383 + $0x38] sm:$0xff]
          %v5331 = vmul.f32 %v5323, %v5284
          %v5332 = vmul.f32 %v5324, %v5286
          %v5333 = vmul.f32 %v5325, %v5288
          %v5334 = vmul.f32 %v5326, %v5290
          %v5335 = vmul.f32 %v5327, %v5292
          %v5336 = vmul.f32 %v5328, %v5294
          %v5337 = vmul.f32 %v5329, %v5296
          %v5338 = vmul.f32 %v5330, %v5298
          %v5339 = vadd.f32 %v5275, %v5331
          %v5340 = vadd.f32 %v5276, %v5332
          %v5341 = vadd.f32 %v5277, %v5333
          %v5342 = vadd.f32 %v5278, %v5334
          %v5343 = vadd.f32 %v5279, %v5335
          %v5344 = vadd.f32 %v5280, %v5336
          %v5345 = vadd.f32 %v5281, %v5337
          %v5346 = vadd.f32 %v5282, %v5338
          %5347 = vrot.lane.b32.xlu0 %v5211, 1
          %v5348 = vpop.permute.xlu0 %5347
          %5349 = vrot.lane.b32.xlu0 %v5212, 1
          %v5350 = vpop.permute.xlu0 %5349
          %5351 = vrot.lane.b32.xlu0 %v5213, 1
          %v5352 = vpop.permute.xlu0 %5351
          %5353 = vrot.lane.b32.xlu0 %v5214, 1
          %v5354 = vpop.permute.xlu0 %5353
          %5355 = vrot.lane.b32.xlu0 %v5215, 1
          %v5356 = vpop.permute.xlu0 %5355
          %5357 = vrot.lane.b32.xlu0 %v5216, 1
          %v5358 = vpop.permute.xlu0 %5357
          %5359 = vrot.lane.b32.xlu0 %v5217, 1
          %v5360 = vpop.permute.xlu0 %5359
          %5361 = vrot.lane.b32.xlu0 %v5218, 1
          %v5362 = vpop.permute.xlu0 %5361
          %v5363 = vld [vmem:[%s2698] sm:$0xff]
          %v5364 = vld [vmem:[%s2698 + $0x8] sm:$0xff]
          %v5365 = vld [vmem:[%s2698 + $0x10] sm:$0xff]
          %v5366 = vld [vmem:[%s2698 + $0x18] sm:$0xff]
          %v5367 = vld [vmem:[%s2698 + $0x20] sm:$0xff]
          %v5368 = vld [vmem:[%s2698 + $0x28] sm:$0xff]
          %v5369 = vld [vmem:[%s2698 + $0x30] sm:$0xff]
          %v5370 = vld [vmem:[%s2698 + $0x38] sm:$0xff]
          %v5371 = vmul.f32 %v5363, %v5348
          %v5372 = vmul.f32 %v5364, %v5350
          %v5373 = vmul.f32 %v5365, %v5352
          %v5374 = vmul.f32 %v5366, %v5354
          %v5375 = vmul.f32 %v5367, %v5356
          %v5376 = vmul.f32 %v5368, %v5358
          %v5377 = vmul.f32 %v5369, %v5360
          %v5378 = vmul.f32 %v5370, %v5362
          %v5379 = vadd.f32 %v5219, %v5371
          %v5380 = vadd.f32 %v5220, %v5372
          %v5381 = vadd.f32 %v5221, %v5373
          %v5382 = vadd.f32 %v5222, %v5374
          %v5383 = vadd.f32 %v5223, %v5375
          %v5384 = vadd.f32 %v5224, %v5376
          %v5385 = vadd.f32 %v5225, %v5377
          %v5386 = vadd.f32 %v5226, %v5378
          %v5387 = vld [vmem:[%s3008] sm:$0xff]
          %v5388 = vld [vmem:[%s3008 + $0x8] sm:$0xff]
          %v5389 = vld [vmem:[%s3008 + $0x10] sm:$0xff]
          %v5390 = vld [vmem:[%s3008 + $0x18] sm:$0xff]
          %v5391 = vld [vmem:[%s3008 + $0x20] sm:$0xff]
          %v5392 = vld [vmem:[%s3008 + $0x28] sm:$0xff]
          %v5393 = vld [vmem:[%s3008 + $0x30] sm:$0xff]
          %v5394 = vld [vmem:[%s3008 + $0x38] sm:$0xff]
          %v5395 = vmul.f32 %v5387, %v5348
          %v5396 = vmul.f32 %v5388, %v5350
          %v5397 = vmul.f32 %v5389, %v5352
          %v5398 = vmul.f32 %v5390, %v5354
          %v5399 = vmul.f32 %v5391, %v5356
          %v5400 = vmul.f32 %v5392, %v5358
          %v5401 = vmul.f32 %v5393, %v5360
          %v5402 = vmul.f32 %v5394, %v5362
          %v5403 = vadd.f32 %v5315, %v5395
          %v5404 = vadd.f32 %v5316, %v5396
          %v5405 = vadd.f32 %v5317, %v5397
          %v5406 = vadd.f32 %v5318, %v5398
          %v5407 = vadd.f32 %v5319, %v5399
          %v5408 = vadd.f32 %v5320, %v5400
          %v5409 = vadd.f32 %v5321, %v5401
          %v5410 = vadd.f32 %v5322, %v5402
          %v5411 = vld [vmem:[%s3448] sm:$0xff]
          %v5412 = vld [vmem:[%s3448 + $0x8] sm:$0xff]
          %v5413 = vld [vmem:[%s3448 + $0x10] sm:$0xff]
          %v5414 = vld [vmem:[%s3448 + $0x18] sm:$0xff]
          %v5415 = vld [vmem:[%s3448 + $0x20] sm:$0xff]
          %v5416 = vld [vmem:[%s3448 + $0x28] sm:$0xff]
          %v5417 = vld [vmem:[%s3448 + $0x30] sm:$0xff]
          %v5418 = vld [vmem:[%s3448 + $0x38] sm:$0xff]
          %v5419 = vmul.f32 %v5411, %v5348
          %v5420 = vmul.f32 %v5412, %v5350
          %v5421 = vmul.f32 %v5413, %v5352
          %v5422 = vmul.f32 %v5414, %v5354
          %v5423 = vmul.f32 %v5415, %v5356
          %v5424 = vmul.f32 %v5416, %v5358
          %v5425 = vmul.f32 %v5417, %v5360
          %v5426 = vmul.f32 %v5418, %v5362
          %v5427 = vadd.f32 %v5339, %v5419
          %v5428 = vadd.f32 %v5340, %v5420
          %v5429 = vadd.f32 %v5341, %v5421
          %v5430 = vadd.f32 %v5342, %v5422
          %v5431 = vadd.f32 %v5343, %v5423
          %v5432 = vadd.f32 %v5344, %v5424
          %v5433 = vadd.f32 %v5345, %v5425
          %v5434 = vadd.f32 %v5346, %v5426
          %v5435 = vld [vmem:[%s2755] sm:$0xff]
          %v5436 = vld [vmem:[%s2755 + $0x8] sm:$0xff]
          %v5437 = vld [vmem:[%s2755 + $0x10] sm:$0xff]
          %v5438 = vld [vmem:[%s2755 + $0x18] sm:$0xff]
          %v5439 = vld [vmem:[%s2755 + $0x20] sm:$0xff]
          %v5440 = vld [vmem:[%s2755 + $0x28] sm:$0xff]
          %v5441 = vld [vmem:[%s2755 + $0x30] sm:$0xff]
          %v5442 = vld [vmem:[%s2755 + $0x38] sm:$0xff]
          %v5443 = vmul.f32 %v5435, %v5211
          %v5444 = vmul.f32 %v5436, %v5212
          %v5445 = vmul.f32 %v5437, %v5213
          %v5446 = vmul.f32 %v5438, %v5214
          %v5447 = vmul.f32 %v5439, %v5215
          %v5448 = vmul.f32 %v5440, %v5216
          %v5449 = vmul.f32 %v5441, %v5217
          %v5450 = vmul.f32 %v5442, %v5218
          %v5451 = vadd.f32 %v5379, %v5443
          %v5452 = vadd.f32 %v5380, %v5444
          %v5453 = vadd.f32 %v5381, %v5445
          %v5454 = vadd.f32 %v5382, %v5446
          %v5455 = vadd.f32 %v5383, %v5447
          %v5456 = vadd.f32 %v5384, %v5448
          %v5457 = vadd.f32 %v5385, %v5449
          %v5458 = vadd.f32 %v5386, %v5450
          %v5459 = vld [vmem:[%s3065] sm:$0xff]
          %v5460 = vld [vmem:[%s3065 + $0x8] sm:$0xff]
          %v5461 = vld [vmem:[%s3065 + $0x10] sm:$0xff]
          %v5462 = vld [vmem:[%s3065 + $0x18] sm:$0xff]
          %v5463 = vld [vmem:[%s3065 + $0x20] sm:$0xff]
          %v5464 = vld [vmem:[%s3065 + $0x28] sm:$0xff]
          %v5465 = vld [vmem:[%s3065 + $0x30] sm:$0xff]
          %v5466 = vld [vmem:[%s3065 + $0x38] sm:$0xff]
          %v5467 = vmul.f32 %v5459, %v5211
          %v5468 = vmul.f32 %v5460, %v5212
          %v5469 = vmul.f32 %v5461, %v5213
          %v5470 = vmul.f32 %v5462, %v5214
          %v5471 = vmul.f32 %v5463, %v5215
          %v5472 = vmul.f32 %v5464, %v5216
          %v5473 = vmul.f32 %v5465, %v5217
          %v5474 = vmul.f32 %v5466, %v5218
          %v5475 = vadd.f32 %v5403, %v5467
          %v5476 = vadd.f32 %v5404, %v5468
          %v5477 = vadd.f32 %v5405, %v5469
          %v5478 = vadd.f32 %v5406, %v5470
          %v5479 = vadd.f32 %v5407, %v5471
          %v5480 = vadd.f32 %v5408, %v5472
          %v5481 = vadd.f32 %v5409, %v5473
          %v5482 = vadd.f32 %v5410, %v5474
          %v5483 = vld [vmem:[%s3505] sm:$0xff]
          %v5484 = vld [vmem:[%s3505 + $0x8] sm:$0xff]
          %v5485 = vld [vmem:[%s3505 + $0x10] sm:$0xff]
          %v5486 = vld [vmem:[%s3505 + $0x18] sm:$0xff]
          %v5487 = vld [vmem:[%s3505 + $0x20] sm:$0xff]
          %v5488 = vld [vmem:[%s3505 + $0x28] sm:$0xff]
          %v5489 = vld [vmem:[%s3505 + $0x30] sm:$0xff]
          %v5490 = vld [vmem:[%s3505 + $0x38] sm:$0xff]
          %v5491 = vmul.f32 %v5483, %v5211
          %v5492 = vmul.f32 %v5484, %v5212
          %v5493 = vmul.f32 %v5485, %v5213
          %v5494 = vmul.f32 %v5486, %v5214
          %v5495 = vmul.f32 %v5487, %v5215
          %v5496 = vmul.f32 %v5488, %v5216
          %v5497 = vmul.f32 %v5489, %v5217
          %v5498 = vmul.f32 %v5490, %v5218
          %v5499 = vadd.f32 %v5427, %v5491
          %v5500 = vadd.f32 %v5428, %v5492
          %v5501 = vadd.f32 %v5429, %v5493
          %v5502 = vadd.f32 %v5430, %v5494
          %v5503 = vadd.f32 %v5431, %v5495
          %v5504 = vadd.f32 %v5432, %v5496
          %v5505 = vadd.f32 %v5433, %v5497
          %v5506 = vadd.f32 %v5434, %v5498
          %5507 = vrot.lane.b32.xlu0 %v5211, 127
          %v5508 = vpop.permute.xlu0 %5507
          %5509 = vrot.lane.b32.xlu0 %v5212, 127
          %v5510 = vpop.permute.xlu0 %5509
          %5511 = vrot.lane.b32.xlu0 %v5213, 127
          %v5512 = vpop.permute.xlu0 %5511
          %5513 = vrot.lane.b32.xlu0 %v5214, 127
          %v5514 = vpop.permute.xlu0 %5513
          %5515 = vrot.lane.b32.xlu0 %v5215, 127
          %v5516 = vpop.permute.xlu0 %5515
          %5517 = vrot.lane.b32.xlu0 %v5216, 127
          %v5518 = vpop.permute.xlu0 %5517
          %5519 = vrot.lane.b32.xlu0 %v5217, 127
          %v5520 = vpop.permute.xlu0 %5519
          %5521 = vrot.lane.b32.xlu0 %v5218, 127
          %v5522 = vpop.permute.xlu0 %5521
          %v5523 = vld [vmem:[%s2820] sm:$0xff]
          %v5524 = vld [vmem:[%s2820 + $0x8] sm:$0xff]
          %v5525 = vld [vmem:[%s2820 + $0x10] sm:$0xff]
          %v5526 = vld [vmem:[%s2820 + $0x18] sm:$0xff]
          %v5527 = vld [vmem:[%s2820 + $0x20] sm:$0xff]
          %v5528 = vld [vmem:[%s2820 + $0x28] sm:$0xff]
          %v5529 = vld [vmem:[%s2820 + $0x30] sm:$0xff]
          %v5530 = vld [vmem:[%s2820 + $0x38] sm:$0xff]
          %v5531 = vmul.f32 %v5523, %v5508
          %v5532 = vmul.f32 %v5524, %v5510
          %v5533 = vmul.f32 %v5525, %v5512
          %v5534 = vmul.f32 %v5526, %v5514
          %v5535 = vmul.f32 %v5527, %v5516
          %v5536 = vmul.f32 %v5528, %v5518
          %v5537 = vmul.f32 %v5529, %v5520
          %v5538 = vmul.f32 %v5530, %v5522
          %v5539 = vadd.f32 %v5451, %v5531
          %v5540 = vadd.f32 %v5452, %v5532
          %v5541 = vadd.f32 %v5453, %v5533
          %v5542 = vadd.f32 %v5454, %v5534
          %v5543 = vadd.f32 %v5455, %v5535
          %v5544 = vadd.f32 %v5456, %v5536
          %v5545 = vadd.f32 %v5457, %v5537
          %v5546 = vadd.f32 %v5458, %v5538
          %v5547 = vld [vmem:[%s3130] sm:$0xff]
          %v5548 = vld [vmem:[%s3130 + $0x8] sm:$0xff]
          %v5549 = vld [vmem:[%s3130 + $0x10] sm:$0xff]
          %v5550 = vld [vmem:[%s3130 + $0x18] sm:$0xff]
          %v5551 = vld [vmem:[%s3130 + $0x20] sm:$0xff]
          %v5552 = vld [vmem:[%s3130 + $0x28] sm:$0xff]
          %v5553 = vld [vmem:[%s3130 + $0x30] sm:$0xff]
          %v5554 = vld [vmem:[%s3130 + $0x38] sm:$0xff]
          %v5555 = vmul.f32 %v5547, %v5508
          %v5556 = vmul.f32 %v5548, %v5510
          %v5557 = vmul.f32 %v5549, %v5512
          %v5558 = vmul.f32 %v5550, %v5514
          %v5559 = vmul.f32 %v5551, %v5516
          %v5560 = vmul.f32 %v5552, %v5518
          %v5561 = vmul.f32 %v5553, %v5520
          %v5562 = vmul.f32 %v5554, %v5522
          %v5563 = vadd.f32 %v5475, %v5555
          %v5564 = vadd.f32 %v5476, %v5556
          %v5565 = vadd.f32 %v5477, %v5557
          %v5566 = vadd.f32 %v5478, %v5558
          %v5567 = vadd.f32 %v5479, %v5559
          %v5568 = vadd.f32 %v5480, %v5560
          %v5569 = vadd.f32 %v5481, %v5561
          %v5570 = vadd.f32 %v5482, %v5562
          %v5571 = vld [vmem:[%s3570] sm:$0xff]
          %v5572 = vld [vmem:[%s3570 + $0x8] sm:$0xff]
          %v5573 = vld [vmem:[%s3570 + $0x10] sm:$0xff]
          %v5574 = vld [vmem:[%s3570 + $0x18] sm:$0xff]
          %v5575 = vld [vmem:[%s3570 + $0x20] sm:$0xff]
          %v5576 = vld [vmem:[%s3570 + $0x28] sm:$0xff]
          %v5577 = vld [vmem:[%s3570 + $0x30] sm:$0xff]
          %v5578 = vld [vmem:[%s3570 + $0x38] sm:$0xff]
          %v5579 = vmul.f32 %v5571, %v5508
          %v5580 = vmul.f32 %v5572, %v5510
          %v5581 = vmul.f32 %v5573, %v5512
          %v5582 = vmul.f32 %v5574, %v5514
          %v5583 = vmul.f32 %v5575, %v5516
          %v5584 = vmul.f32 %v5576, %v5518
          %v5585 = vmul.f32 %v5577, %v5520
          %v5586 = vmul.f32 %v5578, %v5522
          %v5587 = vadd.f32 %v5499, %v5579
          %v5588 = vadd.f32 %v5500, %v5580
          %v5589 = vadd.f32 %v5501, %v5581
          %v5590 = vadd.f32 %v5502, %v5582
          %v5591 = vadd.f32 %v5503, %v5583
          %v5592 = vadd.f32 %v5504, %v5584
          %v5593 = vadd.f32 %v5505, %v5585
          %v5594 = vadd.f32 %v5506, %v5586
          %5595 = vrot.lane.b32.xlu0 %v5211, 126
          %v5596 = vpop.permute.xlu0 %5595
          %5597 = vrot.lane.b32.xlu0 %v5212, 126
          %v5598 = vpop.permute.xlu0 %5597
          %5599 = vrot.lane.b32.xlu0 %v5213, 126
          %v5600 = vpop.permute.xlu0 %5599
          %5601 = vrot.lane.b32.xlu0 %v5214, 126
          %v5602 = vpop.permute.xlu0 %5601
          %5603 = vrot.lane.b32.xlu0 %v5215, 126
          %v5604 = vpop.permute.xlu0 %5603
          %5605 = vrot.lane.b32.xlu0 %v5216, 126
          %v5606 = vpop.permute.xlu0 %5605
          %5607 = vrot.lane.b32.xlu0 %v5217, 126
          %v5608 = vpop.permute.xlu0 %5607
          %5609 = vrot.lane.b32.xlu0 %v5218, 126
          %v5610 = vpop.permute.xlu0 %5609
          %v5611 = vld [vmem:[%s3195] sm:$0xff]
          %v5612 = vld [vmem:[%s3195 + $0x8] sm:$0xff]
          %v5613 = vld [vmem:[%s3195 + $0x10] sm:$0xff]
          %v5614 = vld [vmem:[%s3195 + $0x18] sm:$0xff]
          %v5615 = vld [vmem:[%s3195 + $0x20] sm:$0xff]
          %v5616 = vld [vmem:[%s3195 + $0x28] sm:$0xff]
          %v5617 = vld [vmem:[%s3195 + $0x30] sm:$0xff]
          %v5618 = vld [vmem:[%s3195 + $0x38] sm:$0xff]
          %v5619 = vmul.f32 %v5611, %v5596
          %v5620 = vmul.f32 %v5612, %v5598
          %v5621 = vmul.f32 %v5613, %v5600
          %v5622 = vmul.f32 %v5614, %v5602
          %v5623 = vmul.f32 %v5615, %v5604
          %v5624 = vmul.f32 %v5616, %v5606
          %v5625 = vmul.f32 %v5617, %v5608
          %v5626 = vmul.f32 %v5618, %v5610
          %v5627 = vadd.f32 %v5563, %v5619
          %v5628 = vadd.f32 %v5564, %v5620
          %v5629 = vadd.f32 %v5565, %v5621
          %v5630 = vadd.f32 %v5566, %v5622
          %v5631 = vadd.f32 %v5567, %v5623
          %v5632 = vadd.f32 %v5568, %v5624
          %v5633 = vadd.f32 %v5569, %v5625
          %v5634 = vadd.f32 %v5570, %v5626
          %v5635 = vld [vmem:[%s3635] sm:$0xff]
          %v5636 = vld [vmem:[%s3635 + $0x8] sm:$0xff]
          %v5637 = vld [vmem:[%s3635 + $0x10] sm:$0xff]
          %v5638 = vld [vmem:[%s3635 + $0x18] sm:$0xff]
          %v5639 = vld [vmem:[%s3635 + $0x20] sm:$0xff]
          %v5640 = vld [vmem:[%s3635 + $0x28] sm:$0xff]
          %v5641 = vld [vmem:[%s3635 + $0x30] sm:$0xff]
          %v5642 = vld [vmem:[%s3635 + $0x38] sm:$0xff]
          %v5643 = vmul.f32 %v5635, %v5596
          %v5644 = vmul.f32 %v5636, %v5598
          %v5645 = vmul.f32 %v5637, %v5600
          %v5646 = vmul.f32 %v5638, %v5602
          %v5647 = vmul.f32 %v5639, %v5604
          %v5648 = vmul.f32 %v5640, %v5606
          %v5649 = vmul.f32 %v5641, %v5608
          %v5650 = vmul.f32 %v5642, %v5610
          %v5651 = vadd.f32 %v5587, %v5643
          %v5652 = vadd.f32 %v5588, %v5644
          %v5653 = vadd.f32 %v5589, %v5645
          %v5654 = vadd.f32 %v5590, %v5646
          %v5655 = vadd.f32 %v5591, %v5647
          %v5656 = vadd.f32 %v5592, %v5648
          %v5657 = vadd.f32 %v5593, %v5649
          %v5658 = vadd.f32 %v5594, %v5650
          %5659 = vrot.lane.b32.xlu0 %v5211, 125
          %v5660 = vpop.permute.xlu0 %5659
          %5661 = vrot.lane.b32.xlu0 %v5212, 125
          %v5662 = vpop.permute.xlu0 %5661
          %5663 = vrot.lane.b32.xlu0 %v5213, 125
          %v5664 = vpop.permute.xlu0 %5663
          %5665 = vrot.lane.b32.xlu0 %v5214, 125
          %v5666 = vpop.permute.xlu0 %5665
          %5667 = vrot.lane.b32.xlu0 %v5215, 125
          %v5668 = vpop.permute.xlu0 %5667
          %5669 = vrot.lane.b32.xlu0 %v5216, 125
          %v5670 = vpop.permute.xlu0 %5669
          %5671 = vrot.lane.b32.xlu0 %v5217, 125
          %v5672 = vpop.permute.xlu0 %5671
          %5673 = vrot.lane.b32.xlu0 %v5218, 125
          %v5674 = vpop.permute.xlu0 %5673
          %v5675 = vld [vmem:[%s3700] sm:$0xff]
          %v5676 = vld [vmem:[%s3700 + $0x8] sm:$0xff]
          %v5677 = vld [vmem:[%s3700 + $0x10] sm:$0xff]
          %v5678 = vld [vmem:[%s3700 + $0x18] sm:$0xff]
          %v5679 = vld [vmem:[%s3700 + $0x20] sm:$0xff]
          %v5680 = vld [vmem:[%s3700 + $0x28] sm:$0xff]
          %v5681 = vld [vmem:[%s3700 + $0x30] sm:$0xff]
          %v5682 = vld [vmem:[%s3700 + $0x38] sm:$0xff]
          %v5683 = vmul.f32 %v5675, %v5660
          %v5684 = vmul.f32 %v5676, %v5662
          %v5685 = vmul.f32 %v5677, %v5664
          %v5686 = vmul.f32 %v5678, %v5666
          %v5687 = vmul.f32 %v5679, %v5668
          %v5688 = vmul.f32 %v5680, %v5670
          %v5689 = vmul.f32 %v5681, %v5672
          %v5690 = vmul.f32 %v5682, %v5674
          %v5691 = vadd.f32 %v5651, %v5683
          %v5692 = vadd.f32 %v5652, %v5684
          %v5693 = vadd.f32 %v5653, %v5685
          %v5694 = vadd.f32 %v5654, %v5686
          %v5695 = vadd.f32 %v5655, %v5687
          %v5696 = vadd.f32 %v5656, %v5688
          %v5697 = vadd.f32 %v5657, %v5689
          %v5698 = vadd.f32 %v5658, %v5690
          %vm5699 = vcmp.gt.f32.partialorder %v5539, 0.0
          %vm5700 = vcmp.gt.f32.partialorder %v5540, 0.0
          %vm5701 = vcmp.gt.f32.partialorder %v5541, 0.0
          %vm5702 = vcmp.gt.f32.partialorder %v5542, 0.0
          %vm5703 = vcmp.gt.f32.partialorder %v5543, 0.0
          %vm5704 = vcmp.gt.f32.partialorder %v5544, 0.0
          %vm5705 = vcmp.gt.f32.partialorder %v5545, 0.0
          %vm5706 = vcmp.gt.f32.partialorder %v5546, 0.0
          %v5707 = vmin.f32 %v5539, 0.0
          %v5708 = vmin.f32 %v5540, 0.0
          %v5709 = vmin.f32 %v5541, 0.0
          %v5710 = vmin.f32 %v5542, 0.0
          %v5711 = vmin.f32 %v5543, 0.0
          %v5712 = vmin.f32 %v5544, 0.0
          %v5713 = vmin.f32 %v5545, 0.0
          %v5714 = vmin.f32 %v5546, 0.0
          %v5715 = vmul.f32 %v5707, 1.442695
          %v5716 = vpow.pop %v5715
          %v5717 = vmul.f32 %v5708, 1.442695
          %v5718 = vpow.pop %v5717
          %v5719 = vmul.f32 %v5709, 1.442695
          %v5720 = vpow.pop %v5719
          %v5721 = vmul.f32 %v5710, 1.442695
          %v5722 = vpow.pop %v5721
          %v5723 = vmul.f32 %v5711, 1.442695
          %v5724 = vpow.pop %v5723
          %v5725 = vmul.f32 %v5712, 1.442695
          %v5726 = vpow.pop %v5725
          %v5727 = vmul.f32 %v5713, 1.442695
          %v5728 = vpow.pop %v5727
          %v5729 = vmul.f32 %v5714, 1.442695
          %v5730 = vpow.pop %v5729
          %v5731 = vsub.f32 %v5716, 1.0
          %v5732 = vsub.f32 %v5718, 1.0
          %v5733 = vsub.f32 %v5720, 1.0
          %v5734 = vsub.f32 %v5722, 1.0
          %v5735 = vsub.f32 %v5724, 1.0
          %v5736 = vsub.f32 %v5726, 1.0
          %v5737 = vsub.f32 %v5728, 1.0
          %v5738 = vsub.f32 %v5730, 1.0
          %v5739 = vsel %vm5699, %v5539, %v5731
          %v5740 = vsel %vm5700, %v5540, %v5732
          %v5741 = vsel %vm5701, %v5541, %v5733
          %v5742 = vsel %vm5702, %v5542, %v5734
          %v5743 = vsel %vm5703, %v5543, %v5735
          %v5744 = vsel %vm5704, %v5544, %v5736
          %v5745 = vsel %vm5705, %v5545, %v5737
          %v5746 = vsel %vm5706, %v5546, %v5738
          %vm5747 = vcmp.gt.f32.partialorder %v5627, 0.0
          %vm5748 = vcmp.gt.f32.partialorder %v5628, 0.0
          %vm5749 = vcmp.gt.f32.partialorder %v5629, 0.0
          %vm5750 = vcmp.gt.f32.partialorder %v5630, 0.0
          %vm5751 = vcmp.gt.f32.partialorder %v5631, 0.0
          %vm5752 = vcmp.gt.f32.partialorder %v5632, 0.0
          %vm5753 = vcmp.gt.f32.partialorder %v5633, 0.0
          %vm5754 = vcmp.gt.f32.partialorder %v5634, 0.0
          %v5755 = vmin.f32 %v5627, 0.0
          %v5756 = vmin.f32 %v5628, 0.0
          %v5757 = vmin.f32 %v5629, 0.0
          %v5758 = vmin.f32 %v5630, 0.0
          %v5759 = vmin.f32 %v5631, 0.0
          %v5760 = vmin.f32 %v5632, 0.0
          %v5761 = vmin.f32 %v5633, 0.0
          %v5762 = vmin.f32 %v5634, 0.0
          %v5763 = vmul.f32 %v5755, 1.442695
          %v5764 = vpow.pop %v5763
          %v5765 = vmul.f32 %v5756, 1.442695
          %v5766 = vpow.pop %v5765
          %v5767 = vmul.f32 %v5757, 1.442695
          %v5768 = vpow.pop %v5767
          %v5769 = vmul.f32 %v5758, 1.442695
          %v5770 = vpow.pop %v5769
          %v5771 = vmul.f32 %v5759, 1.442695
          %v5772 = vpow.pop %v5771
          %v5773 = vmul.f32 %v5760, 1.442695
          %v5774 = vpow.pop %v5773
          %v5775 = vmul.f32 %v5761, 1.442695
          %v5776 = vpow.pop %v5775
          %v5777 = vmul.f32 %v5762, 1.442695
          %v5778 = vpow.pop %v5777
          %v5779 = vsub.f32 %v5764, 1.0
          %v5780 = vsub.f32 %v5766, 1.0
          %v5781 = vsub.f32 %v5768, 1.0
          %v5782 = vsub.f32 %v5770, 1.0
          %v5783 = vsub.f32 %v5772, 1.0
          %v5784 = vsub.f32 %v5774, 1.0
          %v5785 = vsub.f32 %v5776, 1.0
          %v5786 = vsub.f32 %v5778, 1.0
          %v5787 = vsel %vm5747, %v5627, %v5779
          %v5788 = vsel %vm5748, %v5628, %v5780
          %v5789 = vsel %vm5749, %v5629, %v5781
          %v5790 = vsel %vm5750, %v5630, %v5782
          %v5791 = vsel %vm5751, %v5631, %v5783
          %v5792 = vsel %vm5752, %v5632, %v5784
          %v5793 = vsel %vm5753, %v5633, %v5785
          %v5794 = vsel %vm5754, %v5634, %v5786
          %v5795 = vadd.f32 %v5739, %v5787
          %v5796 = vadd.f32 %v5740, %v5788
          %v5797 = vadd.f32 %v5741, %v5789
          %v5798 = vadd.f32 %v5742, %v5790
          %v5799 = vadd.f32 %v5743, %v5791
          %v5800 = vadd.f32 %v5744, %v5792
          %v5801 = vadd.f32 %v5745, %v5793
          %v5802 = vadd.f32 %v5746, %v5794
          %vm5803 = vcmp.gt.f32.partialorder %v5691, 0.0
          %vm5804 = vcmp.gt.f32.partialorder %v5692, 0.0
          %vm5805 = vcmp.gt.f32.partialorder %v5693, 0.0
          %vm5806 = vcmp.gt.f32.partialorder %v5694, 0.0
          %vm5807 = vcmp.gt.f32.partialorder %v5695, 0.0
          %vm5808 = vcmp.gt.f32.partialorder %v5696, 0.0
          %vm5809 = vcmp.gt.f32.partialorder %v5697, 0.0
          %vm5810 = vcmp.gt.f32.partialorder %v5698, 0.0
          %v5811 = vmin.f32 %v5691, 0.0
          %v5812 = vmin.f32 %v5692, 0.0
          %v5813 = vmin.f32 %v5693, 0.0
          %v5814 = vmin.f32 %v5694, 0.0
          %v5815 = vmin.f32 %v5695, 0.0
          %v5816 = vmin.f32 %v5696, 0.0
          %v5817 = vmin.f32 %v5697, 0.0
          %v5818 = vmin.f32 %v5698, 0.0
          %v5819 = vmul.f32 %v5811, 1.442695
          %v5820 = vpow.pop %v5819
          %v5821 = vmul.f32 %v5812, 1.442695
          %v5822 = vpow.pop %v5821
          %v5823 = vmul.f32 %v5813, 1.442695
          %v5824 = vpow.pop %v5823
          %v5825 = vmul.f32 %v5814, 1.442695
          %v5826 = vpow.pop %v5825
          %v5827 = vmul.f32 %v5815, 1.442695
          %v5828 = vpow.pop %v5827
          %v5829 = vmul.f32 %v5816, 1.442695
          %v5830 = vpow.pop %v5829
          %v5831 = vmul.f32 %v5817, 1.442695
          %v5832 = vpow.pop %v5831
          %v5833 = vmul.f32 %v5818, 1.442695
          %v5834 = vpow.pop %v5833
          %v5835 = vsub.f32 %v5820, 1.0
          %v5836 = vsub.f32 %v5822, 1.0
          %v5837 = vsub.f32 %v5824, 1.0
          %v5838 = vsub.f32 %v5826, 1.0
          %v5839 = vsub.f32 %v5828, 1.0
          %v5840 = vsub.f32 %v5830, 1.0
          %v5841 = vsub.f32 %v5832, 1.0
          %v5842 = vsub.f32 %v5834, 1.0
          %v5843 = vsel %vm5803, %v5691, %v5835
          %v5844 = vsel %vm5804, %v5692, %v5836
          %v5845 = vsel %vm5805, %v5693, %v5837
          %v5846 = vsel %vm5806, %v5694, %v5838
          %v5847 = vsel %vm5807, %v5695, %v5839
          %v5848 = vsel %vm5808, %v5696, %v5840
          %v5849 = vsel %vm5809, %v5697, %v5841
          %v5850 = vsel %vm5810, %v5698, %v5842
          %v5851 = vadd.f32 %v5795, %v5843
          %v5852 = vadd.f32 %v5796, %v5844
          %v5853 = vadd.f32 %v5797, %v5845
          %v5854 = vadd.f32 %v5798, %v5846
          %v5855 = vadd.f32 %v5799, %v5847
          %v5856 = vadd.f32 %v5800, %v5848
          %v5857 = vadd.f32 %v5801, %v5849
          %v5858 = vadd.f32 %v5802, %v5850
          %5859 = vadd.xlane.f32.xlu0 %v5851
          %v5860 = vpop.xlane.xlu0 %5859
          %5861 = vadd.xlane.f32.xlu0 %v5852
          %v5862 = vpop.xlane.xlu0 %5861
          %5863 = vadd.xlane.f32.xlu0 %v5853
          %v5864 = vpop.xlane.xlu0 %5863
          %5865 = vadd.xlane.f32.xlu0 %v5854
          %v5866 = vpop.xlane.xlu0 %5865
          %5867 = vadd.xlane.f32.xlu0 %v5855
          %v5868 = vpop.xlane.xlu0 %5867
          %5869 = vadd.xlane.f32.xlu0 %v5856
          %v5870 = vpop.xlane.xlu0 %5869
          %5871 = vadd.xlane.f32.xlu0 %v5857
          %v5872 = vpop.xlane.xlu0 %5871
          %5873 = vadd.xlane.f32.xlu0 %v5858
          %v5874 = vpop.xlane.xlu0 %5873
          %v5875 = vrcp.pop 128.0
          %v5876 = vmul.f32 %v5860, %v5875
          %v5877 = vmul.f32 %v5862, %v5875
          %v5878 = vmul.f32 %v5864, %v5875
          %v5879 = vmul.f32 %v5866, %v5875
          %v5880 = vmul.f32 %v5868, %v5875
          %v5881 = vmul.f32 %v5870, %v5875
          %v5882 = vmul.f32 %v5872, %v5875
          %v5883 = vmul.f32 %v5874, %v5875
          %v5884 = vld [vmem:[%s2] sm:$0xff]
          %v5885 = vld [vmem:[%s2 + $0x8] sm:$0xff]
          %v5886 = vld [vmem:[%s2 + $0x10] sm:$0xff]
          %v5887 = vld [vmem:[%s2 + $0x18] sm:$0xff]
          %v5888 = vld [vmem:[%s2 + $0x20] sm:$0xff]
          %v5889 = vld [vmem:[%s2 + $0x28] sm:$0xff]
          %v5890 = vld [vmem:[%s2 + $0x30] sm:$0xff]
          %v5891 = vld [vmem:[%s2 + $0x38] sm:$0xff]
          %v5892 = vmul.f32 %v5876, %v5884
          %v5893 = vmul.f32 %v5877, %v5885
          %v5894 = vmul.f32 %v5878, %v5886
          %v5895 = vmul.f32 %v5879, %v5887
          %v5896 = vmul.f32 %v5880, %v5888
          %v5897 = vmul.f32 %v5881, %v5889
          %v5898 = vmul.f32 %v5882, %v5890
          %v5899 = vmul.f32 %v5883, %v5891
          %v5900 = vadd.f32 %v5892, %v5893
          %v5901 = vadd.f32 %v5900, %v5894
          %v5902 = vadd.f32 %v5901, %v5895
          %v5903 = vadd.f32 %v5902, %v5896
          %v5904 = vadd.f32 %v5903, %v5897
          %v5905 = vadd.f32 %v5904, %v5898
          %v5906 = vadd.f32 %v5905, %v5899
          %v5907 = vrot.slane %v5906, 4
          %v5908 = vadd.f32 %v5906, %v5907
          %v5909 = vrot.slane %v5908, 2
          %v5910 = vadd.f32 %v5908, %v5909
          %v5911 = vrot.slane %v5910, 1
          %v5912 = vadd.f32 %v5910, %v5911
          %v5913 = vstv %s3712
          %vm5914 = vcmp.eq.s32.totalorder %v3710, %v5913
          %v5915 = vsel %vm5914, %v5912, 0.0
          %v5916 = vadd.f32 %v3717, %v5915
        $region49: #{gavel_forward.1} parent=39 // loop_footer
          %s3716 = sadd.s32 1, %s3712
        $region50: #{gavel_forward.1} parent=39 // loop_footer_branch
          %3711 = sbr.rel target = $region46
        $region51: #{gavel_forward.1} parent=39 // loop_exit
          _
        %v5917 = vld [vmem:[%s3] sm:$0xff]
        %v5918 = vld [vmem:[%s3 + $0x8] sm:$0xff]
        %v5919 = vld [vmem:[%s3 + $0x10] sm:$0xff]
        %v5920 = vld [vmem:[%s3 + $0x18] sm:$0xff]
        %v5921 = vld [vmem:[%s3 + $0x20] sm:$0xff]
        %v5922 = vld [vmem:[%s3 + $0x28] sm:$0xff]
        %v5923 = vld [vmem:[%s3 + $0x30] sm:$0xff]
        %v5924 = vld [vmem:[%s3 + $0x38] sm:$0xff]
        %v5925 = vld [vmem:[%s3 + $0x40] sm:$0xff]
        %v5926 = vld [vmem:[%s3 + $0x48] sm:$0xff]
        %v5927 = vld [vmem:[%s3 + $0x50] sm:$0xff]
        %v5928 = vld [vmem:[%s3 + $0x58] sm:$0xff]
        %v5929 = vld [vmem:[%s3 + $0x60] sm:$0xff]
        %v5930 = vld [vmem:[%s3 + $0x68] sm:$0xff]
        %v5931 = vld [vmem:[%s3 + $0x70] sm:$0xff]
        %v5932 = vld [vmem:[%s3 + $0x78] sm:$0xff]
        %v5933 = vld [vmem:[%s4] sm:$0x1]
        %v5935 = vlaneseq
        %v5936 = vshrl.u32 %v5935, 7
        %v5937 = vsub.s32 0, %v5936
        %v5938 = vrot.slane %v5933, %v5937
        %5940 = vmatprep.subr.mxu0 0.0
        %5941 = vmatpush1.msra.mxu0 %v5917
        %5942 = vmatprep.subr.mxu0 0.0
        %5943 = vmatpush1.msra.mxu0 %v5918
        %5944 = vmatprep.subr.mxu0 0.0
        %5945 = vmatpush1.msra.mxu0 %v5919
        %5946 = vmatprep.subr.mxu0 0.0
        %5947 = vmatpush1.msra.mxu0 %v5920
        %5948 = vmatprep.subr.mxu0 0.0
        %5949 = vmatpush1.msra.mxu0 %v5921
        %5950 = vmatprep.subr.mxu0 0.0
        %5951 = vmatpush1.msra.mxu0 %v5922
        %5952 = vmatprep.subr.mxu0 0.0
        %5953 = vmatpush1.msra.mxu0 %v5923
        %5954 = vmatprep.subr.mxu0 0.0
        %5955 = vmatpush1.msra.mxu0 %v5924
        %5956 = vmatprep.subr.mxu0 0.0
        %5957 = vmatpush1.msra.mxu0 %v5925
        %5958 = vmatprep.subr.mxu0 0.0
        %5959 = vmatpush1.msra.mxu0 %v5926
        %5960 = vmatprep.subr.mxu0 0.0
        %5961 = vmatpush1.msra.mxu0 %v5927
        %5962 = vmatprep.subr.mxu0 0.0
        %5963 = vmatpush1.msra.mxu0 %v5928
        %5964 = vmatprep.subr.mxu0 0.0
        %5965 = vmatpush1.msra.mxu0 %v5929
        %5966 = vmatprep.subr.mxu0 0.0
        %5967 = vmatpush1.msra.mxu0 %v5930
        %5968 = vmatprep.subr.mxu0 0.0
        %5969 = vmatpush1.msra.mxu0 %v5931
        %5970 = vmatprep.subr.mxu0 0.0
        %5971 = vmatpush1.msra.mxu0 %v5932
        %5972 = vmatprep.subr.mxu0 0.0
        %5973 = vmatpush1.msra.mxu0 0.0
        %5974 = vmatprep.subr.mxu0 0.0
        %5975 = vmatpush1.msra.mxu0 0.0
        %5976 = vmatprep.subr.mxu0 0.0
        %5977 = vmatpush1.msra.mxu0 0.0
        %5978 = vmatprep.subr.mxu0 0.0
        %5979 = vmatpush1.msra.mxu0 0.0
        %5980 = vmatprep.subr.mxu0 0.0
        %5981 = vmatpush1.msra.mxu0 0.0
        %5982 = vmatprep.subr.mxu0 0.0
        %5983 = vmatpush1.msra.mxu0 0.0
        %5984 = vmatprep.subr.mxu0 0.0
        %5985 = vmatpush1.msra.mxu0 0.0
        %5986 = vmatprep.subr.mxu0 0.0
        %5987 = vmatpush1.msra.mxu0 0.0
        %5988 = vmatprep.subr.mxu0 0.0
        %5989 = vmatpush1.msra.mxu0 0.0
        %5990 = vmatprep.subr.mxu0 0.0
        %5991 = vmatpush1.msra.mxu0 0.0
        %5992 = vmatprep.subr.mxu0 0.0
        %5993 = vmatpush1.msra.mxu0 0.0
        %5994 = vmatprep.subr.mxu0 0.0
        %5995 = vmatpush1.msra.mxu0 0.0
        %5996 = vmatprep.subr.mxu0 0.0
        %5997 = vmatpush1.msra.mxu0 0.0
        %5998 = vmatprep.subr.mxu0 0.0
        %5999 = vmatpush1.msra.mxu0 0.0
        %6000 = vmatprep.subr.mxu0 0.0
        %6001 = vmatpush1.msra.mxu0 0.0
        %6002 = vmatprep.subr.mxu0 0.0
        %6003 = vmatpush1.msra.mxu0 0.0
        %6004 = vmatprep.mubr.f32.mxu0 0.0
        %6005 = vmatmul.mubr.f32.gmra.mrb[0].mxu0 %v3717
        %v6006 = vpop.f32.mrb[0].mxu0
        %v6007 = vadd.f32 %v5938, %v6006
        %v6008 = vpop.f32.mrb[0].mxu0
        %6009 = vdwg.mxu0
        %6010 = vst [vmem:[%s239] sm:$0xff] %v6007
        %p6011 = scmp.lt.s32.totalorder %s17, 1
        %s6012 = scalar_select %p6011, %s17, 1
        %s6013 = smul.addr %s6012, 8
        %s6014 = scalar_lea.vmem %s5, %s6013
        // Predicated region
        $region52: #{gavel_forward.1} parent=39 // pred_check
          %p6015 = pneg %p145
        $region53: #{gavel_forward.1} parent=39 // pred_check_branch
          %6017 = sbr.rel (%p6015) target = $region55
        $region54: #{gavel_forward.1} parent=39 // pred_region
          _
        $region55: #{gavel_forward.1} parent=39 // pred_fallthru
          _
      $region40: #{gavel_forward.1} parent=5 // pred_fallthru
        _
      %p6018 = scmp.le.s32.totalorder 2, %s12
      // Predicated region
      $region56: #{gavel_forward.1} parent=5 // pred_check
        %p6019 = pneg %p6018
      $region57: #{gavel_forward.1} parent=5 // pred_check_branch
        %6021 = sbr.rel (%p6019) target = $region59
      $region58: #{gavel_forward.1} parent=5 // pred_region
        %s6022 = ssub.s32 %s12, 2
        // Predicated region
        $region60: #{gavel_forward.1} parent=58 // pred_check
          %p6023 = pneg %p151
        $region61: #{gavel_forward.1} parent=58 // pred_check_branch
          %6025 = sbr.rel (%p6023) target = $region63
        $region62: #{gavel_forward.1} parent=58 // pred_region
          %p6026 = scmp.lt.s32.totalorder %s18, 1
          %s6027 = scalar_select %p6026, %s18, 1
          %s6028 = smul.addr %s6027, 8
          %s6029 = scalar_lea.vmem %s5, %s6028
        $region63: #{gavel_forward.1} parent=58 // pred_fallthru
          _
      $region59: #{gavel_forward.1} parent=5 // pred_fallthru
        _
    $region6: #{gavel_forward.1} parent=1 // loop_footer
      %s16 = sadd.s32 1, %s12
    $region7: #{gavel_forward.1} parent=1 // loop_footer_branch
      %11 = sbr.rel target = $region3
    $region8: #{gavel_forward.1} parent=1 // loop_exit
      _
    %6030 = vsyncpa [#allocation4], 1
    %s6031 = scalar_lea.sflag [#allocation4], 1
    %6032 = vsyncpa %s6031, 1

</llo_original>
